<compile_context>
chip_gen: v6e
topology: v6e:2x2x1
jax: 0.10.0
libtpu: 0.0.40
codegen_flags: <defaults>
</compile_context>

<pallas_src>
import functools

import jax
import jax.numpy as jnp
from jax.experimental import pallas as pl
from jax.experimental.pallas import tpu as pltpu

F32 = jnp.float32
BF16 = jnp.bfloat16
_VMEM_LIMIT = 32 * 1024 * 1024


def _params(n_grid, parallel=True):
    sem = ("parallel" if parallel else "arbitrary",) * n_grid
    return pltpu.CompilerParams(dimension_semantics=sem,
                                vmem_limit_bytes=_VMEM_LIMIT)


def _fullspec(shape):
    n = len(shape)
    return pl.BlockSpec(tuple(shape), lambda *_: (0,) * n)


def _mxdot(a, b):
    """MXU matmul: bf16 operands (weights pre-cast outside), f32 accumulation."""
    return jnp.dot(a.astype(BF16), b.astype(BF16), preferred_element_type=F32)


def _dot_qkT(q, k):
    """q @ k.T without an explicit transpose (contract last dims)."""
    return jax.lax.dot_general(q.astype(BF16), k.astype(BF16),
                               (((1,), (1,)), ((), ())),
                               preferred_element_type=F32)


# ----------------------------------------------------------------------------
# In-kernel helpers
# ----------------------------------------------------------------------------

def _adaptive_pool_rows(y, l_in, l_out):
    """torch.nn.AdaptiveMaxPool1d window rule over the row axis.  y: [l_in, C]."""
    # TODO(synk): at production BERT shapes (l_in=512) specialize the divisible
    # case to avoid the [l_out, l_in, C] broadcast.
    i_idx = jax.lax.broadcasted_iota(jnp.int32, (l_out, l_in, 1), 0)
    j_idx = jax.lax.broadcasted_iota(jnp.int32, (l_out, l_in, 1), 1)
    mask = (i_idx * l_in < (j_idx + 1) * l_out) & (j_idx * l_out < (i_idx + 1) * l_in)
    yb = jnp.where(mask, y[None, :, :], -jnp.inf)      # [l_out, l_in, C]
    return jnp.max(yb, axis=1)                         # [l_out, C]


def _conv_pool_rows(h, wc, bc, pad_ref, l_in, l_out):
    """Conv1d(k=3, padding=1) over rows as ONE im2col matmul + adaptive max pool.

    The shifted taps h[i-1] / h[i+1] are produced by staging h into a
    zero-padded VMEM scratch (pad_ref, l_in+2 rows) and re-reading it at row
    offsets 0 / 2 -- no shift-matrix matmuls and no MXU padding waste.
    h: [l_in, C] f32,  wc: [3C, C] bf16 (taps stacked along rows),  bc: [1, C].
    """
    c = h.shape[-1]
    z = jnp.zeros((1, c), F32)
    pad_ref[0:1, :] = z
    pad_ref[l_in + 1:l_in + 2, :] = z
    pad_ref[pl.ds(1, l_in), :] = h
    left = pad_ref[pl.ds(0, l_in), :]                   # h[i-1]  (0 at i=0)
    right = pad_ref[pl.ds(2, l_in), :]                  # h[i+1]  (0 at i=l_in-1)
    cols = jnp.concatenate([left, h, right], axis=-1)   # [l_in, 3C]  (im2col)
    y = _mxdot(cols, wc) + bc                            # single K=3C MXU push
    return _adaptive_pool_rows(y, l_in, l_out)


# ----------------------------------------------------------------------------
# Fused branch kernels
# ----------------------------------------------------------------------------

def _text_kernel(enc_ref, wfc_ref, bfc_ref, wc_ref, bc_ref, o_ref, pad_ref,
                 *, seq_len, dis_len):
    # fc1 (768 -> D) + Conv1d(k=3,pad=1) + AdaptiveMaxPool1d(dis_len).
    e = enc_ref[0]                                           # [T, 768]
    h = _mxdot(e, wfc_ref[...]) + bfc_ref[...]               # [T, D]
    o_ref[0] = _conv_pool_rows(h, wc_ref[...], bc_ref[...], pad_ref, seq_len, dis_len)


def text_branch(enc_word, fc1_p, conv_p, dis_len):
    B, T, E = enc_word.shape
    D = fc1_p["w"].shape[1]
    # TODO(synk): at real BERT shapes (T=512, D>=128) tile T and re-budget for
    # v7x's 64 MiB VMEM; at these sizes one block per batch fits trivially.
    return pl.pallas_call(
        functools.partial(_text_kernel, seq_len=T, dis_len=dis_len),
        grid=(B,),
        in_specs=[
            pl.BlockSpec((1, T, E), lambda b: (b, 0, 0)),
            _fullspec((E, D)), _fullspec((1, D)),
            _fullspec((3 * D, D)), _fullspec((1, D)),
        ],
        out_specs=pl.BlockSpec((1, dis_len, D), lambda b: (b, 0, 0)),
        out_shape=jax.ShapeDtypeStruct((B, dis_len, D), F32),
        scratch_shapes=[pltpu.VMEM((T + 2, D), F32)],
        compiler_params=_params(1),
    )(enc_word,
      fc1_p["w"].astype(BF16), fc1_p["b"].reshape(1, D),
      conv_p["w"].reshape(3 * D, D).astype(BF16), conv_p["b"].reshape(1, D))


def _modality_kernel(x_ref, wi_ref, bi_ref, wl_ref, bl_ref, wc_ref, bc_ref,
                     o_ref, pad_ref, *, raw_len, pooled_len, n_layers, dis_len):
    # AdaptiveMaxPool1d(pooled_len) + TimeEncoder (proj + residual ReLU MLPs)
    # + Conv1d(k=3,pad=1) + AdaptiveMaxPool1d(dis_len), all fused.
    x = x_ref[0]                                             # [raw_len, d_in]
    xp = _adaptive_pool_rows(x, raw_len, pooled_len)         # [pooled_len, d_in]
    h = jnp.maximum(_mxdot(xp, wi_ref[...]) + bi_ref[...], 0.0)
    for l in range(n_layers):
        h = h + jnp.maximum(_mxdot(h, wl_ref[l]) + bl_ref[l], 0.0)
    o_ref[0] = _conv_pool_rows(h, wc_ref[...], bc_ref[...], pad_ref,
                               pooled_len, dis_len)


def modality_branch(x_raw, enc_p, conv_p, pooled_len, dis_len):
    B, L_raw, d_in = x_raw.shape
    D = enc_p["w_in"].shape[1]
    n_layers = enc_p["w_layers"].shape[0]
    return pl.pallas_call(
        functools.partial(_modality_kernel, raw_len=L_raw, pooled_len=pooled_len,
                          n_layers=n_layers, dis_len=dis_len),
        grid=(B,),
        in_specs=[
            pl.BlockSpec((1, L_raw, d_in), lambda b: (b, 0, 0)),
            _fullspec((d_in, D)), _fullspec((1, D)),
            _fullspec((n_layers, D, D)), _fullspec((n_layers, 1, D)),
            _fullspec((3 * D, D)), _fullspec((1, D)),
        ],
        out_specs=pl.BlockSpec((1, dis_len, D), lambda b: (b, 0, 0)),
        out_shape=jax.ShapeDtypeStruct((B, dis_len, D), F32),
        scratch_shapes=[pltpu.VMEM((pooled_len + 2, D), F32)],
        compiler_params=_params(1),
    )(x_raw, enc_p["w_in"].astype(BF16), enc_p["b_in"].reshape(1, D),
      enc_p["w_layers"].astype(BF16), enc_p["b_layers"].reshape(n_layers, 1, D),
      conv_p["w"].reshape(3 * D, D).astype(BF16), conv_p["b"].reshape(1, D))


# ----------------------------------------------------------------------------
# Tri_aug attention: both layers in one call, batch loop flattened
# ----------------------------------------------------------------------------

def _tri_att_kernel(t_ref, x_ref, bias_ref, wt_ref, bt_ref, wx_ref, bx_ref,
                    wot_ref, bot_ref, wox_ref, box_ref, tf_ref, xf_ref):
    # One Tri_aug_attlayer per grid step.  Projections run once on the whole
    # flattened [B*L, D] slab; per-sample attention is recovered with an
    # additive block-diagonal mask (bias_ref), so the scores/PV matmuls are
    # single MXU pushes with M = B*L.
    t = t_ref[...]                                           # [B*L, D]
    x = x_ref[0]                                             # [B*L, D]
    bias = bias_ref[...]                                     # [B*L, B*L]

    qt = _mxdot(t, wt_ref[0, 0]) + bt_ref[0, 0]              # 1/sqrt(D) folded in
    kt = _mxdot(t, wt_ref[0, 1]) + bt_ref[0, 1]
    vt = _mxdot(t, wt_ref[0, 2]) + bt_ref[0, 2]
    qx = _mxdot(x, wx_ref[0, 0]) + bx_ref[0, 0]
    kx = _mxdot(x, wx_ref[0, 1]) + bx_ref[0, 1]
    vx = _mxdot(x, wx_ref[0, 2]) + bx_ref[0, 2]

    def attend(q, k, v):
        s = _dot_qkT(q, k) + bias                            # mask cross-sample
        s = s - jnp.max(s, axis=-1, keepdims=True)
        p = jnp.exp(s)
        p = p * pl.reciprocal(jnp.sum(p, axis=-1, keepdims=True), approx=True)
        return _mxdot(p, v)

    tf = attend(qt, kx, vx)                                  # text attends modality
    xf = attend(qx, kt, vt)                                  # modality attends text
    tf_ref[0] = _mxdot(tf, wot_ref[0]) + bot_ref[0]
    xf_ref[0] = _mxdot(xf, wox_ref[0]) + box_ref[0]


def tri_aug_att_pair(p_tv, p_ta, lang_flat, vis_flat, aco_flat, dis_len):
    """Both Tri_aug_attlayer calls (ET_TV, ET_TA) in one pallas_call, grid=(2,)."""
    BL, D = lang_flat.shape
    scale = 1.0 / (float(D) ** 0.5)
    x_stack = jnp.stack([vis_flat, aco_flat], axis=0)        # [2, B*L, D]

    def side(p, qk, kk, vk):
        w = jnp.stack([p[qk]["w"] * scale, p[kk]["w"], p[vk]["w"]], axis=0)
        b = jnp.stack([p[qk]["b"] * scale, p[kk]["b"], p[vk]["b"]],
                      axis=0).reshape(3, 1, D)
        return w, b

    wts, bts, wxs, bxs, wots, bots, woxs, boxs = ([] for _ in range(8))
    for p in (p_tv, p_ta):
        wt, bt = side(p, "qt", "kt", "vt")
        wx, bx = side(p, "qx", "kx", "vx")
        wts.append(wt); bts.append(bt); wxs.append(wx); bxs.append(bx)
        wots.append(p["ot"]["w"]); bots.append(p["ot"]["b"].reshape(1, D))
        woxs.append(p["ox"]["w"]); boxs.append(p["ox"]["b"].reshape(1, D))
    wt = jnp.stack(wts).astype(BF16); bt = jnp.stack(bts)
    wx = jnp.stack(wxs).astype(BF16); bx = jnp.stack(bxs)
    wot = jnp.stack(wots).astype(BF16); bot = jnp.stack(bots)
    wox = jnp.stack(woxs).astype(BF16); box = jnp.stack(boxs)

    sid = jnp.arange(BL, dtype=jnp.int32) // dis_len
    bias = jnp.where(sid[:, None] == sid[None, :], 0.0, -1e30).astype(F32)

    tf, xf = pl.pallas_call(
        _tri_att_kernel,
        grid=(2,),
        in_specs=[
            _fullspec((BL, D)),
            pl.BlockSpec((1, BL, D), lambda i: (i, 0, 0)),
            _fullspec((BL, BL)),
            pl.BlockSpec((1, 3, D, D), lambda i: (i, 0, 0, 0)),
            pl.BlockSpec((1, 3, 1, D), lambda i: (i, 0, 0, 0)),
            pl.BlockSpec((1, 3, D, D), lambda i: (i, 0, 0, 0)),
            pl.BlockSpec((1, 3, 1, D), lambda i: (i, 0, 0, 0)),
            pl.BlockSpec((1, D, D), lambda i: (i, 0, 0)),
            pl.BlockSpec((1, 1, D), lambda i: (i, 0, 0)),
            pl.BlockSpec((1, D, D), lambda i: (i, 0, 0)),
            pl.BlockSpec((1, 1, D), lambda i: (i, 0, 0)),
        ],
        out_specs=[pl.BlockSpec((1, BL, D), lambda i: (i, 0, 0)),
                   pl.BlockSpec((1, BL, D), lambda i: (i, 0, 0))],
        out_shape=[jax.ShapeDtypeStruct((2, BL, D), F32),
                   jax.ShapeDtypeStruct((2, BL, D), F32)],
        compiler_params=_params(1),
    )(lang_flat, x_stack, bias, wt, bt, wx, bx, wot, bot, wox, box)
    # index 0 -> (lang, vis) == ET_TV ; index 1 -> (lang, aco) == ET_TA
    return tf[0], xf[0], tf[1], xf[1]            # TF_v, VF_t, TF_a, AF_t (flat)


# ----------------------------------------------------------------------------
# Fused tail: subnets + sentiment MLP + fusion + decoders in one kernel
# ----------------------------------------------------------------------------

def _tail_kernel(lang_ref, aco_ref, vis_ref, tfv_ref, vft_ref, tfa_ref, aft_ref,
                 avg_ref,
                 ws1, bs1, ws2, bs2, ws3, bs3,
                 wa1, ba1, wa2, ba2,
                 wt1, bt1, wt2, bt2,
                 wf1, bf1, wf2, bf2, wf3, bf3,
                 wd1, bd1, wd2, bd2,
                 preds_ref, feats_ref, *, batch):
    # TODO(synk): grid=(1,) keeps v7x's second TensorCore idle; the dependency
    # chain (act_t -> decoders) prevents a trivial parallel split at this size.
    lang = lang_ref[...]; aco = aco_ref[...]; vis = vis_ref[...]
    tfv = tfv_ref[...]; vft = vft_ref[...]; tfa = tfa_ref[...]; aft = aft_ref[...]
    avg = avg_ref[...]                            # [B, B*L] per-sample mean matrix

    def subnet3(x, w1, b1, w2, b2, w3, b3):
        h = jnp.tanh(_mxdot(x, w1[...]) + b1[...])
        h = jnp.tanh(_mxdot(h, w2[...]) + b2[...])
        return h, _mxdot(h, w3[...]) + b3[...]

    # fusion_prj_s on per-sample means of the three branch embeddings.
    s_feat = _mxdot(avg, jnp.concatenate([lang, aco, vis], axis=-1))   # [B, 3D]
    _, r_preds = subnet3(s_feat, ws1, bs1, ws2, bs2, ws3, bs3)

    # act_t on concat(TF_a, TF_v); its regression head is unused -> dropped.
    h = jnp.tanh(_mxdot(jnp.concatenate([tfa, tfv], axis=-1), wa1[...]) + ba1[...])
    t_emb = jnp.tanh(_mxdot(h, wa2[...]) + ba2[...])                   # [B*L, D]

    # per-sample means (mean over seq as one small matmul) + shared sentiment MLP
    def sent(x):
        return _mxdot(jnp.tanh(_mxdot(x, wt1[...]) + bt1[...]), wt2[...]) + bt2[...]

    t_d = _mxdot(avg, t_emb)
    a_d = _mxdot(avg, aft)
    v_d = _mxdot(avg, vft)
    t_e = sent(t_d); a_e = sent(a_d); v_e = sent(v_d)

    # inverse-distance fusion weights.
    eps = 1e-6

    def dist(u, w):
        return jnp.sqrt(jnp.sum((u - w) * (u - w), axis=-1, keepdims=True))

    c_ta = dist(t_e, a_e); c_tv = dist(t_e, v_e); c_av = dist(a_e, v_e)
    inv_t = 1.0 / (c_ta + c_tv + eps)
    inv_a = 1.0 / (c_ta + c_av + eps)
    inv_v = 1.0 / (c_tv + c_av + eps)
    tot = inv_t + inv_a + inv_v
    f_in = (inv_t * t_d + inv_a * a_d + inv_v * v_d) / tot

    f_feat, r_preds_f = subnet3(f_in, wf1, bf1, wf2, bf2, wf3, bf3)

    # F_S_Decoder x3 (MLP on concat(specific, shared)) fused with mean(dim=1).
    feats_ref[0:batch, :] = f_feat
    for k, (spec, shared) in enumerate(((t_emb, lang), (aft, aco), (vft, vis))):
        hd = jnp.tanh(_mxdot(jnp.concatenate([spec, shared], axis=-1), wd1[k]) + bd1[k])
        yd = _mxdot(hd, wd2[k]) + bd2[k]                               # [B*L, D]
        feats_ref[(k + 1) * batch:(k + 2) * batch, :] = _mxdot(avg, yd)

    preds_ref[0:batch, :] = r_preds
    preds_ref[batch:2 * batch, :] = r_preds_f


def tail_fused(params, lang_flat, aco_flat, vis_flat, TF_v, VF_t, TF_a, AF_t,
               batch, dis_len, hp):
    D = hp["d_prjh"]
    n_class = hp["n_class"]
    BL = batch * dis_len

    sid = jnp.arange(BL, dtype=jnp.int32) // dis_len
    avg = jnp.where(jnp.arange(batch, dtype=jnp.int32)[:, None] == sid[None, :],
                    1.0 / dis_len, 0.0).astype(F32)                    # [B, B*L]

    def w(x):
        return x.astype(BF16)

    def b(x, n):
        return x.reshape(1, n)

    ps = params["fusion_prj_s"]; pa = params["act_t"]; pf = params["fusion_prj_f"]
    st = params["sent_fc"]
    dec = [params["dec_t"], params["dec_a"], params["dec_v"]]
    wd1 = jnp.stack([d["l1"]["w"] for d in dec]).astype(BF16)          # [3, 2D, D]
    bd1 = jnp.stack([d["l1"]["b"].reshape(1, D) for d in dec])
    wd2 = jnp.stack([d["l2"]["w"] for d in dec]).astype(BF16)
    bd2 = jnp.stack([d["l2"]["b"].reshape(1, D) for d in dec])

    args = (lang_flat, aco_flat, vis_flat, TF_v, VF_t, TF_a, AF_t, avg,
            w(ps["l1"]["w"]), b(ps["l1"]["b"], D), w(ps["l2"]["w"]), b(ps["l2"]["b"], D),
            w(ps["l3"]["w"]), b(ps["l3"]["b"], n_class),
            w(pa["l1"]["w"]), b(pa["l1"]["b"], D), w(pa["l2"]["w"]), b(pa["l2"]["b"], D),
            w(st["l1"]["w"]), b(st["l1"]["b"], D), w(st["l2"]["w"]), b(st["l2"]["b"], D),
            w(pf["l1"]["w"]), b(pf["l1"]["b"], D), w(pf["l2"]["w"]), b(pf["l2"]["b"], D),
            w(pf["l3"]["w"]), b(pf["l3"]["b"], n_class),
            wd1, bd1, wd2, bd2)
    in_specs = [_fullspec(a.shape) for a in args]

    preds, feats = pl.pallas_call(
        functools.partial(_tail_kernel, batch=batch),
        grid=(1,),
        in_specs=in_specs,
        out_specs=[_fullspec((2 * batch, n_class)), _fullspec((4 * batch, D))],
        out_shape=[jax.ShapeDtypeStruct((2 * batch, n_class), F32),
                   jax.ShapeDtypeStruct((4 * batch, D), F32)],
        compiler_params=_params(1, parallel=False),
    )(*args)

    r_preds = preds[:batch]
    r_preds_F = preds[batch:]
    F_feat = feats[:batch]
    t_recon = feats[batch:2 * batch]
    a_recon = feats[2 * batch:3 * batch]
    v_recon = feats[3 * batch:]
    return r_preds, r_preds_F, F_feat, t_recon, a_recon, v_recon


# ----------------------------------------------------------------------------
# Tiny tail ops stay in plain jnp so XLA fuses them under jit
# ----------------------------------------------------------------------------

def kl_divergence(x, y):
    """TODO(synk): original kl_divergence helper not provided; standard softmax-KL
    with batch-mean reduction."""
    lpx = jax.nn.log_softmax(x, axis=-1)
    lpy = jax.nn.log_softmax(y, axis=-1)
    return jnp.mean(jnp.sum(jnp.exp(lpx) * (lpx - lpy), axis=-1))


# ----------------------------------------------------------------------------
# Parameter initialization (deterministic, synthetic)
# ----------------------------------------------------------------------------

def init_params(key, hp):
    d = hp["d_prjh"]
    keys = iter(jax.random.split(key, 64))

    def W(shape):
        return jax.random.normal(next(keys), shape, F32) * 0.05

    def lin(i, o):
        return {"w": W((i, o)), "b": jnp.zeros((o,), F32)}

    def subnet_p(i, h, n):
        return {"l1": lin(i, h), "l2": lin(h, h), "l3": lin(h, n)}

    def conv_p(c):
        # TODO(synk): PyTorch Conv1d stores weights as [out_ch, in_ch, k]; kept
        # here pre-transposed as [k, in_ch, out_ch] for the x @ w layout in-kernel.
        return {"w": W((3, c, c)), "b": jnp.zeros((c,), F32)}

    def tri_p(c):
        return {k: lin(c, c) for k in ("qt", "kx", "vx", "qx", "kt", "vt", "ot", "ox")}

    def dec_p(c):
        return {"l1": lin(2 * c, c), "l2": lin(c, c)}

    def tenc_p(in_f, c, n_layers):
        return {"w_in": W((in_f, c)), "b_in": jnp.zeros((c,), F32),
                "w_layers": W((n_layers, c, c)),
                "b_layers": jnp.zeros((n_layers, c), F32)}

    return {
        # TODO(synk): LanguageEmbeddingLayer is BERT in the original; replaced by
        # a deterministic token-embedding table of width 768.
        "emb": W((hp["vocab"], 768)),
        "fc1": lin(768, d),
        "act_t": subnet_p(2 * d, d, hp["n_class"]),
        "fusion_prj_s": subnet_p(3 * d, d, hp["n_class"]),
        "fusion_prj_f": subnet_p(d, d, hp["n_class"]),
        "t_shrink": conv_p(d),
        "a_shrink": conv_p(d),
        "v_shrink": conv_p(d),
        "ET_TA": tri_p(d),
        "ET_TV": tri_p(d),
        "dec_t": dec_p(d),
        "dec_a": dec_p(d),
        "dec_v": dec_p(d),
        "sent_fc": {"l1": lin(d, d), "l2": lin(d, d)},
        "a_enc": tenc_p(hp["d_a"], d, hp["tse_layers"]),
        "v_enc": tenc_p(hp["d_v"], d, hp["tse_layers"]),
    }


# ----------------------------------------------------------------------------
# MSA forward
# ----------------------------------------------------------------------------

def msa_forward(params, visual, acoustic, v_len, a_len, bert_sent, bert_sent_mask, hp):
    # TODO(synk): v_len / a_len are unused (the original TimeEncoder presumably
    # consumed sequence lengths; cannot use them without its definition).
    del v_len, a_len
    B = bert_sent.shape[0]
    D = hp["d_prjh"]
    L = hp["dislen"]

    # Text encoder (BERT stand-in) stays in jnp glue; fc1 + t_shrink fused in Pallas.
    enc_word = jnp.take(params["emb"], bert_sent, axis=0) * bert_sent_mask[..., None]
    lang_emb = text_branch(enc_word, params["fc1"], params["t_shrink"], L)

    # Audio / visual: pool + TimeEncoder + a/v_shrink, each one fused pallas_call.
    aco_emb = modality_branch(acoustic, params["a_enc"], params["a_shrink"],
                              hp["a_size"], L)
    vis_emb = modality_branch(visual, params["v_enc"], params["v_shrink"],
                              hp["v_size"], L)

    lang_flat = lang_emb.reshape(B * L, D)
    aco_flat = aco_emb.reshape(B * L, D)
    vis_flat = vis_emb.reshape(B * L, D)

    TF_v, VF_t, TF_a, AF_t = tri_aug_att_pair(params["ET_TV"], params["ET_TA"],
                                              lang_flat, vis_flat, aco_flat, L)

    (r_preds, r_preds_F, F_feat, t_recon, a_recon, v_recon) = tail_fused(
        params, lang_flat, aco_flat, vis_flat, TF_v, VF_t, TF_a, AF_t, B, L, hp)

    # Sub-(8,128) tail ops in plain jnp (XLA fuses them under jit).
    S_t = jnp.mean(lang_emb, axis=1)
    S_a = jnp.mean(aco_emb, axis=1)
    S_v = jnp.mean(vis_emb, axis=1)

    kl_t = kl_divergence(S_t, t_recon)
    kl_a = kl_divergence(S_a, a_recon)
    kl_v = kl_divergence(S_v, v_recon)
    kl_td = kl_divergence(F_feat, S_t)
    kl_ad = kl_divergence(F_feat, S_a)
    kl_vd = kl_divergence(F_feat, S_v)

    L_recon = (kl_t + kl_a + kl_v) / 3.0
    L_dis = (kl_td + kl_ad + kl_vd) / 3.0
    return r_preds, r_preds_F, L_recon, L_dis


# ----------------------------------------------------------------------------
# Main
# ----------------------------------------------------------------------------

if __name__ == "__main__":
    hp = dict(
        d_prjh=32, n_class=1, a_size=8, v_size=8, dislen=4,
        tse_layers=2, d_a=12, d_v=16, vocab=50,
    )

    key = jax.random.PRNGKey(0)
    kp, kv, ka, kb = jax.random.split(key, 4)
    params = init_params(kp, hp)

    B, T_bert, L_a, L_v = 2, 10, 20, 20
    visual = jax.random.normal(kv, (B, L_v, hp["d_v"]), F32)
    acoustic = jax.random.normal(ka, (B, L_a, hp["d_a"]), F32)
    v_len = jnp.array([20, 18], jnp.int32)
    a_len = jnp.array([20, 16], jnp.int32)
    bert_sent = jax.random.randint(kb, (B, T_bert), 0, hp["vocab"])
    bert_sent_mask = jnp.ones((B, T_bert), F32)

    @jax.jit
    def fwd(params, visual, acoustic, v_len, a_len, bert_sent, bert_sent_mask):
        return msa_forward(params, visual, acoustic, v_len, a_len,
                           bert_sent, bert_sent_mask, hp)

    outs = fwd(params, visual, acoustic, v_len, a_len, bert_sent, bert_sent_mask)
    jax.block_until_ready(outs)

    r_preds, r_preds_F, L_recon, L_dis = outs
    assert r_preds.shape == (B, hp["n_class"])
    assert r_preds_F.shape == (B, hp["n_class"])
    assert L_recon.shape == () and L_dis.shape == ()
    print("KERNEL_OK")
</pallas_src>

<mosaic_0001>
module attributes {stable_mosaic.version = 11 : i64} {
  func.func @_text_kernel(%arg0: i32, %arg1: memref<1x10x768xf32, #tpu.memory_space<vmem>>, %arg2: memref<768x32xbf16, #tpu.memory_space<vmem>>, %arg3: memref<1x32xf32, #tpu.memory_space<vmem>>, %arg4: memref<96x32xbf16, #tpu.memory_space<vmem>>, %arg5: memref<1x32xf32, #tpu.memory_space<vmem>>, %arg6: memref<1x4x32xf32, #tpu.memory_space<vmem>>, %arg7: memref<12x32xf32, #tpu.memory_space<vmem>>) attributes {dimension_semantics = [#tpu.dimension_semantics<parallel>], iteration_bounds = array<i64: 2>, scalar_prefetch = 0 : i64, scratch_operands = 1 : i64, tpu.core_type = #tpu.core_type<tc>, window_params = [{transform_indices = @transform_0, window_bounds = array<i64: 1, 10, 768>}, {pipeline_mode = #tpu.pipeline_mode<synchronous>, transform_indices = @transform_1, window_bounds = array<i64: 768, 32>}, {pipeline_mode = #tpu.pipeline_mode<synchronous>, transform_indices = @transform_2, window_bounds = array<i64: 1, 32>}, {pipeline_mode = #tpu.pipeline_mode<synchronous>, transform_indices = @transform_3, window_bounds = array<i64: 96, 32>}, {pipeline_mode = #tpu.pipeline_mode<synchronous>, transform_indices = @transform_4, window_bounds = array<i64: 1, 32>}, {transform_indices = @transform_5, window_bounds = array<i64: 1, 4, 32>}]} {
    %c0 = arith.constant 0 : index
    %c0_0 = arith.constant 0 : index
    %c0_1 = arith.constant 0 : index
    %0 = vector.load %arg1[%c0, %c0_0, %c0_1] : memref<1x10x768xf32, #tpu.memory_space<vmem>>, vector<1x10x768xf32>
    %1 = vector.shape_cast %0 : vector<1x10x768xf32> to vector<10x768xf32>
    %c0_2 = arith.constant 0 : index
    %c0_3 = arith.constant 0 : index
    %2 = vector.load %arg2[%c0_2, %c0_3] : memref<768x32xbf16, #tpu.memory_space<vmem>>, vector<768x32xbf16>
    %3 = arith.truncf %1 : vector<10x768xf32> to vector<10x768xbf16>
    %cst = arith.constant dense<0.000000e+00> : vector<10x32xf32>
    %4 = tpu.matmul %3, %2, %cst {dimension_numbers = #tpu.dot_dimension_numbers<[1], [0], [0], [1], [0, 0, 1, 1], [], []>} : vector<10x768xbf16>, vector<768x32xbf16>, vector<10x32xf32> -> vector<10x32xf32>
    %c0_4 = arith.constant 0 : index
    %c0_5 = arith.constant 0 : index
    %5 = vector.load %arg3[%c0_4, %c0_5] : memref<1x32xf32, #tpu.memory_space<vmem>>, vector<1x32xf32>
    %6 = vector.broadcast %5 : vector<1x32xf32> to vector<10x32xf32>
    %7 = arith.addf %4, %6 : vector<10x32xf32>
    %c0_6 = arith.constant 0 : index
    %c0_7 = arith.constant 0 : index
    %8 = vector.load %arg4[%c0_6, %c0_7] : memref<96x32xbf16, #tpu.memory_space<vmem>>, vector<96x32xbf16>
    %c0_8 = arith.constant 0 : index
    %c0_9 = arith.constant 0 : index
    %9 = vector.load %arg5[%c0_8, %c0_9] : memref<1x32xf32, #tpu.memory_space<vmem>>, vector<1x32xf32>
    %cst_10 = arith.constant 0.000000e+00 : f32
    %10 = vector.broadcast %cst_10 : f32 to vector<1x32xf32>
    %c0_11 = arith.constant 0 : index
    %c0_12 = arith.constant 0 : index
    %11 = vector.load %arg7[%c0_11, %c0_12] : memref<12x32xf32, #tpu.memory_space<vmem>>, vector<1x32xf32>
    tpu.vector_store %arg7[%c0_11, %c0_12], %10 {strides = array<i32>} : memref<12x32xf32, #tpu.memory_space<vmem>>, vector<1x32xf32>,
    %c11 = arith.constant 11 : index
    %c0_13 = arith.constant 0 : index
    %12 = vector.load %arg7[%c11, %c0_13] : memref<12x32xf32, #tpu.memory_space<vmem>>, vector<1x32xf32>
    tpu.vector_store %arg7[%c11, %c0_13], %10 {strides = array<i32>} : memref<12x32xf32, #tpu.memory_space<vmem>>, vector<1x32xf32>,
    %c1 = arith.constant 1 : index
    %c0_14 = arith.constant 0 : index
    %13 = vector.load %arg7[%c1, %c0_14] : memref<12x32xf32, #tpu.memory_space<vmem>>, vector<10x32xf32>
    tpu.vector_store %arg7[%c1, %c0_14], %7 {strides = array<i32>} : memref<12x32xf32, #tpu.memory_space<vmem>>, vector<10x32xf32>,
    %c0_15 = arith.constant 0 : index
    %c0_16 = arith.constant 0 : index
    %14 = vector.load %arg7[%c0_15, %c0_16] : memref<12x32xf32, #tpu.memory_space<vmem>>, vector<10x32xf32>
    %c2 = arith.constant 2 : index
    %c0_17 = arith.constant 0 : index
    %15 = vector.load %arg7[%c2, %c0_17] : memref<12x32xf32, #tpu.memory_space<vmem>>, vector<10x32xf32>
    %16 = tpu.concatenate %14, %7, %15 in 1 : vector<10x32xf32>, vector<10x32xf32>, vector<10x32xf32> -> vector<10x96xf32>
    %17 = arith.truncf %16 : vector<10x96xf32> to vector<10x96xbf16>
    %cst_18 = arith.constant dense<0.000000e+00> : vector<10x32xf32>
    %18 = tpu.matmul %17, %8, %cst_18 {dimension_numbers = #tpu.dot_dimension_numbers<[1], [0], [0], [1], [0, 0, 1, 1], [], []>} : vector<10x96xbf16>, vector<96x32xbf16>, vector<10x32xf32> -> vector<10x32xf32>
    %19 = vector.broadcast %9 : vector<1x32xf32> to vector<10x32xf32>
    %20 = arith.addf %18, %19 : vector<10x32xf32>
    %21 = tpu.iota {dimensions = array<i32: 0>} : vector<4x10x1xi32>
    %22 = tpu.iota {dimensions = array<i32: 1>} : vector<4x10x1xi32>
    %c10_i32 = arith.constant 10 : i32
    %23 = vector.broadcast %c10_i32 : i32 to vector<4x10x1xi32>
    %24 = arith.muli %21, %23 : vector<4x10x1xi32>
    %c1_i32 = arith.constant 1 : i32
    %25 = vector.broadcast %c1_i32 : i32 to vector<4x10x1xi32>
    %26 = arith.addi %22, %25 : vector<4x10x1xi32>
    %c4_i32 = arith.constant 4 : i32
    %27 = vector.broadcast %c4_i32 : i32 to vector<4x10x1xi32>
    %28 = arith.muli %26, %27 : vector<4x10x1xi32>
    %29 = arith.cmpi slt, %24, %28 : vector<4x10x1xi32>
    %c4_i32_19 = arith.constant 4 : i32
    %30 = vector.broadcast %c4_i32_19 : i32 to vector<4x10x1xi32>
    %31 = arith.muli %22, %30 : vector<4x10x1xi32>
    %c1_i32_20 = arith.constant 1 : i32
    %32 = vector.broadcast %c1_i32_20 : i32 to vector<4x10x1xi32>
    %33 = arith.addi %21, %32 : vector<4x10x1xi32>
    %c10_i32_21 = arith.constant 10 : i32
    %34 = vector.broadcast %c10_i32_21 : i32 to vector<4x10x1xi32>
    %35 = arith.muli %33, %34 : vector<4x10x1xi32>
    %36 = arith.cmpi slt, %31, %35 : vector<4x10x1xi32>
    %37 = arith.andi %29, %36 : vector<4x10x1xi1>
    %38 = vector.shape_cast %20 : vector<10x32xf32> to vector<1x10x32xf32>
    %cst_22 = arith.constant 0xFF800000 : f32
    %39 = vector.shape_cast %37 : vector<4x10x1xi1> to vector<4x10x1xi1>
    %40 = vector.broadcast %39 : vector<4x10x1xi1> to vector<4x10x32xi1>
    %41 = vector.shape_cast %38 : vector<1x10x32xf32> to vector<1x10x32xf32>
    %42 = vector.broadcast %41 : vector<1x10x32xf32> to vector<4x10x32xf32>
    %43 = vector.broadcast %cst_22 : f32 to vector<4x10x32xf32>
    %44 = arith.select %40, %42, %43 : vector<4x10x32xi1>, vector<4x10x32xf32>
    %cst_23 = arith.constant dense<0xFF800000> : vector<4x32xf32>
    %45 = vector.multi_reduction <maximumf>, %44, %cst_23 [1] : vector<4x10x32xf32> to vector<4x32xf32>
    %c0_24 = arith.constant 0 : index
    %c0_25 = arith.constant 0 : index
    %c0_26 = arith.constant 0 : index
    %46 = vector.load %arg6[%c0_24, %c0_25, %c0_26] : memref<1x4x32xf32, #tpu.memory_space<vmem>>, vector<1x4x32xf32>
    %47 = vector.shape_cast %46 : vector<1x4x32xf32> to vector<4x32xf32>
    %48 = vector.shape_cast %45 : vector<4x32xf32> to vector<1x4x32xf32>
    tpu.vector_store %arg6[%c0_24, %c0_25, %c0_26], %48 {strides = array<i32>} : memref<1x4x32xf32, #tpu.memory_space<vmem>>, vector<1x4x32xf32>,
    return
  }
  func.func @transform_0(%arg0: i32) -> (i32, i32, i32) {
    %c0_i32 = arith.constant 0 : i32
    %c0_i32_0 = arith.constant 0 : i32
    %c0_i32_1 = arith.constant 0 : i32
    return %arg0, %c0_i32, %c0_i32_0 : i32, i32, i32
  }
  func.func @transform_1(%arg0: i32) -> (i32, i32) {
    %c0_i32 = arith.constant 0 : i32
    %c0_i32_0 = arith.constant 0 : i32
    %c0_i32_1 = arith.constant 0 : i32
    return %c0_i32, %c0_i32_0 : i32, i32
  }
  func.func @transform_2(%arg0: i32) -> (i32, i32) {
    %c0_i32 = arith.constant 0 : i32
    %c0_i32_0 = arith.constant 0 : i32
    %c0_i32_1 = arith.constant 0 : i32
    return %c0_i32, %c0_i32_0 : i32, i32
  }
  func.func @transform_3(%arg0: i32) -> (i32, i32) {
    %c0_i32 = arith.constant 0 : i32
    %c0_i32_0 = arith.constant 0 : i32
    %c0_i32_1 = arith.constant 0 : i32
    return %c0_i32, %c0_i32_0 : i32, i32
  }
  func.func @transform_4(%arg0: i32) -> (i32, i32) {
    %c0_i32 = arith.constant 0 : i32
    %c0_i32_0 = arith.constant 0 : i32
    %c0_i32_1 = arith.constant 0 : i32
    return %c0_i32, %c0_i32_0 : i32, i32
  }
  func.func @transform_5(%arg0: i32) -> (i32, i32, i32) {
    %c0_i32 = arith.constant 0 : i32
    %c0_i32_0 = arith.constant 0 : i32
    %c0_i32_1 = arith.constant 0 : i32
    return %arg0, %c0_i32, %c0_i32_0 : i32, i32, i32
  }
}

module attributes {stable_mosaic.version = 11 : i64} {
  func.func @_modality_kernel(%arg0: i32, %arg1: memref<1x20x12xf32, #tpu.memory_space<vmem>>, %arg2: memref<12x32xbf16, #tpu.memory_space<vmem>>, %arg3: memref<1x32xf32, #tpu.memory_space<vmem>>, %arg4: memref<2x32x32xbf16, #tpu.memory_space<vmem>>, %arg5: memref<2x1x32xf32, #tpu.memory_space<vmem>>, %arg6: memref<96x32xbf16, #tpu.memory_space<vmem>>, %arg7: memref<1x32xf32, #tpu.memory_space<vmem>>, %arg8: memref<1x4x32xf32, #tpu.memory_space<vmem>>, %arg9: memref<10x32xf32, #tpu.memory_space<vmem>>) attributes {dimension_semantics = [#tpu.dimension_semantics<parallel>], iteration_bounds = array<i64: 2>, scalar_prefetch = 0 : i64, scratch_operands = 1 : i64, tpu.core_type = #tpu.core_type<tc>, window_params = [{transform_indices = @transform_0, window_bounds = array<i64: 1, 20, 12>}, {pipeline_mode = #tpu.pipeline_mode<synchronous>, transform_indices = @transform_1, window_bounds = array<i64: 12, 32>}, {pipeline_mode = #tpu.pipeline_mode<synchronous>, transform_indices = @transform_2, window_bounds = array<i64: 1, 32>}, {pipeline_mode = #tpu.pipeline_mode<synchronous>, transform_indices = @transform_3, window_bounds = array<i64: 2, 32, 32>}, {pipeline_mode = #tpu.pipeline_mode<synchronous>, transform_indices = @transform_4, window_bounds = array<i64: 2, 1, 32>}, {pipeline_mode = #tpu.pipeline_mode<synchronous>, transform_indices = @transform_5, window_bounds = array<i64: 96, 32>}, {pipeline_mode = #tpu.pipeline_mode<synchronous>, transform_indices = @transform_6, window_bounds = array<i64: 1, 32>}, {transform_indices = @transform_7, window_bounds = array<i64: 1, 4, 32>}]} {
    %c0 = arith.constant 0 : index
    %c0_0 = arith.constant 0 : index
    %c0_1 = arith.constant 0 : index
    %0 = vector.load %arg1[%c0, %c0_0, %c0_1] : memref<1x20x12xf32, #tpu.memory_space<vmem>>, vector<1x20x12xf32>
    %1 = vector.shape_cast %0 : vector<1x20x12xf32> to vector<20x12xf32>
    %2 = tpu.iota {dimensions = array<i32: 0>} : vector<8x20x1xi32>
    %3 = tpu.iota {dimensions = array<i32: 1>} : vector<8x20x1xi32>
    %c20_i32 = arith.constant 20 : i32
    %4 = vector.broadcast %c20_i32 : i32 to vector<8x20x1xi32>
    %5 = arith.muli %2, %4 : vector<8x20x1xi32>
    %c1_i32 = arith.constant 1 : i32
    %6 = vector.broadcast %c1_i32 : i32 to vector<8x20x1xi32>
    %7 = arith.addi %3, %6 : vector<8x20x1xi32>
    %c8_i32 = arith.constant 8 : i32
    %8 = vector.broadcast %c8_i32 : i32 to vector<8x20x1xi32>
    %9 = arith.muli %7, %8 : vector<8x20x1xi32>
    %10 = arith.cmpi slt, %5, %9 : vector<8x20x1xi32>
    %c8_i32_2 = arith.constant 8 : i32
    %11 = vector.broadcast %c8_i32_2 : i32 to vector<8x20x1xi32>
    %12 = arith.muli %3, %11 : vector<8x20x1xi32>
    %c1_i32_3 = arith.constant 1 : i32
    %13 = vector.broadcast %c1_i32_3 : i32 to vector<8x20x1xi32>
    %14 = arith.addi %2, %13 : vector<8x20x1xi32>
    %c20_i32_4 = arith.constant 20 : i32
    %15 = vector.broadcast %c20_i32_4 : i32 to vector<8x20x1xi32>
    %16 = arith.muli %14, %15 : vector<8x20x1xi32>
    %17 = arith.cmpi slt, %12, %16 : vector<8x20x1xi32>
    %18 = arith.andi %10, %17 : vector<8x20x1xi1>
    %19 = vector.shape_cast %1 : vector<20x12xf32> to vector<1x20x12xf32>
    %cst = arith.constant 0xFF800000 : f32
    %20 = vector.shape_cast %18 : vector<8x20x1xi1> to vector<8x20x1xi1>
    %21 = vector.broadcast %20 : vector<8x20x1xi1> to vector<8x20x12xi1>
    %22 = vector.shape_cast %19 : vector<1x20x12xf32> to vector<1x20x12xf32>
    %23 = vector.broadcast %22 : vector<1x20x12xf32> to vector<8x20x12xf32>
    %24 = vector.broadcast %cst : f32 to vector<8x20x12xf32>
    %25 = arith.select %21, %23, %24 : vector<8x20x12xi1>, vector<8x20x12xf32>
    %cst_5 = arith.constant dense<0xFF800000> : vector<8x12xf32>
    %26 = vector.multi_reduction <maximumf>, %25, %cst_5 [1] : vector<8x20x12xf32> to vector<8x12xf32>
    %c0_6 = arith.constant 0 : index
    %c0_7 = arith.constant 0 : index
    %27 = vector.load %arg2[%c0_6, %c0_7] : memref<12x32xbf16, #tpu.memory_space<vmem>>, vector<12x32xbf16>
    %28 = arith.truncf %26 : vector<8x12xf32> to vector<8x12xbf16>
    %cst_8 = arith.constant dense<0.000000e+00> : vector<8x32xf32>
    %29 = tpu.matmul %28, %27, %cst_8 {dimension_numbers = #tpu.dot_dimension_numbers<[1], [0], [0], [1], [0, 0, 1, 1], [], []>} : vector<8x12xbf16>, vector<12x32xbf16>, vector<8x32xf32> -> vector<8x32xf32>
    %c0_9 = arith.constant 0 : index
    %c0_10 = arith.constant 0 : index
    %30 = vector.load %arg3[%c0_9, %c0_10] : memref<1x32xf32, #tpu.memory_space<vmem>>, vector<1x32xf32>
    %31 = vector.broadcast %30 : vector<1x32xf32> to vector<8x32xf32>
    %32 = arith.addf %29, %31 : vector<8x32xf32>
    %cst_11 = arith.constant 0.000000e+00 : f32
    %33 = vector.broadcast %cst_11 : f32 to vector<8x32xf32>
    %34 = arith.maximumf %32, %33 : vector<8x32xf32>
    %c0_12 = arith.constant 0 : index
    %c0_13 = arith.constant 0 : index
    %c0_14 = arith.constant 0 : index
    %35 = vector.load %arg4[%c0_12, %c0_13, %c0_14] : memref<2x32x32xbf16, #tpu.memory_space<vmem>>, vector<1x32x32xbf16>
    %36 = vector.shape_cast %35 : vector<1x32x32xbf16> to vector<32x32xbf16>
    %37 = arith.truncf %34 : vector<8x32xf32> to vector<8x32xbf16>
    %cst_15 = arith.constant dense<0.000000e+00> : vector<8x32xf32>
    %38 = tpu.matmul %37, %36, %cst_15 {dimension_numbers = #tpu.dot_dimension_numbers<[1], [0], [0], [1], [0, 0, 1, 1], [], []>} : vector<8x32xbf16>, vector<32x32xbf16>, vector<8x32xf32> -> vector<8x32xf32>
    %c0_16 = arith.constant 0 : index
    %c0_17 = arith.constant 0 : index
    %c0_18 = arith.constant 0 : index
    %39 = vector.load %arg5[%c0_16, %c0_17, %c0_18] : memref<2x1x32xf32, #tpu.memory_space<vmem>>, vector<1x1x32xf32>
    %40 = vector.shape_cast %39 : vector<1x1x32xf32> to vector<1x32xf32>
    %41 = vector.broadcast %40 : vector<1x32xf32> to vector<8x32xf32>
    %42 = arith.addf %38, %41 : vector<8x32xf32>
    %cst_19 = arith.constant 0.000000e+00 : f32
    %43 = vector.broadcast %cst_19 : f32 to vector<8x32xf32>
    %44 = arith.maximumf %42, %43 : vector<8x32xf32>
    %45 = arith.addf %34, %44 : vector<8x32xf32>
    %c1 = arith.constant 1 : index
    %c0_20 = arith.constant 0 : index
    %c0_21 = arith.constant 0 : index
    %46 = vector.load %arg4[%c1, %c0_20, %c0_21] : memref<2x32x32xbf16, #tpu.memory_space<vmem>>, vector<1x32x32xbf16>
    %47 = vector.shape_cast %46 : vector<1x32x32xbf16> to vector<32x32xbf16>
    %48 = arith.truncf %45 : vector<8x32xf32> to vector<8x32xbf16>
    %cst_22 = arith.constant dense<0.000000e+00> : vector<8x32xf32>
    %49 = tpu.matmul %48, %47, %cst_22 {dimension_numbers = #tpu.dot_dimension_numbers<[1], [0], [0], [1], [0, 0, 1, 1], [], []>} : vector<8x32xbf16>, vector<32x32xbf16>, vector<8x32xf32> -> vector<8x32xf32>
    %c1_23 = arith.constant 1 : index
    %c0_24 = arith.constant 0 : index
    %c0_25 = arith.constant 0 : index
    %50 = vector.load %arg5[%c1_23, %c0_24, %c0_25] : memref<2x1x32xf32, #tpu.memory_space<vmem>>, vector<1x1x32xf32>
    %51 = vector.shape_cast %50 : vector<1x1x32xf32> to vector<1x32xf32>
    %52 = vector.broadcast %51 : vector<1x32xf32> to vector<8x32xf32>
    %53 = arith.addf %49, %52 : vector<8x32xf32>
    %cst_26 = arith.constant 0.000000e+00 : f32
    %54 = vector.broadcast %cst_26 : f32 to vector<8x32xf32>
    %55 = arith.maximumf %53, %54 : vector<8x32xf32>
    %56 = arith.addf %45, %55 : vector<8x32xf32>
    %c0_27 = arith.constant 0 : index
    %c0_28 = arith.constant 0 : index
    %57 = vector.load %arg6[%c0_27, %c0_28] : memref<96x32xbf16, #tpu.memory_space<vmem>>, vector<96x32xbf16>
    %c0_29 = arith.constant 0 : index
    %c0_30 = arith.constant 0 : index
    %58 = vector.load %arg7[%c0_29, %c0_30] : memref<1x32xf32, #tpu.memory_space<vmem>>, vector<1x32xf32>
    %cst_31 = arith.constant 0.000000e+00 : f32
    %59 = vector.broadcast %cst_31 : f32 to vector<1x32xf32>
    %c0_32 = arith.constant 0 : index
    %c0_33 = arith.constant 0 : index
    %60 = vector.load %arg9[%c0_32, %c0_33] : memref<10x32xf32, #tpu.memory_space<vmem>>, vector<1x32xf32>
    tpu.vector_store %arg9[%c0_32, %c0_33], %59 {strides = array<i32>} : memref<10x32xf32, #tpu.memory_space<vmem>>, vector<1x32xf32>,
    %c9 = arith.constant 9 : index
    %c0_34 = arith.constant 0 : index
    %61 = vector.load %arg9[%c9, %c0_34] : memref<10x32xf32, #tpu.memory_space<vmem>>, vector<1x32xf32>
    tpu.vector_store %arg9[%c9, %c0_34], %59 {strides = array<i32>} : memref<10x32xf32, #tpu.memory_space<vmem>>, vector<1x32xf32>,
    %c1_35 = arith.constant 1 : index
    %c0_36 = arith.constant 0 : index
    %62 = vector.load %arg9[%c1_35, %c0_36] : memref<10x32xf32, #tpu.memory_space<vmem>>, vector<8x32xf32>
    tpu.vector_store %arg9[%c1_35, %c0_36], %56 {strides = array<i32>} : memref<10x32xf32, #tpu.memory_space<vmem>>, vector<8x32xf32>,
    %c0_37 = arith.constant 0 : index
    %c0_38 = arith.constant 0 : index
    %63 = vector.load %arg9[%c0_37, %c0_38] : memref<10x32xf32, #tpu.memory_space<vmem>>, vector<8x32xf32>
    %c2 = arith.constant 2 : index
    %c0_39 = arith.constant 0 : index
    %64 = vector.load %arg9[%c2, %c0_39] : memref<10x32xf32, #tpu.memory_space<vmem>>, vector<8x32xf32>
    %65 = tpu.concatenate %63, %56, %64 in 1 : vector<8x32xf32>, vector<8x32xf32>, vector<8x32xf32> -> vector<8x96xf32>
    %66 = arith.truncf %65 : vector<8x96xf32> to vector<8x96xbf16>
    %cst_40 = arith.constant dense<0.000000e+00> : vector<8x32xf32>
    %67 = tpu.matmul %66, %57, %cst_40 {dimension_numbers = #tpu.dot_dimension_numbers<[1], [0], [0], [1], [0, 0, 1, 1], [], []>} : vector<8x96xbf16>, vector<96x32xbf16>, vector<8x32xf32> -> vector<8x32xf32>
    %68 = vector.broadcast %58 : vector<1x32xf32> to vector<8x32xf32>
    %69 = arith.addf %67, %68 : vector<8x32xf32>
    %70 = tpu.iota {dimensions = array<i32: 0>} : vector<4x8x1xi32>
    %71 = tpu.iota {dimensions = array<i32: 1>} : vector<4x8x1xi32>
    %c8_i32_41 = arith.constant 8 : i32
    %72 = vector.broadcast %c8_i32_41 : i32 to vector<4x8x1xi32>
    %73 = arith.muli %70, %72 : vector<4x8x1xi32>
    %c1_i32_42 = arith.constant 1 : i32
    %74 = vector.broadcast %c1_i32_42 : i32 to vector<4x8x1xi32>
    %75 = arith.addi %71, %74 : vector<4x8x1xi32>
    %c4_i32 = arith.constant 4 : i32
    %76 = vector.broadcast %c4_i32 : i32 to vector<4x8x1xi32>
    %77 = arith.muli %75, %76 : vector<4x8x1xi32>
    %78 = arith.cmpi slt, %73, %77 : vector<4x8x1xi32>
    %c4_i32_43 = arith.constant 4 : i32
    %79 = vector.broadcast %c4_i32_43 : i32 to vector<4x8x1xi32>
    %80 = arith.muli %71, %79 : vector<4x8x1xi32>
    %c1_i32_44 = arith.constant 1 : i32
    %81 = vector.broadcast %c1_i32_44 : i32 to vector<4x8x1xi32>
    %82 = arith.addi %70, %81 : vector<4x8x1xi32>
    %c8_i32_45 = arith.constant 8 : i32
    %83 = vector.broadcast %c8_i32_45 : i32 to vector<4x8x1xi32>
    %84 = arith.muli %82, %83 : vector<4x8x1xi32>
    %85 = arith.cmpi slt, %80, %84 : vector<4x8x1xi32>
    %86 = arith.andi %78, %85 : vector<4x8x1xi1>
    %87 = vector.shape_cast %69 : vector<8x32xf32> to vector<1x8x32xf32>
    %cst_46 = arith.constant 0xFF800000 : f32
    %88 = vector.shape_cast %86 : vector<4x8x1xi1> to vector<4x8x1xi1>
    %89 = vector.broadcast %88 : vector<4x8x1xi1> to vector<4x8x32xi1>
    %90 = vector.shape_cast %87 : vector<1x8x32xf32> to vector<1x8x32xf32>
    %91 = vector.broadcast %90 : vector<1x8x32xf32> to vector<4x8x32xf32>
    %92 = vector.broadcast %cst_46 : f32 to vector<4x8x32xf32>
    %93 = arith.select %89, %91, %92 : vector<4x8x32xi1>, vector<4x8x32xf32>
    %cst_47 = arith.constant dense<0xFF800000> : vector<4x32xf32>
    %94 = vector.multi_reduction <maximumf>, %93, %cst_47 [1] : vector<4x8x32xf32> to vector<4x32xf32>
    %c0_48 = arith.constant 0 : index
    %c0_49 = arith.constant 0 : index
    %c0_50 = arith.constant 0 : index
    %95 = vector.load %arg8[%c0_48, %c0_49, %c0_50] : memref<1x4x32xf32, #tpu.memory_space<vmem>>, vector<1x4x32xf32>
    %96 = vector.shape_cast %95 : vector<1x4x32xf32> to vector<4x32xf32>
    %97 = vector.shape_cast %94 : vector<4x32xf32> to vector<1x4x32xf32>
    tpu.vector_store %arg8[%c0_48, %c0_49, %c0_50], %97 {strides = array<i32>} : memref<1x4x32xf32, #tpu.memory_space<vmem>>, vector<1x4x32xf32>,
    return
  }
  func.func @transform_0(%arg0: i32) -> (i32, i32, i32) {
    %c0_i32 = arith.constant 0 : i32
    %c0_i32_0 = arith.constant 0 : i32
    %c0_i32_1 = arith.constant 0 : i32
    return %arg0, %c0_i32, %c0_i32_0 : i32, i32, i32
  }
  func.func @transform_1(%arg0: i32) -> (i32, i32) {
    %c0_i32 = arith.constant 0 : i32
    %c0_i32_0 = arith.constant 0 : i32
    %c0_i32_1 = arith.constant 0 : i32
    return %c0_i32, %c0_i32_0 : i32, i32
  }
  func.func @transform_2(%arg0: i32) -> (i32, i32) {
    %c0_i32 = arith.constant 0 : i32
    %c0_i32_0 = arith.constant 0 : i32
    %c0_i32_1 = arith.constant 0 : i32
    return %c0_i32, %c0_i32_0 : i32, i32
  }
  func.func @transform_3(%arg0: i32) -> (i32, i32, i32) {
    %c0_i32 = arith.constant 0 : i32
    %c0_i32_0 = arith.constant 0 : i32
    %c0_i32_1 = arith.constant 0 : i32
    %c0_i32_2 = arith.constant 0 : i32
    return %c0_i32, %c0_i32_0, %c0_i32_1 : i32, i32, i32
  }
  func.func @transform_4(%arg0: i32) -> (i32, i32, i32) {
    %c0_i32 = arith.constant 0 : i32
    %c0_i32_0 = arith.constant 0 : i32
    %c0_i32_1 = arith.constant 0 : i32
    %c0_i32_2 = arith.constant 0 : i32
    return %c0_i32, %c0_i32_0, %c0_i32_1 : i32, i32, i32
  }
  func.func @transform_5(%arg0: i32) -> (i32, i32) {
    %c0_i32 = arith.constant 0 : i32
    %c0_i32_0 = arith.constant 0 : i32
    %c0_i32_1 = arith.constant 0 : i32
    return %c0_i32, %c0_i32_0 : i32, i32
  }
  func.func @transform_6(%arg0: i32) -> (i32, i32) {
    %c0_i32 = arith.constant 0 : i32
    %c0_i32_0 = arith.constant 0 : i32
    %c0_i32_1 = arith.constant 0 : i32
    return %c0_i32, %c0_i32_0 : i32, i32
  }
  func.func @transform_7(%arg0: i32) -> (i32, i32, i32) {
    %c0_i32 = arith.constant 0 : i32
    %c0_i32_0 = arith.constant 0 : i32
    %c0_i32_1 = arith.constant 0 : i32
    return %arg0, %c0_i32, %c0_i32_0 : i32, i32, i32
  }
}

module attributes {stable_mosaic.version = 11 : i64} {
  func.func @_modality_kernel(%arg0: i32, %arg1: memref<1x20x16xf32, #tpu.memory_space<vmem>>, %arg2: memref<16x32xbf16, #tpu.memory_space<vmem>>, %arg3: memref<1x32xf32, #tpu.memory_space<vmem>>, %arg4: memref<2x32x32xbf16, #tpu.memory_space<vmem>>, %arg5: memref<2x1x32xf32, #tpu.memory_space<vmem>>, %arg6: memref<96x32xbf16, #tpu.memory_space<vmem>>, %arg7: memref<1x32xf32, #tpu.memory_space<vmem>>, %arg8: memref<1x4x32xf32, #tpu.memory_space<vmem>>, %arg9: memref<10x32xf32, #tpu.memory_space<vmem>>) attributes {dimension_semantics = [#tpu.dimension_semantics<parallel>], iteration_bounds = array<i64: 2>, scalar_prefetch = 0 : i64, scratch_operands = 1 : i64, tpu.core_type = #tpu.core_type<tc>, window_params = [{transform_indices = @transform_0, window_bounds = array<i64: 1, 20, 16>}, {pipeline_mode = #tpu.pipeline_mode<synchronous>, transform_indices = @transform_1, window_bounds = array<i64: 16, 32>}, {pipeline_mode = #tpu.pipeline_mode<synchronous>, transform_indices = @transform_2, window_bounds = array<i64: 1, 32>}, {pipeline_mode = #tpu.pipeline_mode<synchronous>, transform_indices = @transform_3, window_bounds = array<i64: 2, 32, 32>}, {pipeline_mode = #tpu.pipeline_mode<synchronous>, transform_indices = @transform_4, window_bounds = array<i64: 2, 1, 32>}, {pipeline_mode = #tpu.pipeline_mode<synchronous>, transform_indices = @transform_5, window_bounds = array<i64: 96, 32>}, {pipeline_mode = #tpu.pipeline_mode<synchronous>, transform_indices = @transform_6, window_bounds = array<i64: 1, 32>}, {transform_indices = @transform_7, window_bounds = array<i64: 1, 4, 32>}]} {
    %c0 = arith.constant 0 : index
    %c0_0 = arith.constant 0 : index
    %c0_1 = arith.constant 0 : index
    %0 = vector.load %arg1[%c0, %c0_0, %c0_1] : memref<1x20x16xf32, #tpu.memory_space<vmem>>, vector<1x20x16xf32>
    %1 = vector.shape_cast %0 : vector<1x20x16xf32> to vector<20x16xf32>
    %2 = tpu.iota {dimensions = array<i32: 0>} : vector<8x20x1xi32>
    %3 = tpu.iota {dimensions = array<i32: 1>} : vector<8x20x1xi32>
    %c20_i32 = arith.constant 20 : i32
    %4 = vector.broadcast %c20_i32 : i32 to vector<8x20x1xi32>
    %5 = arith.muli %2, %4 : vector<8x20x1xi32>
    %c1_i32 = arith.constant 1 : i32
    %6 = vector.broadcast %c1_i32 : i32 to vector<8x20x1xi32>
    %7 = arith.addi %3, %6 : vector<8x20x1xi32>
    %c8_i32 = arith.constant 8 : i32
    %8 = vector.broadcast %c8_i32 : i32 to vector<8x20x1xi32>
    %9 = arith.muli %7, %8 : vector<8x20x1xi32>
    %10 = arith.cmpi slt, %5, %9 : vector<8x20x1xi32>
    %c8_i32_2 = arith.constant 8 : i32
    %11 = vector.broadcast %c8_i32_2 : i32 to vector<8x20x1xi32>
    %12 = arith.muli %3, %11 : vector<8x20x1xi32>
    %c1_i32_3 = arith.constant 1 : i32
    %13 = vector.broadcast %c1_i32_3 : i32 to vector<8x20x1xi32>
    %14 = arith.addi %2, %13 : vector<8x20x1xi32>
    %c20_i32_4 = arith.constant 20 : i32
    %15 = vector.broadcast %c20_i32_4 : i32 to vector<8x20x1xi32>
    %16 = arith.muli %14, %15 : vector<8x20x1xi32>
    %17 = arith.cmpi slt, %12, %16 : vector<8x20x1xi32>
    %18 = arith.andi %10, %17 : vector<8x20x1xi1>
    %19 = vector.shape_cast %1 : vector<20x16xf32> to vector<1x20x16xf32>
    %cst = arith.constant 0xFF800000 : f32
    %20 = vector.shape_cast %18 : vector<8x20x1xi1> to vector<8x20x1xi1>
    %21 = vector.broadcast %20 : vector<8x20x1xi1> to vector<8x20x16xi1>
    %22 = vector.shape_cast %19 : vector<1x20x16xf32> to vector<1x20x16xf32>
    %23 = vector.broadcast %22 : vector<1x20x16xf32> to vector<8x20x16xf32>
    %24 = vector.broadcast %cst : f32 to vector<8x20x16xf32>
    %25 = arith.select %21, %23, %24 : vector<8x20x16xi1>, vector<8x20x16xf32>
    %cst_5 = arith.constant dense<0xFF800000> : vector<8x16xf32>
    %26 = vector.multi_reduction <maximumf>, %25, %cst_5 [1] : vector<8x20x16xf32> to vector<8x16xf32>
    %c0_6 = arith.constant 0 : index
    %c0_7 = arith.constant 0 : index
    %27 = vector.load %arg2[%c0_6, %c0_7] : memref<16x32xbf16, #tpu.memory_space<vmem>>, vector<16x32xbf16>
    %28 = arith.truncf %26 : vector<8x16xf32> to vector<8x16xbf16>
    %cst_8 = arith.constant dense<0.000000e+00> : vector<8x32xf32>
    %29 = tpu.matmul %28, %27, %cst_8 {dimension_numbers = #tpu.dot_dimension_numbers<[1], [0], [0], [1], [0, 0, 1, 1], [], []>} : vector<8x16xbf16>, vector<16x32xbf16>, vector<8x32xf32> -> vector<8x32xf32>
    %c0_9 = arith.constant 0 : index
    %c0_10 = arith.constant 0 : index
    %30 = vector.load %arg3[%c0_9, %c0_10] : memref<1x32xf32, #tpu.memory_space<vmem>>, vector<1x32xf32>
    %31 = vector.broadcast %30 : vector<1x32xf32> to vector<8x32xf32>
    %32 = arith.addf %29, %31 : vector<8x32xf32>
    %cst_11 = arith.constant 0.000000e+00 : f32
    %33 = vector.broadcast %cst_11 : f32 to vector<8x32xf32>
    %34 = arith.maximumf %32, %33 : vector<8x32xf32>
    %c0_12 = arith.constant 0 : index
    %c0_13 = arith.constant 0 : index
    %c0_14 = arith.constant 0 : index
    %35 = vector.load %arg4[%c0_12, %c0_13, %c0_14] : memref<2x32x32xbf16, #tpu.memory_space<vmem>>, vector<1x32x32xbf16>
    %36 = vector.shape_cast %35 : vector<1x32x32xbf16> to vector<32x32xbf16>
    %37 = arith.truncf %34 : vector<8x32xf32> to vector<8x32xbf16>
    %cst_15 = arith.constant dense<0.000000e+00> : vector<8x32xf32>
    %38 = tpu.matmul %37, %36, %cst_15 {dimension_numbers = #tpu.dot_dimension_numbers<[1], [0], [0], [1], [0, 0, 1, 1], [], []>} : vector<8x32xbf16>, vector<32x32xbf16>, vector<8x32xf32> -> vector<8x32xf32>
    %c0_16 = arith.constant 0 : index
    %c0_17 = arith.constant 0 : index
    %c0_18 = arith.constant 0 : index
    %39 = vector.load %arg5[%c0_16, %c0_17, %c0_18] : memref<2x1x32xf32, #tpu.memory_space<vmem>>, vector<1x1x32xf32>
    %40 = vector.shape_cast %39 : vector<1x1x32xf32> to vector<1x32xf32>
    %41 = vector.broadcast %40 : vector<1x32xf32> to vector<8x32xf32>
    %42 = arith.addf %38, %41 : vector<8x32xf32>
    %cst_19 = arith.constant 0.000000e+00 : f32
    %43 = vector.broadcast %cst_19 : f32 to vector<8x32xf32>
    %44 = arith.maximumf %42, %43 : vector<8x32xf32>
    %45 = arith.addf %34, %44 : vector<8x32xf32>
    %c1 = arith.constant 1 : index
    %c0_20 = arith.constant 0 : index
    %c0_21 = arith.constant 0 : index
    %46 = vector.load %arg4[%c1, %c0_20, %c0_21] : memref<2x32x32xbf16, #tpu.memory_space<vmem>>, vector<1x32x32xbf16>
    %47 = vector.shape_cast %46 : vector<1x32x32xbf16> to vector<32x32xbf16>
    %48 = arith.truncf %45 : vector<8x32xf32> to vector<8x32xbf16>
    %cst_22 = arith.constant dense<0.000000e+00> : vector<8x32xf32>
    %49 = tpu.matmul %48, %47, %cst_22 {dimension_numbers = #tpu.dot_dimension_numbers<[1], [0], [0], [1], [0, 0, 1, 1], [], []>} : vector<8x32xbf16>, vector<32x32xbf16>, vector<8x32xf32> -> vector<8x32xf32>
    %c1_23 = arith.constant 1 : index
    %c0_24 = arith.constant 0 : index
    %c0_25 = arith.constant 0 : index
    %50 = vector.load %arg5[%c1_23, %c0_24, %c0_25] : memref<2x1x32xf32, #tpu.memory_space<vmem>>, vector<1x1x32xf32>
    %51 = vector.shape_cast %50 : vector<1x1x32xf32> to vector<1x32xf32>
    %52 = vector.broadcast %51 : vector<1x32xf32> to vector<8x32xf32>
    %53 = arith.addf %49, %52 : vector<8x32xf32>
    %cst_26 = arith.constant 0.000000e+00 : f32
    %54 = vector.broadcast %cst_26 : f32 to vector<8x32xf32>
    %55 = arith.maximumf %53, %54 : vector<8x32xf32>
    %56 = arith.addf %45, %55 : vector<8x32xf32>
    %c0_27 = arith.constant 0 : index
    %c0_28 = arith.constant 0 : index
    %57 = vector.load %arg6[%c0_27, %c0_28] : memref<96x32xbf16, #tpu.memory_space<vmem>>, vector<96x32xbf16>
    %c0_29 = arith.constant 0 : index
    %c0_30 = arith.constant 0 : index
    %58 = vector.load %arg7[%c0_29, %c0_30] : memref<1x32xf32, #tpu.memory_space<vmem>>, vector<1x32xf32>
    %cst_31 = arith.constant 0.000000e+00 : f32
    %59 = vector.broadcast %cst_31 : f32 to vector<1x32xf32>
    %c0_32 = arith.constant 0 : index
    %c0_33 = arith.constant 0 : index
    %60 = vector.load %arg9[%c0_32, %c0_33] : memref<10x32xf32, #tpu.memory_space<vmem>>, vector<1x32xf32>
    tpu.vector_store %arg9[%c0_32, %c0_33], %59 {strides = array<i32>} : memref<10x32xf32, #tpu.memory_space<vmem>>, vector<1x32xf32>,
    %c9 = arith.constant 9 : index
    %c0_34 = arith.constant 0 : index
    %61 = vector.load %arg9[%c9, %c0_34] : memref<10x32xf32, #tpu.memory_space<vmem>>, vector<1x32xf32>
    tpu.vector_store %arg9[%c9, %c0_34], %59 {strides = array<i32>} : memref<10x32xf32, #tpu.memory_space<vmem>>, vector<1x32xf32>,
    %c1_35 = arith.constant 1 : index
    %c0_36 = arith.constant 0 : index
    %62 = vector.load %arg9[%c1_35, %c0_36] : memref<10x32xf32, #tpu.memory_space<vmem>>, vector<8x32xf32>
    tpu.vector_store %arg9[%c1_35, %c0_36], %56 {strides = array<i32>} : memref<10x32xf32, #tpu.memory_space<vmem>>, vector<8x32xf32>,
    %c0_37 = arith.constant 0 : index
    %c0_38 = arith.constant 0 : index
    %63 = vector.load %arg9[%c0_37, %c0_38] : memref<10x32xf32, #tpu.memory_space<vmem>>, vector<8x32xf32>
    %c2 = arith.constant 2 : index
    %c0_39 = arith.constant 0 : index
    %64 = vector.load %arg9[%c2, %c0_39] : memref<10x32xf32, #tpu.memory_space<vmem>>, vector<8x32xf32>
    %65 = tpu.concatenate %63, %56, %64 in 1 : vector<8x32xf32>, vector<8x32xf32>, vector<8x32xf32> -> vector<8x96xf32>
    %66 = arith.truncf %65 : vector<8x96xf32> to vector<8x96xbf16>
    %cst_40 = arith.constant dense<0.000000e+00> : vector<8x32xf32>
    %67 = tpu.matmul %66, %57, %cst_40 {dimension_numbers = #tpu.dot_dimension_numbers<[1], [0], [0], [1], [0, 0, 1, 1], [], []>} : vector<8x96xbf16>, vector<96x32xbf16>, vector<8x32xf32> -> vector<8x32xf32>
    %68 = vector.broadcast %58 : vector<1x32xf32> to vector<8x32xf32>
    %69 = arith.addf %67, %68 : vector<8x32xf32>
    %70 = tpu.iota {dimensions = array<i32: 0>} : vector<4x8x1xi32>
    %71 = tpu.iota {dimensions = array<i32: 1>} : vector<4x8x1xi32>
    %c8_i32_41 = arith.constant 8 : i32
    %72 = vector.broadcast %c8_i32_41 : i32 to vector<4x8x1xi32>
    %73 = arith.muli %70, %72 : vector<4x8x1xi32>
    %c1_i32_42 = arith.constant 1 : i32
    %74 = vector.broadcast %c1_i32_42 : i32 to vector<4x8x1xi32>
    %75 = arith.addi %71, %74 : vector<4x8x1xi32>
    %c4_i32 = arith.constant 4 : i32
    %76 = vector.broadcast %c4_i32 : i32 to vector<4x8x1xi32>
    %77 = arith.muli %75, %76 : vector<4x8x1xi32>
    %78 = arith.cmpi slt, %73, %77 : vector<4x8x1xi32>
    %c4_i32_43 = arith.constant 4 : i32
    %79 = vector.broadcast %c4_i32_43 : i32 to vector<4x8x1xi32>
    %80 = arith.muli %71, %79 : vector<4x8x1xi32>
    %c1_i32_44 = arith.constant 1 : i32
    %81 = vector.broadcast %c1_i32_44 : i32 to vector<4x8x1xi32>
    %82 = arith.addi %70, %81 : vector<4x8x1xi32>
    %c8_i32_45 = arith.constant 8 : i32
    %83 = vector.broadcast %c8_i32_45 : i32 to vector<4x8x1xi32>
    %84 = arith.muli %82, %83 : vector<4x8x1xi32>
    %85 = arith.cmpi slt, %80, %84 : vector<4x8x1xi32>
    %86 = arith.andi %78, %85 : vector<4x8x1xi1>
    %87 = vector.shape_cast %69 : vector<8x32xf32> to vector<1x8x32xf32>
    %cst_46 = arith.constant 0xFF800000 : f32
    %88 = vector.shape_cast %86 : vector<4x8x1xi1> to vector<4x8x1xi1>
    %89 = vector.broadcast %88 : vector<4x8x1xi1> to vector<4x8x32xi1>
    %90 = vector.shape_cast %87 : vector<1x8x32xf32> to vector<1x8x32xf32>
    %91 = vector.broadcast %90 : vector<1x8x32xf32> to vector<4x8x32xf32>
    %92 = vector.broadcast %cst_46 : f32 to vector<4x8x32xf32>
    %93 = arith.select %89, %91, %92 : vector<4x8x32xi1>, vector<4x8x32xf32>
    %cst_47 = arith.constant dense<0xFF800000> : vector<4x32xf32>
    %94 = vector.multi_reduction <maximumf>, %93, %cst_47 [1] : vector<4x8x32xf32> to vector<4x32xf32>
    %c0_48 = arith.constant 0 : index
    %c0_49 = arith.constant 0 : index
    %c0_50 = arith.constant 0 : index
    %95 = vector.load %arg8[%c0_48, %c0_49, %c0_50] : memref<1x4x32xf32, #tpu.memory_space<vmem>>, vector<1x4x32xf32>
    %96 = vector.shape_cast %95 : vector<1x4x32xf32> to vector<4x32xf32>
    %97 = vector.shape_cast %94 : vector<4x32xf32> to vector<1x4x32xf32>
    tpu.vector_store %arg8[%c0_48, %c0_49, %c0_50], %97 {strides = array<i32>} : memref<1x4x32xf32, #tpu.memory_space<vmem>>, vector<1x4x32xf32>,
    return
  }
  func.func @transform_0(%arg0: i32) -> (i32, i32, i32) {
    %c0_i32 = arith.constant 0 : i32
    %c0_i32_0 = arith.constant 0 : i32
    %c0_i32_1 = arith.constant 0 : i32
    return %arg0, %c0_i32, %c0_i32_0 : i32, i32, i32
  }
  func.func @transform_1(%arg0: i32) -> (i32, i32) {
    %c0_i32 = arith.constant 0 : i32
    %c0_i32_0 = arith.constant 0 : i32
    %c0_i32_1 = arith.constant 0 : i32
    return %c0_i32, %c0_i32_0 : i32, i32
  }
  func.func @transform_2(%arg0: i32) -> (i32, i32) {
    %c0_i32 = arith.constant 0 : i32
    %c0_i32_0 = arith.constant 0 : i32
    %c0_i32_1 = arith.constant 0 : i32
    return %c0_i32, %c0_i32_0 : i32, i32
  }
  func.func @transform_3(%arg0: i32) -> (i32, i32, i32) {
    %c0_i32 = arith.constant 0 : i32
    %c0_i32_0 = arith.constant 0 : i32
    %c0_i32_1 = arith.constant 0 : i32
    %c0_i32_2 = arith.constant 0 : i32
    return %c0_i32, %c0_i32_0, %c0_i32_1 : i32, i32, i32
  }
  func.func @transform_4(%arg0: i32) -> (i32, i32, i32) {
    %c0_i32 = arith.constant 0 : i32
    %c0_i32_0 = arith.constant 0 : i32
    %c0_i32_1 = arith.constant 0 : i32
    %c0_i32_2 = arith.constant 0 : i32
    return %c0_i32, %c0_i32_0, %c0_i32_1 : i32, i32, i32
  }
  func.func @transform_5(%arg0: i32) -> (i32, i32) {
    %c0_i32 = arith.constant 0 : i32
    %c0_i32_0 = arith.constant 0 : i32
    %c0_i32_1 = arith.constant 0 : i32
    return %c0_i32, %c0_i32_0 : i32, i32
  }
  func.func @transform_6(%arg0: i32) -> (i32, i32) {
    %c0_i32 = arith.constant 0 : i32
    %c0_i32_0 = arith.constant 0 : i32
    %c0_i32_1 = arith.constant 0 : i32
    return %c0_i32, %c0_i32_0 : i32, i32
  }
  func.func @transform_7(%arg0: i32) -> (i32, i32, i32) {
    %c0_i32 = arith.constant 0 : i32
    %c0_i32_0 = arith.constant 0 : i32
    %c0_i32_1 = arith.constant 0 : i32
    return %arg0, %c0_i32, %c0_i32_0 : i32, i32, i32
  }
}

module attributes {stable_mosaic.version = 11 : i64} {
  func.func @_tri_att_kernel(%arg0: i32, %arg1: memref<8x32xf32, #tpu.memory_space<vmem>>, %arg2: memref<1x8x32xf32, #tpu.memory_space<vmem>>, %arg3: memref<8x8xf32, #tpu.memory_space<vmem>>, %arg4: memref<1x3x32x32xbf16, #tpu.memory_space<vmem>>, %arg5: memref<1x3x1x32xf32, #tpu.memory_space<vmem>>, %arg6: memref<1x3x32x32xbf16, #tpu.memory_space<vmem>>, %arg7: memref<1x3x1x32xf32, #tpu.memory_space<vmem>>, %arg8: memref<1x32x32xbf16, #tpu.memory_space<vmem>>, %arg9: memref<1x1x32xf32, #tpu.memory_space<vmem>>, %arg10: memref<1x32x32xbf16, #tpu.memory_space<vmem>>, %arg11: memref<1x1x32xf32, #tpu.memory_space<vmem>>, %arg12: memref<1x8x32xf32, #tpu.memory_space<vmem>>, %arg13: memref<1x8x32xf32, #tpu.memory_space<vmem>>) attributes {dimension_semantics = [#tpu.dimension_semantics<parallel>], iteration_bounds = array<i64: 2>, scalar_prefetch = 0 : i64, scratch_operands = 0 : i64, tpu.core_type = #tpu.core_type<tc>, window_params = [{pipeline_mode = #tpu.pipeline_mode<synchronous>, transform_indices = @transform_0, window_bounds = array<i64: 8, 32>}, {transform_indices = @transform_1, window_bounds = array<i64: 1, 8, 32>}, {pipeline_mode = #tpu.pipeline_mode<synchronous>, transform_indices = @transform_2, window_bounds = array<i64: 8, 8>}, {transform_indices = @transform_3, window_bounds = array<i64: 1, 3, 32, 32>}, {transform_indices = @transform_4, window_bounds = array<i64: 1, 3, 1, 32>}, {transform_indices = @transform_5, window_bounds = array<i64: 1, 3, 32, 32>}, {transform_indices = @transform_6, window_bounds = array<i64: 1, 3, 1, 32>}, {transform_indices = @transform_7, window_bounds = array<i64: 1, 32, 32>}, {transform_indices = @transform_8, window_bounds = array<i64: 1, 1, 32>}, {transform_indices = @transform_9, window_bounds = array<i64: 1, 32, 32>}, {transform_indices = @transform_10, window_bounds = array<i64: 1, 1, 32>}, {transform_indices = @transform_11, window_bounds = array<i64: 1, 8, 32>}, {transform_indices = @transform_12, window_bounds = array<i64: 1, 8, 32>}]} {
    %c0 = arith.constant 0 : index
    %c0_0 = arith.constant 0 : index
    %0 = vector.load %arg1[%c0, %c0_0] : memref<8x32xf32, #tpu.memory_space<vmem>>, vector<8x32xf32>
    %c0_1 = arith.constant 0 : index
    %c0_2 = arith.constant 0 : index
    %c0_3 = arith.constant 0 : index
    %1 = vector.load %arg2[%c0_1, %c0_2, %c0_3] : memref<1x8x32xf32, #tpu.memory_space<vmem>>, vector<1x8x32xf32>
    %2 = vector.shape_cast %1 : vector<1x8x32xf32> to vector<8x32xf32>
    %c0_4 = arith.constant 0 : index
    %c0_5 = arith.constant 0 : index
    %3 = vector.load %arg3[%c0_4, %c0_5] : memref<8x8xf32, #tpu.memory_space<vmem>>, vector<8x8xf32>
    %c0_6 = arith.constant 0 : index
    %c0_7 = arith.constant 0 : index
    %c0_8 = arith.constant 0 : index
    %c0_9 = arith.constant 0 : index
    %4 = vector.load %arg4[%c0_6, %c0_7, %c0_8, %c0_9] : memref<1x3x32x32xbf16, #tpu.memory_space<vmem>>, vector<1x1x32x32xbf16>
    %5 = vector.shape_cast %4 : vector<1x1x32x32xbf16> to vector<32x32xbf16>
    %6 = arith.truncf %0 : vector<8x32xf32> to vector<8x32xbf16>
    %cst = arith.constant dense<0.000000e+00> : vector<8x32xf32>
    %7 = tpu.matmul %6, %5, %cst {dimension_numbers = #tpu.dot_dimension_numbers<[1], [0], [0], [1], [0, 0, 1, 1], [], []>} : vector<8x32xbf16>, vector<32x32xbf16>, vector<8x32xf32> -> vector<8x32xf32>
    %c0_10 = arith.constant 0 : index
    %c0_11 = arith.constant 0 : index
    %c0_12 = arith.constant 0 : index
    %c0_13 = arith.constant 0 : index
    %8 = vector.load %arg5[%c0_10, %c0_11, %c0_12, %c0_13] : memref<1x3x1x32xf32, #tpu.memory_space<vmem>>, vector<1x1x1x32xf32>
    %9 = vector.shape_cast %8 : vector<1x1x1x32xf32> to vector<1x32xf32>
    %10 = vector.broadcast %9 : vector<1x32xf32> to vector<8x32xf32>
    %11 = arith.addf %7, %10 : vector<8x32xf32>
    %c0_14 = arith.constant 0 : index
    %c1 = arith.constant 1 : index
    %c0_15 = arith.constant 0 : index
    %c0_16 = arith.constant 0 : index
    %12 = vector.load %arg4[%c0_14, %c1, %c0_15, %c0_16] : memref<1x3x32x32xbf16, #tpu.memory_space<vmem>>, vector<1x1x32x32xbf16>
    %13 = vector.shape_cast %12 : vector<1x1x32x32xbf16> to vector<32x32xbf16>
    %14 = arith.truncf %0 : vector<8x32xf32> to vector<8x32xbf16>
    %cst_17 = arith.constant dense<0.000000e+00> : vector<8x32xf32>
    %15 = tpu.matmul %14, %13, %cst_17 {dimension_numbers = #tpu.dot_dimension_numbers<[1], [0], [0], [1], [0, 0, 1, 1], [], []>} : vector<8x32xbf16>, vector<32x32xbf16>, vector<8x32xf32> -> vector<8x32xf32>
    %c0_18 = arith.constant 0 : index
    %c1_19 = arith.constant 1 : index
    %c0_20 = arith.constant 0 : index
    %c0_21 = arith.constant 0 : index
    %16 = vector.load %arg5[%c0_18, %c1_19, %c0_20, %c0_21] : memref<1x3x1x32xf32, #tpu.memory_space<vmem>>, vector<1x1x1x32xf32>
    %17 = vector.shape_cast %16 : vector<1x1x1x32xf32> to vector<1x32xf32>
    %18 = vector.broadcast %17 : vector<1x32xf32> to vector<8x32xf32>
    %19 = arith.addf %15, %18 : vector<8x32xf32>
    %c0_22 = arith.constant 0 : index
    %c2 = arith.constant 2 : index
    %c0_23 = arith.constant 0 : index
    %c0_24 = arith.constant 0 : index
    %20 = vector.load %arg4[%c0_22, %c2, %c0_23, %c0_24] : memref<1x3x32x32xbf16, #tpu.memory_space<vmem>>, vector<1x1x32x32xbf16>
    %21 = vector.shape_cast %20 : vector<1x1x32x32xbf16> to vector<32x32xbf16>
    %22 = arith.truncf %0 : vector<8x32xf32> to vector<8x32xbf16>
    %cst_25 = arith.constant dense<0.000000e+00> : vector<8x32xf32>
    %23 = tpu.matmul %22, %21, %cst_25 {dimension_numbers = #tpu.dot_dimension_numbers<[1], [0], [0], [1], [0, 0, 1, 1], [], []>} : vector<8x32xbf16>, vector<32x32xbf16>, vector<8x32xf32> -> vector<8x32xf32>
    %c0_26 = arith.constant 0 : index
    %c2_27 = arith.constant 2 : index
    %c0_28 = arith.constant 0 : index
    %c0_29 = arith.constant 0 : index
    %24 = vector.load %arg5[%c0_26, %c2_27, %c0_28, %c0_29] : memref<1x3x1x32xf32, #tpu.memory_space<vmem>>, vector<1x1x1x32xf32>
    %25 = vector.shape_cast %24 : vector<1x1x1x32xf32> to vector<1x32xf32>
    %26 = vector.broadcast %25 : vector<1x32xf32> to vector<8x32xf32>
    %27 = arith.addf %23, %26 : vector<8x32xf32>
    %c0_30 = arith.constant 0 : index
    %c0_31 = arith.constant 0 : index
    %c0_32 = arith.constant 0 : index
    %c0_33 = arith.constant 0 : index
    %28 = vector.load %arg6[%c0_30, %c0_31, %c0_32, %c0_33] : memref<1x3x32x32xbf16, #tpu.memory_space<vmem>>, vector<1x1x32x32xbf16>
    %29 = vector.shape_cast %28 : vector<1x1x32x32xbf16> to vector<32x32xbf16>
    %30 = arith.truncf %2 : vector<8x32xf32> to vector<8x32xbf16>
    %cst_34 = arith.constant dense<0.000000e+00> : vector<8x32xf32>
    %31 = tpu.matmul %30, %29, %cst_34 {dimension_numbers = #tpu.dot_dimension_numbers<[1], [0], [0], [1], [0, 0, 1, 1], [], []>} : vector<8x32xbf16>, vector<32x32xbf16>, vector<8x32xf32> -> vector<8x32xf32>
    %c0_35 = arith.constant 0 : index
    %c0_36 = arith.constant 0 : index
    %c0_37 = arith.constant 0 : index
    %c0_38 = arith.constant 0 : index
    %32 = vector.load %arg7[%c0_35, %c0_36, %c0_37, %c0_38] : memref<1x3x1x32xf32, #tpu.memory_space<vmem>>, vector<1x1x1x32xf32>
    %33 = vector.shape_cast %32 : vector<1x1x1x32xf32> to vector<1x32xf32>
    %34 = vector.broadcast %33 : vector<1x32xf32> to vector<8x32xf32>
    %35 = arith.addf %31, %34 : vector<8x32xf32>
    %c0_39 = arith.constant 0 : index
    %c1_40 = arith.constant 1 : index
    %c0_41 = arith.constant 0 : index
    %c0_42 = arith.constant 0 : index
    %36 = vector.load %arg6[%c0_39, %c1_40, %c0_41, %c0_42] : memref<1x3x32x32xbf16, #tpu.memory_space<vmem>>, vector<1x1x32x32xbf16>
    %37 = vector.shape_cast %36 : vector<1x1x32x32xbf16> to vector<32x32xbf16>
    %38 = arith.truncf %2 : vector<8x32xf32> to vector<8x32xbf16>
    %cst_43 = arith.constant dense<0.000000e+00> : vector<8x32xf32>
    %39 = tpu.matmul %38, %37, %cst_43 {dimension_numbers = #tpu.dot_dimension_numbers<[1], [0], [0], [1], [0, 0, 1, 1], [], []>} : vector<8x32xbf16>, vector<32x32xbf16>, vector<8x32xf32> -> vector<8x32xf32>
    %c0_44 = arith.constant 0 : index
    %c1_45 = arith.constant 1 : index
    %c0_46 = arith.constant 0 : index
    %c0_47 = arith.constant 0 : index
    %40 = vector.load %arg7[%c0_44, %c1_45, %c0_46, %c0_47] : memref<1x3x1x32xf32, #tpu.memory_space<vmem>>, vector<1x1x1x32xf32>
    %41 = vector.shape_cast %40 : vector<1x1x1x32xf32> to vector<1x32xf32>
    %42 = vector.broadcast %41 : vector<1x32xf32> to vector<8x32xf32>
    %43 = arith.addf %39, %42 : vector<8x32xf32>
    %c0_48 = arith.constant 0 : index
    %c2_49 = arith.constant 2 : index
    %c0_50 = arith.constant 0 : index
    %c0_51 = arith.constant 0 : index
    %44 = vector.load %arg6[%c0_48, %c2_49, %c0_50, %c0_51] : memref<1x3x32x32xbf16, #tpu.memory_space<vmem>>, vector<1x1x32x32xbf16>
    %45 = vector.shape_cast %44 : vector<1x1x32x32xbf16> to vector<32x32xbf16>
    %46 = arith.truncf %2 : vector<8x32xf32> to vector<8x32xbf16>
    %cst_52 = arith.constant dense<0.000000e+00> : vector<8x32xf32>
    %47 = tpu.matmul %46, %45, %cst_52 {dimension_numbers = #tpu.dot_dimension_numbers<[1], [0], [0], [1], [0, 0, 1, 1], [], []>} : vector<8x32xbf16>, vector<32x32xbf16>, vector<8x32xf32> -> vector<8x32xf32>
    %c0_53 = arith.constant 0 : index
    %c2_54 = arith.constant 2 : index
    %c0_55 = arith.constant 0 : index
    %c0_56 = arith.constant 0 : index
    %48 = vector.load %arg7[%c0_53, %c2_54, %c0_55, %c0_56] : memref<1x3x1x32xf32, #tpu.memory_space<vmem>>, vector<1x1x1x32xf32>
    %49 = vector.shape_cast %48 : vector<1x1x1x32xf32> to vector<1x32xf32>
    %50 = vector.broadcast %49 : vector<1x32xf32> to vector<8x32xf32>
    %51 = arith.addf %47, %50 : vector<8x32xf32>
    %52 = arith.truncf %11 : vector<8x32xf32> to vector<8x32xbf16>
    %53 = arith.truncf %43 : vector<8x32xf32> to vector<8x32xbf16>
    %cst_57 = arith.constant dense<0.000000e+00> : vector<8x8xf32>
    %54 = tpu.matmul %52, %53, %cst_57 {dimension_numbers = #tpu.dot_dimension_numbers<[1], [1], [0], [0], [0, 0, 1, 0], [], []>} : vector<8x32xbf16>, vector<8x32xbf16>, vector<8x8xf32> -> vector<8x8xf32>
    %55 = arith.addf %54, %3 : vector<8x8xf32>
    %cst_58 = arith.constant dense<0xFF800000> : vector<8xf32>
    %56 = vector.multi_reduction <maximumf>, %55, %cst_58 [1] : vector<8x8xf32> to vector<8xf32>
    %57 = vector.shape_cast %56 : vector<8xf32> to vector<8x1xf32>
    %58 = vector.broadcast %57 : vector<8x1xf32> to vector<8x8xf32>
    %59 = arith.subf %55, %58 : vector<8x8xf32>
    %60 = math.exp %59 : vector<8x8xf32>
    %cst_59 = arith.constant dense<0.000000e+00> : vector<8xf32>
    %61 = vector.multi_reduction <add>, %60, %cst_59 [1] : vector<8x8xf32> to vector<8xf32>
    %62 = vector.shape_cast %61 : vector<8xf32> to vector<8x1xf32>
    %63 = tpu.reciprocal %62 {approx = true} : vector<8x1xf32> -> vector<8x1xf32>
    %64 = vector.broadcast %63 : vector<8x1xf32> to vector<8x8xf32>
    %65 = arith.mulf %60, %64 : vector<8x8xf32>
    %66 = arith.truncf %65 : vector<8x8xf32> to vector<8x8xbf16>
    %67 = arith.truncf %51 : vector<8x32xf32> to vector<8x32xbf16>
    %cst_60 = arith.constant dense<0.000000e+00> : vector<8x32xf32>
    %68 = tpu.matmul %66, %67, %cst_60 {dimension_numbers = #tpu.dot_dimension_numbers<[1], [0], [0], [1], [0, 0, 1, 1], [], []>} : vector<8x8xbf16>, vector<8x32xbf16>, vector<8x32xf32> -> vector<8x32xf32>
    %69 = arith.truncf %35 : vector<8x32xf32> to vector<8x32xbf16>
    %70 = arith.truncf %19 : vector<8x32xf32> to vector<8x32xbf16>
    %cst_61 = arith.constant dense<0.000000e+00> : vector<8x8xf32>
    %71 = tpu.matmul %69, %70, %cst_61 {dimension_numbers = #tpu.dot_dimension_numbers<[1], [1], [0], [0], [0, 0, 1, 0], [], []>} : vector<8x32xbf16>, vector<8x32xbf16>, vector<8x8xf32> -> vector<8x8xf32>
    %72 = arith.addf %71, %3 : vector<8x8xf32>
    %cst_62 = arith.constant dense<0xFF800000> : vector<8xf32>
    %73 = vector.multi_reduction <maximumf>, %72, %cst_62 [1] : vector<8x8xf32> to vector<8xf32>
    %74 = vector.shape_cast %73 : vector<8xf32> to vector<8x1xf32>
    %75 = vector.broadcast %74 : vector<8x1xf32> to vector<8x8xf32>
    %76 = arith.subf %72, %75 : vector<8x8xf32>
    %77 = math.exp %76 : vector<8x8xf32>
    %cst_63 = arith.constant dense<0.000000e+00> : vector<8xf32>
    %78 = vector.multi_reduction <add>, %77, %cst_63 [1] : vector<8x8xf32> to vector<8xf32>
    %79 = vector.shape_cast %78 : vector<8xf32> to vector<8x1xf32>
    %80 = tpu.reciprocal %79 {approx = true} : vector<8x1xf32> -> vector<8x1xf32>
    %81 = vector.broadcast %80 : vector<8x1xf32> to vector<8x8xf32>
    %82 = arith.mulf %77, %81 : vector<8x8xf32>
    %83 = arith.truncf %82 : vector<8x8xf32> to vector<8x8xbf16>
    %84 = arith.truncf %27 : vector<8x32xf32> to vector<8x32xbf16>
    %cst_64 = arith.constant dense<0.000000e+00> : vector<8x32xf32>
    %85 = tpu.matmul %83, %84, %cst_64 {dimension_numbers = #tpu.dot_dimension_numbers<[1], [0], [0], [1], [0, 0, 1, 1], [], []>} : vector<8x8xbf16>, vector<8x32xbf16>, vector<8x32xf32> -> vector<8x32xf32>
    %c0_65 = arith.constant 0 : index
    %c0_66 = arith.constant 0 : index
    %c0_67 = arith.constant 0 : index
    %86 = vector.load %arg8[%c0_65, %c0_66, %c0_67] : memref<1x32x32xbf16, #tpu.memory_space<vmem>>, vector<1x32x32xbf16>
    %87 = vector.shape_cast %86 : vector<1x32x32xbf16> to vector<32x32xbf16>
    %88 = arith.truncf %68 : vector<8x32xf32> to vector<8x32xbf16>
    %cst_68 = arith.constant dense<0.000000e+00> : vector<8x32xf32>
    %89 = tpu.matmul %88, %87, %cst_68 {dimension_numbers = #tpu.dot_dimension_numbers<[1], [0], [0], [1], [0, 0, 1, 1], [], []>} : vector<8x32xbf16>, vector<32x32xbf16>, vector<8x32xf32> -> vector<8x32xf32>
    %c0_69 = arith.constant 0 : index
    %c0_70 = arith.constant 0 : index
    %c0_71 = arith.constant 0 : index
    %90 = vector.load %arg9[%c0_69, %c0_70, %c0_71] : memref<1x1x32xf32, #tpu.memory_space<vmem>>, vector<1x1x32xf32>
    %91 = vector.shape_cast %90 : vector<1x1x32xf32> to vector<1x32xf32>
    %92 = vector.broadcast %91 : vector<1x32xf32> to vector<8x32xf32>
    %93 = arith.addf %89, %92 : vector<8x32xf32>
    %c0_72 = arith.constant 0 : index
    %c0_73 = arith.constant 0 : index
    %c0_74 = arith.constant 0 : index
    %94 = vector.load %arg12[%c0_72, %c0_73, %c0_74] : memref<1x8x32xf32, #tpu.memory_space<vmem>>, vector<1x8x32xf32>
    %95 = vector.shape_cast %94 : vector<1x8x32xf32> to vector<8x32xf32>
    %96 = vector.shape_cast %93 : vector<8x32xf32> to vector<1x8x32xf32>
    tpu.vector_store %arg12[%c0_72, %c0_73, %c0_74], %96 {strides = array<i32>} : memref<1x8x32xf32, #tpu.memory_space<vmem>>, vector<1x8x32xf32>,
    %c0_75 = arith.constant 0 : index
    %c0_76 = arith.constant 0 : index
    %c0_77 = arith.constant 0 : index
    %97 = vector.load %arg10[%c0_75, %c0_76, %c0_77] : memref<1x32x32xbf16, #tpu.memory_space<vmem>>, vector<1x32x32xbf16>
    %98 = vector.shape_cast %97 : vector<1x32x32xbf16> to vector<32x32xbf16>
    %99 = arith.truncf %85 : vector<8x32xf32> to vector<8x32xbf16>
    %cst_78 = arith.constant dense<0.000000e+00> : vector<8x32xf32>
    %100 = tpu.matmul %99, %98, %cst_78 {dimension_numbers = #tpu.dot_dimension_numbers<[1], [0], [0], [1], [0, 0, 1, 1], [], []>} : vector<8x32xbf16>, vector<32x32xbf16>, vector<8x32xf32> -> vector<8x32xf32>
    %c0_79 = arith.constant 0 : index
    %c0_80 = arith.constant 0 : index
    %c0_81 = arith.constant 0 : index
    %101 = vector.load %arg11[%c0_79, %c0_80, %c0_81] : memref<1x1x32xf32, #tpu.memory_space<vmem>>, vector<1x1x32xf32>
    %102 = vector.shape_cast %101 : vector<1x1x32xf32> to vector<1x32xf32>
    %103 = vector.broadcast %102 : vector<1x32xf32> to vector<8x32xf32>
    %104 = arith.addf %100, %103 : vector<8x32xf32>
    %c0_82 = arith.constant 0 : index
    %c0_83 = arith.constant 0 : index
    %c0_84 = arith.constant 0 : index
    %105 = vector.load %arg13[%c0_82, %c0_83, %c0_84] : memref<1x8x32xf32, #tpu.memory_space<vmem>>, vector<1x8x32xf32>
    %106 = vector.shape_cast %105 : vector<1x8x32xf32> to vector<8x32xf32>
    %107 = vector.shape_cast %104 : vector<8x32xf32> to vector<1x8x32xf32>
    tpu.vector_store %arg13[%c0_82, %c0_83, %c0_84], %107 {strides = array<i32>} : memref<1x8x32xf32, #tpu.memory_space<vmem>>, vector<1x8x32xf32>,
    return
  }
  func.func @transform_0(%arg0: i32) -> (i32, i32) {
    %c0_i32 = arith.constant 0 : i32
    %c0_i32_0 = arith.constant 0 : i32
    %c0_i32_1 = arith.constant 0 : i32
    return %c0_i32, %c0_i32_0 : i32, i32
  }
  func.func @transform_1(%arg0: i32) -> (i32, i32, i32) {
    %c0_i32 = arith.constant 0 : i32
    %c0_i32_0 = arith.constant 0 : i32
    %c0_i32_1 = arith.constant 0 : i32
    return %arg0, %c0_i32, %c0_i32_0 : i32, i32, i32
  }
  func.func @transform_2(%arg0: i32) -> (i32, i32) {
    %c0_i32 = arith.constant 0 : i32
    %c0_i32_0 = arith.constant 0 : i32
    %c0_i32_1 = arith.constant 0 : i32
    return %c0_i32, %c0_i32_0 : i32, i32
  }
  func.func @transform_3(%arg0: i32) -> (i32, i32, i32, i32) {
    %c0_i32 = arith.constant 0 : i32
    %c0_i32_0 = arith.constant 0 : i32
    %c0_i32_1 = arith.constant 0 : i32
    %c0_i32_2 = arith.constant 0 : i32
    return %arg0, %c0_i32, %c0_i32_0, %c0_i32_1 : i32, i32, i32, i32
  }
  func.func @transform_4(%arg0: i32) -> (i32, i32, i32, i32) {
    %c0_i32 = arith.constant 0 : i32
    %c0_i32_0 = arith.constant 0 : i32
    %c0_i32_1 = arith.constant 0 : i32
    %c0_i32_2 = arith.constant 0 : i32
    return %arg0, %c0_i32, %c0_i32_0, %c0_i32_1 : i32, i32, i32, i32
  }
  func.func @transform_5(%arg0: i32) -> (i32, i32, i32, i32) {
    %c0_i32 = arith.constant 0 : i32
    %c0_i32_0 = arith.constant 0 : i32
    %c0_i32_1 = arith.constant 0 : i32
    %c0_i32_2 = arith.constant 0 : i32
    return %arg0, %c0_i32, %c0_i32_0, %c0_i32_1 : i32, i32, i32, i32
  }
  func.func @transform_6(%arg0: i32) -> (i32, i32, i32, i32) {
    %c0_i32 = arith.constant 0 : i32
    %c0_i32_0 = arith.constant 0 : i32
    %c0_i32_1 = arith.constant 0 : i32
    %c0_i32_2 = arith.constant 0 : i32
    return %arg0, %c0_i32, %c0_i32_0, %c0_i32_1 : i32, i32, i32, i32
  }
  func.func @transform_7(%arg0: i32) -> (i32, i32, i32) {
    %c0_i32 = arith.constant 0 : i32
    %c0_i32_0 = arith.constant 0 : i32
    %c0_i32_1 = arith.constant 0 : i32
    return %arg0, %c0_i32, %c0_i32_0 : i32, i32, i32
  }
  func.func @transform_8(%arg0: i32) -> (i32, i32, i32) {
    %c0_i32 = arith.constant 0 : i32
    %c0_i32_0 = arith.constant 0 : i32
    %c0_i32_1 = arith.constant 0 : i32
    return %arg0, %c0_i32, %c0_i32_0 : i32, i32, i32
  }
  func.func @transform_9(%arg0: i32) -> (i32, i32, i32) {
    %c0_i32 = arith.constant 0 : i32
    %c0_i32_0 = arith.constant 0 : i32
    %c0_i32_1 = arith.constant 0 : i32
    return %arg0, %c0_i32, %c0_i32_0 : i32, i32, i32
  }
  func.func @transform_10(%arg0: i32) -> (i32, i32, i32) {
    %c0_i32 = arith.constant 0 : i32
    %c0_i32_0 = arith.constant 0 : i32
    %c0_i32_1 = arith.constant 0 : i32
    return %arg0, %c0_i32, %c0_i32_0 : i32, i32, i32
  }
  func.func @transform_11(%arg0: i32) -> (i32, i32, i32) {
    %c0_i32 = arith.constant 0 : i32
    %c0_i32_0 = arith.constant 0 : i32
    %c0_i32_1 = arith.constant 0 : i32
    return %arg0, %c0_i32, %c0_i32_0 : i32, i32, i32
  }
  func.func @transform_12(%arg0: i32) -> (i32, i32, i32) {
    %c0_i32 = arith.constant 0 : i32
    %c0_i32_0 = arith.constant 0 : i32
    %c0_i32_1 = arith.constant 0 : i32
    return %arg0, %c0_i32, %c0_i32_0 : i32, i32, i32
  }
}

module attributes {stable_mosaic.version = 11 : i64} {
  func.func @_tail_kernel(%arg0: i32, %arg1: memref<8x32xf32, #tpu.memory_space<vmem>>, %arg2: memref<8x32xf32, #tpu.memory_space<vmem>>, %arg3: memref<8x32xf32, #tpu.memory_space<vmem>>, %arg4: memref<8x32xf32, #tpu.memory_space<vmem>>, %arg5: memref<8x32xf32, #tpu.memory_space<vmem>>, %arg6: memref<8x32xf32, #tpu.memory_space<vmem>>, %arg7: memref<8x32xf32, #tpu.memory_space<vmem>>, %arg8: memref<2x8xf32, #tpu.memory_space<vmem>>, %arg9: memref<96x32xbf16, #tpu.memory_space<vmem>>, %arg10: memref<1x32xf32, #tpu.memory_space<vmem>>, %arg11: memref<32x32xbf16, #tpu.memory_space<vmem>>, %arg12: memref<1x32xf32, #tpu.memory_space<vmem>>, %arg13: memref<32x1xbf16, #tpu.memory_space<vmem>>, %arg14: memref<1x1xf32, #tpu.memory_space<vmem>>, %arg15: memref<64x32xbf16, #tpu.memory_space<vmem>>, %arg16: memref<1x32xf32, #tpu.memory_space<vmem>>, %arg17: memref<32x32xbf16, #tpu.memory_space<vmem>>, %arg18: memref<1x32xf32, #tpu.memory_space<vmem>>, %arg19: memref<32x32xbf16, #tpu.memory_space<vmem>>, %arg20: memref<1x32xf32, #tpu.memory_space<vmem>>, %arg21: memref<32x32xbf16, #tpu.memory_space<vmem>>, %arg22: memref<1x32xf32, #tpu.memory_space<vmem>>, %arg23: memref<32x32xbf16, #tpu.memory_space<vmem>>, %arg24: memref<1x32xf32, #tpu.memory_space<vmem>>, %arg25: memref<32x32xbf16, #tpu.memory_space<vmem>>, %arg26: memref<1x32xf32, #tpu.memory_space<vmem>>, %arg27: memref<32x1xbf16, #tpu.memory_space<vmem>>, %arg28: memref<1x1xf32, #tpu.memory_space<vmem>>, %arg29: memref<3x64x32xbf16, #tpu.memory_space<vmem>>, %arg30: memref<3x1x32xf32, #tpu.memory_space<vmem>>, %arg31: memref<3x32x32xbf16, #tpu.memory_space<vmem>>, %arg32: memref<3x1x32xf32, #tpu.memory_space<vmem>>, %arg33: memref<4x1xf32, #tpu.memory_space<vmem>>, %arg34: memref<8x32xf32, #tpu.memory_space<vmem>>) attributes {dimension_semantics = [#tpu.dimension_semantics<arbitrary>], iteration_bounds = array<i64: 1>, scalar_prefetch = 0 : i64, scratch_operands = 0 : i64, tpu.core_type = #tpu.core_type<tc>, window_params = [{pipeline_mode = #tpu.pipeline_mode<synchronous>, transform_indices = @transform_0, window_bounds = array<i64: 8, 32>}, {pipeline_mode = #tpu.pipeline_mode<synchronous>, transform_indices = @transform_1, window_bounds = array<i64: 8, 32>}, {pipeline_mode = #tpu.pipeline_mode<synchronous>, transform_indices = @transform_2, window_bounds = array<i64: 8, 32>}, {pipeline_mode = #tpu.pipeline_mode<synchronous>, transform_indices = @transform_3, window_bounds = array<i64: 8, 32>}, {pipeline_mode = #tpu.pipeline_mode<synchronous>, transform_indices = @transform_4, window_bounds = array<i64: 8, 32>}, {pipeline_mode = #tpu.pipeline_mode<synchronous>, transform_indices = @transform_5, window_bounds = array<i64: 8, 32>}, {pipeline_mode = #tpu.pipeline_mode<synchronous>, transform_indices = @transform_6, window_bounds = array<i64: 8, 32>}, {pipeline_mode = #tpu.pipeline_mode<synchronous>, transform_indices = @transform_7, window_bounds = array<i64: 2, 8>}, {pipeline_mode = #tpu.pipeline_mode<synchronous>, transform_indices = @transform_8, window_bounds = array<i64: 96, 32>}, {pipeline_mode = #tpu.pipeline_mode<synchronous>, transform_indices = @transform_9, window_bounds = array<i64: 1, 32>}, {pipeline_mode = #tpu.pipeline_mode<synchronous>, transform_indices = @transform_10, window_bounds = array<i64: 32, 32>}, {pipeline_mode = #tpu.pipeline_mode<synchronous>, transform_indices = @transform_11, window_bounds = array<i64: 1, 32>}, {pipeline_mode = #tpu.pipeline_mode<synchronous>, transform_indices = @transform_12, window_bounds = array<i64: 32, 1>}, {pipeline_mode = #tpu.pipeline_mode<synchronous>, transform_indices = @transform_13, window_bounds = array<i64: 1, 1>}, {pipeline_mode = #tpu.pipeline_mode<synchronous>, transform_indices = @transform_14, window_bounds = array<i64: 64, 32>}, {pipeline_mode = #tpu.pipeline_mode<synchronous>, transform_indices = @transform_15, window_bounds = array<i64: 1, 32>}, {pipeline_mode = #tpu.pipeline_mode<synchronous>, transform_indices = @transform_16, window_bounds = array<i64: 32, 32>}, {pipeline_mode = #tpu.pipeline_mode<synchronous>, transform_indices = @transform_17, window_bounds = array<i64: 1, 32>}, {pipeline_mode = #tpu.pipeline_mode<synchronous>, transform_indices = @transform_18, window_bounds = array<i64: 32, 32>}, {pipeline_mode = #tpu.pipeline_mode<synchronous>, transform_indices = @transform_19, window_bounds = array<i64: 1, 32>}, {pipeline_mode = #tpu.pipeline_mode<synchronous>, transform_indices = @transform_20, window_bounds = array<i64: 32, 32>}, {pipeline_mode = #tpu.pipeline_mode<synchronous>, transform_indices = @transform_21, window_bounds = array<i64: 1, 32>}, {pipeline_mode = #tpu.pipeline_mode<synchronous>, transform_indices = @transform_22, window_bounds = array<i64: 32, 32>}, {pipeline_mode = #tpu.pipeline_mode<synchronous>, transform_indices = @transform_23, window_bounds = array<i64: 1, 32>}, {pipeline_mode = #tpu.pipeline_mode<synchronous>, transform_indices = @transform_24, window_bounds = array<i64: 32, 32>}, {pipeline_mode = #tpu.pipeline_mode<synchronous>, transform_indices = @transform_25, window_bounds = array<i64: 1, 32>}, {pipeline_mode = #tpu.pipeline_mode<synchronous>, transform_indices = @transform_26, window_bounds = array<i64: 32, 1>}, {pipeline_mode = #tpu.pipeline_mode<synchronous>, transform_indices = @transform_27, window_bounds = array<i64: 1, 1>}, {pipeline_mode = #tpu.pipeline_mode<synchronous>, transform_indices = @transform_28, window_bounds = array<i64: 3, 64, 32>}, {pipeline_mode = #tpu.pipeline_mode<synchronous>, transform_indices = @transform_29, window_bounds = array<i64: 3, 1, 32>}, {pipeline_mode = #tpu.pipeline_mode<synchronous>, transform_indices = @transform_30, window_bounds = array<i64: 3, 32, 32>}, {pipeline_mode = #tpu.pipeline_mode<synchronous>, transform_indices = @transform_31, window_bounds = array<i64: 3, 1, 32>}, {pipeline_mode = #tpu.pipeline_mode<synchronous>, transform_indices = @transform_32, window_bounds = array<i64: 4, 1>}, {pipeline_mode = #tpu.pipeline_mode<synchronous>, transform_indices = @transform_33, window_bounds = array<i64: 8, 32>}]} {
    %c0 = arith.constant 0 : index
    %c0_0 = arith.constant 0 : index
    %0 = vector.load %arg1[%c0, %c0_0] : memref<8x32xf32, #tpu.memory_space<vmem>>, vector<8x32xf32>
    %c0_1 = arith.constant 0 : index
    %c0_2 = arith.constant 0 : index
    %1 = vector.load %arg2[%c0_1, %c0_2] : memref<8x32xf32, #tpu.memory_space<vmem>>, vector<8x32xf32>
    %c0_3 = arith.constant 0 : index
    %c0_4 = arith.constant 0 : index
    %2 = vector.load %arg3[%c0_3, %c0_4] : memref<8x32xf32, #tpu.memory_space<vmem>>, vector<8x32xf32>
    %c0_5 = arith.constant 0 : index
    %c0_6 = arith.constant 0 : index
    %3 = vector.load %arg4[%c0_5, %c0_6] : memref<8x32xf32, #tpu.memory_space<vmem>>, vector<8x32xf32>
    %c0_7 = arith.constant 0 : index
    %c0_8 = arith.constant 0 : index
    %4 = vector.load %arg5[%c0_7, %c0_8] : memref<8x32xf32, #tpu.memory_space<vmem>>, vector<8x32xf32>
    %c0_9 = arith.constant 0 : index
    %c0_10 = arith.constant 0 : index
    %5 = vector.load %arg6[%c0_9, %c0_10] : memref<8x32xf32, #tpu.memory_space<vmem>>, vector<8x32xf32>
    %c0_11 = arith.constant 0 : index
    %c0_12 = arith.constant 0 : index
    %6 = vector.load %arg7[%c0_11, %c0_12] : memref<8x32xf32, #tpu.memory_space<vmem>>, vector<8x32xf32>
    %c0_13 = arith.constant 0 : index
    %c0_14 = arith.constant 0 : index
    %7 = vector.load %arg8[%c0_13, %c0_14] : memref<2x8xf32, #tpu.memory_space<vmem>>, vector<2x8xf32>
    %8 = tpu.concatenate %0, %1, %2 in 1 : vector<8x32xf32>, vector<8x32xf32>, vector<8x32xf32> -> vector<8x96xf32>
    %9 = arith.truncf %7 : vector<2x8xf32> to vector<2x8xbf16>
    %10 = arith.truncf %8 : vector<8x96xf32> to vector<8x96xbf16>
    %cst = arith.constant dense<0.000000e+00> : vector<2x96xf32>
    %11 = tpu.matmul %9, %10, %cst {dimension_numbers = #tpu.dot_dimension_numbers<[1], [0], [0], [1], [0, 0, 1, 1], [], []>} : vector<2x8xbf16>, vector<8x96xbf16>, vector<2x96xf32> -> vector<2x96xf32>
    %c0_15 = arith.constant 0 : index
    %c0_16 = arith.constant 0 : index
    %12 = vector.load %arg9[%c0_15, %c0_16] : memref<96x32xbf16, #tpu.memory_space<vmem>>, vector<96x32xbf16>
    %13 = arith.truncf %11 : vector<2x96xf32> to vector<2x96xbf16>
    %cst_17 = arith.constant dense<0.000000e+00> : vector<2x32xf32>
    %14 = tpu.matmul %13, %12, %cst_17 {dimension_numbers = #tpu.dot_dimension_numbers<[1], [0], [0], [1], [0, 0, 1, 1], [], []>} : vector<2x96xbf16>, vector<96x32xbf16>, vector<2x32xf32> -> vector<2x32xf32>
    %c0_18 = arith.constant 0 : index
    %c0_19 = arith.constant 0 : index
    %15 = vector.load %arg10[%c0_18, %c0_19] : memref<1x32xf32, #tpu.memory_space<vmem>>, vector<1x32xf32>
    %16 = vector.broadcast %15 : vector<1x32xf32> to vector<2x32xf32>
    %17 = arith.addf %14, %16 : vector<2x32xf32>
    %18 = math.tanh %17 : vector<2x32xf32>
    %c0_20 = arith.constant 0 : index
    %c0_21 = arith.constant 0 : index
    %19 = vector.load %arg11[%c0_20, %c0_21] : memref<32x32xbf16, #tpu.memory_space<vmem>>, vector<32x32xbf16>
    %20 = arith.truncf %18 : vector<2x32xf32> to vector<2x32xbf16>
    %cst_22 = arith.constant dense<0.000000e+00> : vector<2x32xf32>
    %21 = tpu.matmul %20, %19, %cst_22 {dimension_numbers = #tpu.dot_dimension_numbers<[1], [0], [0], [1], [0, 0, 1, 1], [], []>} : vector<2x32xbf16>, vector<32x32xbf16>, vector<2x32xf32> -> vector<2x32xf32>
    %c0_23 = arith.constant 0 : index
    %c0_24 = arith.constant 0 : index
    %22 = vector.load %arg12[%c0_23, %c0_24] : memref<1x32xf32, #tpu.memory_space<vmem>>, vector<1x32xf32>
    %23 = vector.broadcast %22 : vector<1x32xf32> to vector<2x32xf32>
    %24 = arith.addf %21, %23 : vector<2x32xf32>
    %25 = math.tanh %24 : vector<2x32xf32>
    %c0_25 = arith.constant 0 : index
    %c0_26 = arith.constant 0 : index
    %26 = vector.load %arg13[%c0_25, %c0_26] : memref<32x1xbf16, #tpu.memory_space<vmem>>, vector<32x1xbf16>
    %27 = arith.truncf %25 : vector<2x32xf32> to vector<2x32xbf16>
    %cst_27 = arith.constant dense<0.000000e+00> : vector<2x1xf32>
    %28 = tpu.matmul %27, %26, %cst_27 {dimension_numbers = #tpu.dot_dimension_numbers<[1], [0], [0], [1], [0, 0, 1, 1], [], []>} : vector<2x32xbf16>, vector<32x1xbf16>, vector<2x1xf32> -> vector<2x1xf32>
    %c0_28 = arith.constant 0 : index
    %c0_29 = arith.constant 0 : index
    %29 = vector.load %arg14[%c0_28, %c0_29] : memref<1x1xf32, #tpu.memory_space<vmem>>, vector<1x1xf32>
    %30 = vector.broadcast %29 : vector<1x1xf32> to vector<2x1xf32>
    %31 = arith.addf %28, %30 : vector<2x1xf32>
    %32 = tpu.concatenate %5, %3 in 1 : vector<8x32xf32>, vector<8x32xf32> -> vector<8x64xf32>
    %c0_30 = arith.constant 0 : index
    %c0_31 = arith.constant 0 : index
    %33 = vector.load %arg15[%c0_30, %c0_31] : memref<64x32xbf16, #tpu.memory_space<vmem>>, vector<64x32xbf16>
    %34 = arith.truncf %32 : vector<8x64xf32> to vector<8x64xbf16>
    %cst_32 = arith.constant dense<0.000000e+00> : vector<8x32xf32>
    %35 = tpu.matmul %34, %33, %cst_32 {dimension_numbers = #tpu.dot_dimension_numbers<[1], [0], [0], [1], [0, 0, 1, 1], [], []>} : vector<8x64xbf16>, vector<64x32xbf16>, vector<8x32xf32> -> vector<8x32xf32>
    %c0_33 = arith.constant 0 : index
    %c0_34 = arith.constant 0 : index
    %36 = vector.load %arg16[%c0_33, %c0_34] : memref<1x32xf32, #tpu.memory_space<vmem>>, vector<1x32xf32>
    %37 = vector.broadcast %36 : vector<1x32xf32> to vector<8x32xf32>
    %38 = arith.addf %35, %37 : vector<8x32xf32>
    %39 = math.tanh %38 : vector<8x32xf32>
    %c0_35 = arith.constant 0 : index
    %c0_36 = arith.constant 0 : index
    %40 = vector.load %arg17[%c0_35, %c0_36] : memref<32x32xbf16, #tpu.memory_space<vmem>>, vector<32x32xbf16>
    %41 = arith.truncf %39 : vector<8x32xf32> to vector<8x32xbf16>
    %cst_37 = arith.constant dense<0.000000e+00> : vector<8x32xf32>
    %42 = tpu.matmul %41, %40, %cst_37 {dimension_numbers = #tpu.dot_dimension_numbers<[1], [0], [0], [1], [0, 0, 1, 1], [], []>} : vector<8x32xbf16>, vector<32x32xbf16>, vector<8x32xf32> -> vector<8x32xf32>
    %c0_38 = arith.constant 0 : index
    %c0_39 = arith.constant 0 : index
    %43 = vector.load %arg18[%c0_38, %c0_39] : memref<1x32xf32, #tpu.memory_space<vmem>>, vector<1x32xf32>
    %44 = vector.broadcast %43 : vector<1x32xf32> to vector<8x32xf32>
    %45 = arith.addf %42, %44 : vector<8x32xf32>
    %46 = math.tanh %45 : vector<8x32xf32>
    %47 = arith.truncf %7 : vector<2x8xf32> to vector<2x8xbf16>
    %48 = arith.truncf %46 : vector<8x32xf32> to vector<8x32xbf16>
    %cst_40 = arith.constant dense<0.000000e+00> : vector<2x32xf32>
    %49 = tpu.matmul %47, %48, %cst_40 {dimension_numbers = #tpu.dot_dimension_numbers<[1], [0], [0], [1], [0, 0, 1, 1], [], []>} : vector<2x8xbf16>, vector<8x32xbf16>, vector<2x32xf32> -> vector<2x32xf32>
    %50 = arith.truncf %7 : vector<2x8xf32> to vector<2x8xbf16>
    %51 = arith.truncf %6 : vector<8x32xf32> to vector<8x32xbf16>
    %cst_41 = arith.constant dense<0.000000e+00> : vector<2x32xf32>
    %52 = tpu.matmul %50, %51, %cst_41 {dimension_numbers = #tpu.dot_dimension_numbers<[1], [0], [0], [1], [0, 0, 1, 1], [], []>} : vector<2x8xbf16>, vector<8x32xbf16>, vector<2x32xf32> -> vector<2x32xf32>
    %53 = arith.truncf %7 : vector<2x8xf32> to vector<2x8xbf16>
    %54 = arith.truncf %4 : vector<8x32xf32> to vector<8x32xbf16>
    %cst_42 = arith.constant dense<0.000000e+00> : vector<2x32xf32>
    %55 = tpu.matmul %53, %54, %cst_42 {dimension_numbers = #tpu.dot_dimension_numbers<[1], [0], [0], [1], [0, 0, 1, 1], [], []>} : vector<2x8xbf16>, vector<8x32xbf16>, vector<2x32xf32> -> vector<2x32xf32>
    %c0_43 = arith.constant 0 : index
    %c0_44 = arith.constant 0 : index
    %56 = vector.load %arg19[%c0_43, %c0_44] : memref<32x32xbf16, #tpu.memory_space<vmem>>, vector<32x32xbf16>
    %57 = arith.truncf %49 : vector<2x32xf32> to vector<2x32xbf16>
    %cst_45 = arith.constant dense<0.000000e+00> : vector<2x32xf32>
    %58 = tpu.matmul %57, %56, %cst_45 {dimension_numbers = #tpu.dot_dimension_numbers<[1], [0], [0], [1], [0, 0, 1, 1], [], []>} : vector<2x32xbf16>, vector<32x32xbf16>, vector<2x32xf32> -> vector<2x32xf32>
    %c0_46 = arith.constant 0 : index
    %c0_47 = arith.constant 0 : index
    %59 = vector.load %arg20[%c0_46, %c0_47] : memref<1x32xf32, #tpu.memory_space<vmem>>, vector<1x32xf32>
    %60 = vector.broadcast %59 : vector<1x32xf32> to vector<2x32xf32>
    %61 = arith.addf %58, %60 : vector<2x32xf32>
    %62 = math.tanh %61 : vector<2x32xf32>
    %c0_48 = arith.constant 0 : index
    %c0_49 = arith.constant 0 : index
    %63 = vector.load %arg21[%c0_48, %c0_49] : memref<32x32xbf16, #tpu.memory_space<vmem>>, vector<32x32xbf16>
    %64 = arith.truncf %62 : vector<2x32xf32> to vector<2x32xbf16>
    %cst_50 = arith.constant dense<0.000000e+00> : vector<2x32xf32>
    %65 = tpu.matmul %64, %63, %cst_50 {dimension_numbers = #tpu.dot_dimension_numbers<[1], [0], [0], [1], [0, 0, 1, 1], [], []>} : vector<2x32xbf16>, vector<32x32xbf16>, vector<2x32xf32> -> vector<2x32xf32>
    %c0_51 = arith.constant 0 : index
    %c0_52 = arith.constant 0 : index
    %66 = vector.load %arg22[%c0_51, %c0_52] : memref<1x32xf32, #tpu.memory_space<vmem>>, vector<1x32xf32>
    %67 = vector.broadcast %66 : vector<1x32xf32> to vector<2x32xf32>
    %68 = arith.addf %65, %67 : vector<2x32xf32>
    %c0_53 = arith.constant 0 : index
    %c0_54 = arith.constant 0 : index
    %69 = vector.load %arg19[%c0_53, %c0_54] : memref<32x32xbf16, #tpu.memory_space<vmem>>, vector<32x32xbf16>
    %70 = arith.truncf %52 : vector<2x32xf32> to vector<2x32xbf16>
    %cst_55 = arith.constant dense<0.000000e+00> : vector<2x32xf32>
    %71 = tpu.matmul %70, %69, %cst_55 {dimension_numbers = #tpu.dot_dimension_numbers<[1], [0], [0], [1], [0, 0, 1, 1], [], []>} : vector<2x32xbf16>, vector<32x32xbf16>, vector<2x32xf32> -> vector<2x32xf32>
    %c0_56 = arith.constant 0 : index
    %c0_57 = arith.constant 0 : index
    %72 = vector.load %arg20[%c0_56, %c0_57] : memref<1x32xf32, #tpu.memory_space<vmem>>, vector<1x32xf32>
    %73 = vector.broadcast %72 : vector<1x32xf32> to vector<2x32xf32>
    %74 = arith.addf %71, %73 : vector<2x32xf32>
    %75 = math.tanh %74 : vector<2x32xf32>
    %c0_58 = arith.constant 0 : index
    %c0_59 = arith.constant 0 : index
    %76 = vector.load %arg21[%c0_58, %c0_59] : memref<32x32xbf16, #tpu.memory_space<vmem>>, vector<32x32xbf16>
    %77 = arith.truncf %75 : vector<2x32xf32> to vector<2x32xbf16>
    %cst_60 = arith.constant dense<0.000000e+00> : vector<2x32xf32>
    %78 = tpu.matmul %77, %76, %cst_60 {dimension_numbers = #tpu.dot_dimension_numbers<[1], [0], [0], [1], [0, 0, 1, 1], [], []>} : vector<2x32xbf16>, vector<32x32xbf16>, vector<2x32xf32> -> vector<2x32xf32>
    %c0_61 = arith.constant 0 : index
    %c0_62 = arith.constant 0 : index
    %79 = vector.load %arg22[%c0_61, %c0_62] : memref<1x32xf32, #tpu.memory_space<vmem>>, vector<1x32xf32>
    %80 = vector.broadcast %79 : vector<1x32xf32> to vector<2x32xf32>
    %81 = arith.addf %78, %80 : vector<2x32xf32>
    %c0_63 = arith.constant 0 : index
    %c0_64 = arith.constant 0 : index
    %82 = vector.load %arg19[%c0_63, %c0_64] : memref<32x32xbf16, #tpu.memory_space<vmem>>, vector<32x32xbf16>
    %83 = arith.truncf %55 : vector<2x32xf32> to vector<2x32xbf16>
    %cst_65 = arith.constant dense<0.000000e+00> : vector<2x32xf32>
    %84 = tpu.matmul %83, %82, %cst_65 {dimension_numbers = #tpu.dot_dimension_numbers<[1], [0], [0], [1], [0, 0, 1, 1], [], []>} : vector<2x32xbf16>, vector<32x32xbf16>, vector<2x32xf32> -> vector<2x32xf32>
    %c0_66 = arith.constant 0 : index
    %c0_67 = arith.constant 0 : index
    %85 = vector.load %arg20[%c0_66, %c0_67] : memref<1x32xf32, #tpu.memory_space<vmem>>, vector<1x32xf32>
    %86 = vector.broadcast %85 : vector<1x32xf32> to vector<2x32xf32>
    %87 = arith.addf %84, %86 : vector<2x32xf32>
    %88 = math.tanh %87 : vector<2x32xf32>
    %c0_68 = arith.constant 0 : index
    %c0_69 = arith.constant 0 : index
    %89 = vector.load %arg21[%c0_68, %c0_69] : memref<32x32xbf16, #tpu.memory_space<vmem>>, vector<32x32xbf16>
    %90 = arith.truncf %88 : vector<2x32xf32> to vector<2x32xbf16>
    %cst_70 = arith.constant dense<0.000000e+00> : vector<2x32xf32>
    %91 = tpu.matmul %90, %89, %cst_70 {dimension_numbers = #tpu.dot_dimension_numbers<[1], [0], [0], [1], [0, 0, 1, 1], [], []>} : vector<2x32xbf16>, vector<32x32xbf16>, vector<2x32xf32> -> vector<2x32xf32>
    %c0_71 = arith.constant 0 : index
    %c0_72 = arith.constant 0 : index
    %92 = vector.load %arg22[%c0_71, %c0_72] : memref<1x32xf32, #tpu.memory_space<vmem>>, vector<1x32xf32>
    %93 = vector.broadcast %92 : vector<1x32xf32> to vector<2x32xf32>
    %94 = arith.addf %91, %93 : vector<2x32xf32>
    %95 = arith.subf %68, %81 : vector<2x32xf32>
    %96 = arith.subf %68, %81 : vector<2x32xf32>
    %97 = arith.mulf %95, %96 : vector<2x32xf32>
    %cst_73 = arith.constant dense<0.000000e+00> : vector<2xf32>
    %98 = vector.multi_reduction <add>, %97, %cst_73 [1] : vector<2x32xf32> to vector<2xf32>
    %99 = vector.shape_cast %98 : vector<2xf32> to vector<2x1xf32>
    %100 = math.sqrt %99 : vector<2x1xf32>
    %101 = arith.subf %68, %94 : vector<2x32xf32>
    %102 = arith.subf %68, %94 : vector<2x32xf32>
    %103 = arith.mulf %101, %102 : vector<2x32xf32>
    %cst_74 = arith.constant dense<0.000000e+00> : vector<2xf32>
    %104 = vector.multi_reduction <add>, %103, %cst_74 [1] : vector<2x32xf32> to vector<2xf32>
    %105 = vector.shape_cast %104 : vector<2xf32> to vector<2x1xf32>
    %106 = math.sqrt %105 : vector<2x1xf32>
    %107 = arith.subf %81, %94 : vector<2x32xf32>
    %108 = arith.subf %81, %94 : vector<2x32xf32>
    %109 = arith.mulf %107, %108 : vector<2x32xf32>
    %cst_75 = arith.constant dense<0.000000e+00> : vector<2xf32>
    %110 = vector.multi_reduction <add>, %109, %cst_75 [1] : vector<2x32xf32> to vector<2xf32>
    %111 = vector.shape_cast %110 : vector<2xf32> to vector<2x1xf32>
    %112 = math.sqrt %111 : vector<2x1xf32>
    %113 = arith.addf %100, %106 : vector<2x1xf32>
    %cst_76 = arith.constant 9.99999997E-7 : f32
    %114 = vector.broadcast %cst_76 : f32 to vector<2x1xf32>
    %115 = arith.addf %113, %114 : vector<2x1xf32>
    %cst_77 = arith.constant 1.000000e+00 : f32
    %116 = vector.broadcast %cst_77 : f32 to vector<2x1xf32>
    %117 = arith.divf %116, %115 : vector<2x1xf32>
    %118 = arith.addf %100, %112 : vector<2x1xf32>
    %cst_78 = arith.constant 9.99999997E-7 : f32
    %119 = vector.broadcast %cst_78 : f32 to vector<2x1xf32>
    %120 = arith.addf %118, %119 : vector<2x1xf32>
    %cst_79 = arith.constant 1.000000e+00 : f32
    %121 = vector.broadcast %cst_79 : f32 to vector<2x1xf32>
    %122 = arith.divf %121, %120 : vector<2x1xf32>
    %123 = arith.addf %106, %112 : vector<2x1xf32>
    %cst_80 = arith.constant 9.99999997E-7 : f32
    %124 = vector.broadcast %cst_80 : f32 to vector<2x1xf32>
    %125 = arith.addf %123, %124 : vector<2x1xf32>
    %cst_81 = arith.constant 1.000000e+00 : f32
    %126 = vector.broadcast %cst_81 : f32 to vector<2x1xf32>
    %127 = arith.divf %126, %125 : vector<2x1xf32>
    %128 = arith.addf %117, %122 : vector<2x1xf32>
    %129 = arith.addf %128, %127 : vector<2x1xf32>
    %130 = vector.broadcast %117 : vector<2x1xf32> to vector<2x32xf32>
    %131 = arith.mulf %130, %49 : vector<2x32xf32>
    %132 = vector.broadcast %122 : vector<2x1xf32> to vector<2x32xf32>
    %133 = arith.mulf %132, %52 : vector<2x32xf32>
    %134 = arith.addf %131, %133 : vector<2x32xf32>
    %135 = vector.broadcast %127 : vector<2x1xf32> to vector<2x32xf32>
    %136 = arith.mulf %135, %55 : vector<2x32xf32>
    %137 = arith.addf %134, %136 : vector<2x32xf32>
    %138 = vector.broadcast %129 : vector<2x1xf32> to vector<2x32xf32>
    %139 = arith.divf %137, %138 : vector<2x32xf32>
    %c0_82 = arith.constant 0 : index
    %c0_83 = arith.constant 0 : index
    %140 = vector.load %arg23[%c0_82, %c0_83] : memref<32x32xbf16, #tpu.memory_space<vmem>>, vector<32x32xbf16>
    %141 = arith.truncf %139 : vector<2x32xf32> to vector<2x32xbf16>
    %cst_84 = arith.constant dense<0.000000e+00> : vector<2x32xf32>
    %142 = tpu.matmul %141, %140, %cst_84 {dimension_numbers = #tpu.dot_dimension_numbers<[1], [0], [0], [1], [0, 0, 1, 1], [], []>} : vector<2x32xbf16>, vector<32x32xbf16>, vector<2x32xf32> -> vector<2x32xf32>
    %c0_85 = arith.constant 0 : index
    %c0_86 = arith.constant 0 : index
    %143 = vector.load %arg24[%c0_85, %c0_86] : memref<1x32xf32, #tpu.memory_space<vmem>>, vector<1x32xf32>
    %144 = vector.broadcast %143 : vector<1x32xf32> to vector<2x32xf32>
    %145 = arith.addf %142, %144 : vector<2x32xf32>
    %146 = math.tanh %145 : vector<2x32xf32>
    %c0_87 = arith.constant 0 : index
    %c0_88 = arith.constant 0 : index
    %147 = vector.load %arg25[%c0_87, %c0_88] : memref<32x32xbf16, #tpu.memory_space<vmem>>, vector<32x32xbf16>
    %148 = arith.truncf %146 : vector<2x32xf32> to vector<2x32xbf16>
    %cst_89 = arith.constant dense<0.000000e+00> : vector<2x32xf32>
    %149 = tpu.matmul %148, %147, %cst_89 {dimension_numbers = #tpu.dot_dimension_numbers<[1], [0], [0], [1], [0, 0, 1, 1], [], []>} : vector<2x32xbf16>, vector<32x32xbf16>, vector<2x32xf32> -> vector<2x32xf32>
    %c0_90 = arith.constant 0 : index
    %c0_91 = arith.constant 0 : index
    %150 = vector.load %arg26[%c0_90, %c0_91] : memref<1x32xf32, #tpu.memory_space<vmem>>, vector<1x32xf32>
    %151 = vector.broadcast %150 : vector<1x32xf32> to vector<2x32xf32>
    %152 = arith.addf %149, %151 : vector<2x32xf32>
    %153 = math.tanh %152 : vector<2x32xf32>
    %c0_92 = arith.constant 0 : index
    %c0_93 = arith.constant 0 : index
    %154 = vector.load %arg27[%c0_92, %c0_93] : memref<32x1xbf16, #tpu.memory_space<vmem>>, vector<32x1xbf16>
    %155 = arith.truncf %153 : vector<2x32xf32> to vector<2x32xbf16>
    %cst_94 = arith.constant dense<0.000000e+00> : vector<2x1xf32>
    %156 = tpu.matmul %155, %154, %cst_94 {dimension_numbers = #tpu.dot_dimension_numbers<[1], [0], [0], [1], [0, 0, 1, 1], [], []>} : vector<2x32xbf16>, vector<32x1xbf16>, vector<2x1xf32> -> vector<2x1xf32>
    %c0_95 = arith.constant 0 : index
    %c0_96 = arith.constant 0 : index
    %157 = vector.load %arg28[%c0_95, %c0_96] : memref<1x1xf32, #tpu.memory_space<vmem>>, vector<1x1xf32>
    %158 = vector.broadcast %157 : vector<1x1xf32> to vector<2x1xf32>
    %159 = arith.addf %156, %158 : vector<2x1xf32>
    %c0_97 = arith.constant 0 : index
    %c0_98 = arith.constant 0 : index
    %160 = vector.load %arg34[%c0_97, %c0_98] : memref<8x32xf32, #tpu.memory_space<vmem>>, vector<2x32xf32>
    tpu.vector_store %arg34[%c0_97, %c0_98], %153 {strides = array<i32>} : memref<8x32xf32, #tpu.memory_space<vmem>>, vector<2x32xf32>,
    %161 = tpu.concatenate %46, %0 in 1 : vector<8x32xf32>, vector<8x32xf32> -> vector<8x64xf32>
    %c0_99 = arith.constant 0 : index
    %c0_100 = arith.constant 0 : index
    %c0_101 = arith.constant 0 : index
    %162 = vector.load %arg29[%c0_99, %c0_100, %c0_101] : memref<3x64x32xbf16, #tpu.memory_space<vmem>>, vector<1x64x32xbf16>
    %163 = vector.shape_cast %162 : vector<1x64x32xbf16> to vector<64x32xbf16>
    %164 = arith.truncf %161 : vector<8x64xf32> to vector<8x64xbf16>
    %cst_102 = arith.constant dense<0.000000e+00> : vector<8x32xf32>
    %165 = tpu.matmul %164, %163, %cst_102 {dimension_numbers = #tpu.dot_dimension_numbers<[1], [0], [0], [1], [0, 0, 1, 1], [], []>} : vector<8x64xbf16>, vector<64x32xbf16>, vector<8x32xf32> -> vector<8x32xf32>
    %c0_103 = arith.constant 0 : index
    %c0_104 = arith.constant 0 : index
    %c0_105 = arith.constant 0 : index
    %166 = vector.load %arg30[%c0_103, %c0_104, %c0_105] : memref<3x1x32xf32, #tpu.memory_space<vmem>>, vector<1x1x32xf32>
    %167 = vector.shape_cast %166 : vector<1x1x32xf32> to vector<1x32xf32>
    %168 = vector.broadcast %167 : vector<1x32xf32> to vector<8x32xf32>
    %169 = arith.addf %165, %168 : vector<8x32xf32>
    %170 = math.tanh %169 : vector<8x32xf32>
    %c0_106 = arith.constant 0 : index
    %c0_107 = arith.constant 0 : index
    %c0_108 = arith.constant 0 : index
    %171 = vector.load %arg31[%c0_106, %c0_107, %c0_108] : memref<3x32x32xbf16, #tpu.memory_space<vmem>>, vector<1x32x32xbf16>
    %172 = vector.shape_cast %171 : vector<1x32x32xbf16> to vector<32x32xbf16>
    %173 = arith.truncf %170 : vector<8x32xf32> to vector<8x32xbf16>
    %cst_109 = arith.constant dense<0.000000e+00> : vector<8x32xf32>
    %174 = tpu.matmul %173, %172, %cst_109 {dimension_numbers = #tpu.dot_dimension_numbers<[1], [0], [0], [1], [0, 0, 1, 1], [], []>} : vector<8x32xbf16>, vector<32x32xbf16>, vector<8x32xf32> -> vector<8x32xf32>
    %c0_110 = arith.constant 0 : index
    %c0_111 = arith.constant 0 : index
    %c0_112 = arith.constant 0 : index
    %175 = vector.load %arg32[%c0_110, %c0_111, %c0_112] : memref<3x1x32xf32, #tpu.memory_space<vmem>>, vector<1x1x32xf32>
    %176 = vector.shape_cast %175 : vector<1x1x32xf32> to vector<1x32xf32>
    %177 = vector.broadcast %176 : vector<1x32xf32> to vector<8x32xf32>
    %178 = arith.addf %174, %177 : vector<8x32xf32>
    %179 = arith.truncf %7 : vector<2x8xf32> to vector<2x8xbf16>
    %180 = arith.truncf %178 : vector<8x32xf32> to vector<8x32xbf16>
    %cst_113 = arith.constant dense<0.000000e+00> : vector<2x32xf32>
    %181 = tpu.matmul %179, %180, %cst_113 {dimension_numbers = #tpu.dot_dimension_numbers<[1], [0], [0], [1], [0, 0, 1, 1], [], []>} : vector<2x8xbf16>, vector<8x32xbf16>, vector<2x32xf32> -> vector<2x32xf32>
    %c2 = arith.constant 2 : index
    %c0_114 = arith.constant 0 : index
    %182 = vector.load %arg34[%c2, %c0_114] : memref<8x32xf32, #tpu.memory_space<vmem>>, vector<2x32xf32>
    tpu.vector_store %arg34[%c2, %c0_114], %181 {strides = array<i32>} : memref<8x32xf32, #tpu.memory_space<vmem>>, vector<2x32xf32>,
    %183 = tpu.concatenate %6, %1 in 1 : vector<8x32xf32>, vector<8x32xf32> -> vector<8x64xf32>
    %c1 = arith.constant 1 : index
    %c0_115 = arith.constant 0 : index
    %c0_116 = arith.constant 0 : index
    %184 = vector.load %arg29[%c1, %c0_115, %c0_116] : memref<3x64x32xbf16, #tpu.memory_space<vmem>>, vector<1x64x32xbf16>
    %185 = vector.shape_cast %184 : vector<1x64x32xbf16> to vector<64x32xbf16>
    %186 = arith.truncf %183 : vector<8x64xf32> to vector<8x64xbf16>
    %cst_117 = arith.constant dense<0.000000e+00> : vector<8x32xf32>
    %187 = tpu.matmul %186, %185, %cst_117 {dimension_numbers = #tpu.dot_dimension_numbers<[1], [0], [0], [1], [0, 0, 1, 1], [], []>} : vector<8x64xbf16>, vector<64x32xbf16>, vector<8x32xf32> -> vector<8x32xf32>
    %c1_118 = arith.constant 1 : index
    %c0_119 = arith.constant 0 : index
    %c0_120 = arith.constant 0 : index
    %188 = vector.load %arg30[%c1_118, %c0_119, %c0_120] : memref<3x1x32xf32, #tpu.memory_space<vmem>>, vector<1x1x32xf32>
    %189 = vector.shape_cast %188 : vector<1x1x32xf32> to vector<1x32xf32>
    %190 = vector.broadcast %189 : vector<1x32xf32> to vector<8x32xf32>
    %191 = arith.addf %187, %190 : vector<8x32xf32>
    %192 = math.tanh %191 : vector<8x32xf32>
    %c1_121 = arith.constant 1 : index
    %c0_122 = arith.constant 0 : index
    %c0_123 = arith.constant 0 : index
    %193 = vector.load %arg31[%c1_121, %c0_122, %c0_123] : memref<3x32x32xbf16, #tpu.memory_space<vmem>>, vector<1x32x32xbf16>
    %194 = vector.shape_cast %193 : vector<1x32x32xbf16> to vector<32x32xbf16>
    %195 = arith.truncf %192 : vector<8x32xf32> to vector<8x32xbf16>
    %cst_124 = arith.constant dense<0.000000e+00> : vector<8x32xf32>
    %196 = tpu.matmul %195, %194, %cst_124 {dimension_numbers = #tpu.dot_dimension_numbers<[1], [0], [0], [1], [0, 0, 1, 1], [], []>} : vector<8x32xbf16>, vector<32x32xbf16>, vector<8x32xf32> -> vector<8x32xf32>
    %c1_125 = arith.constant 1 : index
    %c0_126 = arith.constant 0 : index
    %c0_127 = arith.constant 0 : index
    %197 = vector.load %arg32[%c1_125, %c0_126, %c0_127] : memref<3x1x32xf32, #tpu.memory_space<vmem>>, vector<1x1x32xf32>
    %198 = vector.shape_cast %197 : vector<1x1x32xf32> to vector<1x32xf32>
    %199 = vector.broadcast %198 : vector<1x32xf32> to vector<8x32xf32>
    %200 = arith.addf %196, %199 : vector<8x32xf32>
    %201 = arith.truncf %7 : vector<2x8xf32> to vector<2x8xbf16>
    %202 = arith.truncf %200 : vector<8x32xf32> to vector<8x32xbf16>
    %cst_128 = arith.constant dense<0.000000e+00> : vector<2x32xf32>
    %203 = tpu.matmul %201, %202, %cst_128 {dimension_numbers = #tpu.dot_dimension_numbers<[1], [0], [0], [1], [0, 0, 1, 1], [], []>} : vector<2x8xbf16>, vector<8x32xbf16>, vector<2x32xf32> -> vector<2x32xf32>
    %c4 = arith.constant 4 : index
    %c0_129 = arith.constant 0 : index
    %204 = vector.load %arg34[%c4, %c0_129] : memref<8x32xf32, #tpu.memory_space<vmem>>, vector<2x32xf32>
    tpu.vector_store %arg34[%c4, %c0_129], %203 {strides = array<i32>} : memref<8x32xf32, #tpu.memory_space<vmem>>, vector<2x32xf32>,
    %205 = tpu.concatenate %4, %2 in 1 : vector<8x32xf32>, vector<8x32xf32> -> vector<8x64xf32>
    %c2_130 = arith.constant 2 : index
    %c0_131 = arith.constant 0 : index
    %c0_132 = arith.constant 0 : index
    %206 = vector.load %arg29[%c2_130, %c0_131, %c0_132] : memref<3x64x32xbf16, #tpu.memory_space<vmem>>, vector<1x64x32xbf16>
    %207 = vector.shape_cast %206 : vector<1x64x32xbf16> to vector<64x32xbf16>
    %208 = arith.truncf %205 : vector<8x64xf32> to vector<8x64xbf16>
    %cst_133 = arith.constant dense<0.000000e+00> : vector<8x32xf32>
    %209 = tpu.matmul %208, %207, %cst_133 {dimension_numbers = #tpu.dot_dimension_numbers<[1], [0], [0], [1], [0, 0, 1, 1], [], []>} : vector<8x64xbf16>, vector<64x32xbf16>, vector<8x32xf32> -> vector<8x32xf32>
    %c2_134 = arith.constant 2 : index
    %c0_135 = arith.constant 0 : index
    %c0_136 = arith.constant 0 : index
    %210 = vector.load %arg30[%c2_134, %c0_135, %c0_136] : memref<3x1x32xf32, #tpu.memory_space<vmem>>, vector<1x1x32xf32>
    %211 = vector.shape_cast %210 : vector<1x1x32xf32> to vector<1x32xf32>
    %212 = vector.broadcast %211 : vector<1x32xf32> to vector<8x32xf32>
    %213 = arith.addf %209, %212 : vector<8x32xf32>
    %214 = math.tanh %213 : vector<8x32xf32>
    %c2_137 = arith.constant 2 : index
    %c0_138 = arith.constant 0 : index
    %c0_139 = arith.constant 0 : index
    %215 = vector.load %arg31[%c2_137, %c0_138, %c0_139] : memref<3x32x32xbf16, #tpu.memory_space<vmem>>, vector<1x32x32xbf16>
    %216 = vector.shape_cast %215 : vector<1x32x32xbf16> to vector<32x32xbf16>
    %217 = arith.truncf %214 : vector<8x32xf32> to vector<8x32xbf16>
    %cst_140 = arith.constant dense<0.000000e+00> : vector<8x32xf32>
    %218 = tpu.matmul %217, %216, %cst_140 {dimension_numbers = #tpu.dot_dimension_numbers<[1], [0], [0], [1], [0, 0, 1, 1], [], []>} : vector<8x32xbf16>, vector<32x32xbf16>, vector<8x32xf32> -> vector<8x32xf32>
    %c2_141 = arith.constant 2 : index
    %c0_142 = arith.constant 0 : index
    %c0_143 = arith.constant 0 : index
    %219 = vector.load %arg32[%c2_141, %c0_142, %c0_143] : memref<3x1x32xf32, #tpu.memory_space<vmem>>, vector<1x1x32xf32>
    %220 = vector.shape_cast %219 : vector<1x1x32xf32> to vector<1x32xf32>
    %221 = vector.broadcast %220 : vector<1x32xf32> to vector<8x32xf32>
    %222 = arith.addf %218, %221 : vector<8x32xf32>
    %223 = arith.truncf %7 : vector<2x8xf32> to vector<2x8xbf16>
    %224 = arith.truncf %222 : vector<8x32xf32> to vector<8x32xbf16>
    %cst_144 = arith.constant dense<0.000000e+00> : vector<2x32xf32>
    %225 = tpu.matmul %223, %224, %cst_144 {dimension_numbers = #tpu.dot_dimension_numbers<[1], [0], [0], [1], [0, 0, 1, 1], [], []>} : vector<2x8xbf16>, vector<8x32xbf16>, vector<2x32xf32> -> vector<2x32xf32>
    %c6 = arith.constant 6 : index
    %c0_145 = arith.constant 0 : index
    %226 = vector.load %arg34[%c6, %c0_145] : memref<8x32xf32, #tpu.memory_space<vmem>>, vector<2x32xf32>
    tpu.vector_store %arg34[%c6, %c0_145], %225 {strides = array<i32>} : memref<8x32xf32, #tpu.memory_space<vmem>>, vector<2x32xf32>,
    %c0_146 = arith.constant 0 : index
    %c0_147 = arith.constant 0 : index
    %227 = vector.load %arg33[%c0_146, %c0_147] : memref<4x1xf32, #tpu.memory_space<vmem>>, vector<2x1xf32>
    tpu.vector_store %arg33[%c0_146, %c0_147], %31 {strides = array<i32>} : memref<4x1xf32, #tpu.memory_space<vmem>>, vector<2x1xf32>,
    %c2_148 = arith.constant 2 : index
    %c0_149 = arith.constant 0 : index
    %228 = vector.load %arg33[%c2_148, %c0_149] : memref<4x1xf32, #tpu.memory_space<vmem>>, vector<2x1xf32>
    tpu.vector_store %arg33[%c2_148, %c0_149], %159 {strides = array<i32>} : memref<4x1xf32, #tpu.memory_space<vmem>>, vector<2x1xf32>,
    return
  }
  func.func @transform_0(%arg0: i32) -> (i32, i32) {
    %c0_i32 = arith.constant 0 : i32
    %c0_i32_0 = arith.constant 0 : i32
    %c0_i32_1 = arith.constant 0 : i32
    return %c0_i32, %c0_i32_0 : i32, i32
  }
  func.func @transform_1(%arg0: i32) -> (i32, i32) {
    %c0_i32 = arith.constant 0 : i32
    %c0_i32_0 = arith.constant 0 : i32
    %c0_i32_1 = arith.constant 0 : i32
    return %c0_i32, %c0_i32_0 : i32, i32
  }
  func.func @transform_2(%arg0: i32) -> (i32, i32) {
    %c0_i32 = arith.constant 0 : i32
    %c0_i32_0 = arith.constant 0 : i32
    %c0_i32_1 = arith.constant 0 : i32
    return %c0_i32, %c0_i32_0 : i32, i32
  }
  func.func @transform_3(%arg0: i32) -> (i32, i32) {
    %c0_i32 = arith.constant 0 : i32
    %c0_i32_0 = arith.constant 0 : i32
    %c0_i32_1 = arith.constant 0 : i32
    return %c0_i32, %c0_i32_0 : i32, i32
  }
  func.func @transform_4(%arg0: i32) -> (i32, i32) {
    %c0_i32 = arith.constant 0 : i32
    %c0_i32_0 = arith.constant 0 : i32
    %c0_i32_1 = arith.constant 0 : i32
    return %c0_i32, %c0_i32_0 : i32, i32
  }
  func.func @transform_5(%arg0: i32) -> (i32, i32) {
    %c0_i32 = arith.constant 0 : i32
    %c0_i32_0 = arith.constant 0 : i32
    %c0_i32_1 = arith.constant 0 : i32
    return %c0_i32, %c0_i32_0 : i32, i32
  }
  func.func @transform_6(%arg0: i32) -> (i32, i32) {
    %c0_i32 = arith.constant 0 : i32
    %c0_i32_0 = arith.constant 0 : i32
    %c0_i32_1 = arith.constant 0 : i32
    return %c0_i32, %c0_i32_0 : i32, i32
  }
  func.func @transform_7(%arg0: i32) -> (i32, i32) {
    %c0_i32 = arith.constant 0 : i32
    %c0_i32_0 = arith.constant 0 : i32
    %c0_i32_1 = arith.constant 0 : i32
    return %c0_i32, %c0_i32_0 : i32, i32
  }
  func.func @transform_8(%arg0: i32) -> (i32, i32) {
    %c0_i32 = arith.constant 0 : i32
    %c0_i32_0 = arith.constant 0 : i32
    %c0_i32_1 = arith.constant 0 : i32
    return %c0_i32, %c0_i32_0 : i32, i32
  }
  func.func @transform_9(%arg0: i32) -> (i32, i32) {
    %c0_i32 = arith.constant 0 : i32
    %c0_i32_0 = arith.constant 0 : i32
    %c0_i32_1 = arith.constant 0 : i32
    return %c0_i32, %c0_i32_0 : i32, i32
  }
  func.func @transform_10(%arg0: i32) -> (i32, i32) {
    %c0_i32 = arith.constant 0 : i32
    %c0_i32_0 = arith.constant 0 : i32
    %c0_i32_1 = arith.constant 0 : i32
    return %c0_i32, %c0_i32_0 : i32, i32
  }
  func.func @transform_11(%arg0: i32) -> (i32, i32) {
    %c0_i32 = arith.constant 0 : i32
    %c0_i32_0 = arith.constant 0 : i32
    %c0_i32_1 = arith.constant 0 : i32
    return %c0_i32, %c0_i32_0 : i32, i32
  }
  func.func @transform_12(%arg0: i32) -> (i32, i32) {
    %c0_i32 = arith.constant 0 : i32
    %c0_i32_0 = arith.constant 0 : i32
    %c0_i32_1 = arith.constant 0 : i32
    return %c0_i32, %c0_i32_0 : i32, i32
  }
  func.func @transform_13(%arg0: i32) -> (i32, i32) {
    %c0_i32 = arith.constant 0 : i32
    %c0_i32_0 = arith.constant 0 : i32
    %c0_i32_1 = arith.constant 0 : i32
    return %c0_i32, %c0_i32_0 : i32, i32
  }
  func.func @transform_14(%arg0: i32) -> (i32, i32) {
    %c0_i32 = arith.constant 0 : i32
    %c0_i32_0 = arith.constant 0 : i32
    %c0_i32_1 = arith.constant 0 : i32
    return %c0_i32, %c0_i32_0 : i32, i32
  }
  func.func @transform_15(%arg0: i32) -> (i32, i32) {
    %c0_i32 = arith.constant 0 : i32
    %c0_i32_0 = arith.constant 0 : i32
    %c0_i32_1 = arith.constant 0 : i32
    return %c0_i32, %c0_i32_0 : i32, i32
  }
  func.func @transform_16(%arg0: i32) -> (i32, i32) {
    %c0_i32 = arith.constant 0 : i32
    %c0_i32_0 = arith.constant 0 : i32
    %c0_i32_1 = arith.constant 0 : i32
    return %c0_i32, %c0_i32_0 : i32, i32
  }
  func.func @transform_17(%arg0: i32) -> (i32, i32) {
    %c0_i32 = arith.constant 0 : i32
    %c0_i32_0 = arith.constant 0 : i32
    %c0_i32_1 = arith.constant 0 : i32
    return %c0_i32, %c0_i32_0 : i32, i32
  }
  func.func @transform_18(%arg0: i32) -> (i32, i32) {
    %c0_i32 = arith.constant 0 : i32
    %c0_i32_0 = arith.constant 0 : i32
    %c0_i32_1 = arith.constant 0 : i32
    return %c0_i32, %c0_i32_0 : i32, i32
  }
  func.func @transform_19(%arg0: i32) -> (i32, i32) {
    %c0_i32 = arith.constant 0 : i32
    %c0_i32_0 = arith.constant 0 : i32
    %c0_i32_1 = arith.constant 0 : i32
    return %c0_i32, %c0_i32_0 : i32, i32
  }
  func.func @transform_20(%arg0: i32) -> (i32, i32) {
    %c0_i32 = arith.constant 0 : i32
    %c0_i32_0 = arith.constant 0 : i32
    %c0_i32_1 = arith.constant 0 : i32
    return %c0_i32, %c0_i32_0 : i32, i32
  }
  func.func @transform_21(%arg0: i32) -> (i32, i32) {
    %c0_i32 = arith.constant 0 : i32
    %c0_i32_0 = arith.constant 0 : i32
    %c0_i32_1 = arith.constant 0 : i32
    return %c0_i32, %c0_i32_0 : i32, i32
  }
  func.func @transform_22(%arg0: i32) -> (i32, i32) {
    %c0_i32 = arith.constant 0 : i32
    %c0_i32_0 = arith.constant 0 : i32
    %c0_i32_1 = arith.constant 0 : i32
    return %c0_i32, %c0_i32_0 : i32, i32
  }
  func.func @transform_23(%arg0: i32) -> (i32, i32) {
    %c0_i32 = arith.constant 0 : i32
    %c0_i32_0 = arith.constant 0 : i32
    %c0_i32_1 = arith.constant 0 : i32
    return %c0_i32, %c0_i32_0 : i32, i32
  }
  func.func @transform_24(%arg0: i32) -> (i32, i32) {
    %c0_i32 = arith.constant 0 : i32
    %c0_i32_0 = arith.constant 0 : i32
    %c0_i32_1 = arith.constant 0 : i32
    return %c0_i32, %c0_i32_0 : i32, i32
  }
  func.func @transform_25(%arg0: i32) -> (i32, i32) {
    %c0_i32 = arith.constant 0 : i32
    %c0_i32_0 = arith.constant 0 : i32
    %c0_i32_1 = arith.constant 0 : i32
    return %c0_i32, %c0_i32_0 : i32, i32
  }
  func.func @transform_26(%arg0: i32) -> (i32, i32) {
    %c0_i32 = arith.constant 0 : i32
    %c0_i32_0 = arith.constant 0 : i32
    %c0_i32_1 = arith.constant 0 : i32
    return %c0_i32, %c0_i32_0 : i32, i32
  }
  func.func @transform_27(%arg0: i32) -> (i32, i32) {
    %c0_i32 = arith.constant 0 : i32
    %c0_i32_0 = arith.constant 0 : i32
    %c0_i32_1 = arith.constant 0 : i32
    return %c0_i32, %c0_i32_0 : i32, i32
  }
  func.func @transform_28(%arg0: i32) -> (i32, i32, i32) {
    %c0_i32 = arith.constant 0 : i32
    %c0_i32_0 = arith.constant 0 : i32
    %c0_i32_1 = arith.constant 0 : i32
    %c0_i32_2 = arith.constant 0 : i32
    return %c0_i32, %c0_i32_0, %c0_i32_1 : i32, i32, i32
  }
  func.func @transform_29(%arg0: i32) -> (i32, i32, i32) {
    %c0_i32 = arith.constant 0 : i32
    %c0_i32_0 = arith.constant 0 : i32
    %c0_i32_1 = arith.constant 0 : i32
    %c0_i32_2 = arith.constant 0 : i32
    return %c0_i32, %c0_i32_0, %c0_i32_1 : i32, i32, i32
  }
  func.func @transform_30(%arg0: i32) -> (i32, i32, i32) {
    %c0_i32 = arith.constant 0 : i32
    %c0_i32_0 = arith.constant 0 : i32
    %c0_i32_1 = arith.constant 0 : i32
    %c0_i32_2 = arith.constant 0 : i32
    return %c0_i32, %c0_i32_0, %c0_i32_1 : i32, i32, i32
  }
  func.func @transform_31(%arg0: i32) -> (i32, i32, i32) {
    %c0_i32 = arith.constant 0 : i32
    %c0_i32_0 = arith.constant 0 : i32
    %c0_i32_1 = arith.constant 0 : i32
    %c0_i32_2 = arith.constant 0 : i32
    return %c0_i32, %c0_i32_0, %c0_i32_1 : i32, i32, i32
  }
  func.func @transform_32(%arg0: i32) -> (i32, i32) {
    %c0_i32 = arith.constant 0 : i32
    %c0_i32_0 = arith.constant 0 : i32
    %c0_i32_1 = arith.constant 0 : i32
    return %c0_i32, %c0_i32_0 : i32, i32
  }
  func.func @transform_33(%arg0: i32) -> (i32, i32) {
    %c0_i32 = arith.constant 0 : i32
    %c0_i32_0 = arith.constant 0 : i32
    %c0_i32_1 = arith.constant 0 : i32
    return %c0_i32, %c0_i32_0 : i32, i32
  }
}

</mosaic_0001>

<llo_original>
// kernel: fwd.7
$region0: #{fwd.7}
  #allocation0 [shape = 'u32[]', space=smem, size = 0x4, offset = 0x4, fixed_abs, tag = 'smem constant byte address 0x4 - core index']
  #allocation1 [shape = 'u32[144,128]{1,0:T(1,128)}', space=vmem, size = 0x12000, scoped, tag = 'internal scratch']
  #allocation2 [shape = 'f32[10,32]{1,0:T(8,128)}', space=vmem, size = 0x2000, scoped, tag = 'scratch operand']
  %s0 = inlined_call_operand.vmem [shape: f32[2,20,16], index: 0, kind: input, shape index: {}]
  %s1 = inlined_call_operand.vmem [shape: bf16[16,32], index: 1, kind: input, shape index: {}]
  %s2 = inlined_call_operand.vmem [shape: f32[1,32], index: 2, kind: input, shape index: {}]
  %s3 = inlined_call_operand.vmem [shape: bf16[2,32,32], index: 3, kind: input, shape index: {}]
  %s4 = inlined_call_operand.vmem [shape: f32[2,1,32], index: 4, kind: input, shape index: {}]
  %s5 = inlined_call_operand.vmem [shape: bf16[96,32], index: 5, kind: input, shape index: {}]
  %s6 = inlined_call_operand.vmem [shape: f32[1,32], index: 6, kind: input, shape index: {}]
  %s7 = inlined_call_operand.vmem [shape: f32[2,4,32], index: 7, kind: output, shape index: {}]
  %s8 = sld [smem:[#allocation0]]
  $region61: #{fwd.7} parent=0
    _
  %s10 = ssub.s32 1, %s8
  %s11 = scalar_select 0, %s10, %s8
  loop: start=0, step=1, limit=4
  $region2: #{fwd.7} parent=0 // loop_pre_header
    _
  $region3: #{fwd.7} parent=0 // loop_header
    %s13 = sphi 0, %s17
    %p14 = scmp.ge.s32.totalorder %s13, 4
    %s23 = sphi 0, %s25
    %s26 = sphi 0, %s23
    %s27 = sphi 0, %s26
    %s43 = sphi 0, %s27
    %s47 = sphi 0, %s47
    %s49 = sphi 0, %s47
    %s50 = sphi 0, %s49
    %s64 = sphi 0, %s50
    %s68 = sphi 0, %s68
    %s70 = sphi 0, %s68
    %s71 = sphi 0, %s70
    %s85 = sphi 0, %s71
    %s89 = sphi 0, %s89
    %s91 = sphi 0, %s89
    %s92 = sphi 0, %s91
    %s106 = sphi 0, %s92
    %s110 = sphi 0, %s110
    %s112 = sphi 0, %s110
    %s113 = sphi 0, %s112
    %s127 = sphi 0, %s113
    %s131 = sphi 0, %s131
    %s133 = sphi 0, %s131
    %s134 = sphi 0, %s133
    %s148 = sphi 0, %s134
    %s152 = sphi 0, %s152
    %s154 = sphi 0, %s152
    %s155 = sphi 0, %s154
    %s169 = sphi 0, %s155
    %s175 = sphi 0, %s177
    %s178 = sphi 0, %s175
    %s179 = sphi 0, %s178
    %s195 = sphi 0, %s179
  $region4: #{fwd.7} parent=0 // loop_header_branch
    %16 = sbr.rel (%p14) target = $region8
  $region5: #{fwd.7} parent=0 // loop_body
    %s18 = ssub.s32 %s13, 1
    %s19 = ssub.s32 %s13, 2
    %s20 = sadd.s32 %s13, 1
    %s21 = ssub.s32 %s13, %s20
    %p22 = scmp.eq.s32.totalorder %s21, 0
    %s24 = sadd.s32 %s23, 1
    %s25 = scalar_select %p22, %s23, %s24
    %p28 = pneg %p22
    %p29 = scmp.eq.s32.totalorder %s13, 1
    %p30 = por %p28, %p29
    %p31 = scmp.ne.s32.totalorder %s23, %s26
    %p32 = scmp.eq.s32.totalorder %s13, 0
    %p33 = por %p31, %p32
    %p34 = scmp.ne.s32.totalorder %s23, %s26
    %p35 = scmp.eq.s32.totalorder %s18, 1
    %p36 = por %p34, %p35
    %p37 = scmp.ne.s32.totalorder %s26, %s27
    %p38 = scmp.eq.s32.totalorder %s18, 0
    %p39 = por %p37, %p38
    %p40 = scmp.ne.s32.totalorder %s26, %s27
    %p41 = scmp.eq.s32.totalorder %s19, 1
    %p42 = por %p40, %p41
    %p44 = scmp.ne.s32.totalorder %s27, %s43
    %p45 = scmp.eq.s32.totalorder %s19, 0
    %p46 = por %p44, %p45
    %s48 = sadd.s32 %s47, 1
    %p51 = scmp.eq.s32.totalorder %s13, 1
    %p52 = scmp.ne.s32.totalorder %s47, %s49
    %p53 = scmp.eq.s32.totalorder %s13, 0
    %p54 = por %p52, %p53
    %p55 = scmp.ne.s32.totalorder %s47, %s49
    %p56 = scmp.eq.s32.totalorder %s18, 1
    %p57 = por %p55, %p56
    %p58 = scmp.ne.s32.totalorder %s49, %s50
    %p59 = scmp.eq.s32.totalorder %s18, 0
    %p60 = por %p58, %p59
    %p61 = scmp.ne.s32.totalorder %s49, %s50
    %p62 = scmp.eq.s32.totalorder %s19, 1
    %p63 = por %p61, %p62
    %p65 = scmp.ne.s32.totalorder %s50, %s64
    %p66 = scmp.eq.s32.totalorder %s19, 0
    %p67 = por %p65, %p66
    %s69 = sadd.s32 %s68, 1
    %p72 = scmp.eq.s32.totalorder %s13, 1
    %p73 = scmp.ne.s32.totalorder %s68, %s70
    %p74 = scmp.eq.s32.totalorder %s13, 0
    %p75 = por %p73, %p74
    %p76 = scmp.ne.s32.totalorder %s68, %s70
    %p77 = scmp.eq.s32.totalorder %s18, 1
    %p78 = por %p76, %p77
    %p79 = scmp.ne.s32.totalorder %s70, %s71
    %p80 = scmp.eq.s32.totalorder %s18, 0
    %p81 = por %p79, %p80
    %p82 = scmp.ne.s32.totalorder %s70, %s71
    %p83 = scmp.eq.s32.totalorder %s19, 1
    %p84 = por %p82, %p83
    %p86 = scmp.ne.s32.totalorder %s71, %s85
    %p87 = scmp.eq.s32.totalorder %s19, 0
    %p88 = por %p86, %p87
    %s90 = sadd.s32 %s89, 1
    %p93 = scmp.eq.s32.totalorder %s13, 1
    %p94 = scmp.ne.s32.totalorder %s89, %s91
    %p95 = scmp.eq.s32.totalorder %s13, 0
    %p96 = por %p94, %p95
    %p97 = scmp.ne.s32.totalorder %s89, %s91
    %p98 = scmp.eq.s32.totalorder %s18, 1
    %p99 = por %p97, %p98
    %p100 = scmp.ne.s32.totalorder %s91, %s92
    %p101 = scmp.eq.s32.totalorder %s18, 0
    %p102 = por %p100, %p101
    %p103 = scmp.ne.s32.totalorder %s91, %s92
    %p104 = scmp.eq.s32.totalorder %s19, 1
    %p105 = por %p103, %p104
    %p107 = scmp.ne.s32.totalorder %s92, %s106
    %p108 = scmp.eq.s32.totalorder %s19, 0
    %p109 = por %p107, %p108
    %s111 = sadd.s32 %s110, 1
    %p114 = scmp.eq.s32.totalorder %s13, 1
    %p115 = scmp.ne.s32.totalorder %s110, %s112
    %p116 = scmp.eq.s32.totalorder %s13, 0
    %p117 = por %p115, %p116
    %p118 = scmp.ne.s32.totalorder %s110, %s112
    %p119 = scmp.eq.s32.totalorder %s18, 1
    %p120 = por %p118, %p119
    %p121 = scmp.ne.s32.totalorder %s112, %s113
    %p122 = scmp.eq.s32.totalorder %s18, 0
    %p123 = por %p121, %p122
    %p124 = scmp.ne.s32.totalorder %s112, %s113
    %p125 = scmp.eq.s32.totalorder %s19, 1
    %p126 = por %p124, %p125
    %p128 = scmp.ne.s32.totalorder %s113, %s127
    %p129 = scmp.eq.s32.totalorder %s19, 0
    %p130 = por %p128, %p129
    %s132 = sadd.s32 %s131, 1
    %p135 = scmp.eq.s32.totalorder %s13, 1
    %p136 = scmp.ne.s32.totalorder %s131, %s133
    %p137 = scmp.eq.s32.totalorder %s13, 0
    %p138 = por %p136, %p137
    %p139 = scmp.ne.s32.totalorder %s131, %s133
    %p140 = scmp.eq.s32.totalorder %s18, 1
    %p141 = por %p139, %p140
    %p142 = scmp.ne.s32.totalorder %s133, %s134
    %p143 = scmp.eq.s32.totalorder %s18, 0
    %p144 = por %p142, %p143
    %p145 = scmp.ne.s32.totalorder %s133, %s134
    %p146 = scmp.eq.s32.totalorder %s19, 1
    %p147 = por %p145, %p146
    %p149 = scmp.ne.s32.totalorder %s134, %s148
    %p150 = scmp.eq.s32.totalorder %s19, 0
    %p151 = por %p149, %p150
    %s153 = sadd.s32 %s152, 1
    %p156 = scmp.eq.s32.totalorder %s13, 1
    %p157 = scmp.ne.s32.totalorder %s152, %s154
    %p158 = scmp.eq.s32.totalorder %s13, 0
    %p159 = por %p157, %p158
    %p160 = scmp.ne.s32.totalorder %s152, %s154
    %p161 = scmp.eq.s32.totalorder %s18, 1
    %p162 = por %p160, %p161
    %p163 = scmp.ne.s32.totalorder %s154, %s155
    %p164 = scmp.eq.s32.totalorder %s18, 0
    %p165 = por %p163, %p164
    %p166 = scmp.ne.s32.totalorder %s154, %s155
    %p167 = scmp.eq.s32.totalorder %s19, 1
    %p168 = por %p166, %p167
    %p170 = scmp.ne.s32.totalorder %s155, %s169
    %p171 = scmp.eq.s32.totalorder %s19, 0
    %p172 = por %p170, %p171
    %s173 = ssub.s32 %s13, %s20
    %p174 = scmp.eq.s32.totalorder %s173, 0
    %s176 = sadd.s32 %s175, 1
    %s177 = scalar_select %p174, %s175, %s176
    %p180 = pneg %p174
    %p181 = scmp.eq.s32.totalorder %s13, 1
    %p182 = por %p180, %p181
    %p183 = scmp.ne.s32.totalorder %s175, %s178
    %p184 = scmp.eq.s32.totalorder %s13, 0
    %p185 = por %p183, %p184
    %p186 = scmp.ne.s32.totalorder %s175, %s178
    %p187 = scmp.eq.s32.totalorder %s18, 1
    %p188 = por %p186, %p187
    %p189 = scmp.ne.s32.totalorder %s178, %s179
    %p190 = scmp.eq.s32.totalorder %s18, 0
    %p191 = por %p189, %p190
    %p192 = scmp.ne.s32.totalorder %s178, %s179
    %p193 = scmp.eq.s32.totalorder %s19, 1
    %p194 = por %p192, %p193
    %p196 = scmp.ne.s32.totalorder %s179, %s195
    %p197 = scmp.eq.s32.totalorder %s19, 0
    %p198 = por %p196, %p197
    %p199 = scmp.le.s32.totalorder 1, %s13
    %p200 = scmp.lt.s32.totalorder %s13, 3
    %p201 = pnand %p199, %p200
    %p202 = pneg %p201
    // Predicated region
    $region9: #{fwd.7} parent=5 // pred_check
      _
    $region10: #{fwd.7} parent=5 // pred_check_branch
      %204 = sbr.rel (%p201) target = $region12
    $region11: #{fwd.7} parent=5 // pred_region
      %s205 = ssub.s32 %s13, 1
      // Predicated region
      $region13: #{fwd.7} parent=11 // pred_check
        %p206 = pneg %p60
      $region14: #{fwd.7} parent=11 // pred_check_branch
        %208 = sbr.rel (%p206) target = $region16
      $region15: #{fwd.7} parent=11 // pred_region
        _
      $region16: #{fwd.7} parent=11 // pred_fallthru
        _
      // Predicated region
      $region17: #{fwd.7} parent=11 // pred_check
        %p209 = pneg %p81
      $region18: #{fwd.7} parent=11 // pred_check_branch
        %211 = sbr.rel (%p209) target = $region20
      $region19: #{fwd.7} parent=11 // pred_region
        _
      $region20: #{fwd.7} parent=11 // pred_fallthru
        _
      // Predicated region
      $region21: #{fwd.7} parent=11 // pred_check
        %p212 = pneg %p102
      $region22: #{fwd.7} parent=11 // pred_check_branch
        %214 = sbr.rel (%p212) target = $region24
      $region23: #{fwd.7} parent=11 // pred_region
        _
      $region24: #{fwd.7} parent=11 // pred_fallthru
        _
      // Predicated region
      $region25: #{fwd.7} parent=11 // pred_check
        %p215 = pneg %p123
      $region26: #{fwd.7} parent=11 // pred_check_branch
        %217 = sbr.rel (%p215) target = $region28
      $region27: #{fwd.7} parent=11 // pred_region
        _
      $region28: #{fwd.7} parent=11 // pred_fallthru
        _
      // Predicated region
      $region29: #{fwd.7} parent=11 // pred_check
        %p218 = pneg %p144
      $region30: #{fwd.7} parent=11 // pred_check_branch
        %220 = sbr.rel (%p218) target = $region32
      $region31: #{fwd.7} parent=11 // pred_region
        _
      $region32: #{fwd.7} parent=11 // pred_fallthru
        _
      // Predicated region
      $region33: #{fwd.7} parent=11 // pred_check
        %p221 = pneg %p165
      $region34: #{fwd.7} parent=11 // pred_check_branch
        %223 = sbr.rel (%p221) target = $region36
      $region35: #{fwd.7} parent=11 // pred_region
        _
      $region36: #{fwd.7} parent=11 // pred_fallthru
        _
    $region12: #{fwd.7} parent=5 // pred_fallthru
      _
    %p224 = scmp.lt.s32.totalorder %s13, 2
    // Predicated region
    $region37: #{fwd.7} parent=5 // pred_check
      %p225 = pneg %p224
    $region38: #{fwd.7} parent=5 // pred_check_branch
      %227 = sbr.rel (%p225) target = $region40
    $region39: #{fwd.7} parent=5 // pred_region
      // Predicated region
      $region41: #{fwd.7} parent=39 // pred_check
        %p228 = pneg %p33
      $region42: #{fwd.7} parent=39 // pred_check_branch
        %230 = sbr.rel (%p228) target = $region44
      $region43: #{fwd.7} parent=39 // pred_region
        %p231 = scmp.lt.s32.totalorder %s13, 1
        %s232 = scalar_select %p231, %s13, 1
        %s233 = smul.addr %s232, 3
        %s234 = smul.addr %s233, 8
        %s235 = scalar_lea.vmem %s0, %s234
      $region44: #{fwd.7} parent=39 // pred_fallthru
        _
    $region40: #{fwd.7} parent=5 // pred_fallthru
      _
    %p236 = scmp.le.s32.totalorder 1, %s13
    %p237 = scmp.lt.s32.totalorder %s13, 3
    %p238 = pnand %p236, %p237
    %p239 = pneg %p238
    // Predicated region
    $region45: #{fwd.7} parent=5 // pred_check
      _
    $region46: #{fwd.7} parent=5 // pred_check_branch
      %241 = sbr.rel (%p238) target = $region48
    $region47: #{fwd.7} parent=5 // pred_region
      %s242 = ssub.s32 %s13, 1
      %p243 = scmp.lt.s32.totalorder %s18, 1
      %s244 = scalar_select %p243, %s18, 1
      %s245 = smul.addr %s244, 3
      %s246 = smul.addr %s245, 8
      %s247 = scalar_lea.vmem %s0, %s246
      %p248 = pneg %p39
      %p249 = pneg %p36
      %p250 = pneg %p60
      %p251 = pneg %p57
      %p252 = pneg %p81
      %p253 = pneg %p78
      %p254 = pneg %p102
      %p255 = pneg %p99
      %p256 = pneg %p123
      %p257 = pneg %p120
      %p258 = pneg %p144
      %p259 = pneg %p141
      %p260 = pneg %p165
      %p261 = pneg %p162
      %p262 = pneg %p191
      %p263 = pneg %p188
      %p264 = scmp.lt.s32.totalorder %s18, 1
      %s265 = scalar_select %p264, %s18, 1
      %s266 = smul.addr %s265, 4
      %s267 = scalar_lea.vmem %s7, %s266
      %p268 = scmp.lt.s32.totalorder %s18, 1
      %s269 = scalar_select %p268, %s18, 1
      %s270 = smul.addr %s269, 3
      %s271 = smul.addr %s270, 8
      %s272 = scalar_lea.vmem %s0, %s271
      %p273 = scmp.lt.s32.totalorder %s18, 1
      %s274 = scalar_select %p273, %s18, 1
      %s275 = smul.addr %s274, 4
      %s276 = scalar_lea.vmem %s7, %s275
      %v278 = vld [vmem:[%s272] sm:$0xff]
      %v279 = vld [vmem:[%s272 + $0x8] sm:$0xff]
      %v280 = vld [vmem:[%s272 + $0x10] sm:$0xf]
      %v281 = vlaneseq
      %v282 = vshrl.u32 %v281, 7
      %v283 = vadd.s32 %v282, 8
      %v284 = vadd.s32 %v282, 16
      %v285 = vadd.s32 %v282, 1
      %v286 = vadd.s32 %v283, 1
      %v287 = vadd.s32 %v284, 1
      %v288 = vmul.u32 %v285, 8
      %v289 = vmul.u32 %v286, 8
      %v290 = vmul.u32 %v287, 8
      %vm291 = vcmp.gt.s32.totalorder %v288, 0
      %vm292 = vcmp.gt.s32.totalorder %v289, 0
      %vm293 = vcmp.gt.s32.totalorder %v290, 0
      %vm294 = vcmp.gt.s32.totalorder %v288, 20
      %vm295 = vcmp.gt.s32.totalorder %v289, 20
      %vm296 = vcmp.gt.s32.totalorder %v290, 20
      %vm297 = vcmp.gt.s32.totalorder %v288, 40
      %vm298 = vcmp.gt.s32.totalorder %v289, 40
      %vm299 = vcmp.gt.s32.totalorder %v290, 40
      %vm300 = vcmp.gt.s32.totalorder %v288, 60
      %vm301 = vcmp.gt.s32.totalorder %v289, 60
      %vm302 = vcmp.gt.s32.totalorder %v290, 60
      %vm303 = vcmp.gt.s32.totalorder %v288, 80
      %vm304 = vcmp.gt.s32.totalorder %v289, 80
      %vm305 = vcmp.gt.s32.totalorder %v290, 80
      %vm306 = vcmp.gt.s32.totalorder %v288, 100
      %vm307 = vcmp.gt.s32.totalorder %v289, 100
      %vm308 = vcmp.gt.s32.totalorder %v290, 100
      %vm309 = vcmp.gt.s32.totalorder %v288, 120
      %vm310 = vcmp.gt.s32.totalorder %v289, 120
      %vm311 = vcmp.gt.s32.totalorder %v290, 120
      %vm312 = vcmp.gt.s32.totalorder %v288, 140
      %vm313 = vcmp.gt.s32.totalorder %v289, 140
      %vm314 = vcmp.gt.s32.totalorder %v290, 140
      %v315 = vmul.u32 %v282, 8
      %v316 = vmul.u32 %v283, 8
      %v317 = vmul.u32 %v284, 8
      %vm318 = vcmp.lt.s32.totalorder %v315, 20
      %vm319 = vcmp.lt.s32.totalorder %v316, 20
      %vm320 = vcmp.lt.s32.totalorder %v317, 20
      %vm321 = vcmp.lt.s32.totalorder %v315, 40
      %vm322 = vcmp.lt.s32.totalorder %v316, 40
      %vm323 = vcmp.lt.s32.totalorder %v317, 40
      %vm324 = vcmp.lt.s32.totalorder %v315, 60
      %vm325 = vcmp.lt.s32.totalorder %v316, 60
      %vm326 = vcmp.lt.s32.totalorder %v317, 60
      %vm327 = vcmp.lt.s32.totalorder %v315, 80
      %vm328 = vcmp.lt.s32.totalorder %v316, 80
      %vm329 = vcmp.lt.s32.totalorder %v317, 80
      %vm330 = vcmp.lt.s32.totalorder %v315, 100
      %vm331 = vcmp.lt.s32.totalorder %v316, 100
      %vm332 = vcmp.lt.s32.totalorder %v317, 100
      %vm333 = vcmp.lt.s32.totalorder %v315, 120
      %vm334 = vcmp.lt.s32.totalorder %v316, 120
      %vm335 = vcmp.lt.s32.totalorder %v317, 120
      %vm336 = vcmp.lt.s32.totalorder %v315, 140
      %vm337 = vcmp.lt.s32.totalorder %v316, 140
      %vm338 = vcmp.lt.s32.totalorder %v317, 140
      %vm339 = vcmp.lt.s32.totalorder %v315, 160
      %vm340 = vcmp.lt.s32.totalorder %v316, 160
      %vm341 = vcmp.lt.s32.totalorder %v317, 160
      %vm342 = vmand %vm291, %vm318
      %vm343 = vmand %vm292, %vm319
      %vm344 = vmand %vm293, %vm320
      %vm345 = vmand %vm294, %vm321
      %vm346 = vmand %vm295, %vm322
      %vm347 = vmand %vm296, %vm323
      %vm348 = vmand %vm297, %vm324
      %vm349 = vmand %vm298, %vm325
      %vm350 = vmand %vm299, %vm326
      %vm351 = vmand %vm300, %vm327
      %vm352 = vmand %vm301, %vm328
      %vm353 = vmand %vm302, %vm329
      %vm354 = vmand %vm303, %vm330
      %vm355 = vmand %vm304, %vm331
      %vm356 = vmand %vm305, %vm332
      %vm357 = vmand %vm306, %vm333
      %vm358 = vmand %vm307, %vm334
      %vm359 = vmand %vm308, %vm335
      %vm360 = vmand %vm309, %vm336
      %vm361 = vmand %vm310, %vm337
      %vm362 = vmand %vm311, %vm338
      %vm363 = vmand %vm312, %vm339
      %vm364 = vmand %vm313, %vm340
      %vm365 = vmand %vm314, %vm341
      %v366 = vsel %vm342, 1, 0
      %v367 = vsel %vm343, 1, 0
      %v368 = vsel %vm344, 1, 0
      %v369 = vsel %vm345, 1, 0
      %v370 = vsel %vm346, 1, 0
      %v371 = vsel %vm347, 1, 0
      %v372 = vsel %vm348, 1, 0
      %v373 = vsel %vm349, 1, 0
      %v374 = vsel %vm350, 1, 0
      %v375 = vsel %vm351, 1, 0
      %v376 = vsel %vm352, 1, 0
      %v377 = vsel %vm353, 1, 0
      %v378 = vsel %vm354, 1, 0
      %v379 = vsel %vm355, 1, 0
      %v380 = vsel %vm356, 1, 0
      %v381 = vsel %vm357, 1, 0
      %v382 = vsel %vm358, 1, 0
      %v383 = vsel %vm359, 1, 0
      %v384 = vsel %vm360, 1, 0
      %v385 = vsel %vm361, 1, 0
      %v386 = vsel %vm362, 1, 0
      %v387 = vsel %vm363, 1, 0
      %v388 = vsel %vm364, 1, 0
      %v389 = vsel %vm365, 1, 0
      %vm390 = vcmp.eq.s32.totalorder %v366, 1
      %vm391 = vcmp.eq.s32.totalorder %v367, 1
      %vm392 = vcmp.eq.s32.totalorder %v368, 1
      %vm393 = vcmp.eq.s32.totalorder %v369, 1
      %vm394 = vcmp.eq.s32.totalorder %v370, 1
      %vm395 = vcmp.eq.s32.totalorder %v371, 1
      %vm396 = vcmp.eq.s32.totalorder %v372, 1
      %vm397 = vcmp.eq.s32.totalorder %v373, 1
      %vm398 = vcmp.eq.s32.totalorder %v374, 1
      %vm399 = vcmp.eq.s32.totalorder %v375, 1
      %vm400 = vcmp.eq.s32.totalorder %v376, 1
      %vm401 = vcmp.eq.s32.totalorder %v377, 1
      %vm402 = vcmp.eq.s32.totalorder %v378, 1
      %vm403 = vcmp.eq.s32.totalorder %v379, 1
      %vm404 = vcmp.eq.s32.totalorder %v380, 1
      %vm405 = vcmp.eq.s32.totalorder %v381, 1
      %vm406 = vcmp.eq.s32.totalorder %v382, 1
      %vm407 = vcmp.eq.s32.totalorder %v383, 1
      %vm408 = vcmp.eq.s32.totalorder %v384, 1
      %vm409 = vcmp.eq.s32.totalorder %v385, 1
      %vm410 = vcmp.eq.s32.totalorder %v386, 1
      %vm411 = vcmp.eq.s32.totalorder %v387, 1
      %vm412 = vcmp.eq.s32.totalorder %v388, 1
      %vm413 = vcmp.eq.s32.totalorder %v389, 1
      %v414 = vsel %vm390, %v278, -inf
      %v415 = vsel %vm391, %v279, -inf
      %v416 = vsel %vm392, %v280, -inf
      %v417 = vsel %vm393, %v278, -inf
      %v418 = vsel %vm394, %v279, -inf
      %v419 = vsel %vm395, %v280, -inf
      %v420 = vsel %vm396, %v278, -inf
      %v421 = vsel %vm397, %v279, -inf
      %v422 = vsel %vm398, %v280, -inf
      %v423 = vsel %vm399, %v278, -inf
      %v424 = vsel %vm400, %v279, -inf
      %v425 = vsel %vm401, %v280, -inf
      %v426 = vsel %vm402, %v278, -inf
      %v427 = vsel %vm403, %v279, -inf
      %v428 = vsel %vm404, %v280, -inf
      %v429 = vsel %vm405, %v278, -inf
      %v430 = vsel %vm406, %v279, -inf
      %v431 = vsel %vm407, %v280, -inf
      %v432 = vsel %vm408, %v278, -inf
      %v433 = vsel %vm409, %v279, -inf
      %v434 = vsel %vm410, %v280, -inf
      %v435 = vsel %vm411, %v278, -inf
      %v436 = vsel %vm412, %v279, -inf
      %v437 = vsel %vm413, %v280, -inf
      %vm438 = vcmask 130048
      %v439 = vsel %vm438, %v414, -inf
      %v440 = vsel %vm438, %v415, -inf
      %v441 = vmax.f32 %v439, %v440
      %vm442 = vcmask 125952
      %v443 = vsel %vm442, %v416, -inf
      %v444 = vmax.f32 %v441, %v443
      %v445 = vrot.slane %v444, 4
      %v446 = vmax.f32 %v444, %v445
      %v447 = vrot.slane %v446, 2
      %v448 = vmax.f32 %v446, %v447
      %v449 = vrot.slane %v448, 1
      %v450 = vmax.f32 %v448, %v449
      %v451 = vsel %vm438, %v417, -inf
      %v452 = vsel %vm438, %v418, -inf
      %v453 = vmax.f32 %v451, %v452
      %v454 = vsel %vm442, %v419, -inf
      %v455 = vmax.f32 %v453, %v454
      %v456 = vrot.slane %v455, 4
      %v457 = vmax.f32 %v455, %v456
      %v458 = vrot.slane %v457, 2
      %v459 = vmax.f32 %v457, %v458
      %v460 = vrot.slane %v459, 1
      %v461 = vmax.f32 %v459, %v460
      %v462 = vsel %vm438, %v420, -inf
      %v463 = vsel %vm438, %v421, -inf
      %v464 = vmax.f32 %v462, %v463
      %v465 = vsel %vm442, %v422, -inf
      %v466 = vmax.f32 %v464, %v465
      %v467 = vrot.slane %v466, 4
      %v468 = vmax.f32 %v466, %v467
      %v469 = vrot.slane %v468, 2
      %v470 = vmax.f32 %v468, %v469
      %v471 = vrot.slane %v470, 1
      %v472 = vmax.f32 %v470, %v471
      %v473 = vsel %vm438, %v423, -inf
      %v474 = vsel %vm438, %v424, -inf
      %v475 = vmax.f32 %v473, %v474
      %v476 = vsel %vm442, %v425, -inf
      %v477 = vmax.f32 %v475, %v476
      %v478 = vrot.slane %v477, 4
      %v479 = vmax.f32 %v477, %v478
      %v480 = vrot.slane %v479, 2
      %v481 = vmax.f32 %v479, %v480
      %v482 = vrot.slane %v481, 1
      %v483 = vmax.f32 %v481, %v482
      %v484 = vsel %vm438, %v426, -inf
      %v485 = vsel %vm438, %v427, -inf
      %v486 = vmax.f32 %v484, %v485
      %v487 = vsel %vm442, %v428, -inf
      %v488 = vmax.f32 %v486, %v487
      %v489 = vrot.slane %v488, 4
      %v490 = vmax.f32 %v488, %v489
      %v491 = vrot.slane %v490, 2
      %v492 = vmax.f32 %v490, %v491
      %v493 = vrot.slane %v492, 1
      %v494 = vmax.f32 %v492, %v493
      %v495 = vsel %vm438, %v429, -inf
      %v496 = vsel %vm438, %v430, -inf
      %v497 = vmax.f32 %v495, %v496
      %v498 = vsel %vm442, %v431, -inf
      %v499 = vmax.f32 %v497, %v498
      %v500 = vrot.slane %v499, 4
      %v501 = vmax.f32 %v499, %v500
      %v502 = vrot.slane %v501, 2
      %v503 = vmax.f32 %v501, %v502
      %v504 = vrot.slane %v503, 1
      %v505 = vmax.f32 %v503, %v504
      %v506 = vsel %vm438, %v432, -inf
      %v507 = vsel %vm438, %v433, -inf
      %v508 = vmax.f32 %v506, %v507
      %v509 = vsel %vm442, %v434, -inf
      %v510 = vmax.f32 %v508, %v509
      %v511 = vrot.slane %v510, 4
      %v512 = vmax.f32 %v510, %v511
      %v513 = vrot.slane %v512, 2
      %v514 = vmax.f32 %v512, %v513
      %v515 = vrot.slane %v514, 1
      %v516 = vmax.f32 %v514, %v515
      %v517 = vsel %vm438, %v435, -inf
      %v518 = vsel %vm438, %v436, -inf
      %v519 = vmax.f32 %v517, %v518
      %v520 = vsel %vm442, %v437, -inf
      %v521 = vmax.f32 %v519, %v520
      %v522 = vrot.slane %v521, 4
      %v523 = vmax.f32 %v521, %v522
      %v524 = vrot.slane %v523, 2
      %v525 = vmax.f32 %v523, %v524
      %v526 = vrot.slane %v525, 1
      %v527 = vmax.f32 %v525, %v526
      %v528 = vld [vmem:[%s1] sm:$0xf]
      %v529 = vld [vmem:[%s1 + $0x4] sm:$0xf]
      %v530 = vpack.c.bf16 %v450, %v450
      %v531 = vpack.c.bf16 %v461, %v461
      %v532 = vpack.c.bf16 %v472, %v472
      %v533 = vpack.c.bf16 %v483, %v483
      %v534 = vpack.c.bf16 %v494, %v494
      %v535 = vpack.c.bf16 %v505, %v505
      %v536 = vpack.c.bf16 %v516, %v516
      %v537 = vpack.c.bf16 %v527, %v527
      %v538 = vld [vmem:[%s2] sm:$0x1]
      %v540 = vlaneseq
      %v541 = vshrl.u32 %v540, 7
      %v542 = vsub.s32 0, %v541
      %v543 = vrot.slane %v538, %v542
      %v553 = vunpack.c.l.b16 %v530
      %v554 = vunpack.c.l.b16 %v531
      %v555 = vunpack.c.l.b16 %v532
      %v556 = vunpack.c.l.b16 %v533
      %v557 = vunpack.c.l.b16 %v534
      %v558 = vunpack.c.l.b16 %v535
      %v559 = vunpack.c.l.b16 %v536
      %v560 = vunpack.c.l.b16 %v537
      %vm561 = vcmask 1041409
      %v562 = vsel %vm561, %v554, %v553
      %vm563 = vcmask 1042434
      %v564 = vsel %vm563, %v555, %v562
      %vm565 = vcmask 1043459
      %v566 = vsel %vm565, %v556, %v564
      %vm567 = vcmask 1044484
      %v568 = vsel %vm567, %v557, %v566
      %vm569 = vcmask 1045509
      %v570 = vsel %vm569, %v558, %v568
      %vm571 = vcmask 1046534
      %v572 = vsel %vm571, %v559, %v570
      %vm573 = vcmask 1047559
      %v574 = vsel %vm573, %v560, %v572
      %v575 = vpack.c.b16 %v574, %v574
      %v578 = vunpack.c.l.b16 %v528
      %v579 = vunpack.c.l.b16 %v529
      %v580 = vpack.c.b16 %v579, %v578
      %v583 = vsel %vm438, %v575, 0
      %585 = vmatprep.subr.bf16.mxu0 0
      %586 = vmatpush1.bf16.msra.mxu0 0
      %587 = vmatprep.subr.bf16.mxu0 0
      %588 = vmatpush1.bf16.msra.mxu0 0
      %589 = vmatprep.subr.bf16.mxu0 0
      %590 = vmatpush1.bf16.msra.mxu0 0
      %591 = vmatprep.subr.bf16.mxu0 0
      %592 = vmatpush1.bf16.msra.mxu0 0
      %593 = vmatprep.subr.bf16.mxu0 0
      %594 = vmatpush1.bf16.msra.mxu0 0
      %595 = vmatprep.subr.bf16.mxu0 0
      %596 = vmatpush1.bf16.msra.mxu0 0
      %597 = vmatprep.subr.bf16.mxu0 0
      %598 = vmatpush1.bf16.msra.mxu0 0
      %599 = vmatprep.subr.bf16.mxu0 0
      %600 = vmatpush1.bf16.msra.mxu0 %v580
      %601 = vmatprep.subr.bf16.mxu0 0
      %602 = vmatpush2.bf16.msra.mxu0 0
      %603 = vmatprep.subr.bf16.mxu0 0
      %604 = vmatpush2.bf16.msra.mxu0 0
      %605 = vmatprep.subr.bf16.mxu0 0
      %606 = vmatpush2.bf16.msra.mxu0 0
      %607 = vmatprep.subr.bf16.mxu0 0
      %608 = vmatpush2.bf16.msra.mxu0 0
      %609 = vmatprep.subr.bf16.mxu0 0
      %610 = vmatpush2.bf16.msra.mxu0 0
      %611 = vmatprep.subr.bf16.mxu0 0
      %612 = vmatpush2.bf16.msra.mxu0 0
      %613 = vmatprep.subr.bf16.mxu0 0
      %614 = vmatpush2.bf16.msra.mxu0 0
      %615 = vmatprep.subr.bf16.mxu0 0
      %616 = vmatpush2.bf16.msra.mxu0 0
      %617 = vmatprep.mubr.bf16.mxu0 0
      %618 = vmatmul.mubr.bf16.gmra.mxu0 %v583
      %v619 = vpop.f32.mrf.mxu0
      %v620 = vadd.f32 %v543, %v619
      %v621 = vpop.f32.mrf.mxu0
      %v622 = vpop.f32.mrf.mxu0
      %v623 = vpop.f32.mrf.mxu0
      %624 = vdwg.mxu0
      %v625 = vmax.f32 %v620, 0.0
      %v626 = vld [vmem:[%s3] sm:$0xf]
      %v627 = vld [vmem:[%s3 + $0x4] sm:$0xf]
      %v628 = vld [vmem:[%s3 + $0x8] sm:$0xf]
      %v629 = vld [vmem:[%s3 + $0xc] sm:$0xf]
      %v630 = vpack.c.bf16 %v625, %v625
      %v631 = vld [vmem:[%s4] sm:$0x1]
      %v633 = vlaneseq
      %v634 = vshrl.u32 %v633, 7
      %v635 = vsub.s32 0, %v634
      %v636 = vrot.slane %v631, %v635
      %v642 = vunpack.c.l.b16 %v626
      %v643 = vunpack.c.l.b16 %v627
      %v644 = vunpack.c.l.b16 %v628
      %v645 = vunpack.c.l.b16 %v629
      %v646 = vpack.c.b16 %v643, %v642
      %v647 = vpack.c.b16 %v645, %v644
      %vm650 = vcmask 261120
      %v652 = vsel %vm650, %v630, 0
      %654 = vmatprep.subr.bf16.mxu0 0
      %655 = vmatpush1.bf16.msra.mxu0 0
      %656 = vmatprep.subr.bf16.mxu0 0
      %657 = vmatpush1.bf16.msra.mxu0 0
      %658 = vmatprep.subr.bf16.mxu0 0
      %659 = vmatpush1.bf16.msra.mxu0 0
      %660 = vmatprep.subr.bf16.mxu0 0
      %661 = vmatpush1.bf16.msra.mxu0 0
      %662 = vmatprep.subr.bf16.mxu0 0
      %663 = vmatpush1.bf16.msra.mxu0 0
      %664 = vmatprep.subr.bf16.mxu0 0
      %665 = vmatpush1.bf16.msra.mxu0 0
      %666 = vmatprep.subr.bf16.mxu0 0
      %667 = vmatpush1.bf16.msra.mxu0 %v647
      %668 = vmatprep.subr.bf16.mxu0 0
      %669 = vmatpush1.bf16.msra.mxu0 %v646
      %670 = vmatprep.subr.bf16.mxu0 0
      %671 = vmatpush2.bf16.msra.mxu0 0
      %672 = vmatprep.subr.bf16.mxu0 0
      %673 = vmatpush2.bf16.msra.mxu0 0
      %674 = vmatprep.subr.bf16.mxu0 0
      %675 = vmatpush2.bf16.msra.mxu0 0
      %676 = vmatprep.subr.bf16.mxu0 0
      %677 = vmatpush2.bf16.msra.mxu0 0
      %678 = vmatprep.subr.bf16.mxu0 0
      %679 = vmatpush2.bf16.msra.mxu0 0
      %680 = vmatprep.subr.bf16.mxu0 0
      %681 = vmatpush2.bf16.msra.mxu0 0
      %682 = vmatprep.subr.bf16.mxu0 0
      %683 = vmatpush2.bf16.msra.mxu0 0
      %684 = vmatprep.subr.bf16.mxu0 0
      %685 = vmatpush2.bf16.msra.mxu0 0
      %686 = vmatprep.mubr.bf16.mxu0 0
      %687 = vmatmul.mubr.bf16.gmra.mxu0 %v652
      %v688 = vpop.f32.mrf.mxu0
      %v689 = vadd.f32 %v636, %v688
      %v690 = vpop.f32.mrf.mxu0
      %v691 = vpop.f32.mrf.mxu0
      %v692 = vpop.f32.mrf.mxu0
      %693 = vdwg.mxu0
      %v694 = vmax.f32 %v689, 0.0
      %v695 = vadd.f32 %v625, %v694
      %s696 = scalar_lea.vmem %s3, 16
      %v697 = vld [vmem:[%s696] sm:$0xf]
      %v698 = vld [vmem:[%s696 + $0x4] sm:$0xf]
      %v699 = vld [vmem:[%s696 + $0x8] sm:$0xf]
      %v700 = vld [vmem:[%s696 + $0xc] sm:$0xf]
      %v701 = vpack.c.bf16 %v695, %v695
      %s702 = scalar_lea.vmem %s4, 1
      %v703 = vld [vmem:[%s702] sm:$0x1]
      %v705 = vlaneseq
      %v706 = vshrl.u32 %v705, 7
      %v707 = vsub.s32 0, %v706
      %v708 = vrot.slane %v703, %v707
      %v714 = vunpack.c.l.b16 %v697
      %v715 = vunpack.c.l.b16 %v698
      %v716 = vunpack.c.l.b16 %v699
      %v717 = vunpack.c.l.b16 %v700
      %v718 = vpack.c.b16 %v715, %v714
      %v719 = vpack.c.b16 %v717, %v716
      %v723 = vsel %vm650, %v701, 0
      %725 = vmatprep.subr.bf16.mxu0 0
      %726 = vmatpush1.bf16.msra.mxu0 0
      %727 = vmatprep.subr.bf16.mxu0 0
      %728 = vmatpush1.bf16.msra.mxu0 0
      %729 = vmatprep.subr.bf16.mxu0 0
      %730 = vmatpush1.bf16.msra.mxu0 0
      %731 = vmatprep.subr.bf16.mxu0 0
      %732 = vmatpush1.bf16.msra.mxu0 0
      %733 = vmatprep.subr.bf16.mxu0 0
      %734 = vmatpush1.bf16.msra.mxu0 0
      %735 = vmatprep.subr.bf16.mxu0 0
      %736 = vmatpush1.bf16.msra.mxu0 0
      %737 = vmatprep.subr.bf16.mxu0 0
      %738 = vmatpush1.bf16.msra.mxu0 %v719
      %739 = vmatprep.subr.bf16.mxu0 0
      %740 = vmatpush1.bf16.msra.mxu0 %v718
      %741 = vmatprep.subr.bf16.mxu0 0
      %742 = vmatpush2.bf16.msra.mxu0 0
      %743 = vmatprep.subr.bf16.mxu0 0
      %744 = vmatpush2.bf16.msra.mxu0 0
      %745 = vmatprep.subr.bf16.mxu0 0
      %746 = vmatpush2.bf16.msra.mxu0 0
      %747 = vmatprep.subr.bf16.mxu0 0
      %748 = vmatpush2.bf16.msra.mxu0 0
      %749 = vmatprep.subr.bf16.mxu0 0
      %750 = vmatpush2.bf16.msra.mxu0 0
      %751 = vmatprep.subr.bf16.mxu0 0
      %752 = vmatpush2.bf16.msra.mxu0 0
      %753 = vmatprep.subr.bf16.mxu0 0
      %754 = vmatpush2.bf16.msra.mxu0 0
      %755 = vmatprep.subr.bf16.mxu0 0
      %756 = vmatpush2.bf16.msra.mxu0 0
      %757 = vmatprep.mubr.bf16.mxu0 0
      %758 = vmatmul.mubr.bf16.gmra.mxu0 %v723
      %v759 = vpop.f32.mrf.mxu0
      %v760 = vadd.f32 %v708, %v759
      %v761 = vpop.f32.mrf.mxu0
      %v762 = vpop.f32.mrf.mxu0
      %v763 = vpop.f32.mrf.mxu0
      %764 = vdwg.mxu0
      %v765 = vmax.f32 %v760, 0.0
      %v766 = vadd.f32 %v695, %v765
      %v767 = vld [vmem:[%s5] sm:$0xf]
      %v768 = vld [vmem:[%s5 + $0x4] sm:$0xf]
      %v769 = vld [vmem:[%s5 + $0x8] sm:$0xf]
      %v770 = vld [vmem:[%s5 + $0xc] sm:$0xf]
      %v771 = vld [vmem:[%s5 + $0x10] sm:$0xf]
      %v772 = vld [vmem:[%s5 + $0x14] sm:$0xf]
      %v773 = vld [vmem:[%s5 + $0x18] sm:$0xf]
      %v774 = vld [vmem:[%s5 + $0x1c] sm:$0xf]
      %v775 = vld [vmem:[%s5 + $0x20] sm:$0xf]
      %v776 = vld [vmem:[%s5 + $0x24] sm:$0xf]
      %v777 = vld [vmem:[%s5 + $0x28] sm:$0xf]
      %v778 = vld [vmem:[%s5 + $0x2c] sm:$0xf]
      %v779 = vld [vmem:[%s6] sm:$0x1]
      %vm780 = vcmask 253952
      %781 = vst.msk [vmem:[#allocation2] sm:$0x1] %vm780, 0.0
      %782 = vst.msk [vmem:[#allocation2 + $0x9] sm:$0x1] %vm780, 0.0
      %783 = vst.msk [vmem:[#allocation2 + $0x1] sm:$0xff] %vm650, %v766
      %v784 = vld [vmem:[#allocation2] sm:$0xff]
      %v785 = vld [vmem:[#allocation2 + $0x2] sm:$0xff]
      %787 = vrot.lane.b32.xlu0 %v766, 32
      %v788 = vpop.permute.xlu0 %787
      %791 = vrot.lane.b32.xlu0 %v785, 64
      %v792 = vpop.permute.xlu0 %791
      %v794 = vsel %vm650, %v784, %v788
      %vm795 = vcmask 523264
      %v796 = vsel %vm795, %v794, %v792
      %v797 = vpack.c.bf16 %v796, %v796
      %v799 = vlaneseq
      %v800 = vshrl.u32 %v799, 7
      %v801 = vsub.s32 0, %v800
      %v802 = vrot.slane %v779, %v801
      %v816 = vunpack.c.l.b16 %v767
      %v817 = vunpack.c.l.b16 %v768
      %v818 = vunpack.c.l.b16 %v769
      %v819 = vunpack.c.l.b16 %v770
      %v820 = vunpack.c.l.b16 %v771
      %v821 = vunpack.c.l.b16 %v772
      %v822 = vunpack.c.l.b16 %v773
      %v823 = vunpack.c.l.b16 %v774
      %v824 = vunpack.c.l.b16 %v775
      %v825 = vunpack.c.l.b16 %v776
      %v826 = vunpack.c.l.b16 %v777
      %v827 = vunpack.c.l.b16 %v778
      %v828 = vpack.c.b16 %v817, %v816
      %v829 = vpack.c.b16 %v819, %v818
      %v830 = vpack.c.b16 %v821, %v820
      %v831 = vpack.c.b16 %v823, %v822
      %v832 = vpack.c.b16 %v825, %v824
      %v833 = vpack.c.b16 %v827, %v826
      %vm840 = vcmask 785408
      %v842 = vsel %vm840, %v797, 0
      %844 = vmatprep.subr.bf16.mxu0 0
      %845 = vmatpush1.bf16.msra.mxu0 0
      %846 = vmatprep.subr.bf16.mxu0 0
      %847 = vmatpush1.bf16.msra.mxu0 0
      %848 = vmatprep.subr.bf16.mxu0 0
      %849 = vmatpush1.bf16.msra.mxu0 %v833
      %850 = vmatprep.subr.bf16.mxu0 0
      %851 = vmatpush1.bf16.msra.mxu0 %v832
      %852 = vmatprep.subr.bf16.mxu0 0
      %853 = vmatpush1.bf16.msra.mxu0 %v831
      %854 = vmatprep.subr.bf16.mxu0 0
      %855 = vmatpush1.bf16.msra.mxu0 %v830
      %856 = vmatprep.subr.bf16.mxu0 0
      %857 = vmatpush1.bf16.msra.mxu0 %v829
      %858 = vmatprep.subr.bf16.mxu0 0
      %859 = vmatpush1.bf16.msra.mxu0 %v828
      %860 = vmatprep.subr.bf16.mxu0 0
      %861 = vmatpush2.bf16.msra.mxu0 0
      %862 = vmatprep.subr.bf16.mxu0 0
      %863 = vmatpush2.bf16.msra.mxu0 0
      %864 = vmatprep.subr.bf16.mxu0 0
      %865 = vmatpush2.bf16.msra.mxu0 0
      %866 = vmatprep.subr.bf16.mxu0 0
      %867 = vmatpush2.bf16.msra.mxu0 0
      %868 = vmatprep.subr.bf16.mxu0 0
      %869 = vmatpush2.bf16.msra.mxu0 0
      %870 = vmatprep.subr.bf16.mxu0 0
      %871 = vmatpush2.bf16.msra.mxu0 0
      %872 = vmatprep.subr.bf16.mxu0 0
      %873 = vmatpush2.bf16.msra.mxu0 0
      %874 = vmatprep.subr.bf16.mxu0 0
      %875 = vmatpush2.bf16.msra.mxu0 0
      %876 = vmatprep.mubr.bf16.mxu0 0
      %877 = vmatmul.mubr.bf16.gmra.mxu0 %v842
      %v878 = vpop.f32.mrf.mxu0
      %v879 = vadd.f32 %v802, %v878
      %v880 = vpop.f32.mrf.mxu0
      %v881 = vpop.f32.mrf.mxu0
      %v882 = vpop.f32.mrf.mxu0
      %883 = vdwg.mxu0
      %v884 = vmul.u32 %v285, 4
      %vm885 = vcmp.gt.s32.totalorder %v884, 0
      %vm886 = vcmp.gt.s32.totalorder %v884, 8
      %vm887 = vcmp.gt.s32.totalorder %v884, 16
      %vm888 = vcmp.gt.s32.totalorder %v884, 24
      %v889 = vmul.u32 %v282, 4
      %vm890 = vcmp.lt.s32.totalorder %v889, 8
      %vm891 = vcmp.lt.s32.totalorder %v889, 16
      %vm892 = vcmp.lt.s32.totalorder %v889, 24
      %vm893 = vcmp.lt.s32.totalorder %v889, 32
      %vm894 = vmand %vm885, %vm890
      %vm895 = vmand %vm886, %vm891
      %vm896 = vmand %vm887, %vm892
      %vm897 = vmand %vm888, %vm893
      %v898 = vsel %vm894, 1, 0
      %v899 = vsel %vm895, 1, 0
      %v900 = vsel %vm896, 1, 0
      %v901 = vsel %vm897, 1, 0
      %vm902 = vcmp.eq.s32.totalorder %v898, 1
      %vm903 = vcmp.eq.s32.totalorder %v899, 1
      %vm904 = vcmp.eq.s32.totalorder %v900, 1
      %vm905 = vcmp.eq.s32.totalorder %v901, 1
      %v906 = vsel %vm902, %v879, -inf
      %v907 = vsel %vm903, %v879, -inf
      %v908 = vsel %vm904, %v879, -inf
      %v909 = vsel %vm905, %v879, -inf
      %v910 = vsel %vm650, %v906, -inf
      %v911 = vrot.slane %v910, 4
      %v912 = vmax.f32 %v910, %v911
      %v913 = vrot.slane %v912, 2
      %v914 = vmax.f32 %v912, %v913
      %v915 = vrot.slane %v914, 1
      %v916 = vmax.f32 %v914, %v915
      %v917 = vsel %vm650, %v907, -inf
      %v918 = vrot.slane %v917, 4
      %v919 = vmax.f32 %v917, %v918
      %v920 = vrot.slane %v919, 2
      %v921 = vmax.f32 %v919, %v920
      %v922 = vrot.slane %v921, 1
      %v923 = vmax.f32 %v921, %v922
      %v924 = vsel %vm650, %v908, -inf
      %v925 = vrot.slane %v924, 4
      %v926 = vmax.f32 %v924, %v925
      %v927 = vrot.slane %v926, 2
      %v928 = vmax.f32 %v926, %v927
      %v929 = vrot.slane %v928, 1
      %v930 = vmax.f32 %v928, %v929
      %v931 = vsel %vm650, %v909, -inf
      %v932 = vrot.slane %v931, 4
      %v933 = vmax.f32 %v931, %v932
      %v934 = vrot.slane %v933, 2
      %v935 = vmax.f32 %v933, %v934
      %v936 = vrot.slane %v935, 1
      %v937 = vmax.f32 %v935, %v936
      %v942 = vsel %vm561, %v923, %v916
      %v943 = vsel %vm563, %v930, %v942
      %v944 = vsel %vm565, %v937, %v943
      %vm946 = vcmask 257024
      %947 = vst.msk [vmem:[%s276] sm:$0xf] %vm946, %v944
      %p948 = scmp.lt.s32.totalorder %s18, 1
      %s949 = scalar_select %p948, %s18, 1
      %s950 = smul.addr %s949, 4
      %s951 = scalar_lea.vmem %s7, %s950
      // Predicated region
      $region49: #{fwd.7} parent=47 // pred_check
        %p952 = pneg %p188
      $region50: #{fwd.7} parent=47 // pred_check_branch
        %954 = sbr.rel (%p952) target = $region52
      $region51: #{fwd.7} parent=47 // pred_region
        _
      $region52: #{fwd.7} parent=47 // pred_fallthru
        _
    $region48: #{fwd.7} parent=5 // pred_fallthru
      _
    %p955 = scmp.le.s32.totalorder 2, %s13
    // Predicated region
    $region53: #{fwd.7} parent=5 // pred_check
      %p956 = pneg %p955
    $region54: #{fwd.7} parent=5 // pred_check_branch
      %958 = sbr.rel (%p956) target = $region56
    $region55: #{fwd.7} parent=5 // pred_region
      %s959 = ssub.s32 %s13, 2
      // Predicated region
      $region57: #{fwd.7} parent=55 // pred_check
        %p960 = pneg %p194
      $region58: #{fwd.7} parent=55 // pred_check_branch
        %962 = sbr.rel (%p960) target = $region60
      $region59: #{fwd.7} parent=55 // pred_region
        %p963 = scmp.lt.s32.totalorder %s19, 1
        %s964 = scalar_select %p963, %s19, 1
        %s965 = smul.addr %s964, 4
        %s966 = scalar_lea.vmem %s7, %s965
      $region60: #{fwd.7} parent=55 // pred_fallthru
        _
    $region56: #{fwd.7} parent=5 // pred_fallthru
      _
  $region6: #{fwd.7} parent=0 // loop_footer
    %s17 = sadd.s32 1, %s13
  $region7: #{fwd.7} parent=0 // loop_footer_branch
    %12 = sbr.rel target = $region3
  $region8: #{fwd.7} parent=0 // loop_exit
    _

// kernel: fwd.6
$region0: #{fwd.6}
  #allocation0 [shape = 'u32[]', space=smem, size = 0x4, offset = 0x4, fixed_abs, tag = 'smem constant byte address 0x4 - core index']
  #allocation1 [shape = 'u32[144,128]{1,0:T(1,128)}', space=vmem, size = 0x12000, scoped, tag = 'internal scratch']
  #allocation2 [shape = 'f32[10,32]{1,0:T(8,128)}', space=vmem, size = 0x2000, scoped, tag = 'scratch operand']
  %s0 = inlined_call_operand.vmem [shape: f32[2,20,12], index: 0, kind: input, shape index: {}]
  %s1 = inlined_call_operand.vmem [shape: bf16[12,32], index: 1, kind: input, shape index: {}]
  %s2 = inlined_call_operand.vmem [shape: f32[1,32], index: 2, kind: input, shape index: {}]
  %s3 = inlined_call_operand.vmem [shape: bf16[2,32,32], index: 3, kind: input, shape index: {}]
  %s4 = inlined_call_operand.vmem [shape: f32[2,1,32], index: 4, kind: input, shape index: {}]
  %s5 = inlined_call_operand.vmem [shape: bf16[96,32], index: 5, kind: input, shape index: {}]
  %s6 = inlined_call_operand.vmem [shape: f32[1,32], index: 6, kind: input, shape index: {}]
  %s7 = inlined_call_operand.vmem [shape: f32[2,4,32], index: 7, kind: output, shape index: {}]
  %s8 = sld [smem:[#allocation0]]
  $region61: #{fwd.6} parent=0
    _
  %s10 = ssub.s32 1, %s8
  %s11 = scalar_select 0, %s10, %s8
  loop: start=0, step=1, limit=4
  $region2: #{fwd.6} parent=0 // loop_pre_header
    _
  $region3: #{fwd.6} parent=0 // loop_header
    %s13 = sphi 0, %s17
    %p14 = scmp.ge.s32.totalorder %s13, 4
    %s23 = sphi 0, %s25
    %s26 = sphi 0, %s23
    %s27 = sphi 0, %s26
    %s43 = sphi 0, %s27
    %s47 = sphi 0, %s47
    %s49 = sphi 0, %s47
    %s50 = sphi 0, %s49
    %s64 = sphi 0, %s50
    %s68 = sphi 0, %s68
    %s70 = sphi 0, %s68
    %s71 = sphi 0, %s70
    %s85 = sphi 0, %s71
    %s89 = sphi 0, %s89
    %s91 = sphi 0, %s89
    %s92 = sphi 0, %s91
    %s106 = sphi 0, %s92
    %s110 = sphi 0, %s110
    %s112 = sphi 0, %s110
    %s113 = sphi 0, %s112
    %s127 = sphi 0, %s113
    %s131 = sphi 0, %s131
    %s133 = sphi 0, %s131
    %s134 = sphi 0, %s133
    %s148 = sphi 0, %s134
    %s152 = sphi 0, %s152
    %s154 = sphi 0, %s152
    %s155 = sphi 0, %s154
    %s169 = sphi 0, %s155
    %s175 = sphi 0, %s177
    %s178 = sphi 0, %s175
    %s179 = sphi 0, %s178
    %s195 = sphi 0, %s179
  $region4: #{fwd.6} parent=0 // loop_header_branch
    %16 = sbr.rel (%p14) target = $region8
  $region5: #{fwd.6} parent=0 // loop_body
    %s18 = ssub.s32 %s13, 1
    %s19 = ssub.s32 %s13, 2
    %s20 = sadd.s32 %s13, 1
    %s21 = ssub.s32 %s13, %s20
    %p22 = scmp.eq.s32.totalorder %s21, 0
    %s24 = sadd.s32 %s23, 1
    %s25 = scalar_select %p22, %s23, %s24
    %p28 = pneg %p22
    %p29 = scmp.eq.s32.totalorder %s13, 1
    %p30 = por %p28, %p29
    %p31 = scmp.ne.s32.totalorder %s23, %s26
    %p32 = scmp.eq.s32.totalorder %s13, 0
    %p33 = por %p31, %p32
    %p34 = scmp.ne.s32.totalorder %s23, %s26
    %p35 = scmp.eq.s32.totalorder %s18, 1
    %p36 = por %p34, %p35
    %p37 = scmp.ne.s32.totalorder %s26, %s27
    %p38 = scmp.eq.s32.totalorder %s18, 0
    %p39 = por %p37, %p38
    %p40 = scmp.ne.s32.totalorder %s26, %s27
    %p41 = scmp.eq.s32.totalorder %s19, 1
    %p42 = por %p40, %p41
    %p44 = scmp.ne.s32.totalorder %s27, %s43
    %p45 = scmp.eq.s32.totalorder %s19, 0
    %p46 = por %p44, %p45
    %s48 = sadd.s32 %s47, 1
    %p51 = scmp.eq.s32.totalorder %s13, 1
    %p52 = scmp.ne.s32.totalorder %s47, %s49
    %p53 = scmp.eq.s32.totalorder %s13, 0
    %p54 = por %p52, %p53
    %p55 = scmp.ne.s32.totalorder %s47, %s49
    %p56 = scmp.eq.s32.totalorder %s18, 1
    %p57 = por %p55, %p56
    %p58 = scmp.ne.s32.totalorder %s49, %s50
    %p59 = scmp.eq.s32.totalorder %s18, 0
    %p60 = por %p58, %p59
    %p61 = scmp.ne.s32.totalorder %s49, %s50
    %p62 = scmp.eq.s32.totalorder %s19, 1
    %p63 = por %p61, %p62
    %p65 = scmp.ne.s32.totalorder %s50, %s64
    %p66 = scmp.eq.s32.totalorder %s19, 0
    %p67 = por %p65, %p66
    %s69 = sadd.s32 %s68, 1
    %p72 = scmp.eq.s32.totalorder %s13, 1
    %p73 = scmp.ne.s32.totalorder %s68, %s70
    %p74 = scmp.eq.s32.totalorder %s13, 0
    %p75 = por %p73, %p74
    %p76 = scmp.ne.s32.totalorder %s68, %s70
    %p77 = scmp.eq.s32.totalorder %s18, 1
    %p78 = por %p76, %p77
    %p79 = scmp.ne.s32.totalorder %s70, %s71
    %p80 = scmp.eq.s32.totalorder %s18, 0
    %p81 = por %p79, %p80
    %p82 = scmp.ne.s32.totalorder %s70, %s71
    %p83 = scmp.eq.s32.totalorder %s19, 1
    %p84 = por %p82, %p83
    %p86 = scmp.ne.s32.totalorder %s71, %s85
    %p87 = scmp.eq.s32.totalorder %s19, 0
    %p88 = por %p86, %p87
    %s90 = sadd.s32 %s89, 1
    %p93 = scmp.eq.s32.totalorder %s13, 1
    %p94 = scmp.ne.s32.totalorder %s89, %s91
    %p95 = scmp.eq.s32.totalorder %s13, 0
    %p96 = por %p94, %p95
    %p97 = scmp.ne.s32.totalorder %s89, %s91
    %p98 = scmp.eq.s32.totalorder %s18, 1
    %p99 = por %p97, %p98
    %p100 = scmp.ne.s32.totalorder %s91, %s92
    %p101 = scmp.eq.s32.totalorder %s18, 0
    %p102 = por %p100, %p101
    %p103 = scmp.ne.s32.totalorder %s91, %s92
    %p104 = scmp.eq.s32.totalorder %s19, 1
    %p105 = por %p103, %p104
    %p107 = scmp.ne.s32.totalorder %s92, %s106
    %p108 = scmp.eq.s32.totalorder %s19, 0
    %p109 = por %p107, %p108
    %s111 = sadd.s32 %s110, 1
    %p114 = scmp.eq.s32.totalorder %s13, 1
    %p115 = scmp.ne.s32.totalorder %s110, %s112
    %p116 = scmp.eq.s32.totalorder %s13, 0
    %p117 = por %p115, %p116
    %p118 = scmp.ne.s32.totalorder %s110, %s112
    %p119 = scmp.eq.s32.totalorder %s18, 1
    %p120 = por %p118, %p119
    %p121 = scmp.ne.s32.totalorder %s112, %s113
    %p122 = scmp.eq.s32.totalorder %s18, 0
    %p123 = por %p121, %p122
    %p124 = scmp.ne.s32.totalorder %s112, %s113
    %p125 = scmp.eq.s32.totalorder %s19, 1
    %p126 = por %p124, %p125
    %p128 = scmp.ne.s32.totalorder %s113, %s127
    %p129 = scmp.eq.s32.totalorder %s19, 0
    %p130 = por %p128, %p129
    %s132 = sadd.s32 %s131, 1
    %p135 = scmp.eq.s32.totalorder %s13, 1
    %p136 = scmp.ne.s32.totalorder %s131, %s133
    %p137 = scmp.eq.s32.totalorder %s13, 0
    %p138 = por %p136, %p137
    %p139 = scmp.ne.s32.totalorder %s131, %s133
    %p140 = scmp.eq.s32.totalorder %s18, 1
    %p141 = por %p139, %p140
    %p142 = scmp.ne.s32.totalorder %s133, %s134
    %p143 = scmp.eq.s32.totalorder %s18, 0
    %p144 = por %p142, %p143
    %p145 = scmp.ne.s32.totalorder %s133, %s134
    %p146 = scmp.eq.s32.totalorder %s19, 1
    %p147 = por %p145, %p146
    %p149 = scmp.ne.s32.totalorder %s134, %s148
    %p150 = scmp.eq.s32.totalorder %s19, 0
    %p151 = por %p149, %p150
    %s153 = sadd.s32 %s152, 1
    %p156 = scmp.eq.s32.totalorder %s13, 1
    %p157 = scmp.ne.s32.totalorder %s152, %s154
    %p158 = scmp.eq.s32.totalorder %s13, 0
    %p159 = por %p157, %p158
    %p160 = scmp.ne.s32.totalorder %s152, %s154
    %p161 = scmp.eq.s32.totalorder %s18, 1
    %p162 = por %p160, %p161
    %p163 = scmp.ne.s32.totalorder %s154, %s155
    %p164 = scmp.eq.s32.totalorder %s18, 0
    %p165 = por %p163, %p164
    %p166 = scmp.ne.s32.totalorder %s154, %s155
    %p167 = scmp.eq.s32.totalorder %s19, 1
    %p168 = por %p166, %p167
    %p170 = scmp.ne.s32.totalorder %s155, %s169
    %p171 = scmp.eq.s32.totalorder %s19, 0
    %p172 = por %p170, %p171
    %s173 = ssub.s32 %s13, %s20
    %p174 = scmp.eq.s32.totalorder %s173, 0
    %s176 = sadd.s32 %s175, 1
    %s177 = scalar_select %p174, %s175, %s176
    %p180 = pneg %p174
    %p181 = scmp.eq.s32.totalorder %s13, 1
    %p182 = por %p180, %p181
    %p183 = scmp.ne.s32.totalorder %s175, %s178
    %p184 = scmp.eq.s32.totalorder %s13, 0
    %p185 = por %p183, %p184
    %p186 = scmp.ne.s32.totalorder %s175, %s178
    %p187 = scmp.eq.s32.totalorder %s18, 1
    %p188 = por %p186, %p187
    %p189 = scmp.ne.s32.totalorder %s178, %s179
    %p190 = scmp.eq.s32.totalorder %s18, 0
    %p191 = por %p189, %p190
    %p192 = scmp.ne.s32.totalorder %s178, %s179
    %p193 = scmp.eq.s32.totalorder %s19, 1
    %p194 = por %p192, %p193
    %p196 = scmp.ne.s32.totalorder %s179, %s195
    %p197 = scmp.eq.s32.totalorder %s19, 0
    %p198 = por %p196, %p197
    %p199 = scmp.le.s32.totalorder 1, %s13
    %p200 = scmp.lt.s32.totalorder %s13, 3
    %p201 = pnand %p199, %p200
    %p202 = pneg %p201
    // Predicated region
    $region9: #{fwd.6} parent=5 // pred_check
      _
    $region10: #{fwd.6} parent=5 // pred_check_branch
      %204 = sbr.rel (%p201) target = $region12
    $region11: #{fwd.6} parent=5 // pred_region
      %s205 = ssub.s32 %s13, 1
      // Predicated region
      $region13: #{fwd.6} parent=11 // pred_check
        %p206 = pneg %p60
      $region14: #{fwd.6} parent=11 // pred_check_branch
        %208 = sbr.rel (%p206) target = $region16
      $region15: #{fwd.6} parent=11 // pred_region
        _
      $region16: #{fwd.6} parent=11 // pred_fallthru
        _
      // Predicated region
      $region17: #{fwd.6} parent=11 // pred_check
        %p209 = pneg %p81
      $region18: #{fwd.6} parent=11 // pred_check_branch
        %211 = sbr.rel (%p209) target = $region20
      $region19: #{fwd.6} parent=11 // pred_region
        _
      $region20: #{fwd.6} parent=11 // pred_fallthru
        _
      // Predicated region
      $region21: #{fwd.6} parent=11 // pred_check
        %p212 = pneg %p102
      $region22: #{fwd.6} parent=11 // pred_check_branch
        %214 = sbr.rel (%p212) target = $region24
      $region23: #{fwd.6} parent=11 // pred_region
        _
      $region24: #{fwd.6} parent=11 // pred_fallthru
        _
      // Predicated region
      $region25: #{fwd.6} parent=11 // pred_check
        %p215 = pneg %p123
      $region26: #{fwd.6} parent=11 // pred_check_branch
        %217 = sbr.rel (%p215) target = $region28
      $region27: #{fwd.6} parent=11 // pred_region
        _
      $region28: #{fwd.6} parent=11 // pred_fallthru
        _
      // Predicated region
      $region29: #{fwd.6} parent=11 // pred_check
        %p218 = pneg %p144
      $region30: #{fwd.6} parent=11 // pred_check_branch
        %220 = sbr.rel (%p218) target = $region32
      $region31: #{fwd.6} parent=11 // pred_region
        _
      $region32: #{fwd.6} parent=11 // pred_fallthru
        _
      // Predicated region
      $region33: #{fwd.6} parent=11 // pred_check
        %p221 = pneg %p165
      $region34: #{fwd.6} parent=11 // pred_check_branch
        %223 = sbr.rel (%p221) target = $region36
      $region35: #{fwd.6} parent=11 // pred_region
        _
      $region36: #{fwd.6} parent=11 // pred_fallthru
        _
    $region12: #{fwd.6} parent=5 // pred_fallthru
      _
    %p224 = scmp.lt.s32.totalorder %s13, 2
    // Predicated region
    $region37: #{fwd.6} parent=5 // pred_check
      %p225 = pneg %p224
    $region38: #{fwd.6} parent=5 // pred_check_branch
      %227 = sbr.rel (%p225) target = $region40
    $region39: #{fwd.6} parent=5 // pred_region
      // Predicated region
      $region41: #{fwd.6} parent=39 // pred_check
        %p228 = pneg %p33
      $region42: #{fwd.6} parent=39 // pred_check_branch
        %230 = sbr.rel (%p228) target = $region44
      $region43: #{fwd.6} parent=39 // pred_region
        %p231 = scmp.lt.s32.totalorder %s13, 1
        %s232 = scalar_select %p231, %s13, 1
        %s233 = smul.addr %s232, 3
        %s234 = smul.addr %s233, 8
        %s235 = scalar_lea.vmem %s0, %s234
      $region44: #{fwd.6} parent=39 // pred_fallthru
        _
    $region40: #{fwd.6} parent=5 // pred_fallthru
      _
    %p236 = scmp.le.s32.totalorder 1, %s13
    %p237 = scmp.lt.s32.totalorder %s13, 3
    %p238 = pnand %p236, %p237
    %p239 = pneg %p238
    // Predicated region
    $region45: #{fwd.6} parent=5 // pred_check
      _
    $region46: #{fwd.6} parent=5 // pred_check_branch
      %241 = sbr.rel (%p238) target = $region48
    $region47: #{fwd.6} parent=5 // pred_region
      %s242 = ssub.s32 %s13, 1
      %p243 = scmp.lt.s32.totalorder %s18, 1
      %s244 = scalar_select %p243, %s18, 1
      %s245 = smul.addr %s244, 3
      %s246 = smul.addr %s245, 8
      %s247 = scalar_lea.vmem %s0, %s246
      %p248 = pneg %p39
      %p249 = pneg %p36
      %p250 = pneg %p60
      %p251 = pneg %p57
      %p252 = pneg %p81
      %p253 = pneg %p78
      %p254 = pneg %p102
      %p255 = pneg %p99
      %p256 = pneg %p123
      %p257 = pneg %p120
      %p258 = pneg %p144
      %p259 = pneg %p141
      %p260 = pneg %p165
      %p261 = pneg %p162
      %p262 = pneg %p191
      %p263 = pneg %p188
      %p264 = scmp.lt.s32.totalorder %s18, 1
      %s265 = scalar_select %p264, %s18, 1
      %s266 = smul.addr %s265, 4
      %s267 = scalar_lea.vmem %s7, %s266
      %p268 = scmp.lt.s32.totalorder %s18, 1
      %s269 = scalar_select %p268, %s18, 1
      %s270 = smul.addr %s269, 3
      %s271 = smul.addr %s270, 8
      %s272 = scalar_lea.vmem %s0, %s271
      %p273 = scmp.lt.s32.totalorder %s18, 1
      %s274 = scalar_select %p273, %s18, 1
      %s275 = smul.addr %s274, 4
      %s276 = scalar_lea.vmem %s7, %s275
      %v278 = vld [vmem:[%s272] sm:$0xff]
      %v279 = vld [vmem:[%s272 + $0x8] sm:$0xff]
      %v280 = vld [vmem:[%s272 + $0x10] sm:$0xf]
      %v281 = vlaneseq
      %v282 = vshrl.u32 %v281, 7
      %v283 = vadd.s32 %v282, 8
      %v284 = vadd.s32 %v282, 16
      %v285 = vadd.s32 %v282, 1
      %v286 = vadd.s32 %v283, 1
      %v287 = vadd.s32 %v284, 1
      %v288 = vmul.u32 %v285, 8
      %v289 = vmul.u32 %v286, 8
      %v290 = vmul.u32 %v287, 8
      %vm291 = vcmp.gt.s32.totalorder %v288, 0
      %vm292 = vcmp.gt.s32.totalorder %v289, 0
      %vm293 = vcmp.gt.s32.totalorder %v290, 0
      %vm294 = vcmp.gt.s32.totalorder %v288, 20
      %vm295 = vcmp.gt.s32.totalorder %v289, 20
      %vm296 = vcmp.gt.s32.totalorder %v290, 20
      %vm297 = vcmp.gt.s32.totalorder %v288, 40
      %vm298 = vcmp.gt.s32.totalorder %v289, 40
      %vm299 = vcmp.gt.s32.totalorder %v290, 40
      %vm300 = vcmp.gt.s32.totalorder %v288, 60
      %vm301 = vcmp.gt.s32.totalorder %v289, 60
      %vm302 = vcmp.gt.s32.totalorder %v290, 60
      %vm303 = vcmp.gt.s32.totalorder %v288, 80
      %vm304 = vcmp.gt.s32.totalorder %v289, 80
      %vm305 = vcmp.gt.s32.totalorder %v290, 80
      %vm306 = vcmp.gt.s32.totalorder %v288, 100
      %vm307 = vcmp.gt.s32.totalorder %v289, 100
      %vm308 = vcmp.gt.s32.totalorder %v290, 100
      %vm309 = vcmp.gt.s32.totalorder %v288, 120
      %vm310 = vcmp.gt.s32.totalorder %v289, 120
      %vm311 = vcmp.gt.s32.totalorder %v290, 120
      %vm312 = vcmp.gt.s32.totalorder %v288, 140
      %vm313 = vcmp.gt.s32.totalorder %v289, 140
      %vm314 = vcmp.gt.s32.totalorder %v290, 140
      %v315 = vmul.u32 %v282, 8
      %v316 = vmul.u32 %v283, 8
      %v317 = vmul.u32 %v284, 8
      %vm318 = vcmp.lt.s32.totalorder %v315, 20
      %vm319 = vcmp.lt.s32.totalorder %v316, 20
      %vm320 = vcmp.lt.s32.totalorder %v317, 20
      %vm321 = vcmp.lt.s32.totalorder %v315, 40
      %vm322 = vcmp.lt.s32.totalorder %v316, 40
      %vm323 = vcmp.lt.s32.totalorder %v317, 40
      %vm324 = vcmp.lt.s32.totalorder %v315, 60
      %vm325 = vcmp.lt.s32.totalorder %v316, 60
      %vm326 = vcmp.lt.s32.totalorder %v317, 60
      %vm327 = vcmp.lt.s32.totalorder %v315, 80
      %vm328 = vcmp.lt.s32.totalorder %v316, 80
      %vm329 = vcmp.lt.s32.totalorder %v317, 80
      %vm330 = vcmp.lt.s32.totalorder %v315, 100
      %vm331 = vcmp.lt.s32.totalorder %v316, 100
      %vm332 = vcmp.lt.s32.totalorder %v317, 100
      %vm333 = vcmp.lt.s32.totalorder %v315, 120
      %vm334 = vcmp.lt.s32.totalorder %v316, 120
      %vm335 = vcmp.lt.s32.totalorder %v317, 120
      %vm336 = vcmp.lt.s32.totalorder %v315, 140
      %vm337 = vcmp.lt.s32.totalorder %v316, 140
      %vm338 = vcmp.lt.s32.totalorder %v317, 140
      %vm339 = vcmp.lt.s32.totalorder %v315, 160
      %vm340 = vcmp.lt.s32.totalorder %v316, 160
      %vm341 = vcmp.lt.s32.totalorder %v317, 160
      %vm342 = vmand %vm291, %vm318
      %vm343 = vmand %vm292, %vm319
      %vm344 = vmand %vm293, %vm320
      %vm345 = vmand %vm294, %vm321
      %vm346 = vmand %vm295, %vm322
      %vm347 = vmand %vm296, %vm323
      %vm348 = vmand %vm297, %vm324
      %vm349 = vmand %vm298, %vm325
      %vm350 = vmand %vm299, %vm326
      %vm351 = vmand %vm300, %vm327
      %vm352 = vmand %vm301, %vm328
      %vm353 = vmand %vm302, %vm329
      %vm354 = vmand %vm303, %vm330
      %vm355 = vmand %vm304, %vm331
      %vm356 = vmand %vm305, %vm332
      %vm357 = vmand %vm306, %vm333
      %vm358 = vmand %vm307, %vm334
      %vm359 = vmand %vm308, %vm335
      %vm360 = vmand %vm309, %vm336
      %vm361 = vmand %vm310, %vm337
      %vm362 = vmand %vm311, %vm338
      %vm363 = vmand %vm312, %vm339
      %vm364 = vmand %vm313, %vm340
      %vm365 = vmand %vm314, %vm341
      %v366 = vsel %vm342, 1, 0
      %v367 = vsel %vm343, 1, 0
      %v368 = vsel %vm344, 1, 0
      %v369 = vsel %vm345, 1, 0
      %v370 = vsel %vm346, 1, 0
      %v371 = vsel %vm347, 1, 0
      %v372 = vsel %vm348, 1, 0
      %v373 = vsel %vm349, 1, 0
      %v374 = vsel %vm350, 1, 0
      %v375 = vsel %vm351, 1, 0
      %v376 = vsel %vm352, 1, 0
      %v377 = vsel %vm353, 1, 0
      %v378 = vsel %vm354, 1, 0
      %v379 = vsel %vm355, 1, 0
      %v380 = vsel %vm356, 1, 0
      %v381 = vsel %vm357, 1, 0
      %v382 = vsel %vm358, 1, 0
      %v383 = vsel %vm359, 1, 0
      %v384 = vsel %vm360, 1, 0
      %v385 = vsel %vm361, 1, 0
      %v386 = vsel %vm362, 1, 0
      %v387 = vsel %vm363, 1, 0
      %v388 = vsel %vm364, 1, 0
      %v389 = vsel %vm365, 1, 0
      %vm390 = vcmp.eq.s32.totalorder %v366, 1
      %vm391 = vcmp.eq.s32.totalorder %v367, 1
      %vm392 = vcmp.eq.s32.totalorder %v368, 1
      %vm393 = vcmp.eq.s32.totalorder %v369, 1
      %vm394 = vcmp.eq.s32.totalorder %v370, 1
      %vm395 = vcmp.eq.s32.totalorder %v371, 1
      %vm396 = vcmp.eq.s32.totalorder %v372, 1
      %vm397 = vcmp.eq.s32.totalorder %v373, 1
      %vm398 = vcmp.eq.s32.totalorder %v374, 1
      %vm399 = vcmp.eq.s32.totalorder %v375, 1
      %vm400 = vcmp.eq.s32.totalorder %v376, 1
      %vm401 = vcmp.eq.s32.totalorder %v377, 1
      %vm402 = vcmp.eq.s32.totalorder %v378, 1
      %vm403 = vcmp.eq.s32.totalorder %v379, 1
      %vm404 = vcmp.eq.s32.totalorder %v380, 1
      %vm405 = vcmp.eq.s32.totalorder %v381, 1
      %vm406 = vcmp.eq.s32.totalorder %v382, 1
      %vm407 = vcmp.eq.s32.totalorder %v383, 1
      %vm408 = vcmp.eq.s32.totalorder %v384, 1
      %vm409 = vcmp.eq.s32.totalorder %v385, 1
      %vm410 = vcmp.eq.s32.totalorder %v386, 1
      %vm411 = vcmp.eq.s32.totalorder %v387, 1
      %vm412 = vcmp.eq.s32.totalorder %v388, 1
      %vm413 = vcmp.eq.s32.totalorder %v389, 1
      %v414 = vsel %vm390, %v278, -inf
      %v415 = vsel %vm391, %v279, -inf
      %v416 = vsel %vm392, %v280, -inf
      %v417 = vsel %vm393, %v278, -inf
      %v418 = vsel %vm394, %v279, -inf
      %v419 = vsel %vm395, %v280, -inf
      %v420 = vsel %vm396, %v278, -inf
      %v421 = vsel %vm397, %v279, -inf
      %v422 = vsel %vm398, %v280, -inf
      %v423 = vsel %vm399, %v278, -inf
      %v424 = vsel %vm400, %v279, -inf
      %v425 = vsel %vm401, %v280, -inf
      %v426 = vsel %vm402, %v278, -inf
      %v427 = vsel %vm403, %v279, -inf
      %v428 = vsel %vm404, %v280, -inf
      %v429 = vsel %vm405, %v278, -inf
      %v430 = vsel %vm406, %v279, -inf
      %v431 = vsel %vm407, %v280, -inf
      %v432 = vsel %vm408, %v278, -inf
      %v433 = vsel %vm409, %v279, -inf
      %v434 = vsel %vm410, %v280, -inf
      %v435 = vsel %vm411, %v278, -inf
      %v436 = vsel %vm412, %v279, -inf
      %v437 = vsel %vm413, %v280, -inf
      %vm438 = vcmask 97280
      %v439 = vsel %vm438, %v414, -inf
      %v440 = vsel %vm438, %v415, -inf
      %v441 = vmax.f32 %v439, %v440
      %vm442 = vcmask 93184
      %v443 = vsel %vm442, %v416, -inf
      %v444 = vmax.f32 %v441, %v443
      %v445 = vrot.slane %v444, 4
      %v446 = vmax.f32 %v444, %v445
      %v447 = vrot.slane %v446, 2
      %v448 = vmax.f32 %v446, %v447
      %v449 = vrot.slane %v448, 1
      %v450 = vmax.f32 %v448, %v449
      %v451 = vsel %vm438, %v417, -inf
      %v452 = vsel %vm438, %v418, -inf
      %v453 = vmax.f32 %v451, %v452
      %v454 = vsel %vm442, %v419, -inf
      %v455 = vmax.f32 %v453, %v454
      %v456 = vrot.slane %v455, 4
      %v457 = vmax.f32 %v455, %v456
      %v458 = vrot.slane %v457, 2
      %v459 = vmax.f32 %v457, %v458
      %v460 = vrot.slane %v459, 1
      %v461 = vmax.f32 %v459, %v460
      %v462 = vsel %vm438, %v420, -inf
      %v463 = vsel %vm438, %v421, -inf
      %v464 = vmax.f32 %v462, %v463
      %v465 = vsel %vm442, %v422, -inf
      %v466 = vmax.f32 %v464, %v465
      %v467 = vrot.slane %v466, 4
      %v468 = vmax.f32 %v466, %v467
      %v469 = vrot.slane %v468, 2
      %v470 = vmax.f32 %v468, %v469
      %v471 = vrot.slane %v470, 1
      %v472 = vmax.f32 %v470, %v471
      %v473 = vsel %vm438, %v423, -inf
      %v474 = vsel %vm438, %v424, -inf
      %v475 = vmax.f32 %v473, %v474
      %v476 = vsel %vm442, %v425, -inf
      %v477 = vmax.f32 %v475, %v476
      %v478 = vrot.slane %v477, 4
      %v479 = vmax.f32 %v477, %v478
      %v480 = vrot.slane %v479, 2
      %v481 = vmax.f32 %v479, %v480
      %v482 = vrot.slane %v481, 1
      %v483 = vmax.f32 %v481, %v482
      %v484 = vsel %vm438, %v426, -inf
      %v485 = vsel %vm438, %v427, -inf
      %v486 = vmax.f32 %v484, %v485
      %v487 = vsel %vm442, %v428, -inf
      %v488 = vmax.f32 %v486, %v487
      %v489 = vrot.slane %v488, 4
      %v490 = vmax.f32 %v488, %v489
      %v491 = vrot.slane %v490, 2
      %v492 = vmax.f32 %v490, %v491
      %v493 = vrot.slane %v492, 1
      %v494 = vmax.f32 %v492, %v493
      %v495 = vsel %vm438, %v429, -inf
      %v496 = vsel %vm438, %v430, -inf
      %v497 = vmax.f32 %v495, %v496
      %v498 = vsel %vm442, %v431, -inf
      %v499 = vmax.f32 %v497, %v498
      %v500 = vrot.slane %v499, 4
      %v501 = vmax.f32 %v499, %v500
      %v502 = vrot.slane %v501, 2
      %v503 = vmax.f32 %v501, %v502
      %v504 = vrot.slane %v503, 1
      %v505 = vmax.f32 %v503, %v504
      %v506 = vsel %vm438, %v432, -inf
      %v507 = vsel %vm438, %v433, -inf
      %v508 = vmax.f32 %v506, %v507
      %v509 = vsel %vm442, %v434, -inf
      %v510 = vmax.f32 %v508, %v509
      %v511 = vrot.slane %v510, 4
      %v512 = vmax.f32 %v510, %v511
      %v513 = vrot.slane %v512, 2
      %v514 = vmax.f32 %v512, %v513
      %v515 = vrot.slane %v514, 1
      %v516 = vmax.f32 %v514, %v515
      %v517 = vsel %vm438, %v435, -inf
      %v518 = vsel %vm438, %v436, -inf
      %v519 = vmax.f32 %v517, %v518
      %v520 = vsel %vm442, %v437, -inf
      %v521 = vmax.f32 %v519, %v520
      %v522 = vrot.slane %v521, 4
      %v523 = vmax.f32 %v521, %v522
      %v524 = vrot.slane %v523, 2
      %v525 = vmax.f32 %v523, %v524
      %v526 = vrot.slane %v525, 1
      %v527 = vmax.f32 %v525, %v526
      %v528 = vld [vmem:[%s1] sm:$0xf]
      %v529 = vld [vmem:[%s1 + $0x4] sm:$0x3]
      %v530 = vpack.c.bf16 %v450, %v450
      %v531 = vpack.c.bf16 %v461, %v461
      %v532 = vpack.c.bf16 %v472, %v472
      %v533 = vpack.c.bf16 %v483, %v483
      %v534 = vpack.c.bf16 %v494, %v494
      %v535 = vpack.c.bf16 %v505, %v505
      %v536 = vpack.c.bf16 %v516, %v516
      %v537 = vpack.c.bf16 %v527, %v527
      %v538 = vld [vmem:[%s2] sm:$0x1]
      %v540 = vlaneseq
      %v541 = vshrl.u32 %v540, 7
      %v542 = vsub.s32 0, %v541
      %v543 = vrot.slane %v538, %v542
      %v553 = vunpack.c.l.b16 %v530
      %v554 = vunpack.c.l.b16 %v531
      %v555 = vunpack.c.l.b16 %v532
      %v556 = vunpack.c.l.b16 %v533
      %v557 = vunpack.c.l.b16 %v534
      %v558 = vunpack.c.l.b16 %v535
      %v559 = vunpack.c.l.b16 %v536
      %v560 = vunpack.c.l.b16 %v537
      %vm561 = vcmask 1041409
      %v562 = vsel %vm561, %v554, %v553
      %vm563 = vcmask 1042434
      %v564 = vsel %vm563, %v555, %v562
      %vm565 = vcmask 1043459
      %v566 = vsel %vm565, %v556, %v564
      %vm567 = vcmask 1044484
      %v568 = vsel %vm567, %v557, %v566
      %vm569 = vcmask 1045509
      %v570 = vsel %vm569, %v558, %v568
      %vm571 = vcmask 1046534
      %v572 = vsel %vm571, %v559, %v570
      %vm573 = vcmask 1047559
      %v574 = vsel %vm573, %v560, %v572
      %v575 = vpack.c.b16 %v574, %v574
      %v578 = vunpack.c.l.b16 %v528
      %v579 = vunpack.c.l.b16 %v529
      %v580 = vpack.c.b16 %v579, %v578
      %v582 = vsel %vm438, %v575, 0
      %vm584 = vcmask 1045504
      %v586 = vsel %vm584, %v580, 0
      %588 = vmatprep.subr.bf16.mxu0 0
      %589 = vmatpush1.bf16.msra.mxu0 0
      %590 = vmatprep.subr.bf16.mxu0 0
      %591 = vmatpush1.bf16.msra.mxu0 0
      %592 = vmatprep.subr.bf16.mxu0 0
      %593 = vmatpush1.bf16.msra.mxu0 0
      %594 = vmatprep.subr.bf16.mxu0 0
      %595 = vmatpush1.bf16.msra.mxu0 0
      %596 = vmatprep.subr.bf16.mxu0 0
      %597 = vmatpush1.bf16.msra.mxu0 0
      %598 = vmatprep.subr.bf16.mxu0 0
      %599 = vmatpush1.bf16.msra.mxu0 0
      %600 = vmatprep.subr.bf16.mxu0 0
      %601 = vmatpush1.bf16.msra.mxu0 0
      %602 = vmatprep.subr.bf16.mxu0 0
      %603 = vmatpush1.bf16.msra.mxu0 %v586
      %604 = vmatprep.subr.bf16.mxu0 0
      %605 = vmatpush2.bf16.msra.mxu0 0
      %606 = vmatprep.subr.bf16.mxu0 0
      %607 = vmatpush2.bf16.msra.mxu0 0
      %608 = vmatprep.subr.bf16.mxu0 0
      %609 = vmatpush2.bf16.msra.mxu0 0
      %610 = vmatprep.subr.bf16.mxu0 0
      %611 = vmatpush2.bf16.msra.mxu0 0
      %612 = vmatprep.subr.bf16.mxu0 0
      %613 = vmatpush2.bf16.msra.mxu0 0
      %614 = vmatprep.subr.bf16.mxu0 0
      %615 = vmatpush2.bf16.msra.mxu0 0
      %616 = vmatprep.subr.bf16.mxu0 0
      %617 = vmatpush2.bf16.msra.mxu0 0
      %618 = vmatprep.subr.bf16.mxu0 0
      %619 = vmatpush2.bf16.msra.mxu0 0
      %620 = vmatprep.mubr.bf16.mxu0 0
      %621 = vmatmul.mubr.bf16.gmra.mxu0 %v582
      %v622 = vpop.f32.mrf.mxu0
      %v623 = vadd.f32 %v543, %v622
      %v624 = vpop.f32.mrf.mxu0
      %v625 = vpop.f32.mrf.mxu0
      %v626 = vpop.f32.mrf.mxu0
      %627 = vdwg.mxu0
      %v628 = vmax.f32 %v623, 0.0
      %v629 = vld [vmem:[%s3] sm:$0xf]
      %v630 = vld [vmem:[%s3 + $0x4] sm:$0xf]
      %v631 = vld [vmem:[%s3 + $0x8] sm:$0xf]
      %v632 = vld [vmem:[%s3 + $0xc] sm:$0xf]
      %v633 = vpack.c.bf16 %v628, %v628
      %v634 = vld [vmem:[%s4] sm:$0x1]
      %v636 = vlaneseq
      %v637 = vshrl.u32 %v636, 7
      %v638 = vsub.s32 0, %v637
      %v639 = vrot.slane %v634, %v638
      %v645 = vunpack.c.l.b16 %v629
      %v646 = vunpack.c.l.b16 %v630
      %v647 = vunpack.c.l.b16 %v631
      %v648 = vunpack.c.l.b16 %v632
      %v649 = vpack.c.b16 %v646, %v645
      %v650 = vpack.c.b16 %v648, %v647
      %vm653 = vcmask 261120
      %v655 = vsel %vm653, %v633, 0
      %657 = vmatprep.subr.bf16.mxu0 0
      %658 = vmatpush1.bf16.msra.mxu0 0
      %659 = vmatprep.subr.bf16.mxu0 0
      %660 = vmatpush1.bf16.msra.mxu0 0
      %661 = vmatprep.subr.bf16.mxu0 0
      %662 = vmatpush1.bf16.msra.mxu0 0
      %663 = vmatprep.subr.bf16.mxu0 0
      %664 = vmatpush1.bf16.msra.mxu0 0
      %665 = vmatprep.subr.bf16.mxu0 0
      %666 = vmatpush1.bf16.msra.mxu0 0
      %667 = vmatprep.subr.bf16.mxu0 0
      %668 = vmatpush1.bf16.msra.mxu0 0
      %669 = vmatprep.subr.bf16.mxu0 0
      %670 = vmatpush1.bf16.msra.mxu0 %v650
      %671 = vmatprep.subr.bf16.mxu0 0
      %672 = vmatpush1.bf16.msra.mxu0 %v649
      %673 = vmatprep.subr.bf16.mxu0 0
      %674 = vmatpush2.bf16.msra.mxu0 0
      %675 = vmatprep.subr.bf16.mxu0 0
      %676 = vmatpush2.bf16.msra.mxu0 0
      %677 = vmatprep.subr.bf16.mxu0 0
      %678 = vmatpush2.bf16.msra.mxu0 0
      %679 = vmatprep.subr.bf16.mxu0 0
      %680 = vmatpush2.bf16.msra.mxu0 0
      %681 = vmatprep.subr.bf16.mxu0 0
      %682 = vmatpush2.bf16.msra.mxu0 0
      %683 = vmatprep.subr.bf16.mxu0 0
      %684 = vmatpush2.bf16.msra.mxu0 0
      %685 = vmatprep.subr.bf16.mxu0 0
      %686 = vmatpush2.bf16.msra.mxu0 0
      %687 = vmatprep.subr.bf16.mxu0 0
      %688 = vmatpush2.bf16.msra.mxu0 0
      %689 = vmatprep.mubr.bf16.mxu0 0
      %690 = vmatmul.mubr.bf16.gmra.mxu0 %v655
      %v691 = vpop.f32.mrf.mxu0
      %v692 = vadd.f32 %v639, %v691
      %v693 = vpop.f32.mrf.mxu0
      %v694 = vpop.f32.mrf.mxu0
      %v695 = vpop.f32.mrf.mxu0
      %696 = vdwg.mxu0
      %v697 = vmax.f32 %v692, 0.0
      %v698 = vadd.f32 %v628, %v697
      %s699 = scalar_lea.vmem %s3, 16
      %v700 = vld [vmem:[%s699] sm:$0xf]
      %v701 = vld [vmem:[%s699 + $0x4] sm:$0xf]
      %v702 = vld [vmem:[%s699 + $0x8] sm:$0xf]
      %v703 = vld [vmem:[%s699 + $0xc] sm:$0xf]
      %v704 = vpack.c.bf16 %v698, %v698
      %s705 = scalar_lea.vmem %s4, 1
      %v706 = vld [vmem:[%s705] sm:$0x1]
      %v708 = vlaneseq
      %v709 = vshrl.u32 %v708, 7
      %v710 = vsub.s32 0, %v709
      %v711 = vrot.slane %v706, %v710
      %v717 = vunpack.c.l.b16 %v700
      %v718 = vunpack.c.l.b16 %v701
      %v719 = vunpack.c.l.b16 %v702
      %v720 = vunpack.c.l.b16 %v703
      %v721 = vpack.c.b16 %v718, %v717
      %v722 = vpack.c.b16 %v720, %v719
      %v726 = vsel %vm653, %v704, 0
      %728 = vmatprep.subr.bf16.mxu0 0
      %729 = vmatpush1.bf16.msra.mxu0 0
      %730 = vmatprep.subr.bf16.mxu0 0
      %731 = vmatpush1.bf16.msra.mxu0 0
      %732 = vmatprep.subr.bf16.mxu0 0
      %733 = vmatpush1.bf16.msra.mxu0 0
      %734 = vmatprep.subr.bf16.mxu0 0
      %735 = vmatpush1.bf16.msra.mxu0 0
      %736 = vmatprep.subr.bf16.mxu0 0
      %737 = vmatpush1.bf16.msra.mxu0 0
      %738 = vmatprep.subr.bf16.mxu0 0
      %739 = vmatpush1.bf16.msra.mxu0 0
      %740 = vmatprep.subr.bf16.mxu0 0
      %741 = vmatpush1.bf16.msra.mxu0 %v722
      %742 = vmatprep.subr.bf16.mxu0 0
      %743 = vmatpush1.bf16.msra.mxu0 %v721
      %744 = vmatprep.subr.bf16.mxu0 0
      %745 = vmatpush2.bf16.msra.mxu0 0
      %746 = vmatprep.subr.bf16.mxu0 0
      %747 = vmatpush2.bf16.msra.mxu0 0
      %748 = vmatprep.subr.bf16.mxu0 0
      %749 = vmatpush2.bf16.msra.mxu0 0
      %750 = vmatprep.subr.bf16.mxu0 0
      %751 = vmatpush2.bf16.msra.mxu0 0
      %752 = vmatprep.subr.bf16.mxu0 0
      %753 = vmatpush2.bf16.msra.mxu0 0
      %754 = vmatprep.subr.bf16.mxu0 0
      %755 = vmatpush2.bf16.msra.mxu0 0
      %756 = vmatprep.subr.bf16.mxu0 0
      %757 = vmatpush2.bf16.msra.mxu0 0
      %758 = vmatprep.subr.bf16.mxu0 0
      %759 = vmatpush2.bf16.msra.mxu0 0
      %760 = vmatprep.mubr.bf16.mxu0 0
      %761 = vmatmul.mubr.bf16.gmra.mxu0 %v726
      %v762 = vpop.f32.mrf.mxu0
      %v763 = vadd.f32 %v711, %v762
      %v764 = vpop.f32.mrf.mxu0
      %v765 = vpop.f32.mrf.mxu0
      %v766 = vpop.f32.mrf.mxu0
      %767 = vdwg.mxu0
      %v768 = vmax.f32 %v763, 0.0
      %v769 = vadd.f32 %v698, %v768
      %v770 = vld [vmem:[%s5] sm:$0xf]
      %v771 = vld [vmem:[%s5 + $0x4] sm:$0xf]
      %v772 = vld [vmem:[%s5 + $0x8] sm:$0xf]
      %v773 = vld [vmem:[%s5 + $0xc] sm:$0xf]
      %v774 = vld [vmem:[%s5 + $0x10] sm:$0xf]
      %v775 = vld [vmem:[%s5 + $0x14] sm:$0xf]
      %v776 = vld [vmem:[%s5 + $0x18] sm:$0xf]
      %v777 = vld [vmem:[%s5 + $0x1c] sm:$0xf]
      %v778 = vld [vmem:[%s5 + $0x20] sm:$0xf]
      %v779 = vld [vmem:[%s5 + $0x24] sm:$0xf]
      %v780 = vld [vmem:[%s5 + $0x28] sm:$0xf]
      %v781 = vld [vmem:[%s5 + $0x2c] sm:$0xf]
      %v782 = vld [vmem:[%s6] sm:$0x1]
      %vm783 = vcmask 253952
      %784 = vst.msk [vmem:[#allocation2] sm:$0x1] %vm783, 0.0
      %785 = vst.msk [vmem:[#allocation2 + $0x9] sm:$0x1] %vm783, 0.0
      %786 = vst.msk [vmem:[#allocation2 + $0x1] sm:$0xff] %vm653, %v769
      %v787 = vld [vmem:[#allocation2] sm:$0xff]
      %v788 = vld [vmem:[#allocation2 + $0x2] sm:$0xff]
      %790 = vrot.lane.b32.xlu0 %v769, 32
      %v791 = vpop.permute.xlu0 %790
      %794 = vrot.lane.b32.xlu0 %v788, 64
      %v795 = vpop.permute.xlu0 %794
      %v797 = vsel %vm653, %v787, %v791
      %vm798 = vcmask 523264
      %v799 = vsel %vm798, %v797, %v795
      %v800 = vpack.c.bf16 %v799, %v799
      %v802 = vlaneseq
      %v803 = vshrl.u32 %v802, 7
      %v804 = vsub.s32 0, %v803
      %v805 = vrot.slane %v782, %v804
      %v819 = vunpack.c.l.b16 %v770
      %v820 = vunpack.c.l.b16 %v771
      %v821 = vunpack.c.l.b16 %v772
      %v822 = vunpack.c.l.b16 %v773
      %v823 = vunpack.c.l.b16 %v774
      %v824 = vunpack.c.l.b16 %v775
      %v825 = vunpack.c.l.b16 %v776
      %v826 = vunpack.c.l.b16 %v777
      %v827 = vunpack.c.l.b16 %v778
      %v828 = vunpack.c.l.b16 %v779
      %v829 = vunpack.c.l.b16 %v780
      %v830 = vunpack.c.l.b16 %v781
      %v831 = vpack.c.b16 %v820, %v819
      %v832 = vpack.c.b16 %v822, %v821
      %v833 = vpack.c.b16 %v824, %v823
      %v834 = vpack.c.b16 %v826, %v825
      %v835 = vpack.c.b16 %v828, %v827
      %v836 = vpack.c.b16 %v830, %v829
      %vm843 = vcmask 785408
      %v845 = vsel %vm843, %v800, 0
      %847 = vmatprep.subr.bf16.mxu0 0
      %848 = vmatpush1.bf16.msra.mxu0 0
      %849 = vmatprep.subr.bf16.mxu0 0
      %850 = vmatpush1.bf16.msra.mxu0 0
      %851 = vmatprep.subr.bf16.mxu0 0
      %852 = vmatpush1.bf16.msra.mxu0 %v836
      %853 = vmatprep.subr.bf16.mxu0 0
      %854 = vmatpush1.bf16.msra.mxu0 %v835
      %855 = vmatprep.subr.bf16.mxu0 0
      %856 = vmatpush1.bf16.msra.mxu0 %v834
      %857 = vmatprep.subr.bf16.mxu0 0
      %858 = vmatpush1.bf16.msra.mxu0 %v833
      %859 = vmatprep.subr.bf16.mxu0 0
      %860 = vmatpush1.bf16.msra.mxu0 %v832
      %861 = vmatprep.subr.bf16.mxu0 0
      %862 = vmatpush1.bf16.msra.mxu0 %v831
      %863 = vmatprep.subr.bf16.mxu0 0
      %864 = vmatpush2.bf16.msra.mxu0 0
      %865 = vmatprep.subr.bf16.mxu0 0
      %866 = vmatpush2.bf16.msra.mxu0 0
      %867 = vmatprep.subr.bf16.mxu0 0
      %868 = vmatpush2.bf16.msra.mxu0 0
      %869 = vmatprep.subr.bf16.mxu0 0
      %870 = vmatpush2.bf16.msra.mxu0 0
      %871 = vmatprep.subr.bf16.mxu0 0
      %872 = vmatpush2.bf16.msra.mxu0 0
      %873 = vmatprep.subr.bf16.mxu0 0
      %874 = vmatpush2.bf16.msra.mxu0 0
      %875 = vmatprep.subr.bf16.mxu0 0
      %876 = vmatpush2.bf16.msra.mxu0 0
      %877 = vmatprep.subr.bf16.mxu0 0
      %878 = vmatpush2.bf16.msra.mxu0 0
      %879 = vmatprep.mubr.bf16.mxu0 0
      %880 = vmatmul.mubr.bf16.gmra.mxu0 %v845
      %v881 = vpop.f32.mrf.mxu0
      %v882 = vadd.f32 %v805, %v881
      %v883 = vpop.f32.mrf.mxu0
      %v884 = vpop.f32.mrf.mxu0
      %v885 = vpop.f32.mrf.mxu0
      %886 = vdwg.mxu0
      %v887 = vmul.u32 %v285, 4
      %vm888 = vcmp.gt.s32.totalorder %v887, 0
      %vm889 = vcmp.gt.s32.totalorder %v887, 8
      %vm890 = vcmp.gt.s32.totalorder %v887, 16
      %vm891 = vcmp.gt.s32.totalorder %v887, 24
      %v892 = vmul.u32 %v282, 4
      %vm893 = vcmp.lt.s32.totalorder %v892, 8
      %vm894 = vcmp.lt.s32.totalorder %v892, 16
      %vm895 = vcmp.lt.s32.totalorder %v892, 24
      %vm896 = vcmp.lt.s32.totalorder %v892, 32
      %vm897 = vmand %vm888, %vm893
      %vm898 = vmand %vm889, %vm894
      %vm899 = vmand %vm890, %vm895
      %vm900 = vmand %vm891, %vm896
      %v901 = vsel %vm897, 1, 0
      %v902 = vsel %vm898, 1, 0
      %v903 = vsel %vm899, 1, 0
      %v904 = vsel %vm900, 1, 0
      %vm905 = vcmp.eq.s32.totalorder %v901, 1
      %vm906 = vcmp.eq.s32.totalorder %v902, 1
      %vm907 = vcmp.eq.s32.totalorder %v903, 1
      %vm908 = vcmp.eq.s32.totalorder %v904, 1
      %v909 = vsel %vm905, %v882, -inf
      %v910 = vsel %vm906, %v882, -inf
      %v911 = vsel %vm907, %v882, -inf
      %v912 = vsel %vm908, %v882, -inf
      %v913 = vsel %vm653, %v909, -inf
      %v914 = vrot.slane %v913, 4
      %v915 = vmax.f32 %v913, %v914
      %v916 = vrot.slane %v915, 2
      %v917 = vmax.f32 %v915, %v916
      %v918 = vrot.slane %v917, 1
      %v919 = vmax.f32 %v917, %v918
      %v920 = vsel %vm653, %v910, -inf
      %v921 = vrot.slane %v920, 4
      %v922 = vmax.f32 %v920, %v921
      %v923 = vrot.slane %v922, 2
      %v924 = vmax.f32 %v922, %v923
      %v925 = vrot.slane %v924, 1
      %v926 = vmax.f32 %v924, %v925
      %v927 = vsel %vm653, %v911, -inf
      %v928 = vrot.slane %v927, 4
      %v929 = vmax.f32 %v927, %v928
      %v930 = vrot.slane %v929, 2
      %v931 = vmax.f32 %v929, %v930
      %v932 = vrot.slane %v931, 1
      %v933 = vmax.f32 %v931, %v932
      %v934 = vsel %vm653, %v912, -inf
      %v935 = vrot.slane %v934, 4
      %v936 = vmax.f32 %v934, %v935
      %v937 = vrot.slane %v936, 2
      %v938 = vmax.f32 %v936, %v937
      %v939 = vrot.slane %v938, 1
      %v940 = vmax.f32 %v938, %v939
      %v945 = vsel %vm561, %v926, %v919
      %v946 = vsel %vm563, %v933, %v945
      %v947 = vsel %vm565, %v940, %v946
      %vm949 = vcmask 257024
      %950 = vst.msk [vmem:[%s276] sm:$0xf] %vm949, %v947
      %p951 = scmp.lt.s32.totalorder %s18, 1
      %s952 = scalar_select %p951, %s18, 1
      %s953 = smul.addr %s952, 4
      %s954 = scalar_lea.vmem %s7, %s953
      // Predicated region
      $region49: #{fwd.6} parent=47 // pred_check
        %p955 = pneg %p188
      $region50: #{fwd.6} parent=47 // pred_check_branch
        %957 = sbr.rel (%p955) target = $region52
      $region51: #{fwd.6} parent=47 // pred_region
        _
      $region52: #{fwd.6} parent=47 // pred_fallthru
        _
    $region48: #{fwd.6} parent=5 // pred_fallthru
      _
    %p958 = scmp.le.s32.totalorder 2, %s13
    // Predicated region
    $region53: #{fwd.6} parent=5 // pred_check
      %p959 = pneg %p958
    $region54: #{fwd.6} parent=5 // pred_check_branch
      %961 = sbr.rel (%p959) target = $region56
    $region55: #{fwd.6} parent=5 // pred_region
      %s962 = ssub.s32 %s13, 2
      // Predicated region
      $region57: #{fwd.6} parent=55 // pred_check
        %p963 = pneg %p194
      $region58: #{fwd.6} parent=55 // pred_check_branch
        %965 = sbr.rel (%p963) target = $region60
      $region59: #{fwd.6} parent=55 // pred_region
        %p966 = scmp.lt.s32.totalorder %s19, 1
        %s967 = scalar_select %p966, %s19, 1
        %s968 = smul.addr %s967, 4
        %s969 = scalar_lea.vmem %s7, %s968
      $region60: #{fwd.6} parent=55 // pred_fallthru
        _
    $region56: #{fwd.6} parent=5 // pred_fallthru
      _
  $region6: #{fwd.6} parent=0 // loop_footer
    %s17 = sadd.s32 1, %s13
  $region7: #{fwd.6} parent=0 // loop_footer_branch
    %12 = sbr.rel target = $region3
  $region8: #{fwd.6} parent=0 // loop_exit
    _

// kernel: fwd.5
$region0: #{fwd.5}
  #allocation0 [shape = 'u32[]', space=smem, size = 0x4, offset = 0x4, fixed_abs, tag = 'smem constant byte address 0x4 - core index']
  #allocation1 [shape = 'u32[144,128]{1,0:T(1,128)}', space=vmem, size = 0x12000, scoped, tag = 'internal scratch']
  #allocation2 [shape = 'f32[12,32]{1,0:T(8,128)}', space=vmem, size = 0x2000, scoped, tag = 'scratch operand']
  %s0 = inlined_call_operand.vmem [shape: f32[2,10,768], index: 0, kind: input, shape index: {}]
  %s1 = inlined_call_operand.vmem [shape: bf16[768,32], index: 1, kind: input, shape index: {}]
  %s2 = inlined_call_operand.vmem [shape: f32[1,32], index: 2, kind: input, shape index: {}]
  %s3 = inlined_call_operand.vmem [shape: bf16[96,32], index: 3, kind: input, shape index: {}]
  %s4 = inlined_call_operand.vmem [shape: f32[1,32], index: 4, kind: input, shape index: {}]
  %s5 = inlined_call_operand.vmem [shape: f32[2,4,32], index: 5, kind: output, shape index: {}]
  %s6 = sld [smem:[#allocation0]]
  $region53: #{fwd.5} parent=0
    _
  %s8 = ssub.s32 1, %s6
  %s9 = scalar_select 0, %s8, %s6
  loop: start=0, step=1, limit=4
  $region2: #{fwd.5} parent=0 // loop_pre_header
    _
  $region3: #{fwd.5} parent=0 // loop_header
    %s11 = sphi 0, %s15
    %p12 = scmp.ge.s32.totalorder %s11, 4
    %s21 = sphi 0, %s23
    %s24 = sphi 0, %s21
    %s25 = sphi 0, %s24
    %s41 = sphi 0, %s25
    %s45 = sphi 0, %s45
    %s47 = sphi 0, %s45
    %s48 = sphi 0, %s47
    %s62 = sphi 0, %s48
    %s66 = sphi 0, %s66
    %s68 = sphi 0, %s66
    %s69 = sphi 0, %s68
    %s83 = sphi 0, %s69
    %s87 = sphi 0, %s87
    %s89 = sphi 0, %s87
    %s90 = sphi 0, %s89
    %s104 = sphi 0, %s90
    %s108 = sphi 0, %s108
    %s110 = sphi 0, %s108
    %s111 = sphi 0, %s110
    %s125 = sphi 0, %s111
    %s131 = sphi 0, %s133
    %s134 = sphi 0, %s131
    %s135 = sphi 0, %s134
    %s151 = sphi 0, %s135
  $region4: #{fwd.5} parent=0 // loop_header_branch
    %14 = sbr.rel (%p12) target = $region8
  $region5: #{fwd.5} parent=0 // loop_body
    %s16 = ssub.s32 %s11, 1
    %s17 = ssub.s32 %s11, 2
    %s18 = sadd.s32 %s11, 1
    %s19 = ssub.s32 %s11, %s18
    %p20 = scmp.eq.s32.totalorder %s19, 0
    %s22 = sadd.s32 %s21, 1
    %s23 = scalar_select %p20, %s21, %s22
    %p26 = pneg %p20
    %p27 = scmp.eq.s32.totalorder %s11, 1
    %p28 = por %p26, %p27
    %p29 = scmp.ne.s32.totalorder %s21, %s24
    %p30 = scmp.eq.s32.totalorder %s11, 0
    %p31 = por %p29, %p30
    %p32 = scmp.ne.s32.totalorder %s21, %s24
    %p33 = scmp.eq.s32.totalorder %s16, 1
    %p34 = por %p32, %p33
    %p35 = scmp.ne.s32.totalorder %s24, %s25
    %p36 = scmp.eq.s32.totalorder %s16, 0
    %p37 = por %p35, %p36
    %p38 = scmp.ne.s32.totalorder %s24, %s25
    %p39 = scmp.eq.s32.totalorder %s17, 1
    %p40 = por %p38, %p39
    %p42 = scmp.ne.s32.totalorder %s25, %s41
    %p43 = scmp.eq.s32.totalorder %s17, 0
    %p44 = por %p42, %p43
    %s46 = sadd.s32 %s45, 1
    %p49 = scmp.eq.s32.totalorder %s11, 1
    %p50 = scmp.ne.s32.totalorder %s45, %s47
    %p51 = scmp.eq.s32.totalorder %s11, 0
    %p52 = por %p50, %p51
    %p53 = scmp.ne.s32.totalorder %s45, %s47
    %p54 = scmp.eq.s32.totalorder %s16, 1
    %p55 = por %p53, %p54
    %p56 = scmp.ne.s32.totalorder %s47, %s48
    %p57 = scmp.eq.s32.totalorder %s16, 0
    %p58 = por %p56, %p57
    %p59 = scmp.ne.s32.totalorder %s47, %s48
    %p60 = scmp.eq.s32.totalorder %s17, 1
    %p61 = por %p59, %p60
    %p63 = scmp.ne.s32.totalorder %s48, %s62
    %p64 = scmp.eq.s32.totalorder %s17, 0
    %p65 = por %p63, %p64
    %s67 = sadd.s32 %s66, 1
    %p70 = scmp.eq.s32.totalorder %s11, 1
    %p71 = scmp.ne.s32.totalorder %s66, %s68
    %p72 = scmp.eq.s32.totalorder %s11, 0
    %p73 = por %p71, %p72
    %p74 = scmp.ne.s32.totalorder %s66, %s68
    %p75 = scmp.eq.s32.totalorder %s16, 1
    %p76 = por %p74, %p75
    %p77 = scmp.ne.s32.totalorder %s68, %s69
    %p78 = scmp.eq.s32.totalorder %s16, 0
    %p79 = por %p77, %p78
    %p80 = scmp.ne.s32.totalorder %s68, %s69
    %p81 = scmp.eq.s32.totalorder %s17, 1
    %p82 = por %p80, %p81
    %p84 = scmp.ne.s32.totalorder %s69, %s83
    %p85 = scmp.eq.s32.totalorder %s17, 0
    %p86 = por %p84, %p85
    %s88 = sadd.s32 %s87, 1
    %p91 = scmp.eq.s32.totalorder %s11, 1
    %p92 = scmp.ne.s32.totalorder %s87, %s89
    %p93 = scmp.eq.s32.totalorder %s11, 0
    %p94 = por %p92, %p93
    %p95 = scmp.ne.s32.totalorder %s87, %s89
    %p96 = scmp.eq.s32.totalorder %s16, 1
    %p97 = por %p95, %p96
    %p98 = scmp.ne.s32.totalorder %s89, %s90
    %p99 = scmp.eq.s32.totalorder %s16, 0
    %p100 = por %p98, %p99
    %p101 = scmp.ne.s32.totalorder %s89, %s90
    %p102 = scmp.eq.s32.totalorder %s17, 1
    %p103 = por %p101, %p102
    %p105 = scmp.ne.s32.totalorder %s90, %s104
    %p106 = scmp.eq.s32.totalorder %s17, 0
    %p107 = por %p105, %p106
    %s109 = sadd.s32 %s108, 1
    %p112 = scmp.eq.s32.totalorder %s11, 1
    %p113 = scmp.ne.s32.totalorder %s108, %s110
    %p114 = scmp.eq.s32.totalorder %s11, 0
    %p115 = por %p113, %p114
    %p116 = scmp.ne.s32.totalorder %s108, %s110
    %p117 = scmp.eq.s32.totalorder %s16, 1
    %p118 = por %p116, %p117
    %p119 = scmp.ne.s32.totalorder %s110, %s111
    %p120 = scmp.eq.s32.totalorder %s16, 0
    %p121 = por %p119, %p120
    %p122 = scmp.ne.s32.totalorder %s110, %s111
    %p123 = scmp.eq.s32.totalorder %s17, 1
    %p124 = por %p122, %p123
    %p126 = scmp.ne.s32.totalorder %s111, %s125
    %p127 = scmp.eq.s32.totalorder %s17, 0
    %p128 = por %p126, %p127
    %s129 = ssub.s32 %s11, %s18
    %p130 = scmp.eq.s32.totalorder %s129, 0
    %s132 = sadd.s32 %s131, 1
    %s133 = scalar_select %p130, %s131, %s132
    %p136 = pneg %p130
    %p137 = scmp.eq.s32.totalorder %s11, 1
    %p138 = por %p136, %p137
    %p139 = scmp.ne.s32.totalorder %s131, %s134
    %p140 = scmp.eq.s32.totalorder %s11, 0
    %p141 = por %p139, %p140
    %p142 = scmp.ne.s32.totalorder %s131, %s134
    %p143 = scmp.eq.s32.totalorder %s16, 1
    %p144 = por %p142, %p143
    %p145 = scmp.ne.s32.totalorder %s134, %s135
    %p146 = scmp.eq.s32.totalorder %s16, 0
    %p147 = por %p145, %p146
    %p148 = scmp.ne.s32.totalorder %s134, %s135
    %p149 = scmp.eq.s32.totalorder %s17, 1
    %p150 = por %p148, %p149
    %p152 = scmp.ne.s32.totalorder %s135, %s151
    %p153 = scmp.eq.s32.totalorder %s17, 0
    %p154 = por %p152, %p153
    %p155 = scmp.le.s32.totalorder 1, %s11
    %p156 = scmp.lt.s32.totalorder %s11, 3
    %p157 = pnand %p155, %p156
    %p158 = pneg %p157
    // Predicated region
    $region9: #{fwd.5} parent=5 // pred_check
      _
    $region10: #{fwd.5} parent=5 // pred_check_branch
      %160 = sbr.rel (%p157) target = $region12
    $region11: #{fwd.5} parent=5 // pred_region
      %s161 = ssub.s32 %s11, 1
      // Predicated region
      $region13: #{fwd.5} parent=11 // pred_check
        %p162 = pneg %p58
      $region14: #{fwd.5} parent=11 // pred_check_branch
        %164 = sbr.rel (%p162) target = $region16
      $region15: #{fwd.5} parent=11 // pred_region
        _
      $region16: #{fwd.5} parent=11 // pred_fallthru
        _
      // Predicated region
      $region17: #{fwd.5} parent=11 // pred_check
        %p165 = pneg %p79
      $region18: #{fwd.5} parent=11 // pred_check_branch
        %167 = sbr.rel (%p165) target = $region20
      $region19: #{fwd.5} parent=11 // pred_region
        _
      $region20: #{fwd.5} parent=11 // pred_fallthru
        _
      // Predicated region
      $region21: #{fwd.5} parent=11 // pred_check
        %p168 = pneg %p100
      $region22: #{fwd.5} parent=11 // pred_check_branch
        %170 = sbr.rel (%p168) target = $region24
      $region23: #{fwd.5} parent=11 // pred_region
        _
      $region24: #{fwd.5} parent=11 // pred_fallthru
        _
      // Predicated region
      $region25: #{fwd.5} parent=11 // pred_check
        %p171 = pneg %p121
      $region26: #{fwd.5} parent=11 // pred_check_branch
        %173 = sbr.rel (%p171) target = $region28
      $region27: #{fwd.5} parent=11 // pred_region
        _
      $region28: #{fwd.5} parent=11 // pred_fallthru
        _
    $region12: #{fwd.5} parent=5 // pred_fallthru
      _
    %p174 = scmp.lt.s32.totalorder %s11, 2
    // Predicated region
    $region29: #{fwd.5} parent=5 // pred_check
      %p175 = pneg %p174
    $region30: #{fwd.5} parent=5 // pred_check_branch
      %177 = sbr.rel (%p175) target = $region32
    $region31: #{fwd.5} parent=5 // pred_region
      // Predicated region
      $region33: #{fwd.5} parent=31 // pred_check
        %p178 = pneg %p31
      $region34: #{fwd.5} parent=31 // pred_check_branch
        %180 = sbr.rel (%p178) target = $region36
      $region35: #{fwd.5} parent=31 // pred_region
        %p181 = scmp.lt.s32.totalorder %s11, 1
        %s182 = scalar_select %p181, %s11, 1
        %s183 = smul.addr %s182, 12
        %s184 = smul.addr %s183, 8
        %s185 = scalar_lea.vmem %s0, %s184
      $region36: #{fwd.5} parent=31 // pred_fallthru
        _
    $region32: #{fwd.5} parent=5 // pred_fallthru
      _
    %p186 = scmp.le.s32.totalorder 1, %s11
    %p187 = scmp.lt.s32.totalorder %s11, 3
    %p188 = pnand %p186, %p187
    %p189 = pneg %p188
    // Predicated region
    $region37: #{fwd.5} parent=5 // pred_check
      _
    $region38: #{fwd.5} parent=5 // pred_check_branch
      %191 = sbr.rel (%p188) target = $region40
    $region39: #{fwd.5} parent=5 // pred_region
      %s192 = ssub.s32 %s11, 1
      %p193 = scmp.lt.s32.totalorder %s16, 1
      %s194 = scalar_select %p193, %s16, 1
      %s195 = smul.addr %s194, 12
      %s196 = smul.addr %s195, 8
      %s197 = scalar_lea.vmem %s0, %s196
      %p198 = pneg %p37
      %p199 = pneg %p34
      %p200 = pneg %p58
      %p201 = pneg %p55
      %p202 = pneg %p79
      %p203 = pneg %p76
      %p204 = pneg %p100
      %p205 = pneg %p97
      %p206 = pneg %p121
      %p207 = pneg %p118
      %p208 = pneg %p147
      %p209 = pneg %p144
      %p210 = scmp.lt.s32.totalorder %s16, 1
      %s211 = scalar_select %p210, %s16, 1
      %s212 = smul.addr %s211, 4
      %s213 = scalar_lea.vmem %s5, %s212
      %p214 = scmp.lt.s32.totalorder %s16, 1
      %s215 = scalar_select %p214, %s16, 1
      %s216 = smul.addr %s215, 12
      %s217 = smul.addr %s216, 8
      %s218 = scalar_lea.vmem %s0, %s217
      %p219 = scmp.lt.s32.totalorder %s16, 1
      %s220 = scalar_select %p219, %s16, 1
      %s221 = smul.addr %s220, 4
      %s222 = scalar_lea.vmem %s5, %s221
      %v224 = vld [vmem:[%s218] sm:$0xff]
      %v225 = vld [vmem:[%s218 + $0x8] sm:$0xff]
      %v226 = vld [vmem:[%s218 + $0x10] sm:$0xff]
      %v227 = vld [vmem:[%s218 + $0x18] sm:$0xff]
      %v228 = vld [vmem:[%s218 + $0x20] sm:$0xff]
      %v229 = vld [vmem:[%s218 + $0x28] sm:$0xff]
      %v230 = vld [vmem:[%s218 + $0x30] sm:$0x3]
      %v231 = vld [vmem:[%s218 + $0x38] sm:$0x3]
      %v232 = vld [vmem:[%s218 + $0x40] sm:$0x3]
      %v233 = vld [vmem:[%s218 + $0x48] sm:$0x3]
      %v234 = vld [vmem:[%s218 + $0x50] sm:$0x3]
      %v235 = vld [vmem:[%s218 + $0x58] sm:$0x3]
      %v236 = vld [vmem:[%s1] sm:$0xf]
      %v237 = vld [vmem:[%s1 + $0x4] sm:$0xf]
      %v238 = vld [vmem:[%s1 + $0x8] sm:$0xf]
      %v239 = vld [vmem:[%s1 + $0xc] sm:$0xf]
      %v240 = vld [vmem:[%s1 + $0x10] sm:$0xf]
      %v241 = vld [vmem:[%s1 + $0x14] sm:$0xf]
      %v242 = vld [vmem:[%s1 + $0x18] sm:$0xf]
      %v243 = vld [vmem:[%s1 + $0x1c] sm:$0xf]
      %v244 = vld [vmem:[%s1 + $0x20] sm:$0xf]
      %v245 = vld [vmem:[%s1 + $0x24] sm:$0xf]
      %v246 = vld [vmem:[%s1 + $0x28] sm:$0xf]
      %v247 = vld [vmem:[%s1 + $0x2c] sm:$0xf]
      %v248 = vld [vmem:[%s1 + $0x30] sm:$0xf]
      %v249 = vld [vmem:[%s1 + $0x34] sm:$0xf]
      %v250 = vld [vmem:[%s1 + $0x38] sm:$0xf]
      %v251 = vld [vmem:[%s1 + $0x3c] sm:$0xf]
      %v252 = vld [vmem:[%s1 + $0x40] sm:$0xf]
      %v253 = vld [vmem:[%s1 + $0x44] sm:$0xf]
      %v254 = vld [vmem:[%s1 + $0x48] sm:$0xf]
      %v255 = vld [vmem:[%s1 + $0x4c] sm:$0xf]
      %v256 = vld [vmem:[%s1 + $0x50] sm:$0xf]
      %v257 = vld [vmem:[%s1 + $0x54] sm:$0xf]
      %v258 = vld [vmem:[%s1 + $0x58] sm:$0xf]
      %v259 = vld [vmem:[%s1 + $0x5c] sm:$0xf]
      %v260 = vld [vmem:[%s1 + $0x60] sm:$0xf]
      %v261 = vld [vmem:[%s1 + $0x64] sm:$0xf]
      %v262 = vld [vmem:[%s1 + $0x68] sm:$0xf]
      %v263 = vld [vmem:[%s1 + $0x6c] sm:$0xf]
      %v264 = vld [vmem:[%s1 + $0x70] sm:$0xf]
      %v265 = vld [vmem:[%s1 + $0x74] sm:$0xf]
      %v266 = vld [vmem:[%s1 + $0x78] sm:$0xf]
      %v267 = vld [vmem:[%s1 + $0x7c] sm:$0xf]
      %v268 = vld [vmem:[%s1 + $0x80] sm:$0xf]
      %v269 = vld [vmem:[%s1 + $0x84] sm:$0xf]
      %v270 = vld [vmem:[%s1 + $0x88] sm:$0xf]
      %v271 = vld [vmem:[%s1 + $0x8c] sm:$0xf]
      %v272 = vld [vmem:[%s1 + $0x90] sm:$0xf]
      %v273 = vld [vmem:[%s1 + $0x94] sm:$0xf]
      %v274 = vld [vmem:[%s1 + $0x98] sm:$0xf]
      %v275 = vld [vmem:[%s1 + $0x9c] sm:$0xf]
      %v276 = vld [vmem:[%s1 + $0xa0] sm:$0xf]
      %v277 = vld [vmem:[%s1 + $0xa4] sm:$0xf]
      %v278 = vld [vmem:[%s1 + $0xa8] sm:$0xf]
      %v279 = vld [vmem:[%s1 + $0xac] sm:$0xf]
      %v280 = vld [vmem:[%s1 + $0xb0] sm:$0xf]
      %v281 = vld [vmem:[%s1 + $0xb4] sm:$0xf]
      %v282 = vld [vmem:[%s1 + $0xb8] sm:$0xf]
      %v283 = vld [vmem:[%s1 + $0xbc] sm:$0xf]
      %v284 = vld [vmem:[%s1 + $0xc0] sm:$0xf]
      %v285 = vld [vmem:[%s1 + $0xc4] sm:$0xf]
      %v286 = vld [vmem:[%s1 + $0xc8] sm:$0xf]
      %v287 = vld [vmem:[%s1 + $0xcc] sm:$0xf]
      %v288 = vld [vmem:[%s1 + $0xd0] sm:$0xf]
      %v289 = vld [vmem:[%s1 + $0xd4] sm:$0xf]
      %v290 = vld [vmem:[%s1 + $0xd8] sm:$0xf]
      %v291 = vld [vmem:[%s1 + $0xdc] sm:$0xf]
      %v292 = vld [vmem:[%s1 + $0xe0] sm:$0xf]
      %v293 = vld [vmem:[%s1 + $0xe4] sm:$0xf]
      %v294 = vld [vmem:[%s1 + $0xe8] sm:$0xf]
      %v295 = vld [vmem:[%s1 + $0xec] sm:$0xf]
      %v296 = vld [vmem:[%s1 + $0xf0] sm:$0xf]
      %v297 = vld [vmem:[%s1 + $0xf4] sm:$0xf]
      %v298 = vld [vmem:[%s1 + $0xf8] sm:$0xf]
      %v299 = vld [vmem:[%s1 + $0xfc] sm:$0xf]
      %v300 = vld [vmem:[%s1 + $0x100] sm:$0xf]
      %v301 = vld [vmem:[%s1 + $0x104] sm:$0xf]
      %v302 = vld [vmem:[%s1 + $0x108] sm:$0xf]
      %v303 = vld [vmem:[%s1 + $0x10c] sm:$0xf]
      %v304 = vld [vmem:[%s1 + $0x110] sm:$0xf]
      %v305 = vld [vmem:[%s1 + $0x114] sm:$0xf]
      %v306 = vld [vmem:[%s1 + $0x118] sm:$0xf]
      %v307 = vld [vmem:[%s1 + $0x11c] sm:$0xf]
      %v308 = vld [vmem:[%s1 + $0x120] sm:$0xf]
      %v309 = vld [vmem:[%s1 + $0x124] sm:$0xf]
      %v310 = vld [vmem:[%s1 + $0x128] sm:$0xf]
      %v311 = vld [vmem:[%s1 + $0x12c] sm:$0xf]
      %v312 = vld [vmem:[%s1 + $0x130] sm:$0xf]
      %v313 = vld [vmem:[%s1 + $0x134] sm:$0xf]
      %v314 = vld [vmem:[%s1 + $0x138] sm:$0xf]
      %v315 = vld [vmem:[%s1 + $0x13c] sm:$0xf]
      %v316 = vld [vmem:[%s1 + $0x140] sm:$0xf]
      %v317 = vld [vmem:[%s1 + $0x144] sm:$0xf]
      %v318 = vld [vmem:[%s1 + $0x148] sm:$0xf]
      %v319 = vld [vmem:[%s1 + $0x14c] sm:$0xf]
      %v320 = vld [vmem:[%s1 + $0x150] sm:$0xf]
      %v321 = vld [vmem:[%s1 + $0x154] sm:$0xf]
      %v322 = vld [vmem:[%s1 + $0x158] sm:$0xf]
      %v323 = vld [vmem:[%s1 + $0x15c] sm:$0xf]
      %v324 = vld [vmem:[%s1 + $0x160] sm:$0xf]
      %v325 = vld [vmem:[%s1 + $0x164] sm:$0xf]
      %v326 = vld [vmem:[%s1 + $0x168] sm:$0xf]
      %v327 = vld [vmem:[%s1 + $0x16c] sm:$0xf]
      %v328 = vld [vmem:[%s1 + $0x170] sm:$0xf]
      %v329 = vld [vmem:[%s1 + $0x174] sm:$0xf]
      %v330 = vld [vmem:[%s1 + $0x178] sm:$0xf]
      %v331 = vld [vmem:[%s1 + $0x17c] sm:$0xf]
      %v332 = vpack.c.bf16 %v230, %v224
      %v333 = vpack.c.bf16 %v231, %v225
      %v334 = vpack.c.bf16 %v232, %v226
      %v335 = vpack.c.bf16 %v233, %v227
      %v336 = vpack.c.bf16 %v234, %v228
      %v337 = vpack.c.bf16 %v235, %v229
      %v338 = vld [vmem:[%s2] sm:$0x1]
      %v340 = vlaneseq
      %v341 = vshrl.u32 %v340, 7
      %v342 = vsub.s32 0, %v341
      %v343 = vrot.slane %v338, %v342
      %v441 = vunpack.c.l.b16 %v236
      %v442 = vunpack.c.l.b16 %v237
      %v443 = vunpack.c.l.b16 %v238
      %v444 = vunpack.c.l.b16 %v239
      %v445 = vunpack.c.l.b16 %v240
      %v446 = vunpack.c.l.b16 %v241
      %v447 = vunpack.c.l.b16 %v242
      %v448 = vunpack.c.l.b16 %v243
      %v449 = vunpack.c.l.b16 %v244
      %v450 = vunpack.c.l.b16 %v245
      %v451 = vunpack.c.l.b16 %v246
      %v452 = vunpack.c.l.b16 %v247
      %v453 = vunpack.c.l.b16 %v248
      %v454 = vunpack.c.l.b16 %v249
      %v455 = vunpack.c.l.b16 %v250
      %v456 = vunpack.c.l.b16 %v251
      %v457 = vunpack.c.l.b16 %v252
      %v458 = vunpack.c.l.b16 %v253
      %v459 = vunpack.c.l.b16 %v254
      %v460 = vunpack.c.l.b16 %v255
      %v461 = vunpack.c.l.b16 %v256
      %v462 = vunpack.c.l.b16 %v257
      %v463 = vunpack.c.l.b16 %v258
      %v464 = vunpack.c.l.b16 %v259
      %v465 = vunpack.c.l.b16 %v260
      %v466 = vunpack.c.l.b16 %v261
      %v467 = vunpack.c.l.b16 %v262
      %v468 = vunpack.c.l.b16 %v263
      %v469 = vunpack.c.l.b16 %v264
      %v470 = vunpack.c.l.b16 %v265
      %v471 = vunpack.c.l.b16 %v266
      %v472 = vunpack.c.l.b16 %v267
      %v473 = vunpack.c.l.b16 %v268
      %v474 = vunpack.c.l.b16 %v269
      %v475 = vunpack.c.l.b16 %v270
      %v476 = vunpack.c.l.b16 %v271
      %v477 = vunpack.c.l.b16 %v272
      %v478 = vunpack.c.l.b16 %v273
      %v479 = vunpack.c.l.b16 %v274
      %v480 = vunpack.c.l.b16 %v275
      %v481 = vunpack.c.l.b16 %v276
      %v482 = vunpack.c.l.b16 %v277
      %v483 = vunpack.c.l.b16 %v278
      %v484 = vunpack.c.l.b16 %v279
      %v485 = vunpack.c.l.b16 %v280
      %v486 = vunpack.c.l.b16 %v281
      %v487 = vunpack.c.l.b16 %v282
      %v488 = vunpack.c.l.b16 %v283
      %v489 = vunpack.c.l.b16 %v284
      %v490 = vunpack.c.l.b16 %v285
      %v491 = vunpack.c.l.b16 %v286
      %v492 = vunpack.c.l.b16 %v287
      %v493 = vunpack.c.l.b16 %v288
      %v494 = vunpack.c.l.b16 %v289
      %v495 = vunpack.c.l.b16 %v290
      %v496 = vunpack.c.l.b16 %v291
      %v497 = vunpack.c.l.b16 %v292
      %v498 = vunpack.c.l.b16 %v293
      %v499 = vunpack.c.l.b16 %v294
      %v500 = vunpack.c.l.b16 %v295
      %v501 = vunpack.c.l.b16 %v296
      %v502 = vunpack.c.l.b16 %v297
      %v503 = vunpack.c.l.b16 %v298
      %v504 = vunpack.c.l.b16 %v299
      %v505 = vunpack.c.l.b16 %v300
      %v506 = vunpack.c.l.b16 %v301
      %v507 = vunpack.c.l.b16 %v302
      %v508 = vunpack.c.l.b16 %v303
      %v509 = vunpack.c.l.b16 %v304
      %v510 = vunpack.c.l.b16 %v305
      %v511 = vunpack.c.l.b16 %v306
      %v512 = vunpack.c.l.b16 %v307
      %v513 = vunpack.c.l.b16 %v308
      %v514 = vunpack.c.l.b16 %v309
      %v515 = vunpack.c.l.b16 %v310
      %v516 = vunpack.c.l.b16 %v311
      %v517 = vunpack.c.l.b16 %v312
      %v518 = vunpack.c.l.b16 %v313
      %v519 = vunpack.c.l.b16 %v314
      %v520 = vunpack.c.l.b16 %v315
      %v521 = vunpack.c.l.b16 %v316
      %v522 = vunpack.c.l.b16 %v317
      %v523 = vunpack.c.l.b16 %v318
      %v524 = vunpack.c.l.b16 %v319
      %v525 = vunpack.c.l.b16 %v320
      %v526 = vunpack.c.l.b16 %v321
      %v527 = vunpack.c.l.b16 %v322
      %v528 = vunpack.c.l.b16 %v323
      %v529 = vunpack.c.l.b16 %v324
      %v530 = vunpack.c.l.b16 %v325
      %v531 = vunpack.c.l.b16 %v326
      %v532 = vunpack.c.l.b16 %v327
      %v533 = vunpack.c.l.b16 %v328
      %v534 = vunpack.c.l.b16 %v329
      %v535 = vunpack.c.l.b16 %v330
      %v536 = vunpack.c.l.b16 %v331
      %v537 = vpack.c.b16 %v442, %v441
      %v538 = vpack.c.b16 %v444, %v443
      %v539 = vpack.c.b16 %v446, %v445
      %v540 = vpack.c.b16 %v448, %v447
      %v541 = vpack.c.b16 %v450, %v449
      %v542 = vpack.c.b16 %v452, %v451
      %v543 = vpack.c.b16 %v454, %v453
      %v544 = vpack.c.b16 %v456, %v455
      %v545 = vpack.c.b16 %v458, %v457
      %v546 = vpack.c.b16 %v460, %v459
      %v547 = vpack.c.b16 %v462, %v461
      %v548 = vpack.c.b16 %v464, %v463
      %v549 = vpack.c.b16 %v466, %v465
      %v550 = vpack.c.b16 %v468, %v467
      %v551 = vpack.c.b16 %v470, %v469
      %v552 = vpack.c.b16 %v472, %v471
      %v553 = vpack.c.b16 %v474, %v473
      %v554 = vpack.c.b16 %v476, %v475
      %v555 = vpack.c.b16 %v478, %v477
      %v556 = vpack.c.b16 %v480, %v479
      %v557 = vpack.c.b16 %v482, %v481
      %v558 = vpack.c.b16 %v484, %v483
      %v559 = vpack.c.b16 %v486, %v485
      %v560 = vpack.c.b16 %v488, %v487
      %v561 = vpack.c.b16 %v490, %v489
      %v562 = vpack.c.b16 %v492, %v491
      %v563 = vpack.c.b16 %v494, %v493
      %v564 = vpack.c.b16 %v496, %v495
      %v565 = vpack.c.b16 %v498, %v497
      %v566 = vpack.c.b16 %v500, %v499
      %v567 = vpack.c.b16 %v502, %v501
      %v568 = vpack.c.b16 %v504, %v503
      %v569 = vpack.c.b16 %v506, %v505
      %v570 = vpack.c.b16 %v508, %v507
      %v571 = vpack.c.b16 %v510, %v509
      %v572 = vpack.c.b16 %v512, %v511
      %v573 = vpack.c.b16 %v514, %v513
      %v574 = vpack.c.b16 %v516, %v515
      %v575 = vpack.c.b16 %v518, %v517
      %v576 = vpack.c.b16 %v520, %v519
      %v577 = vpack.c.b16 %v522, %v521
      %v578 = vpack.c.b16 %v524, %v523
      %v579 = vpack.c.b16 %v526, %v525
      %v580 = vpack.c.b16 %v528, %v527
      %v581 = vpack.c.b16 %v530, %v529
      %v582 = vpack.c.b16 %v532, %v531
      %v583 = vpack.c.b16 %v534, %v533
      %v584 = vpack.c.b16 %v536, %v535
      %633 = vmatprep.subr.bf16.mxu0 0
      %634 = vmatpush1.bf16.msra.mxu0 %v544
      %635 = vmatprep.subr.bf16.mxu0 0
      %636 = vmatpush1.bf16.msra.mxu0 %v543
      %637 = vmatprep.subr.bf16.mxu0 0
      %638 = vmatpush1.bf16.msra.mxu0 %v542
      %639 = vmatprep.subr.bf16.mxu0 0
      %640 = vmatpush1.bf16.msra.mxu0 %v541
      %641 = vmatprep.subr.bf16.mxu0 0
      %642 = vmatpush1.bf16.msra.mxu0 %v540
      %643 = vmatprep.subr.bf16.mxu0 0
      %644 = vmatpush1.bf16.msra.mxu0 %v539
      %645 = vmatprep.subr.bf16.mxu0 0
      %646 = vmatpush1.bf16.msra.mxu0 %v538
      %647 = vmatprep.subr.bf16.mxu0 0
      %648 = vmatpush1.bf16.msra.mxu0 %v537
      %649 = vmatprep.subr.bf16.mxu0 0
      %650 = vmatpush2.bf16.msra.mxu0 %v552
      %651 = vmatprep.subr.bf16.mxu0 0
      %652 = vmatpush2.bf16.msra.mxu0 %v551
      %653 = vmatprep.subr.bf16.mxu0 0
      %654 = vmatpush2.bf16.msra.mxu0 %v550
      %655 = vmatprep.subr.bf16.mxu0 0
      %656 = vmatpush2.bf16.msra.mxu0 %v549
      %657 = vmatprep.subr.bf16.mxu0 0
      %658 = vmatpush2.bf16.msra.mxu0 %v548
      %659 = vmatprep.subr.bf16.mxu0 0
      %660 = vmatpush2.bf16.msra.mxu0 %v547
      %661 = vmatprep.subr.bf16.mxu0 0
      %662 = vmatpush2.bf16.msra.mxu0 %v546
      %663 = vmatprep.subr.bf16.mxu0 0
      %664 = vmatpush2.bf16.msra.mxu0 %v545
      %665 = vmatprep.mubr.bf16.mxu0 %v333
      %666 = vmatmul.mubr.bf16.gmra.mxu0 %v332
      %v667 = vpop.f32.mrf.mxu0
      %v668 = vadd.f32 %v343, %v667
      %v669 = vpop.f32.mrf.mxu0
      %v670 = vpop.f32.mrf.mxu0
      %v671 = vadd.f32 %v343, %v670
      %v672 = vpop.f32.mrf.mxu0
      %673 = vdwg.mxu0
      %674 = vmatprep.subr.bf16.mxu0 0
      %675 = vmatpush1.bf16.msra.mxu0 %v560
      %676 = vmatprep.subr.bf16.mxu0 0
      %677 = vmatpush1.bf16.msra.mxu0 %v559
      %678 = vmatprep.subr.bf16.mxu0 0
      %679 = vmatpush1.bf16.msra.mxu0 %v558
      %680 = vmatprep.subr.bf16.mxu0 0
      %681 = vmatpush1.bf16.msra.mxu0 %v557
      %682 = vmatprep.subr.bf16.mxu0 0
      %683 = vmatpush1.bf16.msra.mxu0 %v556
      %684 = vmatprep.subr.bf16.mxu0 0
      %685 = vmatpush1.bf16.msra.mxu0 %v555
      %686 = vmatprep.subr.bf16.mxu0 0
      %687 = vmatpush1.bf16.msra.mxu0 %v554
      %688 = vmatprep.subr.bf16.mxu0 0
      %689 = vmatpush1.bf16.msra.mxu0 %v553
      %690 = vmatprep.subr.bf16.mxu0 0
      %691 = vmatpush2.bf16.msra.mxu0 %v568
      %692 = vmatprep.subr.bf16.mxu0 0
      %693 = vmatpush2.bf16.msra.mxu0 %v567
      %694 = vmatprep.subr.bf16.mxu0 0
      %695 = vmatpush2.bf16.msra.mxu0 %v566
      %696 = vmatprep.subr.bf16.mxu0 0
      %697 = vmatpush2.bf16.msra.mxu0 %v565
      %698 = vmatprep.subr.bf16.mxu0 0
      %699 = vmatpush2.bf16.msra.mxu0 %v564
      %700 = vmatprep.subr.bf16.mxu0 0
      %701 = vmatpush2.bf16.msra.mxu0 %v563
      %702 = vmatprep.subr.bf16.mxu0 0
      %703 = vmatpush2.bf16.msra.mxu0 %v562
      %704 = vmatprep.subr.bf16.mxu0 0
      %705 = vmatpush2.bf16.msra.mxu0 %v561
      %706 = vmatprep.mubr.bf16.mxu0 %v335
      %707 = vmatmul.mubr.bf16.gmra.mxu0 %v334
      %v708 = vpop.f32.mrf.mxu0
      %v709 = vadd.f32 %v668, %v708
      %v710 = vpop.f32.mrf.mxu0
      %v711 = vpop.f32.mrf.mxu0
      %v712 = vadd.f32 %v671, %v711
      %v713 = vpop.f32.mrf.mxu0
      %714 = vdwg.mxu0
      %715 = vmatprep.subr.bf16.mxu0 0
      %716 = vmatpush1.bf16.msra.mxu0 %v576
      %717 = vmatprep.subr.bf16.mxu0 0
      %718 = vmatpush1.bf16.msra.mxu0 %v575
      %719 = vmatprep.subr.bf16.mxu0 0
      %720 = vmatpush1.bf16.msra.mxu0 %v574
      %721 = vmatprep.subr.bf16.mxu0 0
      %722 = vmatpush1.bf16.msra.mxu0 %v573
      %723 = vmatprep.subr.bf16.mxu0 0
      %724 = vmatpush1.bf16.msra.mxu0 %v572
      %725 = vmatprep.subr.bf16.mxu0 0
      %726 = vmatpush1.bf16.msra.mxu0 %v571
      %727 = vmatprep.subr.bf16.mxu0 0
      %728 = vmatpush1.bf16.msra.mxu0 %v570
      %729 = vmatprep.subr.bf16.mxu0 0
      %730 = vmatpush1.bf16.msra.mxu0 %v569
      %731 = vmatprep.subr.bf16.mxu0 0
      %732 = vmatpush2.bf16.msra.mxu0 %v584
      %733 = vmatprep.subr.bf16.mxu0 0
      %734 = vmatpush2.bf16.msra.mxu0 %v583
      %735 = vmatprep.subr.bf16.mxu0 0
      %736 = vmatpush2.bf16.msra.mxu0 %v582
      %737 = vmatprep.subr.bf16.mxu0 0
      %738 = vmatpush2.bf16.msra.mxu0 %v581
      %739 = vmatprep.subr.bf16.mxu0 0
      %740 = vmatpush2.bf16.msra.mxu0 %v580
      %741 = vmatprep.subr.bf16.mxu0 0
      %742 = vmatpush2.bf16.msra.mxu0 %v579
      %743 = vmatprep.subr.bf16.mxu0 0
      %744 = vmatpush2.bf16.msra.mxu0 %v578
      %745 = vmatprep.subr.bf16.mxu0 0
      %746 = vmatpush2.bf16.msra.mxu0 %v577
      %747 = vmatprep.mubr.bf16.mxu0 %v337
      %748 = vmatmul.mubr.bf16.gmra.mxu0 %v336
      %v749 = vpop.f32.mrf.mxu0
      %v750 = vadd.f32 %v709, %v749
      %v751 = vpop.f32.mrf.mxu0
      %v752 = vpop.f32.mrf.mxu0
      %v753 = vadd.f32 %v712, %v752
      %v754 = vpop.f32.mrf.mxu0
      %755 = vdwg.mxu0
      %v756 = vld [vmem:[%s3] sm:$0xf]
      %v757 = vld [vmem:[%s3 + $0x4] sm:$0xf]
      %v758 = vld [vmem:[%s3 + $0x8] sm:$0xf]
      %v759 = vld [vmem:[%s3 + $0xc] sm:$0xf]
      %v760 = vld [vmem:[%s3 + $0x10] sm:$0xf]
      %v761 = vld [vmem:[%s3 + $0x14] sm:$0xf]
      %v762 = vld [vmem:[%s3 + $0x18] sm:$0xf]
      %v763 = vld [vmem:[%s3 + $0x1c] sm:$0xf]
      %v764 = vld [vmem:[%s3 + $0x20] sm:$0xf]
      %v765 = vld [vmem:[%s3 + $0x24] sm:$0xf]
      %v766 = vld [vmem:[%s3 + $0x28] sm:$0xf]
      %v767 = vld [vmem:[%s3 + $0x2c] sm:$0xf]
      %v768 = vld [vmem:[%s4] sm:$0x1]
      %vm769 = vcmask 253952
      %770 = vst.msk [vmem:[#allocation2] sm:$0x1] %vm769, 0.0
      %771 = vst.msk [vmem:[#allocation2 + $0xb] sm:$0x1] %vm769, 0.0
      %vm772 = vcmask 261120
      %773 = vst.msk [vmem:[#allocation2 + $0x1] sm:$0xff] %vm772, %v750
      %vm774 = vcmask 254976
      %775 = vst.msk [vmem:[#allocation2 + $0x9] sm:$0x3] %vm774, %v753
      %v776 = vld [vmem:[#allocation2] sm:$0xff]
      %v777 = vld [vmem:[#allocation2 + $0x8] sm:$0x3]
      %v778 = vld [vmem:[#allocation2 + $0x2] sm:$0xff]
      %v779 = vld [vmem:[#allocation2 + $0xa] sm:$0x3]
      %782 = vrot.lane.b32.xlu0 %v750, 32
      %v783 = vpop.permute.xlu0 %782
      %784 = vrot.lane.b32.xlu0 %v753, 32
      %v785 = vpop.permute.xlu0 %784
      %790 = vrot.lane.b32.xlu0 %v778, 64
      %v791 = vpop.permute.xlu0 %790
      %792 = vrot.lane.b32.xlu0 %v779, 64
      %v793 = vpop.permute.xlu0 %792
      %v796 = vsel %vm772, %v776, %v783
      %v797 = vsel %vm772, %v777, %v785
      %vm798 = vcmask 523264
      %v799 = vsel %vm798, %v796, %v791
      %v800 = vsel %vm798, %v797, %v793
      %v801 = vpack.c.bf16 %v800, %v799
      %v803 = vlaneseq
      %v804 = vshrl.u32 %v803, 7
      %v805 = vsub.s32 0, %v804
      %v806 = vrot.slane %v768, %v805
      %v820 = vunpack.c.l.b16 %v756
      %v821 = vunpack.c.l.b16 %v757
      %v822 = vunpack.c.l.b16 %v758
      %v823 = vunpack.c.l.b16 %v759
      %v824 = vunpack.c.l.b16 %v760
      %v825 = vunpack.c.l.b16 %v761
      %v826 = vunpack.c.l.b16 %v762
      %v827 = vunpack.c.l.b16 %v763
      %v828 = vunpack.c.l.b16 %v764
      %v829 = vunpack.c.l.b16 %v765
      %v830 = vunpack.c.l.b16 %v766
      %v831 = vunpack.c.l.b16 %v767
      %v832 = vpack.c.b16 %v821, %v820
      %v833 = vpack.c.b16 %v823, %v822
      %v834 = vpack.c.b16 %v825, %v824
      %v835 = vpack.c.b16 %v827, %v826
      %v836 = vpack.c.b16 %v829, %v828
      %v837 = vpack.c.b16 %v831, %v830
      %vm844 = vcmask 785408
      %v846 = vsel %vm844, %v801, 0
      %848 = vmatprep.subr.bf16.mxu0 0
      %849 = vmatpush1.bf16.msra.mxu0 0
      %850 = vmatprep.subr.bf16.mxu0 0
      %851 = vmatpush1.bf16.msra.mxu0 0
      %852 = vmatprep.subr.bf16.mxu0 0
      %853 = vmatpush1.bf16.msra.mxu0 %v837
      %854 = vmatprep.subr.bf16.mxu0 0
      %855 = vmatpush1.bf16.msra.mxu0 %v836
      %856 = vmatprep.subr.bf16.mxu0 0
      %857 = vmatpush1.bf16.msra.mxu0 %v835
      %858 = vmatprep.subr.bf16.mxu0 0
      %859 = vmatpush1.bf16.msra.mxu0 %v834
      %860 = vmatprep.subr.bf16.mxu0 0
      %861 = vmatpush1.bf16.msra.mxu0 %v833
      %862 = vmatprep.subr.bf16.mxu0 0
      %863 = vmatpush1.bf16.msra.mxu0 %v832
      %864 = vmatprep.subr.bf16.mxu0 0
      %865 = vmatpush2.bf16.msra.mxu0 0
      %866 = vmatprep.subr.bf16.mxu0 0
      %867 = vmatpush2.bf16.msra.mxu0 0
      %868 = vmatprep.subr.bf16.mxu0 0
      %869 = vmatpush2.bf16.msra.mxu0 0
      %870 = vmatprep.subr.bf16.mxu0 0
      %871 = vmatpush2.bf16.msra.mxu0 0
      %872 = vmatprep.subr.bf16.mxu0 0
      %873 = vmatpush2.bf16.msra.mxu0 0
      %874 = vmatprep.subr.bf16.mxu0 0
      %875 = vmatpush2.bf16.msra.mxu0 0
      %876 = vmatprep.subr.bf16.mxu0 0
      %877 = vmatpush2.bf16.msra.mxu0 0
      %878 = vmatprep.subr.bf16.mxu0 0
      %879 = vmatpush2.bf16.msra.mxu0 0
      %880 = vmatprep.mubr.bf16.mxu0 0
      %881 = vmatmul.mubr.bf16.gmra.mxu0 %v846
      %v882 = vpop.f32.mrf.mxu0
      %v883 = vadd.f32 %v806, %v882
      %v884 = vpop.f32.mrf.mxu0
      %v885 = vpop.f32.mrf.mxu0
      %v886 = vadd.f32 %v806, %v885
      %v887 = vpop.f32.mrf.mxu0
      %888 = vdwg.mxu0
      %v889 = vlaneseq
      %v890 = vshrl.u32 %v889, 7
      %v891 = vadd.s32 %v890, 8
      %v892 = vadd.s32 %v890, 1
      %v893 = vadd.s32 %v891, 1
      %v894 = vmul.u32 %v892, 4
      %v895 = vmul.u32 %v893, 4
      %vm896 = vcmp.gt.s32.totalorder %v894, 0
      %vm897 = vcmp.gt.s32.totalorder %v895, 0
      %vm898 = vcmp.gt.s32.totalorder %v894, 10
      %vm899 = vcmp.gt.s32.totalorder %v895, 10
      %vm900 = vcmp.gt.s32.totalorder %v894, 20
      %vm901 = vcmp.gt.s32.totalorder %v895, 20
      %vm902 = vcmp.gt.s32.totalorder %v894, 30
      %vm903 = vcmp.gt.s32.totalorder %v895, 30
      %v904 = vmul.u32 %v890, 4
      %v905 = vmul.u32 %v891, 4
      %vm906 = vcmp.lt.s32.totalorder %v904, 10
      %vm907 = vcmp.lt.s32.totalorder %v905, 10
      %vm908 = vcmp.lt.s32.totalorder %v904, 20
      %vm909 = vcmp.lt.s32.totalorder %v905, 20
      %vm910 = vcmp.lt.s32.totalorder %v904, 30
      %vm911 = vcmp.lt.s32.totalorder %v905, 30
      %vm912 = vcmp.lt.s32.totalorder %v904, 40
      %vm913 = vcmp.lt.s32.totalorder %v905, 40
      %vm914 = vmand %vm896, %vm906
      %vm915 = vmand %vm897, %vm907
      %vm916 = vmand %vm898, %vm908
      %vm917 = vmand %vm899, %vm909
      %vm918 = vmand %vm900, %vm910
      %vm919 = vmand %vm901, %vm911
      %vm920 = vmand %vm902, %vm912
      %vm921 = vmand %vm903, %vm913
      %v922 = vsel %vm914, 1, 0
      %v923 = vsel %vm915, 1, 0
      %v924 = vsel %vm916, 1, 0
      %v925 = vsel %vm917, 1, 0
      %v926 = vsel %vm918, 1, 0
      %v927 = vsel %vm919, 1, 0
      %v928 = vsel %vm920, 1, 0
      %v929 = vsel %vm921, 1, 0
      %vm930 = vcmp.eq.s32.totalorder %v922, 1
      %vm931 = vcmp.eq.s32.totalorder %v923, 1
      %vm932 = vcmp.eq.s32.totalorder %v924, 1
      %vm933 = vcmp.eq.s32.totalorder %v925, 1
      %vm934 = vcmp.eq.s32.totalorder %v926, 1
      %vm935 = vcmp.eq.s32.totalorder %v927, 1
      %vm936 = vcmp.eq.s32.totalorder %v928, 1
      %vm937 = vcmp.eq.s32.totalorder %v929, 1
      %v938 = vsel %vm930, %v883, -inf
      %v939 = vsel %vm931, %v886, -inf
      %v940 = vsel %vm932, %v883, -inf
      %v941 = vsel %vm933, %v886, -inf
      %v942 = vsel %vm934, %v883, -inf
      %v943 = vsel %vm935, %v886, -inf
      %v944 = vsel %vm936, %v883, -inf
      %v945 = vsel %vm937, %v886, -inf
      %v946 = vsel %vm772, %v938, -inf
      %v947 = vsel %vm774, %v939, -inf
      %v948 = vmax.f32 %v946, %v947
      %v949 = vrot.slane %v948, 4
      %v950 = vmax.f32 %v948, %v949
      %v951 = vrot.slane %v950, 2
      %v952 = vmax.f32 %v950, %v951
      %v953 = vrot.slane %v952, 1
      %v954 = vmax.f32 %v952, %v953
      %v955 = vsel %vm772, %v940, -inf
      %v956 = vsel %vm774, %v941, -inf
      %v957 = vmax.f32 %v955, %v956
      %v958 = vrot.slane %v957, 4
      %v959 = vmax.f32 %v957, %v958
      %v960 = vrot.slane %v959, 2
      %v961 = vmax.f32 %v959, %v960
      %v962 = vrot.slane %v961, 1
      %v963 = vmax.f32 %v961, %v962
      %v964 = vsel %vm772, %v942, -inf
      %v965 = vsel %vm774, %v943, -inf
      %v966 = vmax.f32 %v964, %v965
      %v967 = vrot.slane %v966, 4
      %v968 = vmax.f32 %v966, %v967
      %v969 = vrot.slane %v968, 2
      %v970 = vmax.f32 %v968, %v969
      %v971 = vrot.slane %v970, 1
      %v972 = vmax.f32 %v970, %v971
      %v973 = vsel %vm772, %v944, -inf
      %v974 = vsel %vm774, %v945, -inf
      %v975 = vmax.f32 %v973, %v974
      %v976 = vrot.slane %v975, 4
      %v977 = vmax.f32 %v975, %v976
      %v978 = vrot.slane %v977, 2
      %v979 = vmax.f32 %v977, %v978
      %v980 = vrot.slane %v979, 1
      %v981 = vmax.f32 %v979, %v980
      %vm986 = vcmask 1041409
      %v987 = vsel %vm986, %v963, %v954
      %vm988 = vcmask 1042434
      %v989 = vsel %vm988, %v972, %v987
      %vm990 = vcmask 1043459
      %v991 = vsel %vm990, %v981, %v989
      %vm993 = vcmask 257024
      %994 = vst.msk [vmem:[%s222] sm:$0xf] %vm993, %v991
      %p995 = scmp.lt.s32.totalorder %s16, 1
      %s996 = scalar_select %p995, %s16, 1
      %s997 = smul.addr %s996, 4
      %s998 = scalar_lea.vmem %s5, %s997
      // Predicated region
      $region41: #{fwd.5} parent=39 // pred_check
        %p999 = pneg %p144
      $region42: #{fwd.5} parent=39 // pred_check_branch
        %1001 = sbr.rel (%p999) target = $region44
      $region43: #{fwd.5} parent=39 // pred_region
        _
      $region44: #{fwd.5} parent=39 // pred_fallthru
        _
    $region40: #{fwd.5} parent=5 // pred_fallthru
      _
    %p1002 = scmp.le.s32.totalorder 2, %s11
    // Predicated region
    $region45: #{fwd.5} parent=5 // pred_check
      %p1003 = pneg %p1002
    $region46: #{fwd.5} parent=5 // pred_check_branch
      %1005 = sbr.rel (%p1003) target = $region48
    $region47: #{fwd.5} parent=5 // pred_region
      %s1006 = ssub.s32 %s11, 2
      // Predicated region
      $region49: #{fwd.5} parent=47 // pred_check
        %p1007 = pneg %p150
      $region50: #{fwd.5} parent=47 // pred_check_branch
        %1009 = sbr.rel (%p1007) target = $region52
      $region51: #{fwd.5} parent=47 // pred_region
        %p1010 = scmp.lt.s32.totalorder %s17, 1
        %s1011 = scalar_select %p1010, %s17, 1
        %s1012 = smul.addr %s1011, 4
        %s1013 = scalar_lea.vmem %s5, %s1012
      $region52: #{fwd.5} parent=47 // pred_fallthru
        _
    $region48: #{fwd.5} parent=5 // pred_fallthru
      _
  $region6: #{fwd.5} parent=0 // loop_footer
    %s15 = sadd.s32 1, %s11
  $region7: #{fwd.5} parent=0 // loop_footer_branch
    %10 = sbr.rel target = $region3
  $region8: #{fwd.5} parent=0 // loop_exit
    _

// kernel: fwd.8
$region0: #{fwd.8}
  #allocation0 [shape = 'u32[]', space=smem, size = 0x4, offset = 0x4, fixed_abs, tag = 'smem constant byte address 0x4 - core index']
  #allocation1 [shape = 'u32[144,128]{1,0:T(1,128)}', space=vmem, size = 0x12000, scoped, tag = 'internal scratch']
  %s0 = inlined_call_operand.vmem [shape: f32[8,32], index: 0, kind: input, shape index: {}]
  %s1 = inlined_call_operand.vmem [shape: f32[2,8,32], index: 1, kind: input, shape index: {}]
  %s2 = inlined_call_operand.vmem [shape: f32[8,8], index: 2, kind: input, shape index: {}]
  %s3 = inlined_call_operand.vmem [shape: bf16[2,3,32,32], index: 3, kind: input, shape index: {}]
  %s4 = inlined_call_operand.vmem [shape: f32[2,3,1,32], index: 4, kind: input, shape index: {}]
  %s5 = inlined_call_operand.vmem [shape: bf16[2,3,32,32], index: 5, kind: input, shape index: {}]
  %s6 = inlined_call_operand.vmem [shape: f32[2,3,1,32], index: 6, kind: input, shape index: {}]
  %s7 = inlined_call_operand.vmem [shape: bf16[2,32,32], index: 7, kind: input, shape index: {}]
  %s8 = inlined_call_operand.vmem [shape: f32[2,1,32], index: 8, kind: input, shape index: {}]
  %s9 = inlined_call_operand.vmem [shape: bf16[2,32,32], index: 9, kind: input, shape index: {}]
  %s10 = inlined_call_operand.vmem [shape: f32[2,1,32], index: 10, kind: input, shape index: {}]
  %s11 = inlined_call_operand.vmem [shape: f32[2,8,32], index: 11, kind: output, shape index: {0}]
  %s12 = inlined_call_operand.vmem [shape: f32[2,8,32], index: 12, kind: output, shape index: {1}]
  %13 = xla_tuple %s11, %s12
  %s14 = sld [smem:[#allocation0]]
  $region85: #{fwd.8} parent=0
    _
  %s16 = ssub.s32 1, %s14
  %s17 = scalar_select 0, %s16, %s14
  loop: start=0, step=1, limit=4
  $region2: #{fwd.8} parent=0 // loop_pre_header
    _
  $region3: #{fwd.8} parent=0 // loop_header
    %s19 = sphi 0, %s23
    %p20 = scmp.ge.s32.totalorder %s19, 4
    %s27 = sphi 0, %s27
    %s29 = sphi 0, %s27
    %s30 = sphi 0, %s29
    %s44 = sphi 0, %s30
    %s50 = sphi 0, %s52
    %s53 = sphi 0, %s50
    %s54 = sphi 0, %s53
    %s70 = sphi 0, %s54
    %s74 = sphi 0, %s74
    %s76 = sphi 0, %s74
    %s77 = sphi 0, %s76
    %s91 = sphi 0, %s77
    %s97 = sphi 0, %s99
    %s100 = sphi 0, %s97
    %s101 = sphi 0, %s100
    %s117 = sphi 0, %s101
    %s123 = sphi 0, %s125
    %s126 = sphi 0, %s123
    %s127 = sphi 0, %s126
    %s143 = sphi 0, %s127
    %s149 = sphi 0, %s151
    %s152 = sphi 0, %s149
    %s153 = sphi 0, %s152
    %s169 = sphi 0, %s153
    %s175 = sphi 0, %s177
    %s178 = sphi 0, %s175
    %s179 = sphi 0, %s178
    %s195 = sphi 0, %s179
    %s201 = sphi 0, %s203
    %s204 = sphi 0, %s201
    %s205 = sphi 0, %s204
    %s221 = sphi 0, %s205
    %s227 = sphi 0, %s229
    %s230 = sphi 0, %s227
    %s231 = sphi 0, %s230
    %s247 = sphi 0, %s231
    %s253 = sphi 0, %s255
    %s256 = sphi 0, %s253
    %s257 = sphi 0, %s256
    %s273 = sphi 0, %s257
    %s279 = sphi 0, %s281
    %s282 = sphi 0, %s279
    %s283 = sphi 0, %s282
    %s299 = sphi 0, %s283
    %s305 = sphi 0, %s307
    %s308 = sphi 0, %s305
    %s309 = sphi 0, %s308
    %s325 = sphi 0, %s309
    %s331 = sphi 0, %s333
    %s334 = sphi 0, %s331
    %s335 = sphi 0, %s334
    %s351 = sphi 0, %s335
  $region4: #{fwd.8} parent=0 // loop_header_branch
    %22 = sbr.rel (%p20) target = $region8
  $region5: #{fwd.8} parent=0 // loop_body
    %s24 = ssub.s32 %s19, 1
    %s25 = ssub.s32 %s19, 2
    %s26 = sadd.s32 %s19, 1
    %s28 = sadd.s32 %s27, 1
    %p31 = scmp.eq.s32.totalorder %s19, 1
    %p32 = scmp.ne.s32.totalorder %s27, %s29
    %p33 = scmp.eq.s32.totalorder %s19, 0
    %p34 = por %p32, %p33
    %p35 = scmp.ne.s32.totalorder %s27, %s29
    %p36 = scmp.eq.s32.totalorder %s24, 1
    %p37 = por %p35, %p36
    %p38 = scmp.ne.s32.totalorder %s29, %s30
    %p39 = scmp.eq.s32.totalorder %s24, 0
    %p40 = por %p38, %p39
    %p41 = scmp.ne.s32.totalorder %s29, %s30
    %p42 = scmp.eq.s32.totalorder %s25, 1
    %p43 = por %p41, %p42
    %p45 = scmp.ne.s32.totalorder %s30, %s44
    %p46 = scmp.eq.s32.totalorder %s25, 0
    %p47 = por %p45, %p46
    %s48 = ssub.s32 %s19, %s26
    %p49 = scmp.eq.s32.totalorder %s48, 0
    %s51 = sadd.s32 %s50, 1
    %s52 = scalar_select %p49, %s50, %s51
    %p55 = pneg %p49
    %p56 = scmp.eq.s32.totalorder %s19, 1
    %p57 = por %p55, %p56
    %p58 = scmp.ne.s32.totalorder %s50, %s53
    %p59 = scmp.eq.s32.totalorder %s19, 0
    %p60 = por %p58, %p59
    %p61 = scmp.ne.s32.totalorder %s50, %s53
    %p62 = scmp.eq.s32.totalorder %s24, 1
    %p63 = por %p61, %p62
    %p64 = scmp.ne.s32.totalorder %s53, %s54
    %p65 = scmp.eq.s32.totalorder %s24, 0
    %p66 = por %p64, %p65
    %p67 = scmp.ne.s32.totalorder %s53, %s54
    %p68 = scmp.eq.s32.totalorder %s25, 1
    %p69 = por %p67, %p68
    %p71 = scmp.ne.s32.totalorder %s54, %s70
    %p72 = scmp.eq.s32.totalorder %s25, 0
    %p73 = por %p71, %p72
    %s75 = sadd.s32 %s74, 1
    %p78 = scmp.eq.s32.totalorder %s19, 1
    %p79 = scmp.ne.s32.totalorder %s74, %s76
    %p80 = scmp.eq.s32.totalorder %s19, 0
    %p81 = por %p79, %p80
    %p82 = scmp.ne.s32.totalorder %s74, %s76
    %p83 = scmp.eq.s32.totalorder %s24, 1
    %p84 = por %p82, %p83
    %p85 = scmp.ne.s32.totalorder %s76, %s77
    %p86 = scmp.eq.s32.totalorder %s24, 0
    %p87 = por %p85, %p86
    %p88 = scmp.ne.s32.totalorder %s76, %s77
    %p89 = scmp.eq.s32.totalorder %s25, 1
    %p90 = por %p88, %p89
    %p92 = scmp.ne.s32.totalorder %s77, %s91
    %p93 = scmp.eq.s32.totalorder %s25, 0
    %p94 = por %p92, %p93
    %s95 = ssub.s32 %s19, %s26
    %p96 = scmp.eq.s32.totalorder %s95, 0
    %s98 = sadd.s32 %s97, 1
    %s99 = scalar_select %p96, %s97, %s98
    %p102 = pneg %p96
    %p103 = scmp.eq.s32.totalorder %s19, 1
    %p104 = por %p102, %p103
    %p105 = scmp.ne.s32.totalorder %s97, %s100
    %p106 = scmp.eq.s32.totalorder %s19, 0
    %p107 = por %p105, %p106
    %p108 = scmp.ne.s32.totalorder %s97, %s100
    %p109 = scmp.eq.s32.totalorder %s24, 1
    %p110 = por %p108, %p109
    %p111 = scmp.ne.s32.totalorder %s100, %s101
    %p112 = scmp.eq.s32.totalorder %s24, 0
    %p113 = por %p111, %p112
    %p114 = scmp.ne.s32.totalorder %s100, %s101
    %p115 = scmp.eq.s32.totalorder %s25, 1
    %p116 = por %p114, %p115
    %p118 = scmp.ne.s32.totalorder %s101, %s117
    %p119 = scmp.eq.s32.totalorder %s25, 0
    %p120 = por %p118, %p119
    %s121 = ssub.s32 %s19, %s26
    %p122 = scmp.eq.s32.totalorder %s121, 0
    %s124 = sadd.s32 %s123, 1
    %s125 = scalar_select %p122, %s123, %s124
    %p128 = pneg %p122
    %p129 = scmp.eq.s32.totalorder %s19, 1
    %p130 = por %p128, %p129
    %p131 = scmp.ne.s32.totalorder %s123, %s126
    %p132 = scmp.eq.s32.totalorder %s19, 0
    %p133 = por %p131, %p132
    %p134 = scmp.ne.s32.totalorder %s123, %s126
    %p135 = scmp.eq.s32.totalorder %s24, 1
    %p136 = por %p134, %p135
    %p137 = scmp.ne.s32.totalorder %s126, %s127
    %p138 = scmp.eq.s32.totalorder %s24, 0
    %p139 = por %p137, %p138
    %p140 = scmp.ne.s32.totalorder %s126, %s127
    %p141 = scmp.eq.s32.totalorder %s25, 1
    %p142 = por %p140, %p141
    %p144 = scmp.ne.s32.totalorder %s127, %s143
    %p145 = scmp.eq.s32.totalorder %s25, 0
    %p146 = por %p144, %p145
    %s147 = ssub.s32 %s19, %s26
    %p148 = scmp.eq.s32.totalorder %s147, 0
    %s150 = sadd.s32 %s149, 1
    %s151 = scalar_select %p148, %s149, %s150
    %p154 = pneg %p148
    %p155 = scmp.eq.s32.totalorder %s19, 1
    %p156 = por %p154, %p155
    %p157 = scmp.ne.s32.totalorder %s149, %s152
    %p158 = scmp.eq.s32.totalorder %s19, 0
    %p159 = por %p157, %p158
    %p160 = scmp.ne.s32.totalorder %s149, %s152
    %p161 = scmp.eq.s32.totalorder %s24, 1
    %p162 = por %p160, %p161
    %p163 = scmp.ne.s32.totalorder %s152, %s153
    %p164 = scmp.eq.s32.totalorder %s24, 0
    %p165 = por %p163, %p164
    %p166 = scmp.ne.s32.totalorder %s152, %s153
    %p167 = scmp.eq.s32.totalorder %s25, 1
    %p168 = por %p166, %p167
    %p170 = scmp.ne.s32.totalorder %s153, %s169
    %p171 = scmp.eq.s32.totalorder %s25, 0
    %p172 = por %p170, %p171
    %s173 = ssub.s32 %s19, %s26
    %p174 = scmp.eq.s32.totalorder %s173, 0
    %s176 = sadd.s32 %s175, 1
    %s177 = scalar_select %p174, %s175, %s176
    %p180 = pneg %p174
    %p181 = scmp.eq.s32.totalorder %s19, 1
    %p182 = por %p180, %p181
    %p183 = scmp.ne.s32.totalorder %s175, %s178
    %p184 = scmp.eq.s32.totalorder %s19, 0
    %p185 = por %p183, %p184
    %p186 = scmp.ne.s32.totalorder %s175, %s178
    %p187 = scmp.eq.s32.totalorder %s24, 1
    %p188 = por %p186, %p187
    %p189 = scmp.ne.s32.totalorder %s178, %s179
    %p190 = scmp.eq.s32.totalorder %s24, 0
    %p191 = por %p189, %p190
    %p192 = scmp.ne.s32.totalorder %s178, %s179
    %p193 = scmp.eq.s32.totalorder %s25, 1
    %p194 = por %p192, %p193
    %p196 = scmp.ne.s32.totalorder %s179, %s195
    %p197 = scmp.eq.s32.totalorder %s25, 0
    %p198 = por %p196, %p197
    %s199 = ssub.s32 %s19, %s26
    %p200 = scmp.eq.s32.totalorder %s199, 0
    %s202 = sadd.s32 %s201, 1
    %s203 = scalar_select %p200, %s201, %s202
    %p206 = pneg %p200
    %p207 = scmp.eq.s32.totalorder %s19, 1
    %p208 = por %p206, %p207
    %p209 = scmp.ne.s32.totalorder %s201, %s204
    %p210 = scmp.eq.s32.totalorder %s19, 0
    %p211 = por %p209, %p210
    %p212 = scmp.ne.s32.totalorder %s201, %s204
    %p213 = scmp.eq.s32.totalorder %s24, 1
    %p214 = por %p212, %p213
    %p215 = scmp.ne.s32.totalorder %s204, %s205
    %p216 = scmp.eq.s32.totalorder %s24, 0
    %p217 = por %p215, %p216
    %p218 = scmp.ne.s32.totalorder %s204, %s205
    %p219 = scmp.eq.s32.totalorder %s25, 1
    %p220 = por %p218, %p219
    %p222 = scmp.ne.s32.totalorder %s205, %s221
    %p223 = scmp.eq.s32.totalorder %s25, 0
    %p224 = por %p222, %p223
    %s225 = ssub.s32 %s19, %s26
    %p226 = scmp.eq.s32.totalorder %s225, 0
    %s228 = sadd.s32 %s227, 1
    %s229 = scalar_select %p226, %s227, %s228
    %p232 = pneg %p226
    %p233 = scmp.eq.s32.totalorder %s19, 1
    %p234 = por %p232, %p233
    %p235 = scmp.ne.s32.totalorder %s227, %s230
    %p236 = scmp.eq.s32.totalorder %s19, 0
    %p237 = por %p235, %p236
    %p238 = scmp.ne.s32.totalorder %s227, %s230
    %p239 = scmp.eq.s32.totalorder %s24, 1
    %p240 = por %p238, %p239
    %p241 = scmp.ne.s32.totalorder %s230, %s231
    %p242 = scmp.eq.s32.totalorder %s24, 0
    %p243 = por %p241, %p242
    %p244 = scmp.ne.s32.totalorder %s230, %s231
    %p245 = scmp.eq.s32.totalorder %s25, 1
    %p246 = por %p244, %p245
    %p248 = scmp.ne.s32.totalorder %s231, %s247
    %p249 = scmp.eq.s32.totalorder %s25, 0
    %p250 = por %p248, %p249
    %s251 = ssub.s32 %s19, %s26
    %p252 = scmp.eq.s32.totalorder %s251, 0
    %s254 = sadd.s32 %s253, 1
    %s255 = scalar_select %p252, %s253, %s254
    %p258 = pneg %p252
    %p259 = scmp.eq.s32.totalorder %s19, 1
    %p260 = por %p258, %p259
    %p261 = scmp.ne.s32.totalorder %s253, %s256
    %p262 = scmp.eq.s32.totalorder %s19, 0
    %p263 = por %p261, %p262
    %p264 = scmp.ne.s32.totalorder %s253, %s256
    %p265 = scmp.eq.s32.totalorder %s24, 1
    %p266 = por %p264, %p265
    %p267 = scmp.ne.s32.totalorder %s256, %s257
    %p268 = scmp.eq.s32.totalorder %s24, 0
    %p269 = por %p267, %p268
    %p270 = scmp.ne.s32.totalorder %s256, %s257
    %p271 = scmp.eq.s32.totalorder %s25, 1
    %p272 = por %p270, %p271
    %p274 = scmp.ne.s32.totalorder %s257, %s273
    %p275 = scmp.eq.s32.totalorder %s25, 0
    %p276 = por %p274, %p275
    %s277 = ssub.s32 %s19, %s26
    %p278 = scmp.eq.s32.totalorder %s277, 0
    %s280 = sadd.s32 %s279, 1
    %s281 = scalar_select %p278, %s279, %s280
    %p284 = pneg %p278
    %p285 = scmp.eq.s32.totalorder %s19, 1
    %p286 = por %p284, %p285
    %p287 = scmp.ne.s32.totalorder %s279, %s282
    %p288 = scmp.eq.s32.totalorder %s19, 0
    %p289 = por %p287, %p288
    %p290 = scmp.ne.s32.totalorder %s279, %s282
    %p291 = scmp.eq.s32.totalorder %s24, 1
    %p292 = por %p290, %p291
    %p293 = scmp.ne.s32.totalorder %s282, %s283
    %p294 = scmp.eq.s32.totalorder %s24, 0
    %p295 = por %p293, %p294
    %p296 = scmp.ne.s32.totalorder %s282, %s283
    %p297 = scmp.eq.s32.totalorder %s25, 1
    %p298 = por %p296, %p297
    %p300 = scmp.ne.s32.totalorder %s283, %s299
    %p301 = scmp.eq.s32.totalorder %s25, 0
    %p302 = por %p300, %p301
    %s303 = ssub.s32 %s19, %s26
    %p304 = scmp.eq.s32.totalorder %s303, 0
    %s306 = sadd.s32 %s305, 1
    %s307 = scalar_select %p304, %s305, %s306
    %p310 = pneg %p304
    %p311 = scmp.eq.s32.totalorder %s19, 1
    %p312 = por %p310, %p311
    %p313 = scmp.ne.s32.totalorder %s305, %s308
    %p314 = scmp.eq.s32.totalorder %s19, 0
    %p315 = por %p313, %p314
    %p316 = scmp.ne.s32.totalorder %s305, %s308
    %p317 = scmp.eq.s32.totalorder %s24, 1
    %p318 = por %p316, %p317
    %p319 = scmp.ne.s32.totalorder %s308, %s309
    %p320 = scmp.eq.s32.totalorder %s24, 0
    %p321 = por %p319, %p320
    %p322 = scmp.ne.s32.totalorder %s308, %s309
    %p323 = scmp.eq.s32.totalorder %s25, 1
    %p324 = por %p322, %p323
    %p326 = scmp.ne.s32.totalorder %s309, %s325
    %p327 = scmp.eq.s32.totalorder %s25, 0
    %p328 = por %p326, %p327
    %s329 = ssub.s32 %s19, %s26
    %p330 = scmp.eq.s32.totalorder %s329, 0
    %s332 = sadd.s32 %s331, 1
    %s333 = scalar_select %p330, %s331, %s332
    %p336 = pneg %p330
    %p337 = scmp.eq.s32.totalorder %s19, 1
    %p338 = por %p336, %p337
    %p339 = scmp.ne.s32.totalorder %s331, %s334
    %p340 = scmp.eq.s32.totalorder %s19, 0
    %p341 = por %p339, %p340
    %p342 = scmp.ne.s32.totalorder %s331, %s334
    %p343 = scmp.eq.s32.totalorder %s24, 1
    %p344 = por %p342, %p343
    %p345 = scmp.ne.s32.totalorder %s334, %s335
    %p346 = scmp.eq.s32.totalorder %s24, 0
    %p347 = por %p345, %p346
    %p348 = scmp.ne.s32.totalorder %s334, %s335
    %p349 = scmp.eq.s32.totalorder %s25, 1
    %p350 = por %p348, %p349
    %p352 = scmp.ne.s32.totalorder %s335, %s351
    %p353 = scmp.eq.s32.totalorder %s25, 0
    %p354 = por %p352, %p353
    %p355 = scmp.le.s32.totalorder 1, %s19
    %p356 = scmp.lt.s32.totalorder %s19, 3
    %p357 = pnand %p355, %p356
    %p358 = pneg %p357
    // Predicated region
    $region9: #{fwd.8} parent=5 // pred_check
      _
    $region10: #{fwd.8} parent=5 // pred_check_branch
      %360 = sbr.rel (%p357) target = $region12
    $region11: #{fwd.8} parent=5 // pred_region
      %s361 = ssub.s32 %s19, 1
      // Predicated region
      $region13: #{fwd.8} parent=11 // pred_check
        %p362 = pneg %p40
      $region14: #{fwd.8} parent=11 // pred_check_branch
        %364 = sbr.rel (%p362) target = $region16
      $region15: #{fwd.8} parent=11 // pred_region
        _
      $region16: #{fwd.8} parent=11 // pred_fallthru
        _
      // Predicated region
      $region17: #{fwd.8} parent=11 // pred_check
        %p365 = pneg %p87
      $region18: #{fwd.8} parent=11 // pred_check_branch
        %367 = sbr.rel (%p365) target = $region20
      $region19: #{fwd.8} parent=11 // pred_region
        _
      $region20: #{fwd.8} parent=11 // pred_fallthru
        _
    $region12: #{fwd.8} parent=5 // pred_fallthru
      _
    %p368 = scmp.lt.s32.totalorder %s19, 2
    // Predicated region
    $region21: #{fwd.8} parent=5 // pred_check
      %p369 = pneg %p368
    $region22: #{fwd.8} parent=5 // pred_check_branch
      %371 = sbr.rel (%p369) target = $region24
    $region23: #{fwd.8} parent=5 // pred_region
      // Predicated region
      $region25: #{fwd.8} parent=23 // pred_check
        %p372 = pneg %p60
      $region26: #{fwd.8} parent=23 // pred_check_branch
        %374 = sbr.rel (%p372) target = $region28
      $region27: #{fwd.8} parent=23 // pred_region
        %p375 = scmp.lt.s32.totalorder %s19, 1
        %s376 = scalar_select %p375, %s19, 1
        %s377 = smul.addr %s376, 8
        %s378 = scalar_lea.vmem %s1, %s377
      $region28: #{fwd.8} parent=23 // pred_fallthru
        _
      // Predicated region
      $region29: #{fwd.8} parent=23 // pred_check
        %p379 = pneg %p107
      $region30: #{fwd.8} parent=23 // pred_check_branch
        %381 = sbr.rel (%p379) target = $region32
      $region31: #{fwd.8} parent=23 // pred_region
        %p382 = scmp.lt.s32.totalorder %s19, 1
        %s383 = scalar_select %p382, %s19, 1
        %s384 = smul.addr %s383, 12
        %s385 = smul.addr %s384, 4
        %s386 = scalar_lea.vmem %s3, %s385
      $region32: #{fwd.8} parent=23 // pred_fallthru
        _
      // Predicated region
      $region33: #{fwd.8} parent=23 // pred_check
        %p387 = pneg %p133
      $region34: #{fwd.8} parent=23 // pred_check_branch
        %389 = sbr.rel (%p387) target = $region36
      $region35: #{fwd.8} parent=23 // pred_region
        %p390 = scmp.lt.s32.totalorder %s19, 1
        %s391 = scalar_select %p390, %s19, 1
        %s392 = smul.addr %s391, 3
        %s393 = scalar_lea.vmem %s4, %s392
      $region36: #{fwd.8} parent=23 // pred_fallthru
        _
      // Predicated region
      $region37: #{fwd.8} parent=23 // pred_check
        %p394 = pneg %p159
      $region38: #{fwd.8} parent=23 // pred_check_branch
        %396 = sbr.rel (%p394) target = $region40
      $region39: #{fwd.8} parent=23 // pred_region
        %p397 = scmp.lt.s32.totalorder %s19, 1
        %s398 = scalar_select %p397, %s19, 1
        %s399 = smul.addr %s398, 12
        %s400 = smul.addr %s399, 4
        %s401 = scalar_lea.vmem %s5, %s400
      $region40: #{fwd.8} parent=23 // pred_fallthru
        _
      // Predicated region
      $region41: #{fwd.8} parent=23 // pred_check
        %p402 = pneg %p185
      $region42: #{fwd.8} parent=23 // pred_check_branch
        %404 = sbr.rel (%p402) target = $region44
      $region43: #{fwd.8} parent=23 // pred_region
        %p405 = scmp.lt.s32.totalorder %s19, 1
        %s406 = scalar_select %p405, %s19, 1
        %s407 = smul.addr %s406, 3
        %s408 = scalar_lea.vmem %s6, %s407
      $region44: #{fwd.8} parent=23 // pred_fallthru
        _
      // Predicated region
      $region45: #{fwd.8} parent=23 // pred_check
        %p409 = pneg %p211
      $region46: #{fwd.8} parent=23 // pred_check_branch
        %411 = sbr.rel (%p409) target = $region48
      $region47: #{fwd.8} parent=23 // pred_region
        %p412 = scmp.lt.s32.totalorder %s19, 1
        %s413 = scalar_select %p412, %s19, 1
        %s414 = smul.addr %s413, 4
        %s415 = smul.addr %s414, 4
        %s416 = scalar_lea.vmem %s7, %s415
      $region48: #{fwd.8} parent=23 // pred_fallthru
        _
      // Predicated region
      $region49: #{fwd.8} parent=23 // pred_check
        %p417 = pneg %p237
      $region50: #{fwd.8} parent=23 // pred_check_branch
        %419 = sbr.rel (%p417) target = $region52
      $region51: #{fwd.8} parent=23 // pred_region
        %p420 = scmp.lt.s32.totalorder %s19, 1
        %s421 = scalar_select %p420, %s19, 1
        %s422 = scalar_lea.vmem %s8, %s421
      $region52: #{fwd.8} parent=23 // pred_fallthru
        _
      // Predicated region
      $region53: #{fwd.8} parent=23 // pred_check
        %p423 = pneg %p263
      $region54: #{fwd.8} parent=23 // pred_check_branch
        %425 = sbr.rel (%p423) target = $region56
      $region55: #{fwd.8} parent=23 // pred_region
        %p426 = scmp.lt.s32.totalorder %s19, 1
        %s427 = scalar_select %p426, %s19, 1
        %s428 = smul.addr %s427, 4
        %s429 = smul.addr %s428, 4
        %s430 = scalar_lea.vmem %s9, %s429
      $region56: #{fwd.8} parent=23 // pred_fallthru
        _
      // Predicated region
      $region57: #{fwd.8} parent=23 // pred_check
        %p431 = pneg %p289
      $region58: #{fwd.8} parent=23 // pred_check_branch
        %433 = sbr.rel (%p431) target = $region60
      $region59: #{fwd.8} parent=23 // pred_region
        %p434 = scmp.lt.s32.totalorder %s19, 1
        %s435 = scalar_select %p434, %s19, 1
        %s436 = scalar_lea.vmem %s10, %s435
      $region60: #{fwd.8} parent=23 // pred_fallthru
        _
    $region24: #{fwd.8} parent=5 // pred_fallthru
      _
    %p437 = scmp.le.s32.totalorder 1, %s19
    %p438 = scmp.lt.s32.totalorder %s19, 3
    %p439 = pnand %p437, %p438
    %p440 = pneg %p439
    // Predicated region
    $region61: #{fwd.8} parent=5 // pred_check
      _
    $region62: #{fwd.8} parent=5 // pred_check_branch
      %442 = sbr.rel (%p439) target = $region64
    $region63: #{fwd.8} parent=5 // pred_region
      %s443 = ssub.s32 %s19, 1
      %p444 = pneg %p40
      %p445 = pneg %p37
      %p446 = scmp.lt.s32.totalorder %s24, 1
      %s447 = scalar_select %p446, %s24, 1
      %s448 = smul.addr %s447, 8
      %s449 = scalar_lea.vmem %s1, %s448
      %p450 = pneg %p66
      %p451 = pneg %p63
      %p452 = pneg %p87
      %p453 = pneg %p84
      %p454 = scmp.lt.s32.totalorder %s24, 1
      %s455 = scalar_select %p454, %s24, 1
      %s456 = smul.addr %s455, 12
      %s457 = smul.addr %s456, 4
      %s458 = scalar_lea.vmem %s3, %s457
      %p459 = pneg %p113
      %p460 = pneg %p110
      %p461 = scmp.lt.s32.totalorder %s24, 1
      %s462 = scalar_select %p461, %s24, 1
      %s463 = smul.addr %s462, 3
      %s464 = scalar_lea.vmem %s4, %s463
      %p465 = pneg %p139
      %p466 = pneg %p136
      %p467 = scmp.lt.s32.totalorder %s24, 1
      %s468 = scalar_select %p467, %s24, 1
      %s469 = smul.addr %s468, 12
      %s470 = smul.addr %s469, 4
      %s471 = scalar_lea.vmem %s5, %s470
      %p472 = pneg %p165
      %p473 = pneg %p162
      %p474 = scmp.lt.s32.totalorder %s24, 1
      %s475 = scalar_select %p474, %s24, 1
      %s476 = smul.addr %s475, 3
      %s477 = scalar_lea.vmem %s6, %s476
      %p478 = pneg %p191
      %p479 = pneg %p188
      %p480 = scmp.lt.s32.totalorder %s24, 1
      %s481 = scalar_select %p480, %s24, 1
      %s482 = smul.addr %s481, 4
      %s483 = smul.addr %s482, 4
      %s484 = scalar_lea.vmem %s7, %s483
      %p485 = pneg %p217
      %p486 = pneg %p214
      %p487 = scmp.lt.s32.totalorder %s24, 1
      %s488 = scalar_select %p487, %s24, 1
      %s489 = scalar_lea.vmem %s8, %s488
      %p490 = pneg %p243
      %p491 = pneg %p240
      %p492 = scmp.lt.s32.totalorder %s24, 1
      %s493 = scalar_select %p492, %s24, 1
      %s494 = smul.addr %s493, 4
      %s495 = smul.addr %s494, 4
      %s496 = scalar_lea.vmem %s9, %s495
      %p497 = pneg %p269
      %p498 = pneg %p266
      %p499 = scmp.lt.s32.totalorder %s24, 1
      %s500 = scalar_select %p499, %s24, 1
      %s501 = scalar_lea.vmem %s10, %s500
      %p502 = pneg %p295
      %p503 = pneg %p292
      %p504 = pneg %p321
      %p505 = pneg %p318
      %p506 = scmp.lt.s32.totalorder %s24, 1
      %s507 = scalar_select %p506, %s24, 1
      %s508 = smul.addr %s507, 8
      %s509 = scalar_lea.vmem %s11, %s508
      %p510 = pneg %p347
      %p511 = pneg %p344
      %p512 = scmp.lt.s32.totalorder %s24, 1
      %s513 = scalar_select %p512, %s24, 1
      %s514 = smul.addr %s513, 8
      %s515 = scalar_lea.vmem %s12, %s514
      %p516 = scmp.lt.s32.totalorder %s24, 1
      %s517 = scalar_select %p516, %s24, 1
      %s518 = smul.addr %s517, 8
      %s519 = scalar_lea.vmem %s1, %s518
      %p520 = scmp.lt.s32.totalorder %s24, 1
      %s521 = scalar_select %p520, %s24, 1
      %s522 = smul.addr %s521, 12
      %s523 = smul.addr %s522, 4
      %s524 = scalar_lea.vmem %s3, %s523
      %p525 = scmp.lt.s32.totalorder %s24, 1
      %s526 = scalar_select %p525, %s24, 1
      %s527 = smul.addr %s526, 3
      %s528 = scalar_lea.vmem %s4, %s527
      %p529 = scmp.lt.s32.totalorder %s24, 1
      %s530 = scalar_select %p529, %s24, 1
      %s531 = smul.addr %s530, 12
      %s532 = smul.addr %s531, 4
      %s533 = scalar_lea.vmem %s5, %s532
      %p534 = scmp.lt.s32.totalorder %s24, 1
      %s535 = scalar_select %p534, %s24, 1
      %s536 = smul.addr %s535, 3
      %s537 = scalar_lea.vmem %s6, %s536
      %p538 = scmp.lt.s32.totalorder %s24, 1
      %s539 = scalar_select %p538, %s24, 1
      %s540 = smul.addr %s539, 4
      %s541 = smul.addr %s540, 4
      %s542 = scalar_lea.vmem %s7, %s541
      %p543 = scmp.lt.s32.totalorder %s24, 1
      %s544 = scalar_select %p543, %s24, 1
      %s545 = scalar_lea.vmem %s8, %s544
      %p546 = scmp.lt.s32.totalorder %s24, 1
      %s547 = scalar_select %p546, %s24, 1
      %s548 = smul.addr %s547, 4
      %s549 = smul.addr %s548, 4
      %s550 = scalar_lea.vmem %s9, %s549
      %p551 = scmp.lt.s32.totalorder %s24, 1
      %s552 = scalar_select %p551, %s24, 1
      %s553 = scalar_lea.vmem %s10, %s552
      %p554 = scmp.lt.s32.totalorder %s24, 1
      %s555 = scalar_select %p554, %s24, 1
      %s556 = smul.addr %s555, 8
      %s557 = scalar_lea.vmem %s11, %s556
      %p558 = scmp.lt.s32.totalorder %s24, 1
      %s559 = scalar_select %p558, %s24, 1
      %s560 = smul.addr %s559, 8
      %s561 = scalar_lea.vmem %s12, %s560
      %v563 = vld [vmem:[%s0] sm:$0xff]
      %v564 = vld [vmem:[%s519] sm:$0xff]
      %v565 = vld [vmem:[%s2] sm:$0xff]
      %v566 = vld [vmem:[%s524] sm:$0xf]
      %v567 = vld [vmem:[%s524 + $0x4] sm:$0xf]
      %v568 = vld [vmem:[%s524 + $0x8] sm:$0xf]
      %v569 = vld [vmem:[%s524 + $0xc] sm:$0xf]
      %v570 = vpack.c.bf16 %v563, %v563
      %v571 = vld [vmem:[%s528] sm:$0x1]
      %v573 = vlaneseq
      %v574 = vshrl.u32 %v573, 7
      %v575 = vsub.s32 0, %v574
      %v576 = vrot.slane %v571, %v575
      %v582 = vunpack.c.l.b16 %v566
      %v583 = vunpack.c.l.b16 %v567
      %v584 = vunpack.c.l.b16 %v568
      %v585 = vunpack.c.l.b16 %v569
      %v586 = vpack.c.b16 %v583, %v582
      %v587 = vpack.c.b16 %v585, %v584
      %vm590 = vcmask 261120
      %v592 = vsel %vm590, %v570, 0
      %594 = vmatprep.subr.bf16.mxu0 0
      %595 = vmatpush1.bf16.msra.mxu0 0
      %596 = vmatprep.subr.bf16.mxu0 0
      %597 = vmatpush1.bf16.msra.mxu0 0
      %598 = vmatprep.subr.bf16.mxu0 0
      %599 = vmatpush1.bf16.msra.mxu0 0
      %600 = vmatprep.subr.bf16.mxu0 0
      %601 = vmatpush1.bf16.msra.mxu0 0
      %602 = vmatprep.subr.bf16.mxu0 0
      %603 = vmatpush1.bf16.msra.mxu0 0
      %604 = vmatprep.subr.bf16.mxu0 0
      %605 = vmatpush1.bf16.msra.mxu0 0
      %606 = vmatprep.subr.bf16.mxu0 0
      %607 = vmatpush1.bf16.msra.mxu0 %v587
      %608 = vmatprep.subr.bf16.mxu0 0
      %609 = vmatpush1.bf16.msra.mxu0 %v586
      %610 = vmatprep.subr.bf16.mxu0 0
      %611 = vmatpush2.bf16.msra.mxu0 0
      %612 = vmatprep.subr.bf16.mxu0 0
      %613 = vmatpush2.bf16.msra.mxu0 0
      %614 = vmatprep.subr.bf16.mxu0 0
      %615 = vmatpush2.bf16.msra.mxu0 0
      %616 = vmatprep.subr.bf16.mxu0 0
      %617 = vmatpush2.bf16.msra.mxu0 0
      %618 = vmatprep.subr.bf16.mxu0 0
      %619 = vmatpush2.bf16.msra.mxu0 0
      %620 = vmatprep.subr.bf16.mxu0 0
      %621 = vmatpush2.bf16.msra.mxu0 0
      %622 = vmatprep.subr.bf16.mxu0 0
      %623 = vmatpush2.bf16.msra.mxu0 0
      %624 = vmatprep.subr.bf16.mxu0 0
      %625 = vmatpush2.bf16.msra.mxu0 0
      %626 = vmatprep.mubr.bf16.mxu0 0
      %627 = vmatmul.mubr.bf16.gmra.mxu0 %v592
      %v628 = vpop.f32.mrf.mxu0
      %v629 = vadd.f32 %v576, %v628
      %v630 = vpop.f32.mrf.mxu0
      %v631 = vpop.f32.mrf.mxu0
      %v632 = vpop.f32.mrf.mxu0
      %633 = vdwg.mxu0
      %s634 = scalar_lea.vmem %s524, 16
      %v635 = vld [vmem:[%s634] sm:$0xf]
      %v636 = vld [vmem:[%s634 + $0x4] sm:$0xf]
      %v637 = vld [vmem:[%s634 + $0x8] sm:$0xf]
      %v638 = vld [vmem:[%s634 + $0xc] sm:$0xf]
      %s639 = scalar_lea.vmem %s528, 1
      %v640 = vld [vmem:[%s639] sm:$0x1]
      %v642 = vlaneseq
      %v643 = vshrl.u32 %v642, 7
      %v644 = vsub.s32 0, %v643
      %v645 = vrot.slane %v640, %v644
      %v651 = vunpack.c.l.b16 %v635
      %v652 = vunpack.c.l.b16 %v636
      %v653 = vunpack.c.l.b16 %v637
      %v654 = vunpack.c.l.b16 %v638
      %v655 = vpack.c.b16 %v652, %v651
      %v656 = vpack.c.b16 %v654, %v653
      %659 = vmatprep.subr.bf16.mxu0 0
      %660 = vmatpush1.bf16.msra.mxu0 0
      %661 = vmatprep.subr.bf16.mxu0 0
      %662 = vmatpush1.bf16.msra.mxu0 0
      %663 = vmatprep.subr.bf16.mxu0 0
      %664 = vmatpush1.bf16.msra.mxu0 0
      %665 = vmatprep.subr.bf16.mxu0 0
      %666 = vmatpush1.bf16.msra.mxu0 0
      %667 = vmatprep.subr.bf16.mxu0 0
      %668 = vmatpush1.bf16.msra.mxu0 0
      %669 = vmatprep.subr.bf16.mxu0 0
      %670 = vmatpush1.bf16.msra.mxu0 0
      %671 = vmatprep.subr.bf16.mxu0 0
      %672 = vmatpush1.bf16.msra.mxu0 %v656
      %673 = vmatprep.subr.bf16.mxu0 0
      %674 = vmatpush1.bf16.msra.mxu0 %v655
      %675 = vmatprep.subr.bf16.mxu0 0
      %676 = vmatpush2.bf16.msra.mxu0 0
      %677 = vmatprep.subr.bf16.mxu0 0
      %678 = vmatpush2.bf16.msra.mxu0 0
      %679 = vmatprep.subr.bf16.mxu0 0
      %680 = vmatpush2.bf16.msra.mxu0 0
      %681 = vmatprep.subr.bf16.mxu0 0
      %682 = vmatpush2.bf16.msra.mxu0 0
      %683 = vmatprep.subr.bf16.mxu0 0
      %684 = vmatpush2.bf16.msra.mxu0 0
      %685 = vmatprep.subr.bf16.mxu0 0
      %686 = vmatpush2.bf16.msra.mxu0 0
      %687 = vmatprep.subr.bf16.mxu0 0
      %688 = vmatpush2.bf16.msra.mxu0 0
      %689 = vmatprep.subr.bf16.mxu0 0
      %690 = vmatpush2.bf16.msra.mxu0 0
      %691 = vmatprep.mubr.bf16.mxu0 0
      %692 = vmatmul.mubr.bf16.gmra.mxu0 %v592
      %v693 = vpop.f32.mrf.mxu0
      %v694 = vadd.f32 %v645, %v693
      %v695 = vpop.f32.mrf.mxu0
      %v696 = vpop.f32.mrf.mxu0
      %v697 = vpop.f32.mrf.mxu0
      %698 = vdwg.mxu0
      %s699 = scalar_lea.vmem %s524, 32
      %v700 = vld [vmem:[%s699] sm:$0xf]
      %v701 = vld [vmem:[%s699 + $0x4] sm:$0xf]
      %v702 = vld [vmem:[%s699 + $0x8] sm:$0xf]
      %v703 = vld [vmem:[%s699 + $0xc] sm:$0xf]
      %s704 = scalar_lea.vmem %s528, 2
      %v705 = vld [vmem:[%s704] sm:$0x1]
      %v707 = vlaneseq
      %v708 = vshrl.u32 %v707, 7
      %v709 = vsub.s32 0, %v708
      %v710 = vrot.slane %v705, %v709
      %v716 = vunpack.c.l.b16 %v700
      %v717 = vunpack.c.l.b16 %v701
      %v718 = vunpack.c.l.b16 %v702
      %v719 = vunpack.c.l.b16 %v703
      %v720 = vpack.c.b16 %v717, %v716
      %v721 = vpack.c.b16 %v719, %v718
      %724 = vmatprep.subr.bf16.mxu0 0
      %725 = vmatpush1.bf16.msra.mxu0 0
      %726 = vmatprep.subr.bf16.mxu0 0
      %727 = vmatpush1.bf16.msra.mxu0 0
      %728 = vmatprep.subr.bf16.mxu0 0
      %729 = vmatpush1.bf16.msra.mxu0 0
      %730 = vmatprep.subr.bf16.mxu0 0
      %731 = vmatpush1.bf16.msra.mxu0 0
      %732 = vmatprep.subr.bf16.mxu0 0
      %733 = vmatpush1.bf16.msra.mxu0 0
      %734 = vmatprep.subr.bf16.mxu0 0
      %735 = vmatpush1.bf16.msra.mxu0 0
      %736 = vmatprep.subr.bf16.mxu0 0
      %737 = vmatpush1.bf16.msra.mxu0 %v721
      %738 = vmatprep.subr.bf16.mxu0 0
      %739 = vmatpush1.bf16.msra.mxu0 %v720
      %740 = vmatprep.subr.bf16.mxu0 0
      %741 = vmatpush2.bf16.msra.mxu0 0
      %742 = vmatprep.subr.bf16.mxu0 0
      %743 = vmatpush2.bf16.msra.mxu0 0
      %744 = vmatprep.subr.bf16.mxu0 0
      %745 = vmatpush2.bf16.msra.mxu0 0
      %746 = vmatprep.subr.bf16.mxu0 0
      %747 = vmatpush2.bf16.msra.mxu0 0
      %748 = vmatprep.subr.bf16.mxu0 0
      %749 = vmatpush2.bf16.msra.mxu0 0
      %750 = vmatprep.subr.bf16.mxu0 0
      %751 = vmatpush2.bf16.msra.mxu0 0
      %752 = vmatprep.subr.bf16.mxu0 0
      %753 = vmatpush2.bf16.msra.mxu0 0
      %754 = vmatprep.subr.bf16.mxu0 0
      %755 = vmatpush2.bf16.msra.mxu0 0
      %756 = vmatprep.mubr.bf16.mxu0 0
      %757 = vmatmul.mubr.bf16.gmra.mxu0 %v592
      %v758 = vpop.f32.mrf.mxu0
      %v759 = vadd.f32 %v710, %v758
      %v760 = vpop.f32.mrf.mxu0
      %v761 = vpop.f32.mrf.mxu0
      %v762 = vpop.f32.mrf.mxu0
      %763 = vdwg.mxu0
      %v764 = vld [vmem:[%s533] sm:$0xf]
      %v765 = vld [vmem:[%s533 + $0x4] sm:$0xf]
      %v766 = vld [vmem:[%s533 + $0x8] sm:$0xf]
      %v767 = vld [vmem:[%s533 + $0xc] sm:$0xf]
      %v768 = vpack.c.bf16 %v564, %v564
      %v769 = vld [vmem:[%s537] sm:$0x1]
      %v771 = vlaneseq
      %v772 = vshrl.u32 %v771, 7
      %v773 = vsub.s32 0, %v772
      %v774 = vrot.slane %v769, %v773
      %v780 = vunpack.c.l.b16 %v764
      %v781 = vunpack.c.l.b16 %v765
      %v782 = vunpack.c.l.b16 %v766
      %v783 = vunpack.c.l.b16 %v767
      %v784 = vpack.c.b16 %v781, %v780
      %v785 = vpack.c.b16 %v783, %v782
      %v789 = vsel %vm590, %v768, 0
      %791 = vmatprep.subr.bf16.mxu0 0
      %792 = vmatpush1.bf16.msra.mxu0 0
      %793 = vmatprep.subr.bf16.mxu0 0
      %794 = vmatpush1.bf16.msra.mxu0 0
      %795 = vmatprep.subr.bf16.mxu0 0
      %796 = vmatpush1.bf16.msra.mxu0 0
      %797 = vmatprep.subr.bf16.mxu0 0
      %798 = vmatpush1.bf16.msra.mxu0 0
      %799 = vmatprep.subr.bf16.mxu0 0
      %800 = vmatpush1.bf16.msra.mxu0 0
      %801 = vmatprep.subr.bf16.mxu0 0
      %802 = vmatpush1.bf16.msra.mxu0 0
      %803 = vmatprep.subr.bf16.mxu0 0
      %804 = vmatpush1.bf16.msra.mxu0 %v785
      %805 = vmatprep.subr.bf16.mxu0 0
      %806 = vmatpush1.bf16.msra.mxu0 %v784
      %807 = vmatprep.subr.bf16.mxu0 0
      %808 = vmatpush2.bf16.msra.mxu0 0
      %809 = vmatprep.subr.bf16.mxu0 0
      %810 = vmatpush2.bf16.msra.mxu0 0
      %811 = vmatprep.subr.bf16.mxu0 0
      %812 = vmatpush2.bf16.msra.mxu0 0
      %813 = vmatprep.subr.bf16.mxu0 0
      %814 = vmatpush2.bf16.msra.mxu0 0
      %815 = vmatprep.subr.bf16.mxu0 0
      %816 = vmatpush2.bf16.msra.mxu0 0
      %817 = vmatprep.subr.bf16.mxu0 0
      %818 = vmatpush2.bf16.msra.mxu0 0
      %819 = vmatprep.subr.bf16.mxu0 0
      %820 = vmatpush2.bf16.msra.mxu0 0
      %821 = vmatprep.subr.bf16.mxu0 0
      %822 = vmatpush2.bf16.msra.mxu0 0
      %823 = vmatprep.mubr.bf16.mxu0 0
      %824 = vmatmul.mubr.bf16.gmra.mxu0 %v789
      %v825 = vpop.f32.mrf.mxu0
      %v826 = vadd.f32 %v774, %v825
      %v827 = vpop.f32.mrf.mxu0
      %v828 = vpop.f32.mrf.mxu0
      %v829 = vpop.f32.mrf.mxu0
      %830 = vdwg.mxu0
      %s831 = scalar_lea.vmem %s533, 16
      %v832 = vld [vmem:[%s831] sm:$0xf]
      %v833 = vld [vmem:[%s831 + $0x4] sm:$0xf]
      %v834 = vld [vmem:[%s831 + $0x8] sm:$0xf]
      %v835 = vld [vmem:[%s831 + $0xc] sm:$0xf]
      %s836 = scalar_lea.vmem %s537, 1
      %v837 = vld [vmem:[%s836] sm:$0x1]
      %v839 = vlaneseq
      %v840 = vshrl.u32 %v839, 7
      %v841 = vsub.s32 0, %v840
      %v842 = vrot.slane %v837, %v841
      %v848 = vunpack.c.l.b16 %v832
      %v849 = vunpack.c.l.b16 %v833
      %v850 = vunpack.c.l.b16 %v834
      %v851 = vunpack.c.l.b16 %v835
      %v852 = vpack.c.b16 %v849, %v848
      %v853 = vpack.c.b16 %v851, %v850
      %856 = vmatprep.subr.bf16.mxu0 0
      %857 = vmatpush1.bf16.msra.mxu0 0
      %858 = vmatprep.subr.bf16.mxu0 0
      %859 = vmatpush1.bf16.msra.mxu0 0
      %860 = vmatprep.subr.bf16.mxu0 0
      %861 = vmatpush1.bf16.msra.mxu0 0
      %862 = vmatprep.subr.bf16.mxu0 0
      %863 = vmatpush1.bf16.msra.mxu0 0
      %864 = vmatprep.subr.bf16.mxu0 0
      %865 = vmatpush1.bf16.msra.mxu0 0
      %866 = vmatprep.subr.bf16.mxu0 0
      %867 = vmatpush1.bf16.msra.mxu0 0
      %868 = vmatprep.subr.bf16.mxu0 0
      %869 = vmatpush1.bf16.msra.mxu0 %v853
      %870 = vmatprep.subr.bf16.mxu0 0
      %871 = vmatpush1.bf16.msra.mxu0 %v852
      %872 = vmatprep.subr.bf16.mxu0 0
      %873 = vmatpush2.bf16.msra.mxu0 0
      %874 = vmatprep.subr.bf16.mxu0 0
      %875 = vmatpush2.bf16.msra.mxu0 0
      %876 = vmatprep.subr.bf16.mxu0 0
      %877 = vmatpush2.bf16.msra.mxu0 0
      %878 = vmatprep.subr.bf16.mxu0 0
      %879 = vmatpush2.bf16.msra.mxu0 0
      %880 = vmatprep.subr.bf16.mxu0 0
      %881 = vmatpush2.bf16.msra.mxu0 0
      %882 = vmatprep.subr.bf16.mxu0 0
      %883 = vmatpush2.bf16.msra.mxu0 0
      %884 = vmatprep.subr.bf16.mxu0 0
      %885 = vmatpush2.bf16.msra.mxu0 0
      %886 = vmatprep.subr.bf16.mxu0 0
      %887 = vmatpush2.bf16.msra.mxu0 0
      %888 = vmatprep.mubr.bf16.mxu0 0
      %889 = vmatmul.mubr.bf16.gmra.mxu0 %v789
      %v890 = vpop.f32.mrf.mxu0
      %v891 = vadd.f32 %v842, %v890
      %v892 = vpop.f32.mrf.mxu0
      %v893 = vpop.f32.mrf.mxu0
      %v894 = vpop.f32.mrf.mxu0
      %895 = vdwg.mxu0
      %s896 = scalar_lea.vmem %s533, 32
      %v897 = vld [vmem:[%s896] sm:$0xf]
      %v898 = vld [vmem:[%s896 + $0x4] sm:$0xf]
      %v899 = vld [vmem:[%s896 + $0x8] sm:$0xf]
      %v900 = vld [vmem:[%s896 + $0xc] sm:$0xf]
      %s901 = scalar_lea.vmem %s537, 2
      %v902 = vld [vmem:[%s901] sm:$0x1]
      %v904 = vlaneseq
      %v905 = vshrl.u32 %v904, 7
      %v906 = vsub.s32 0, %v905
      %v907 = vrot.slane %v902, %v906
      %v913 = vunpack.c.l.b16 %v897
      %v914 = vunpack.c.l.b16 %v898
      %v915 = vunpack.c.l.b16 %v899
      %v916 = vunpack.c.l.b16 %v900
      %v917 = vpack.c.b16 %v914, %v913
      %v918 = vpack.c.b16 %v916, %v915
      %921 = vmatprep.subr.bf16.mxu0 0
      %922 = vmatpush1.bf16.msra.mxu0 0
      %923 = vmatprep.subr.bf16.mxu0 0
      %924 = vmatpush1.bf16.msra.mxu0 0
      %925 = vmatprep.subr.bf16.mxu0 0
      %926 = vmatpush1.bf16.msra.mxu0 0
      %927 = vmatprep.subr.bf16.mxu0 0
      %928 = vmatpush1.bf16.msra.mxu0 0
      %929 = vmatprep.subr.bf16.mxu0 0
      %930 = vmatpush1.bf16.msra.mxu0 0
      %931 = vmatprep.subr.bf16.mxu0 0
      %932 = vmatpush1.bf16.msra.mxu0 0
      %933 = vmatprep.subr.bf16.mxu0 0
      %934 = vmatpush1.bf16.msra.mxu0 %v918
      %935 = vmatprep.subr.bf16.mxu0 0
      %936 = vmatpush1.bf16.msra.mxu0 %v917
      %937 = vmatprep.subr.bf16.mxu0 0
      %938 = vmatpush2.bf16.msra.mxu0 0
      %939 = vmatprep.subr.bf16.mxu0 0
      %940 = vmatpush2.bf16.msra.mxu0 0
      %941 = vmatprep.subr.bf16.mxu0 0
      %942 = vmatpush2.bf16.msra.mxu0 0
      %943 = vmatprep.subr.bf16.mxu0 0
      %944 = vmatpush2.bf16.msra.mxu0 0
      %945 = vmatprep.subr.bf16.mxu0 0
      %946 = vmatpush2.bf16.msra.mxu0 0
      %947 = vmatprep.subr.bf16.mxu0 0
      %948 = vmatpush2.bf16.msra.mxu0 0
      %949 = vmatprep.subr.bf16.mxu0 0
      %950 = vmatpush2.bf16.msra.mxu0 0
      %951 = vmatprep.subr.bf16.mxu0 0
      %952 = vmatpush2.bf16.msra.mxu0 0
      %953 = vmatprep.mubr.bf16.mxu0 0
      %954 = vmatmul.mubr.bf16.gmra.mxu0 %v789
      %v955 = vpop.f32.mrf.mxu0
      %v956 = vadd.f32 %v907, %v955
      %v957 = vpop.f32.mrf.mxu0
      %v958 = vpop.f32.mrf.mxu0
      %v959 = vpop.f32.mrf.mxu0
      %960 = vdwg.mxu0
      %v961 = vpack.c.bf16 %v629, %v629
      %v962 = vpack.c.bf16 %v891, %v891
      %v964 = vsel %vm590, %v961, 0
      %v967 = vsel %vm590, %v962, 0
      %969 = vmatprep.subr.bf16.mxu0 0
      %970 = vmatpush1.bf16.xpose.msra.mxu0 0
      %971 = vmatprep.subr.bf16.mxu0 0
      %972 = vmatpush1.bf16.xpose.msra.mxu0 0
      %973 = vmatprep.subr.bf16.mxu0 0
      %974 = vmatpush1.bf16.xpose.msra.mxu0 0
      %975 = vmatprep.subr.bf16.mxu0 0
      %976 = vmatpush1.bf16.xpose.msra.mxu0 0
      %977 = vmatprep.subr.bf16.mxu0 0
      %978 = vmatpush1.bf16.xpose.msra.mxu0 0
      %979 = vmatprep.subr.bf16.mxu0 0
      %980 = vmatpush1.bf16.xpose.msra.mxu0 0
      %981 = vmatprep.subr.bf16.mxu0 0
      %982 = vmatpush1.bf16.xpose.msra.mxu0 0
      %983 = vmatprep.subr.bf16.mxu0 0
      %984 = vmatpush1.bf16.xpose.msra.mxu0 %v967
      %985 = vmatprep.subr.bf16.mxu0 0
      %986 = vmatpush2.bf16.xpose.msra.mxu0 0
      %987 = vmatprep.subr.bf16.mxu0 0
      %988 = vmatpush2.bf16.xpose.msra.mxu0 0
      %989 = vmatprep.subr.bf16.mxu0 0
      %990 = vmatpush2.bf16.xpose.msra.mxu0 0
      %991 = vmatprep.subr.bf16.mxu0 0
      %992 = vmatpush2.bf16.xpose.msra.mxu0 0
      %993 = vmatprep.subr.bf16.mxu0 0
      %994 = vmatpush2.bf16.xpose.msra.mxu0 0
      %995 = vmatprep.subr.bf16.mxu0 0
      %996 = vmatpush2.bf16.xpose.msra.mxu0 0
      %997 = vmatprep.subr.bf16.mxu0 0
      %998 = vmatpush2.bf16.xpose.msra.mxu0 0
      %999 = vmatprep.subr.bf16.mxu0 0
      %1000 = vmatpush2.bf16.xpose.msra.mxu0 0
      %1001 = vmatprep.mubr.bf16.mxu0 0
      %1002 = vmatmul.mubr.bf16.gmra.mxu0 %v964
      %v1003 = vpop.f32.mrf.mxu0
      %v1004 = vadd.f32 %v565, %v1003
      %v1005 = vpop.f32.mrf.mxu0
      %v1006 = vpop.f32.mrf.mxu0
      %v1007 = vpop.f32.mrf.mxu0
      %1008 = vdwg.mxu0
      %vm1009 = vcmask 64512
      %v1010 = vsel %vm1009, %v1004, -inf
      %1011 = vmax.xlane.f32.xlu0 %v1010
      %v1012 = vpop.xlane.xlu0 %1011
      %v1013 = vsub.f32 %v1004, %v1012
      %v1014 = vmul.f32 %v1013, 1.442695
      %v1015 = vpow.pop %v1014
      %v1016 = vsel %vm1009, %v1015, 0.0
      %1017 = vadd.xlane.f32.xlu0 %v1016
      %v1018 = vpop.xlane.xlu0 %1017
      %v1019 = vrcp.pop %v1018
      %v1020 = vmul.f32 %v1015, %v1019
      %v1021 = vpack.c.bf16 %v1020, %v1020
      %v1022 = vpack.c.bf16 %v956, %v956
      %v1024 = vsel %vm1009, %v1021, 0
      %vm1026 = vcmask 1043456
      %v1028 = vsel %vm1026, %v1022, 0
      %1030 = vmatprep.subr.bf16.mxu0 0
      %1031 = vmatpush1.bf16.msra.mxu0 0
      %1032 = vmatprep.subr.bf16.mxu0 0
      %1033 = vmatpush1.bf16.msra.mxu0 0
      %1034 = vmatprep.subr.bf16.mxu0 0
      %1035 = vmatpush1.bf16.msra.mxu0 0
      %1036 = vmatprep.subr.bf16.mxu0 0
      %1037 = vmatpush1.bf16.msra.mxu0 0
      %1038 = vmatprep.subr.bf16.mxu0 0
      %1039 = vmatpush1.bf16.msra.mxu0 0
      %1040 = vmatprep.subr.bf16.mxu0 0
      %1041 = vmatpush1.bf16.msra.mxu0 0
      %1042 = vmatprep.subr.bf16.mxu0 0
      %1043 = vmatpush1.bf16.msra.mxu0 0
      %1044 = vmatprep.subr.bf16.mxu0 0
      %1045 = vmatpush1.bf16.msra.mxu0 %v1028
      %1046 = vmatprep.subr.bf16.mxu0 0
      %1047 = vmatpush2.bf16.msra.mxu0 0
      %1048 = vmatprep.subr.bf16.mxu0 0
      %1049 = vmatpush2.bf16.msra.mxu0 0
      %1050 = vmatprep.subr.bf16.mxu0 0
      %1051 = vmatpush2.bf16.msra.mxu0 0
      %1052 = vmatprep.subr.bf16.mxu0 0
      %1053 = vmatpush2.bf16.msra.mxu0 0
      %1054 = vmatprep.subr.bf16.mxu0 0
      %1055 = vmatpush2.bf16.msra.mxu0 0
      %1056 = vmatprep.subr.bf16.mxu0 0
      %1057 = vmatpush2.bf16.msra.mxu0 0
      %1058 = vmatprep.subr.bf16.mxu0 0
      %1059 = vmatpush2.bf16.msra.mxu0 0
      %1060 = vmatprep.subr.bf16.mxu0 0
      %1061 = vmatpush2.bf16.msra.mxu0 0
      %1062 = vmatprep.mubr.bf16.mxu0 0
      %1063 = vmatmul.mubr.bf16.gmra.mxu0 %v1024
      %v1064 = vpop.f32.mrf.mxu0
      %v1065 = vadd.f32 0.0, %v1064
      %v1066 = vpop.f32.mrf.mxu0
      %v1067 = vpop.f32.mrf.mxu0
      %v1068 = vpop.f32.mrf.mxu0
      %1069 = vdwg.mxu0
      %v1070 = vpack.c.bf16 %v826, %v826
      %v1071 = vpack.c.bf16 %v694, %v694
      %v1073 = vsel %vm590, %v1070, 0
      %v1076 = vsel %vm590, %v1071, 0
      %1078 = vmatprep.subr.bf16.mxu0 0
      %1079 = vmatpush1.bf16.xpose.msra.mxu0 0
      %1080 = vmatprep.subr.bf16.mxu0 0
      %1081 = vmatpush1.bf16.xpose.msra.mxu0 0
      %1082 = vmatprep.subr.bf16.mxu0 0
      %1083 = vmatpush1.bf16.xpose.msra.mxu0 0
      %1084 = vmatprep.subr.bf16.mxu0 0
      %1085 = vmatpush1.bf16.xpose.msra.mxu0 0
      %1086 = vmatprep.subr.bf16.mxu0 0
      %1087 = vmatpush1.bf16.xpose.msra.mxu0 0
      %1088 = vmatprep.subr.bf16.mxu0 0
      %1089 = vmatpush1.bf16.xpose.msra.mxu0 0
      %1090 = vmatprep.subr.bf16.mxu0 0
      %1091 = vmatpush1.bf16.xpose.msra.mxu0 0
      %1092 = vmatprep.subr.bf16.mxu0 0
      %1093 = vmatpush1.bf16.xpose.msra.mxu0 %v1076
      %1094 = vmatprep.subr.bf16.mxu0 0
      %1095 = vmatpush2.bf16.xpose.msra.mxu0 0
      %1096 = vmatprep.subr.bf16.mxu0 0
      %1097 = vmatpush2.bf16.xpose.msra.mxu0 0
      %1098 = vmatprep.subr.bf16.mxu0 0
      %1099 = vmatpush2.bf16.xpose.msra.mxu0 0
      %1100 = vmatprep.subr.bf16.mxu0 0
      %1101 = vmatpush2.bf16.xpose.msra.mxu0 0
      %1102 = vmatprep.subr.bf16.mxu0 0
      %1103 = vmatpush2.bf16.xpose.msra.mxu0 0
      %1104 = vmatprep.subr.bf16.mxu0 0
      %1105 = vmatpush2.bf16.xpose.msra.mxu0 0
      %1106 = vmatprep.subr.bf16.mxu0 0
      %1107 = vmatpush2.bf16.xpose.msra.mxu0 0
      %1108 = vmatprep.subr.bf16.mxu0 0
      %1109 = vmatpush2.bf16.xpose.msra.mxu0 0
      %1110 = vmatprep.mubr.bf16.mxu0 0
      %1111 = vmatmul.mubr.bf16.gmra.mxu0 %v1073
      %v1112 = vpop.f32.mrf.mxu0
      %v1113 = vadd.f32 %v565, %v1112
      %v1114 = vpop.f32.mrf.mxu0
      %v1115 = vpop.f32.mrf.mxu0
      %v1116 = vpop.f32.mrf.mxu0
      %1117 = vdwg.mxu0
      %v1118 = vsel %vm1009, %v1113, -inf
      %1119 = vmax.xlane.f32.xlu0 %v1118
      %v1120 = vpop.xlane.xlu0 %1119
      %v1121 = vsub.f32 %v1113, %v1120
      %v1122 = vmul.f32 %v1121, 1.442695
      %v1123 = vpow.pop %v1122
      %v1124 = vsel %vm1009, %v1123, 0.0
      %1125 = vadd.xlane.f32.xlu0 %v1124
      %v1126 = vpop.xlane.xlu0 %1125
      %v1127 = vrcp.pop %v1126
      %v1128 = vmul.f32 %v1123, %v1127
      %v1129 = vpack.c.bf16 %v1128, %v1128
      %v1130 = vpack.c.bf16 %v759, %v759
      %v1132 = vsel %vm1009, %v1129, 0
      %v1135 = vsel %vm1026, %v1130, 0
      %1137 = vmatprep.subr.bf16.mxu0 0
      %1138 = vmatpush1.bf16.msra.mxu0 0
      %1139 = vmatprep.subr.bf16.mxu0 0
      %1140 = vmatpush1.bf16.msra.mxu0 0
      %1141 = vmatprep.subr.bf16.mxu0 0
      %1142 = vmatpush1.bf16.msra.mxu0 0
      %1143 = vmatprep.subr.bf16.mxu0 0
      %1144 = vmatpush1.bf16.msra.mxu0 0
      %1145 = vmatprep.subr.bf16.mxu0 0
      %1146 = vmatpush1.bf16.msra.mxu0 0
      %1147 = vmatprep.subr.bf16.mxu0 0
      %1148 = vmatpush1.bf16.msra.mxu0 0
      %1149 = vmatprep.subr.bf16.mxu0 0
      %1150 = vmatpush1.bf16.msra.mxu0 0
      %1151 = vmatprep.subr.bf16.mxu0 0
      %1152 = vmatpush1.bf16.msra.mxu0 %v1135
      %1153 = vmatprep.subr.bf16.mxu0 0
      %1154 = vmatpush2.bf16.msra.mxu0 0
      %1155 = vmatprep.subr.bf16.mxu0 0
      %1156 = vmatpush2.bf16.msra.mxu0 0
      %1157 = vmatprep.subr.bf16.mxu0 0
      %1158 = vmatpush2.bf16.msra.mxu0 0
      %1159 = vmatprep.subr.bf16.mxu0 0
      %1160 = vmatpush2.bf16.msra.mxu0 0
      %1161 = vmatprep.subr.bf16.mxu0 0
      %1162 = vmatpush2.bf16.msra.mxu0 0
      %1163 = vmatprep.subr.bf16.mxu0 0
      %1164 = vmatpush2.bf16.msra.mxu0 0
      %1165 = vmatprep.subr.bf16.mxu0 0
      %1166 = vmatpush2.bf16.msra.mxu0 0
      %1167 = vmatprep.subr.bf16.mxu0 0
      %1168 = vmatpush2.bf16.msra.mxu0 0
      %1169 = vmatprep.mubr.bf16.mxu0 0
      %1170 = vmatmul.mubr.bf16.gmra.mxu0 %v1132
      %v1171 = vpop.f32.mrf.mxu0
      %v1172 = vadd.f32 0.0, %v1171
      %v1173 = vpop.f32.mrf.mxu0
      %v1174 = vpop.f32.mrf.mxu0
      %v1175 = vpop.f32.mrf.mxu0
      %1176 = vdwg.mxu0
      %v1177 = vld [vmem:[%s542] sm:$0xf]
      %v1178 = vld [vmem:[%s542 + $0x4] sm:$0xf]
      %v1179 = vld [vmem:[%s542 + $0x8] sm:$0xf]
      %v1180 = vld [vmem:[%s542 + $0xc] sm:$0xf]
      %v1181 = vpack.c.bf16 %v1065, %v1065
      %v1182 = vld [vmem:[%s545] sm:$0x1]
      %v1184 = vlaneseq
      %v1185 = vshrl.u32 %v1184, 7
      %v1186 = vsub.s32 0, %v1185
      %v1187 = vrot.slane %v1182, %v1186
      %v1193 = vunpack.c.l.b16 %v1177
      %v1194 = vunpack.c.l.b16 %v1178
      %v1195 = vunpack.c.l.b16 %v1179
      %v1196 = vunpack.c.l.b16 %v1180
      %v1197 = vpack.c.b16 %v1194, %v1193
      %v1198 = vpack.c.b16 %v1196, %v1195
      %v1202 = vsel %vm590, %v1181, 0
      %1204 = vmatprep.subr.bf16.mxu0 0
      %1205 = vmatpush1.bf16.msra.mxu0 0
      %1206 = vmatprep.subr.bf16.mxu0 0
      %1207 = vmatpush1.bf16.msra.mxu0 0
      %1208 = vmatprep.subr.bf16.mxu0 0
      %1209 = vmatpush1.bf16.msra.mxu0 0
      %1210 = vmatprep.subr.bf16.mxu0 0
      %1211 = vmatpush1.bf16.msra.mxu0 0
      %1212 = vmatprep.subr.bf16.mxu0 0
      %1213 = vmatpush1.bf16.msra.mxu0 0
      %1214 = vmatprep.subr.bf16.mxu0 0
      %1215 = vmatpush1.bf16.msra.mxu0 0
      %1216 = vmatprep.subr.bf16.mxu0 0
      %1217 = vmatpush1.bf16.msra.mxu0 %v1198
      %1218 = vmatprep.subr.bf16.mxu0 0
      %1219 = vmatpush1.bf16.msra.mxu0 %v1197
      %1220 = vmatprep.subr.bf16.mxu0 0
      %1221 = vmatpush2.bf16.msra.mxu0 0
      %1222 = vmatprep.subr.bf16.mxu0 0
      %1223 = vmatpush2.bf16.msra.mxu0 0
      %1224 = vmatprep.subr.bf16.mxu0 0
      %1225 = vmatpush2.bf16.msra.mxu0 0
      %1226 = vmatprep.subr.bf16.mxu0 0
      %1227 = vmatpush2.bf16.msra.mxu0 0
      %1228 = vmatprep.subr.bf16.mxu0 0
      %1229 = vmatpush2.bf16.msra.mxu0 0
      %1230 = vmatprep.subr.bf16.mxu0 0
      %1231 = vmatpush2.bf16.msra.mxu0 0
      %1232 = vmatprep.subr.bf16.mxu0 0
      %1233 = vmatpush2.bf16.msra.mxu0 0
      %1234 = vmatprep.subr.bf16.mxu0 0
      %1235 = vmatpush2.bf16.msra.mxu0 0
      %1236 = vmatprep.mubr.bf16.mxu0 0
      %1237 = vmatmul.mubr.bf16.gmra.mxu0 %v1202
      %v1238 = vpop.f32.mrf.mxu0
      %v1239 = vadd.f32 %v1187, %v1238
      %v1240 = vpop.f32.mrf.mxu0
      %v1241 = vpop.f32.mrf.mxu0
      %v1242 = vpop.f32.mrf.mxu0
      %1243 = vdwg.mxu0
      %1244 = vst.msk [vmem:[%s557] sm:$0xff] %vm590, %v1239
      %v1245 = vld [vmem:[%s550] sm:$0xf]
      %v1246 = vld [vmem:[%s550 + $0x4] sm:$0xf]
      %v1247 = vld [vmem:[%s550 + $0x8] sm:$0xf]
      %v1248 = vld [vmem:[%s550 + $0xc] sm:$0xf]
      %v1249 = vpack.c.bf16 %v1172, %v1172
      %v1250 = vld [vmem:[%s553] sm:$0x1]
      %v1252 = vlaneseq
      %v1253 = vshrl.u32 %v1252, 7
      %v1254 = vsub.s32 0, %v1253
      %v1255 = vrot.slane %v1250, %v1254
      %v1261 = vunpack.c.l.b16 %v1245
      %v1262 = vunpack.c.l.b16 %v1246
      %v1263 = vunpack.c.l.b16 %v1247
      %v1264 = vunpack.c.l.b16 %v1248
      %v1265 = vpack.c.b16 %v1262, %v1261
      %v1266 = vpack.c.b16 %v1264, %v1263
      %v1270 = vsel %vm590, %v1249, 0
      %1272 = vmatprep.subr.bf16.mxu0 0
      %1273 = vmatpush1.bf16.msra.mxu0 0
      %1274 = vmatprep.subr.bf16.mxu0 0
      %1275 = vmatpush1.bf16.msra.mxu0 0
      %1276 = vmatprep.subr.bf16.mxu0 0
      %1277 = vmatpush1.bf16.msra.mxu0 0
      %1278 = vmatprep.subr.bf16.mxu0 0
      %1279 = vmatpush1.bf16.msra.mxu0 0
      %1280 = vmatprep.subr.bf16.mxu0 0
      %1281 = vmatpush1.bf16.msra.mxu0 0
      %1282 = vmatprep.subr.bf16.mxu0 0
      %1283 = vmatpush1.bf16.msra.mxu0 0
      %1284 = vmatprep.subr.bf16.mxu0 0
      %1285 = vmatpush1.bf16.msra.mxu0 %v1266
      %1286 = vmatprep.subr.bf16.mxu0 0
      %1287 = vmatpush1.bf16.msra.mxu0 %v1265
      %1288 = vmatprep.subr.bf16.mxu0 0
      %1289 = vmatpush2.bf16.msra.mxu0 0
      %1290 = vmatprep.subr.bf16.mxu0 0
      %1291 = vmatpush2.bf16.msra.mxu0 0
      %1292 = vmatprep.subr.bf16.mxu0 0
      %1293 = vmatpush2.bf16.msra.mxu0 0
      %1294 = vmatprep.subr.bf16.mxu0 0
      %1295 = vmatpush2.bf16.msra.mxu0 0
      %1296 = vmatprep.subr.bf16.mxu0 0
      %1297 = vmatpush2.bf16.msra.mxu0 0
      %1298 = vmatprep.subr.bf16.mxu0 0
      %1299 = vmatpush2.bf16.msra.mxu0 0
      %1300 = vmatprep.subr.bf16.mxu0 0
      %1301 = vmatpush2.bf16.msra.mxu0 0
      %1302 = vmatprep.subr.bf16.mxu0 0
      %1303 = vmatpush2.bf16.msra.mxu0 0
      %1304 = vmatprep.mubr.bf16.mxu0 0
      %1305 = vmatmul.mubr.bf16.gmra.mxu0 %v1270
      %v1306 = vpop.f32.mrf.mxu0
      %v1307 = vadd.f32 %v1255, %v1306
      %v1308 = vpop.f32.mrf.mxu0
      %v1309 = vpop.f32.mrf.mxu0
      %v1310 = vpop.f32.mrf.mxu0
      %1311 = vdwg.mxu0
      %1312 = vst.msk [vmem:[%s561] sm:$0xff] %vm590, %v1307
      %p1313 = scmp.lt.s32.totalorder %s24, 1
      %s1314 = scalar_select %p1313, %s24, 1
      %s1315 = smul.addr %s1314, 8
      %s1316 = scalar_lea.vmem %s11, %s1315
      %p1317 = scmp.lt.s32.totalorder %s24, 1
      %s1318 = scalar_select %p1317, %s24, 1
      %s1319 = smul.addr %s1318, 8
      %s1320 = scalar_lea.vmem %s12, %s1319
      // Predicated region
      $region65: #{fwd.8} parent=63 // pred_check
        %p1321 = pneg %p318
      $region66: #{fwd.8} parent=63 // pred_check_branch
        %1323 = sbr.rel (%p1321) target = $region68
      $region67: #{fwd.8} parent=63 // pred_region
        _
      $region68: #{fwd.8} parent=63 // pred_fallthru
        _
      // Predicated region
      $region69: #{fwd.8} parent=63 // pred_check
        %p1324 = pneg %p344
      $region70: #{fwd.8} parent=63 // pred_check_branch
        %1326 = sbr.rel (%p1324) target = $region72
      $region71: #{fwd.8} parent=63 // pred_region
        _
      $region72: #{fwd.8} parent=63 // pred_fallthru
        _
    $region64: #{fwd.8} parent=5 // pred_fallthru
      _
    %p1327 = scmp.le.s32.totalorder 2, %s19
    // Predicated region
    $region73: #{fwd.8} parent=5 // pred_check
      %p1328 = pneg %p1327
    $region74: #{fwd.8} parent=5 // pred_check_branch
      %1330 = sbr.rel (%p1328) target = $region76
    $region75: #{fwd.8} parent=5 // pred_region
      %s1331 = ssub.s32 %s19, 2
      // Predicated region
      $region77: #{fwd.8} parent=75 // pred_check
        %p1332 = pneg %p324
      $region78: #{fwd.8} parent=75 // pred_check_branch
        %1334 = sbr.rel (%p1332) target = $region80
      $region79: #{fwd.8} parent=75 // pred_region
        %p1335 = scmp.lt.s32.totalorder %s25, 1
        %s1336 = scalar_select %p1335, %s25, 1
        %s1337 = smul.addr %s1336, 8
        %s1338 = scalar_lea.vmem %s11, %s1337
      $region80: #{fwd.8} parent=75 // pred_fallthru
        _
      // Predicated region
      $region81: #{fwd.8} parent=75 // pred_check
        %p1339 = pneg %p350
      $region82: #{fwd.8} parent=75 // pred_check_branch
        %1341 = sbr.rel (%p1339) target = $region84
      $region83: #{fwd.8} parent=75 // pred_region
        %p1342 = scmp.lt.s32.totalorder %s25, 1
        %s1343 = scalar_select %p1342, %s25, 1
        %s1344 = smul.addr %s1343, 8
        %s1345 = scalar_lea.vmem %s12, %s1344
      $region84: #{fwd.8} parent=75 // pred_fallthru
        _
    $region76: #{fwd.8} parent=5 // pred_fallthru
      _
  $region6: #{fwd.8} parent=0 // loop_footer
    %s23 = sadd.s32 1, %s19
  $region7: #{fwd.8} parent=0 // loop_footer_branch
    %18 = sbr.rel target = $region3
  $region8: #{fwd.8} parent=0 // loop_exit
    _

// kernel: fwd.9
$region0: #{fwd.9}
  #allocation0 [shape = 'u32[]', space=smem, size = 0x4, offset = 0x4, fixed_abs, tag = 'smem constant byte address 0x4 - core index']
  #allocation1 [shape = 'u32[144,128]{1,0:T(1,128)}', space=vmem, size = 0x12000, scoped, tag = 'internal scratch']
  #allocation2 [shape = 'f32[1,1]{1,0:T(1,128)S(1)}', space=vmem, size = 0x200, scoped, tag = 'scoped memory for fwd.9']
  #allocation3 [shape = 'f32[1,1]{1,0:T(1,128)S(1)}', space=vmem, size = 0x200, scoped, tag = 'scoped memory for fwd.9']
  %s0 = inlined_call_operand.smem [shape: u32[34], index: -1, kind: input, shape index: {}]
  %s1 = sld [smem:[%s0]]
  %s2 = scalar_lea.smem %s0, 1
  %s3 = sld [smem:[%s2]]
  %s4 = scalar_lea.smem %s0, 2
  %s5 = sld [smem:[%s4]]
  %s6 = scalar_lea.smem %s0, 3
  %s7 = sld [smem:[%s6]]
  %s8 = scalar_lea.smem %s0, 4
  %s9 = sld [smem:[%s8]]
  %s10 = scalar_lea.smem %s0, 5
  %s11 = sld [smem:[%s10]]
  %s12 = scalar_lea.smem %s0, 6
  %s13 = sld [smem:[%s12]]
  %s14 = scalar_lea.smem %s0, 7
  %s15 = sld [smem:[%s14]]
  %s16 = scalar_lea.smem %s0, 8
  %s17 = sld [smem:[%s16]]
  %s18 = scalar_lea.smem %s0, 9
  %s19 = sld [smem:[%s18]]
  %s20 = scalar_lea.smem %s0, 10
  %s21 = sld [smem:[%s20]]
  %s22 = scalar_lea.smem %s0, 11
  %s23 = sld [smem:[%s22]]
  %s24 = scalar_lea.smem %s0, 12
  %s25 = sld [smem:[%s24]]
  %s26 = scalar_lea.smem %s0, 13
  %s27 = sld [smem:[%s26]]
  %s28 = scalar_lea.smem %s0, 14
  %s29 = sld [smem:[%s28]]
  %s30 = scalar_lea.smem %s0, 15
  %s31 = sld [smem:[%s30]]
  %s32 = scalar_lea.smem %s0, 16
  %s33 = sld [smem:[%s32]]
  %s34 = scalar_lea.smem %s0, 17
  %s35 = sld [smem:[%s34]]
  %s36 = scalar_lea.smem %s0, 18
  %s37 = sld [smem:[%s36]]
  %s38 = scalar_lea.smem %s0, 19
  %s39 = sld [smem:[%s38]]
  %s40 = scalar_lea.smem %s0, 20
  %s41 = sld [smem:[%s40]]
  %s42 = scalar_lea.smem %s0, 21
  %s43 = sld [smem:[%s42]]
  %s44 = scalar_lea.smem %s0, 22
  %s45 = sld [smem:[%s44]]
  %s46 = scalar_lea.smem %s0, 23
  %s47 = sld [smem:[%s46]]
  %s48 = scalar_lea.smem %s0, 24
  %s49 = sld [smem:[%s48]]
  %s50 = scalar_lea.smem %s0, 25
  %s51 = sld [smem:[%s50]]
  %s52 = scalar_lea.smem %s0, 26
  %s53 = sld [smem:[%s52]]
  %s54 = scalar_lea.smem %s0, 27
  %s55 = sld [smem:[%s54]]
  %s56 = scalar_lea.smem %s0, 28
  %s57 = sld [smem:[%s56]]
  %s58 = scalar_lea.smem %s0, 29
  %s59 = sld [smem:[%s58]]
  %s60 = scalar_lea.smem %s0, 30
  %s61 = sld [smem:[%s60]]
  %s62 = scalar_lea.smem %s0, 31
  %s63 = sld [smem:[%s62]]
  %s64 = scalar_lea.smem %s0, 32
  %s65 = sld [smem:[%s64]]
  %s66 = scalar_lea.smem %s0, 33
  %s67 = sld [smem:[%s66]]
  %68 = xla_tuple %s65, %s67
  %s69 = sld [smem:[#allocation0]]
  $region146: #{fwd.9} parent=0
    _
  %s71 = ssub.s32 1, %s69
  %s72 = scalar_select 0, %s71, %s69
  %v73 = vstv %s27
  %74 = vst [vmem:[#allocation2] sm:$0x1] %v73
  %v75 = vstv %s55
  %76 = vst [vmem:[#allocation3] sm:$0x1] %v75
  // Predicated region
  $region2: #{fwd.9} parent=0 // pred_check
    _
  $region3: #{fwd.9} parent=0 // pred_check_branch
    %78 = sbr.rel (0) target = $region5
  $region4: #{fwd.9} parent=0 // pred_region
    _
  $region5: #{fwd.9} parent=0 // pred_fallthru
    _
  // Predicated region
  $region6: #{fwd.9} parent=0 // pred_check
    _
  $region7: #{fwd.9} parent=0 // pred_check_branch
    %80 = sbr.rel (0) target = $region9
  $region8: #{fwd.9} parent=0 // pred_region
    _
  $region9: #{fwd.9} parent=0 // pred_fallthru
    _
  // Predicated region
  $region10: #{fwd.9} parent=0 // pred_check
    _
  $region11: #{fwd.9} parent=0 // pred_check_branch
    %82 = sbr.rel (0) target = $region13
  $region12: #{fwd.9} parent=0 // pred_region
    _
  $region13: #{fwd.9} parent=0 // pred_fallthru
    _
  // Predicated region
  $region14: #{fwd.9} parent=0 // pred_check
    _
  $region15: #{fwd.9} parent=0 // pred_check_branch
    %84 = sbr.rel (0) target = $region17
  $region16: #{fwd.9} parent=0 // pred_region
    _
  $region17: #{fwd.9} parent=0 // pred_fallthru
    _
  // Predicated region
  $region18: #{fwd.9} parent=0 // pred_check
    _
  $region19: #{fwd.9} parent=0 // pred_check_branch
    %86 = sbr.rel (0) target = $region21
  $region20: #{fwd.9} parent=0 // pred_region
    _
  $region21: #{fwd.9} parent=0 // pred_fallthru
    _
  // Predicated region
  $region22: #{fwd.9} parent=0 // pred_check
    _
  $region23: #{fwd.9} parent=0 // pred_check_branch
    %88 = sbr.rel (0) target = $region25
  $region24: #{fwd.9} parent=0 // pred_region
    _
  $region25: #{fwd.9} parent=0 // pred_fallthru
    _
  // Predicated region
  $region26: #{fwd.9} parent=0 // pred_check
    _
  $region27: #{fwd.9} parent=0 // pred_check_branch
    %90 = sbr.rel (0) target = $region29
  $region28: #{fwd.9} parent=0 // pred_region
    _
  $region29: #{fwd.9} parent=0 // pred_fallthru
    _
  // Predicated region
  $region30: #{fwd.9} parent=0 // pred_check
    _
  $region31: #{fwd.9} parent=0 // pred_check_branch
    %92 = sbr.rel (0) target = $region33
  $region32: #{fwd.9} parent=0 // pred_region
    _
  $region33: #{fwd.9} parent=0 // pred_fallthru
    _
  // Predicated region
  $region34: #{fwd.9} parent=0 // pred_check
    _
  $region35: #{fwd.9} parent=0 // pred_check_branch
    %94 = sbr.rel (0) target = $region37
  $region36: #{fwd.9} parent=0 // pred_region
    _
  $region37: #{fwd.9} parent=0 // pred_fallthru
    _
  // Predicated region
  $region38: #{fwd.9} parent=0 // pred_check
    _
  $region39: #{fwd.9} parent=0 // pred_check_branch
    %96 = sbr.rel (0) target = $region41
  $region40: #{fwd.9} parent=0 // pred_region
    _
  $region41: #{fwd.9} parent=0 // pred_fallthru
    _
  // Predicated region
  $region42: #{fwd.9} parent=0 // pred_check
    _
  $region43: #{fwd.9} parent=0 // pred_check_branch
    %98 = sbr.rel (0) target = $region45
  $region44: #{fwd.9} parent=0 // pred_region
    _
  $region45: #{fwd.9} parent=0 // pred_fallthru
    _
  // Predicated region
  $region46: #{fwd.9} parent=0 // pred_check
    _
  $region47: #{fwd.9} parent=0 // pred_check_branch
    %100 = sbr.rel (0) target = $region49
  $region48: #{fwd.9} parent=0 // pred_region
    _
  $region49: #{fwd.9} parent=0 // pred_fallthru
    _
  // Predicated region
  $region50: #{fwd.9} parent=0 // pred_check
    _
  $region51: #{fwd.9} parent=0 // pred_check_branch
    %102 = sbr.rel (0) target = $region53
  $region52: #{fwd.9} parent=0 // pred_region
    _
  $region53: #{fwd.9} parent=0 // pred_fallthru
    _
  // Predicated region
  $region54: #{fwd.9} parent=0 // pred_check
    _
  $region55: #{fwd.9} parent=0 // pred_check_branch
    %104 = sbr.rel (0) target = $region57
  $region56: #{fwd.9} parent=0 // pred_region
    _
  $region57: #{fwd.9} parent=0 // pred_fallthru
    _
  // Predicated region
  $region58: #{fwd.9} parent=0 // pred_check
    _
  $region59: #{fwd.9} parent=0 // pred_check_branch
    %106 = sbr.rel (0) target = $region61
  $region60: #{fwd.9} parent=0 // pred_region
    _
  $region61: #{fwd.9} parent=0 // pred_fallthru
    _
  // Predicated region
  $region62: #{fwd.9} parent=0 // pred_check
    _
  $region63: #{fwd.9} parent=0 // pred_check_branch
    %108 = sbr.rel (0) target = $region65
  $region64: #{fwd.9} parent=0 // pred_region
    _
  $region65: #{fwd.9} parent=0 // pred_fallthru
    _
  // Predicated region
  $region66: #{fwd.9} parent=0 // pred_check
    _
  $region67: #{fwd.9} parent=0 // pred_check_branch
    %110 = sbr.rel (0) target = $region69
  $region68: #{fwd.9} parent=0 // pred_region
    _
  $region69: #{fwd.9} parent=0 // pred_fallthru
    _
  // Predicated region
  $region70: #{fwd.9} parent=0 // pred_check
    _
  $region71: #{fwd.9} parent=0 // pred_check_branch
    %112 = sbr.rel (0) target = $region73
  $region72: #{fwd.9} parent=0 // pred_region
    _
  $region73: #{fwd.9} parent=0 // pred_fallthru
    _
  // Predicated region
  $region74: #{fwd.9} parent=0 // pred_check
    _
  $region75: #{fwd.9} parent=0 // pred_check_branch
    %114 = sbr.rel (0) target = $region77
  $region76: #{fwd.9} parent=0 // pred_region
    _
  $region77: #{fwd.9} parent=0 // pred_fallthru
    _
  // Predicated region
  $region78: #{fwd.9} parent=0 // pred_check
    _
  $region79: #{fwd.9} parent=0 // pred_check_branch
    %116 = sbr.rel (0) target = $region81
  $region80: #{fwd.9} parent=0 // pred_region
    _
  $region81: #{fwd.9} parent=0 // pred_fallthru
    _
  // Predicated region
  $region82: #{fwd.9} parent=0 // pred_check
    _
  $region83: #{fwd.9} parent=0 // pred_check_branch
    %118 = sbr.rel (0) target = $region85
  $region84: #{fwd.9} parent=0 // pred_region
    _
  $region85: #{fwd.9} parent=0 // pred_fallthru
    _
  // Predicated region
  $region86: #{fwd.9} parent=0 // pred_check
    _
  $region87: #{fwd.9} parent=0 // pred_check_branch
    %120 = sbr.rel (0) target = $region89
  $region88: #{fwd.9} parent=0 // pred_region
    _
  $region89: #{fwd.9} parent=0 // pred_fallthru
    _
  // Predicated region
  $region90: #{fwd.9} parent=0 // pred_check
    _
  $region91: #{fwd.9} parent=0 // pred_check_branch
    %122 = sbr.rel (0) target = $region93
  $region92: #{fwd.9} parent=0 // pred_region
    _
  $region93: #{fwd.9} parent=0 // pred_fallthru
    _
  // Predicated region
  $region94: #{fwd.9} parent=0 // pred_check
    _
  $region95: #{fwd.9} parent=0 // pred_check_branch
    %124 = sbr.rel (0) target = $region97
  $region96: #{fwd.9} parent=0 // pred_region
    _
  $region97: #{fwd.9} parent=0 // pred_fallthru
    _
  // Predicated region
  $region98: #{fwd.9} parent=0 // pred_check
    _
  $region99: #{fwd.9} parent=0 // pred_check_branch
    %126 = sbr.rel (0) target = $region101
  $region100: #{fwd.9} parent=0 // pred_region
    _
  $region101: #{fwd.9} parent=0 // pred_fallthru
    _
  // Predicated region
  $region102: #{fwd.9} parent=0 // pred_check
    _
  $region103: #{fwd.9} parent=0 // pred_check_branch
    %128 = sbr.rel (0) target = $region105
  $region104: #{fwd.9} parent=0 // pred_region
    _
  $region105: #{fwd.9} parent=0 // pred_fallthru
    _
  // Predicated region
  $region106: #{fwd.9} parent=0 // pred_check
    _
  $region107: #{fwd.9} parent=0 // pred_check_branch
    %130 = sbr.rel (0) target = $region109
  $region108: #{fwd.9} parent=0 // pred_region
    _
  $region109: #{fwd.9} parent=0 // pred_fallthru
    _
  // Predicated region
  $region110: #{fwd.9} parent=0 // pred_check
    _
  $region111: #{fwd.9} parent=0 // pred_check_branch
    %132 = sbr.rel (0) target = $region113
  $region112: #{fwd.9} parent=0 // pred_region
    _
  $region113: #{fwd.9} parent=0 // pred_fallthru
    _
  // Predicated region
  $region114: #{fwd.9} parent=0 // pred_check
    _
  $region115: #{fwd.9} parent=0 // pred_check_branch
    %134 = sbr.rel (0) target = $region117
  $region116: #{fwd.9} parent=0 // pred_region
    _
  $region117: #{fwd.9} parent=0 // pred_fallthru
    _
  // Predicated region
  $region118: #{fwd.9} parent=0 // pred_check
    _
  $region119: #{fwd.9} parent=0 // pred_check_branch
    %136 = sbr.rel (0) target = $region121
  $region120: #{fwd.9} parent=0 // pred_region
    _
  $region121: #{fwd.9} parent=0 // pred_fallthru
    _
  // Predicated region
  $region122: #{fwd.9} parent=0 // pred_check
    _
  $region123: #{fwd.9} parent=0 // pred_check_branch
    %138 = sbr.rel (0) target = $region125
  $region124: #{fwd.9} parent=0 // pred_region
    _
  $region125: #{fwd.9} parent=0 // pred_fallthru
    _
  // Predicated region
  $region126: #{fwd.9} parent=0 // pred_check
    _
  $region127: #{fwd.9} parent=0 // pred_check_branch
    %140 = sbr.rel (0) target = $region129
  $region128: #{fwd.9} parent=0 // pred_region
    _
  $region129: #{fwd.9} parent=0 // pred_fallthru
    _
  %v142 = vld [vmem:[%s1] sm:$0xff]
  %v143 = vld [vmem:[%s3] sm:$0xff]
  %v144 = vld [vmem:[%s5] sm:$0xff]
  %v145 = vld [vmem:[%s7] sm:$0xff]
  %v146 = vld [vmem:[%s9] sm:$0xff]
  %v147 = vld [vmem:[%s11] sm:$0xff]
  %v148 = vld [vmem:[%s13] sm:$0xff]
  %v149 = vld [vmem:[%s15] sm:$0x3]
  %151 = vrot.lane.b32.xlu0 %v143, 32
  %v152 = vpop.permute.xlu0 %151
  %155 = vrot.lane.b32.xlu0 %v144, 64
  %v156 = vpop.permute.xlu0 %155
  %vm158 = vcmask 261120
  %v159 = vsel %vm158, %v142, %v152
  %vm160 = vcmask 523264
  %v161 = vsel %vm160, %v159, %v156
  %v162 = vpack.c.bf16 %v149, %v149
  %v163 = vpack.c.bf16 %v161, %v161
  %vm164 = vcmask 64512
  %v166 = vsel %vm164, %v162, 0
  %vm168 = vcmask 1043456
  %v170 = vsel %vm168, %v163, 0
  %172 = vmatprep.subr.bf16.mxu0 0
  %173 = vmatpush1.bf16.msra.mxu0 0
  %174 = vmatprep.subr.bf16.mxu0 0
  %175 = vmatpush1.bf16.msra.mxu0 0
  %176 = vmatprep.subr.bf16.mxu0 0
  %177 = vmatpush1.bf16.msra.mxu0 0
  %178 = vmatprep.subr.bf16.mxu0 0
  %179 = vmatpush1.bf16.msra.mxu0 0
  %180 = vmatprep.subr.bf16.mxu0 0
  %181 = vmatpush1.bf16.msra.mxu0 0
  %182 = vmatprep.subr.bf16.mxu0 0
  %183 = vmatpush1.bf16.msra.mxu0 0
  %184 = vmatprep.subr.bf16.mxu0 0
  %185 = vmatpush1.bf16.msra.mxu0 0
  %186 = vmatprep.subr.bf16.mxu0 0
  %187 = vmatpush1.bf16.msra.mxu0 %v170
  %188 = vmatprep.subr.bf16.mxu0 0
  %189 = vmatpush2.bf16.msra.mxu0 0
  %190 = vmatprep.subr.bf16.mxu0 0
  %191 = vmatpush2.bf16.msra.mxu0 0
  %192 = vmatprep.subr.bf16.mxu0 0
  %193 = vmatpush2.bf16.msra.mxu0 0
  %194 = vmatprep.subr.bf16.mxu0 0
  %195 = vmatpush2.bf16.msra.mxu0 0
  %196 = vmatprep.subr.bf16.mxu0 0
  %197 = vmatpush2.bf16.msra.mxu0 0
  %198 = vmatprep.subr.bf16.mxu0 0
  %199 = vmatpush2.bf16.msra.mxu0 0
  %200 = vmatprep.subr.bf16.mxu0 0
  %201 = vmatpush2.bf16.msra.mxu0 0
  %202 = vmatprep.subr.bf16.mxu0 0
  %203 = vmatpush2.bf16.msra.mxu0 0
  %204 = vmatprep.mubr.bf16.mxu0 0
  %205 = vmatmul.mubr.bf16.gmra.mxu0 %v166
  %v206 = vpop.f32.mrf.mxu0
  %v207 = vadd.f32 0.0, %v206
  %v208 = vpop.f32.mrf.mxu0
  %v209 = vpop.f32.mrf.mxu0
  %v210 = vpop.f32.mrf.mxu0
  %211 = vdwg.mxu0
  %v212 = vld [vmem:[%s17] sm:$0xf]
  %v213 = vld [vmem:[%s17 + $0x4] sm:$0xf]
  %v214 = vld [vmem:[%s17 + $0x8] sm:$0xf]
  %v215 = vld [vmem:[%s17 + $0xc] sm:$0xf]
  %v216 = vld [vmem:[%s17 + $0x10] sm:$0xf]
  %v217 = vld [vmem:[%s17 + $0x14] sm:$0xf]
  %v218 = vld [vmem:[%s17 + $0x18] sm:$0xf]
  %v219 = vld [vmem:[%s17 + $0x1c] sm:$0xf]
  %v220 = vld [vmem:[%s17 + $0x20] sm:$0xf]
  %v221 = vld [vmem:[%s17 + $0x24] sm:$0xf]
  %v222 = vld [vmem:[%s17 + $0x28] sm:$0xf]
  %v223 = vld [vmem:[%s17 + $0x2c] sm:$0xf]
  %v224 = vpack.c.bf16 %v207, %v207
  %v225 = vld [vmem:[%s19] sm:$0x1]
  %v227 = vlaneseq
  %v228 = vshrl.u32 %v227, 7
  %v229 = vsub.s32 0, %v228
  %v230 = vrot.slane %v225, %v229
  %v244 = vunpack.c.l.b16 %v212
  %v245 = vunpack.c.l.b16 %v213
  %v246 = vunpack.c.l.b16 %v214
  %v247 = vunpack.c.l.b16 %v215
  %v248 = vunpack.c.l.b16 %v216
  %v249 = vunpack.c.l.b16 %v217
  %v250 = vunpack.c.l.b16 %v218
  %v251 = vunpack.c.l.b16 %v219
  %v252 = vunpack.c.l.b16 %v220
  %v253 = vunpack.c.l.b16 %v221
  %v254 = vunpack.c.l.b16 %v222
  %v255 = vunpack.c.l.b16 %v223
  %v256 = vpack.c.b16 %v245, %v244
  %v257 = vpack.c.b16 %v247, %v246
  %v258 = vpack.c.b16 %v249, %v248
  %v259 = vpack.c.b16 %v251, %v250
  %v260 = vpack.c.b16 %v253, %v252
  %v261 = vpack.c.b16 %v255, %v254
  %vm268 = vcmask 785408
  %v270 = vsel %vm268, %v224, 0
  %272 = vmatprep.subr.bf16.mxu0 0
  %273 = vmatpush1.bf16.msra.mxu0 0
  %274 = vmatprep.subr.bf16.mxu0 0
  %275 = vmatpush1.bf16.msra.mxu0 0
  %276 = vmatprep.subr.bf16.mxu0 0
  %277 = vmatpush1.bf16.msra.mxu0 %v261
  %278 = vmatprep.subr.bf16.mxu0 0
  %279 = vmatpush1.bf16.msra.mxu0 %v260
  %280 = vmatprep.subr.bf16.mxu0 0
  %281 = vmatpush1.bf16.msra.mxu0 %v259
  %282 = vmatprep.subr.bf16.mxu0 0
  %283 = vmatpush1.bf16.msra.mxu0 %v258
  %284 = vmatprep.subr.bf16.mxu0 0
  %285 = vmatpush1.bf16.msra.mxu0 %v257
  %286 = vmatprep.subr.bf16.mxu0 0
  %287 = vmatpush1.bf16.msra.mxu0 %v256
  %288 = vmatprep.subr.bf16.mxu0 0
  %289 = vmatpush2.bf16.msra.mxu0 0
  %290 = vmatprep.subr.bf16.mxu0 0
  %291 = vmatpush2.bf16.msra.mxu0 0
  %292 = vmatprep.subr.bf16.mxu0 0
  %293 = vmatpush2.bf16.msra.mxu0 0
  %294 = vmatprep.subr.bf16.mxu0 0
  %295 = vmatpush2.bf16.msra.mxu0 0
  %296 = vmatprep.subr.bf16.mxu0 0
  %297 = vmatpush2.bf16.msra.mxu0 0
  %298 = vmatprep.subr.bf16.mxu0 0
  %299 = vmatpush2.bf16.msra.mxu0 0
  %300 = vmatprep.subr.bf16.mxu0 0
  %301 = vmatpush2.bf16.msra.mxu0 0
  %302 = vmatprep.subr.bf16.mxu0 0
  %303 = vmatpush2.bf16.msra.mxu0 0
  %304 = vmatprep.mubr.bf16.mxu0 0
  %305 = vmatmul.mubr.bf16.gmra.mxu0 %v270
  %v306 = vpop.f32.mrf.mxu0
  %v307 = vadd.f32 %v230, %v306
  %v308 = vpop.f32.mrf.mxu0
  %v309 = vpop.f32.mrf.mxu0
  %v310 = vpop.f32.mrf.mxu0
  %311 = vdwg.mxu0
  %v312 = vtanh.pop %v307
  %v313 = vld [vmem:[%s21] sm:$0xf]
  %v314 = vld [vmem:[%s21 + $0x4] sm:$0xf]
  %v315 = vld [vmem:[%s21 + $0x8] sm:$0xf]
  %v316 = vld [vmem:[%s21 + $0xc] sm:$0xf]
  %v317 = vpack.c.bf16 %v312, %v312
  %v318 = vld [vmem:[%s23] sm:$0x1]
  %v320 = vlaneseq
  %v321 = vshrl.u32 %v320, 7
  %v322 = vsub.s32 0, %v321
  %v323 = vrot.slane %v318, %v322
  %v329 = vunpack.c.l.b16 %v313
  %v330 = vunpack.c.l.b16 %v314
  %v331 = vunpack.c.l.b16 %v315
  %v332 = vunpack.c.l.b16 %v316
  %v333 = vpack.c.b16 %v330, %v329
  %v334 = vpack.c.b16 %v332, %v331
  %v338 = vsel %vm158, %v317, 0
  %340 = vmatprep.subr.bf16.mxu0 0
  %341 = vmatpush1.bf16.msra.mxu0 0
  %342 = vmatprep.subr.bf16.mxu0 0
  %343 = vmatpush1.bf16.msra.mxu0 0
  %344 = vmatprep.subr.bf16.mxu0 0
  %345 = vmatpush1.bf16.msra.mxu0 0
  %346 = vmatprep.subr.bf16.mxu0 0
  %347 = vmatpush1.bf16.msra.mxu0 0
  %348 = vmatprep.subr.bf16.mxu0 0
  %349 = vmatpush1.bf16.msra.mxu0 0
  %350 = vmatprep.subr.bf16.mxu0 0
  %351 = vmatpush1.bf16.msra.mxu0 0
  %352 = vmatprep.subr.bf16.mxu0 0
  %353 = vmatpush1.bf16.msra.mxu0 %v334
  %354 = vmatprep.subr.bf16.mxu0 0
  %355 = vmatpush1.bf16.msra.mxu0 %v333
  %356 = vmatprep.subr.bf16.mxu0 0
  %357 = vmatpush2.bf16.msra.mxu0 0
  %358 = vmatprep.subr.bf16.mxu0 0
  %359 = vmatpush2.bf16.msra.mxu0 0
  %360 = vmatprep.subr.bf16.mxu0 0
  %361 = vmatpush2.bf16.msra.mxu0 0
  %362 = vmatprep.subr.bf16.mxu0 0
  %363 = vmatpush2.bf16.msra.mxu0 0
  %364 = vmatprep.subr.bf16.mxu0 0
  %365 = vmatpush2.bf16.msra.mxu0 0
  %366 = vmatprep.subr.bf16.mxu0 0
  %367 = vmatpush2.bf16.msra.mxu0 0
  %368 = vmatprep.subr.bf16.mxu0 0
  %369 = vmatpush2.bf16.msra.mxu0 0
  %370 = vmatprep.subr.bf16.mxu0 0
  %371 = vmatpush2.bf16.msra.mxu0 0
  %372 = vmatprep.mubr.bf16.mxu0 0
  %373 = vmatmul.mubr.bf16.gmra.mxu0 %v338
  %v374 = vpop.f32.mrf.mxu0
  %v375 = vadd.f32 %v323, %v374
  %v376 = vpop.f32.mrf.mxu0
  %v377 = vpop.f32.mrf.mxu0
  %v378 = vpop.f32.mrf.mxu0
  %379 = vdwg.mxu0
  %v380 = vtanh.pop %v375
  %v381 = vld [vmem:[%s25] sm:$0xf]
  %v382 = vld [vmem:[%s25 + $0x4] sm:$0xf]
  %v383 = vld [vmem:[%s25 + $0x8] sm:$0xf]
  %v384 = vld [vmem:[%s25 + $0xc] sm:$0xf]
  %v385 = vpack.c.bf16 %v380, %v380
  %v386 = vld [vmem:[#allocation2] sm:$0x1]
  %v388 = vlaneseq
  %v389 = vshrl.u32 %v388, 7
  %v390 = vsub.s32 0, %v389
  %v391 = vrot.slane %v386, %v390
  %v397 = vunpack.c.l.b16 %v381
  %v398 = vunpack.c.l.b16 %v382
  %v399 = vunpack.c.l.b16 %v383
  %v400 = vunpack.c.l.b16 %v384
  %v401 = vpack.c.b16 %v398, %v397
  %v402 = vpack.c.b16 %v400, %v399
  %v406 = vsel %vm158, %v385, 0
  %408 = vmatprep.subr.bf16.mxu0 0
  %409 = vmatpush1.bf16.msra.mxu0 0
  %410 = vmatprep.subr.bf16.mxu0 0
  %411 = vmatpush1.bf16.msra.mxu0 0
  %412 = vmatprep.subr.bf16.mxu0 0
  %413 = vmatpush1.bf16.msra.mxu0 0
  %414 = vmatprep.subr.bf16.mxu0 0
  %415 = vmatpush1.bf16.msra.mxu0 0
  %416 = vmatprep.subr.bf16.mxu0 0
  %417 = vmatpush1.bf16.msra.mxu0 0
  %418 = vmatprep.subr.bf16.mxu0 0
  %419 = vmatpush1.bf16.msra.mxu0 0
  %420 = vmatprep.subr.bf16.mxu0 0
  %421 = vmatpush1.bf16.msra.mxu0 %v402
  %422 = vmatprep.subr.bf16.mxu0 0
  %423 = vmatpush1.bf16.msra.mxu0 %v401
  %424 = vmatprep.subr.bf16.mxu0 0
  %425 = vmatpush2.bf16.msra.mxu0 0
  %426 = vmatprep.subr.bf16.mxu0 0
  %427 = vmatpush2.bf16.msra.mxu0 0
  %428 = vmatprep.subr.bf16.mxu0 0
  %429 = vmatpush2.bf16.msra.mxu0 0
  %430 = vmatprep.subr.bf16.mxu0 0
  %431 = vmatpush2.bf16.msra.mxu0 0
  %432 = vmatprep.subr.bf16.mxu0 0
  %433 = vmatpush2.bf16.msra.mxu0 0
  %434 = vmatprep.subr.bf16.mxu0 0
  %435 = vmatpush2.bf16.msra.mxu0 0
  %436 = vmatprep.subr.bf16.mxu0 0
  %437 = vmatpush2.bf16.msra.mxu0 0
  %438 = vmatprep.subr.bf16.mxu0 0
  %439 = vmatpush2.bf16.msra.mxu0 0
  %440 = vmatprep.mubr.bf16.mxu0 0
  %441 = vmatmul.mubr.bf16.gmra.mxu0 %v406
  %v442 = vpop.f32.mrf.mxu0
  %v443 = vadd.f32 %v391, %v442
  %v444 = vpop.f32.mrf.mxu0
  %v445 = vpop.f32.mrf.mxu0
  %v446 = vpop.f32.mrf.mxu0
  %447 = vdwg.mxu0
  %449 = vrot.lane.b32.xlu0 %v145, 32
  %v450 = vpop.permute.xlu0 %449
  %v452 = vsel %vm158, %v147, %v450
  %v453 = vld [vmem:[%s29] sm:$0xf]
  %v454 = vld [vmem:[%s29 + $0x4] sm:$0xf]
  %v455 = vld [vmem:[%s29 + $0x8] sm:$0xf]
  %v456 = vld [vmem:[%s29 + $0xc] sm:$0xf]
  %v457 = vld [vmem:[%s29 + $0x10] sm:$0xf]
  %v458 = vld [vmem:[%s29 + $0x14] sm:$0xf]
  %v459 = vld [vmem:[%s29 + $0x18] sm:$0xf]
  %v460 = vld [vmem:[%s29 + $0x1c] sm:$0xf]
  %v461 = vpack.c.bf16 %v452, %v452
  %v462 = vld [vmem:[%s31] sm:$0x1]
  %v464 = vlaneseq
  %v465 = vshrl.u32 %v464, 7
  %v466 = vsub.s32 0, %v465
  %v467 = vrot.slane %v462, %v466
  %v477 = vunpack.c.l.b16 %v453
  %v478 = vunpack.c.l.b16 %v454
  %v479 = vunpack.c.l.b16 %v455
  %v480 = vunpack.c.l.b16 %v456
  %v481 = vunpack.c.l.b16 %v457
  %v482 = vunpack.c.l.b16 %v458
  %v483 = vunpack.c.l.b16 %v459
  %v484 = vunpack.c.l.b16 %v460
  %v485 = vpack.c.b16 %v478, %v477
  %v486 = vpack.c.b16 %v480, %v479
  %v487 = vpack.c.b16 %v482, %v481
  %v488 = vpack.c.b16 %v484, %v483
  %v494 = vsel %vm160, %v461, 0
  %496 = vmatprep.subr.bf16.mxu0 0
  %497 = vmatpush1.bf16.msra.mxu0 0
  %498 = vmatprep.subr.bf16.mxu0 0
  %499 = vmatpush1.bf16.msra.mxu0 0
  %500 = vmatprep.subr.bf16.mxu0 0
  %501 = vmatpush1.bf16.msra.mxu0 0
  %502 = vmatprep.subr.bf16.mxu0 0
  %503 = vmatpush1.bf16.msra.mxu0 0
  %504 = vmatprep.subr.bf16.mxu0 0
  %505 = vmatpush1.bf16.msra.mxu0 %v488
  %506 = vmatprep.subr.bf16.mxu0 0
  %507 = vmatpush1.bf16.msra.mxu0 %v487
  %508 = vmatprep.subr.bf16.mxu0 0
  %509 = vmatpush1.bf16.msra.mxu0 %v486
  %510 = vmatprep.subr.bf16.mxu0 0
  %511 = vmatpush1.bf16.msra.mxu0 %v485
  %512 = vmatprep.subr.bf16.mxu0 0
  %513 = vmatpush2.bf16.msra.mxu0 0
  %514 = vmatprep.subr.bf16.mxu0 0
  %515 = vmatpush2.bf16.msra.mxu0 0
  %516 = vmatprep.subr.bf16.mxu0 0
  %517 = vmatpush2.bf16.msra.mxu0 0
  %518 = vmatprep.subr.bf16.mxu0 0
  %519 = vmatpush2.bf16.msra.mxu0 0
  %520 = vmatprep.subr.bf16.mxu0 0
  %521 = vmatpush2.bf16.msra.mxu0 0
  %522 = vmatprep.subr.bf16.mxu0 0
  %523 = vmatpush2.bf16.msra.mxu0 0
  %524 = vmatprep.subr.bf16.mxu0 0
  %525 = vmatpush2.bf16.msra.mxu0 0
  %526 = vmatprep.subr.bf16.mxu0 0
  %527 = vmatpush2.bf16.msra.mxu0 0
  %528 = vmatprep.mubr.bf16.mxu0 0
  %529 = vmatmul.mubr.bf16.gmra.mxu0 %v494
  %v530 = vpop.f32.mrf.mxu0
  %v531 = vadd.f32 %v467, %v530
  %v532 = vpop.f32.mrf.mxu0
  %v533 = vpop.f32.mrf.mxu0
  %v534 = vpop.f32.mrf.mxu0
  %535 = vdwg.mxu0
  %v536 = vtanh.pop %v531
  %v537 = vld [vmem:[%s33] sm:$0xf]
  %v538 = vld [vmem:[%s33 + $0x4] sm:$0xf]
  %v539 = vld [vmem:[%s33 + $0x8] sm:$0xf]
  %v540 = vld [vmem:[%s33 + $0xc] sm:$0xf]
  %v541 = vpack.c.bf16 %v536, %v536
  %v542 = vld [vmem:[%s35] sm:$0x1]
  %v544 = vlaneseq
  %v545 = vshrl.u32 %v544, 7
  %v546 = vsub.s32 0, %v545
  %v547 = vrot.slane %v542, %v546
  %v553 = vunpack.c.l.b16 %v537
  %v554 = vunpack.c.l.b16 %v538
  %v555 = vunpack.c.l.b16 %v539
  %v556 = vunpack.c.l.b16 %v540
  %v557 = vpack.c.b16 %v554, %v553
  %v558 = vpack.c.b16 %v556, %v555
  %v562 = vsel %vm158, %v541, 0
  %564 = vmatprep.subr.bf16.mxu0 0
  %565 = vmatpush1.bf16.msra.mxu0 0
  %566 = vmatprep.subr.bf16.mxu0 0
  %567 = vmatpush1.bf16.msra.mxu0 0
  %568 = vmatprep.subr.bf16.mxu0 0
  %569 = vmatpush1.bf16.msra.mxu0 0
  %570 = vmatprep.subr.bf16.mxu0 0
  %571 = vmatpush1.bf16.msra.mxu0 0
  %572 = vmatprep.subr.bf16.mxu0 0
  %573 = vmatpush1.bf16.msra.mxu0 0
  %574 = vmatprep.subr.bf16.mxu0 0
  %575 = vmatpush1.bf16.msra.mxu0 0
  %576 = vmatprep.subr.bf16.mxu0 0
  %577 = vmatpush1.bf16.msra.mxu0 %v558
  %578 = vmatprep.subr.bf16.mxu0 0
  %579 = vmatpush1.bf16.msra.mxu0 %v557
  %580 = vmatprep.subr.bf16.mxu0 0
  %581 = vmatpush2.bf16.msra.mxu0 0
  %582 = vmatprep.subr.bf16.mxu0 0
  %583 = vmatpush2.bf16.msra.mxu0 0
  %584 = vmatprep.subr.bf16.mxu0 0
  %585 = vmatpush2.bf16.msra.mxu0 0
  %586 = vmatprep.subr.bf16.mxu0 0
  %587 = vmatpush2.bf16.msra.mxu0 0
  %588 = vmatprep.subr.bf16.mxu0 0
  %589 = vmatpush2.bf16.msra.mxu0 0
  %590 = vmatprep.subr.bf16.mxu0 0
  %591 = vmatpush2.bf16.msra.mxu0 0
  %592 = vmatprep.subr.bf16.mxu0 0
  %593 = vmatpush2.bf16.msra.mxu0 0
  %594 = vmatprep.subr.bf16.mxu0 0
  %595 = vmatpush2.bf16.msra.mxu0 0
  %596 = vmatprep.mubr.bf16.mxu0 0
  %597 = vmatmul.mubr.bf16.gmra.mxu0 %v562
  %v598 = vpop.f32.mrf.mxu0
  %v599 = vadd.f32 %v547, %v598
  %v600 = vpop.f32.mrf.mxu0
  %v601 = vpop.f32.mrf.mxu0
  %v602 = vpop.f32.mrf.mxu0
  %603 = vdwg.mxu0
  %v604 = vtanh.pop %v599
  %v605 = vpack.c.bf16 %v604, %v604
  %v607 = vsel %vm168, %v605, 0
  %609 = vmatprep.subr.bf16.mxu0 0
  %610 = vmatpush1.bf16.msra.mxu0 0
  %611 = vmatprep.subr.bf16.mxu0 0
  %612 = vmatpush1.bf16.msra.mxu0 0
  %613 = vmatprep.subr.bf16.mxu0 0
  %614 = vmatpush1.bf16.msra.mxu0 0
  %615 = vmatprep.subr.bf16.mxu0 0
  %616 = vmatpush1.bf16.msra.mxu0 0
  %617 = vmatprep.subr.bf16.mxu0 0
  %618 = vmatpush1.bf16.msra.mxu0 0
  %619 = vmatprep.subr.bf16.mxu0 0
  %620 = vmatpush1.bf16.msra.mxu0 0
  %621 = vmatprep.subr.bf16.mxu0 0
  %622 = vmatpush1.bf16.msra.mxu0 0
  %623 = vmatprep.subr.bf16.mxu0 0
  %624 = vmatpush1.bf16.msra.mxu0 %v607
  %625 = vmatprep.subr.bf16.mxu0 0
  %626 = vmatpush2.bf16.msra.mxu0 0
  %627 = vmatprep.subr.bf16.mxu0 0
  %628 = vmatpush2.bf16.msra.mxu0 0
  %629 = vmatprep.subr.bf16.mxu0 0
  %630 = vmatpush2.bf16.msra.mxu0 0
  %631 = vmatprep.subr.bf16.mxu0 0
  %632 = vmatpush2.bf16.msra.mxu0 0
  %633 = vmatprep.subr.bf16.mxu0 0
  %634 = vmatpush2.bf16.msra.mxu0 0
  %635 = vmatprep.subr.bf16.mxu0 0
  %636 = vmatpush2.bf16.msra.mxu0 0
  %637 = vmatprep.subr.bf16.mxu0 0
  %638 = vmatpush2.bf16.msra.mxu0 0
  %639 = vmatprep.subr.bf16.mxu0 0
  %640 = vmatpush2.bf16.msra.mxu0 0
  %641 = vmatprep.mubr.bf16.mxu0 0
  %642 = vmatmul.mubr.bf16.gmra.mxu0 %v166
  %v643 = vpop.f32.mrf.mxu0
  %v644 = vadd.f32 0.0, %v643
  %v645 = vpop.f32.mrf.mxu0
  %v646 = vpop.f32.mrf.mxu0
  %v647 = vpop.f32.mrf.mxu0
  %648 = vdwg.mxu0
  %v649 = vpack.c.bf16 %v148, %v148
  %v651 = vsel %vm168, %v649, 0
  %653 = vmatprep.subr.bf16.mxu0 0
  %654 = vmatpush1.bf16.msra.mxu0 0
  %655 = vmatprep.subr.bf16.mxu0 0
  %656 = vmatpush1.bf16.msra.mxu0 0
  %657 = vmatprep.subr.bf16.mxu0 0
  %658 = vmatpush1.bf16.msra.mxu0 0
  %659 = vmatprep.subr.bf16.mxu0 0
  %660 = vmatpush1.bf16.msra.mxu0 0
  %661 = vmatprep.subr.bf16.mxu0 0
  %662 = vmatpush1.bf16.msra.mxu0 0
  %663 = vmatprep.subr.bf16.mxu0 0
  %664 = vmatpush1.bf16.msra.mxu0 0
  %665 = vmatprep.subr.bf16.mxu0 0
  %666 = vmatpush1.bf16.msra.mxu0 0
  %667 = vmatprep.subr.bf16.mxu0 0
  %668 = vmatpush1.bf16.msra.mxu0 %v651
  %669 = vmatprep.subr.bf16.mxu0 0
  %670 = vmatpush2.bf16.msra.mxu0 0
  %671 = vmatprep.subr.bf16.mxu0 0
  %672 = vmatpush2.bf16.msra.mxu0 0
  %673 = vmatprep.subr.bf16.mxu0 0
  %674 = vmatpush2.bf16.msra.mxu0 0
  %675 = vmatprep.subr.bf16.mxu0 0
  %676 = vmatpush2.bf16.msra.mxu0 0
  %677 = vmatprep.subr.bf16.mxu0 0
  %678 = vmatpush2.bf16.msra.mxu0 0
  %679 = vmatprep.subr.bf16.mxu0 0
  %680 = vmatpush2.bf16.msra.mxu0 0
  %681 = vmatprep.subr.bf16.mxu0 0
  %682 = vmatpush2.bf16.msra.mxu0 0
  %683 = vmatprep.subr.bf16.mxu0 0
  %684 = vmatpush2.bf16.msra.mxu0 0
  %685 = vmatprep.mubr.bf16.mxu0 0
  %686 = vmatmul.mubr.bf16.gmra.mxu0 %v166
  %v687 = vpop.f32.mrf.mxu0
  %v688 = vadd.f32 0.0, %v687
  %v689 = vpop.f32.mrf.mxu0
  %v690 = vpop.f32.mrf.mxu0
  %v691 = vpop.f32.mrf.mxu0
  %692 = vdwg.mxu0
  %v693 = vpack.c.bf16 %v146, %v146
  %v695 = vsel %vm168, %v693, 0
  %697 = vmatprep.subr.bf16.mxu0 0
  %698 = vmatpush1.bf16.msra.mxu0 0
  %699 = vmatprep.subr.bf16.mxu0 0
  %700 = vmatpush1.bf16.msra.mxu0 0
  %701 = vmatprep.subr.bf16.mxu0 0
  %702 = vmatpush1.bf16.msra.mxu0 0
  %703 = vmatprep.subr.bf16.mxu0 0
  %704 = vmatpush1.bf16.msra.mxu0 0
  %705 = vmatprep.subr.bf16.mxu0 0
  %706 = vmatpush1.bf16.msra.mxu0 0
  %707 = vmatprep.subr.bf16.mxu0 0
  %708 = vmatpush1.bf16.msra.mxu0 0
  %709 = vmatprep.subr.bf16.mxu0 0
  %710 = vmatpush1.bf16.msra.mxu0 0
  %711 = vmatprep.subr.bf16.mxu0 0
  %712 = vmatpush1.bf16.msra.mxu0 %v695
  %713 = vmatprep.subr.bf16.mxu0 0
  %714 = vmatpush2.bf16.msra.mxu0 0
  %715 = vmatprep.subr.bf16.mxu0 0
  %716 = vmatpush2.bf16.msra.mxu0 0
  %717 = vmatprep.subr.bf16.mxu0 0
  %718 = vmatpush2.bf16.msra.mxu0 0
  %719 = vmatprep.subr.bf16.mxu0 0
  %720 = vmatpush2.bf16.msra.mxu0 0
  %721 = vmatprep.subr.bf16.mxu0 0
  %722 = vmatpush2.bf16.msra.mxu0 0
  %723 = vmatprep.subr.bf16.mxu0 0
  %724 = vmatpush2.bf16.msra.mxu0 0
  %725 = vmatprep.subr.bf16.mxu0 0
  %726 = vmatpush2.bf16.msra.mxu0 0
  %727 = vmatprep.subr.bf16.mxu0 0
  %728 = vmatpush2.bf16.msra.mxu0 0
  %729 = vmatprep.mubr.bf16.mxu0 0
  %730 = vmatmul.mubr.bf16.gmra.mxu0 %v166
  %v731 = vpop.f32.mrf.mxu0
  %v732 = vadd.f32 0.0, %v731
  %v733 = vpop.f32.mrf.mxu0
  %v734 = vpop.f32.mrf.mxu0
  %v735 = vpop.f32.mrf.mxu0
  %736 = vdwg.mxu0
  %v737 = vld [vmem:[%s37] sm:$0xf]
  %v738 = vld [vmem:[%s37 + $0x4] sm:$0xf]
  %v739 = vld [vmem:[%s37 + $0x8] sm:$0xf]
  %v740 = vld [vmem:[%s37 + $0xc] sm:$0xf]
  %v741 = vpack.c.bf16 %v644, %v644
  %v742 = vld [vmem:[%s39] sm:$0x1]
  %v744 = vlaneseq
  %v745 = vshrl.u32 %v744, 7
  %v746 = vsub.s32 0, %v745
  %v747 = vrot.slane %v742, %v746
  %v753 = vunpack.c.l.b16 %v737
  %v754 = vunpack.c.l.b16 %v738
  %v755 = vunpack.c.l.b16 %v739
  %v756 = vunpack.c.l.b16 %v740
  %v757 = vpack.c.b16 %v754, %v753
  %v758 = vpack.c.b16 %v756, %v755
  %v762 = vsel %vm158, %v741, 0
  %764 = vmatprep.subr.bf16.mxu0 0
  %765 = vmatpush1.bf16.msra.mxu0 0
  %766 = vmatprep.subr.bf16.mxu0 0
  %767 = vmatpush1.bf16.msra.mxu0 0
  %768 = vmatprep.subr.bf16.mxu0 0
  %769 = vmatpush1.bf16.msra.mxu0 0
  %770 = vmatprep.subr.bf16.mxu0 0
  %771 = vmatpush1.bf16.msra.mxu0 0
  %772 = vmatprep.subr.bf16.mxu0 0
  %773 = vmatpush1.bf16.msra.mxu0 0
  %774 = vmatprep.subr.bf16.mxu0 0
  %775 = vmatpush1.bf16.msra.mxu0 0
  %776 = vmatprep.subr.bf16.mxu0 0
  %777 = vmatpush1.bf16.msra.mxu0 %v758
  %778 = vmatprep.subr.bf16.mxu0 0
  %779 = vmatpush1.bf16.msra.mxu0 %v757
  %780 = vmatprep.subr.bf16.mxu0 0
  %781 = vmatpush2.bf16.msra.mxu0 0
  %782 = vmatprep.subr.bf16.mxu0 0
  %783 = vmatpush2.bf16.msra.mxu0 0
  %784 = vmatprep.subr.bf16.mxu0 0
  %785 = vmatpush2.bf16.msra.mxu0 0
  %786 = vmatprep.subr.bf16.mxu0 0
  %787 = vmatpush2.bf16.msra.mxu0 0
  %788 = vmatprep.subr.bf16.mxu0 0
  %789 = vmatpush2.bf16.msra.mxu0 0
  %790 = vmatprep.subr.bf16.mxu0 0
  %791 = vmatpush2.bf16.msra.mxu0 0
  %792 = vmatprep.subr.bf16.mxu0 0
  %793 = vmatpush2.bf16.msra.mxu0 0
  %794 = vmatprep.subr.bf16.mxu0 0
  %795 = vmatpush2.bf16.msra.mxu0 0
  %796 = vmatprep.mubr.bf16.mxu0 0
  %797 = vmatmul.mubr.bf16.gmra.mxu0 %v762
  %v798 = vpop.f32.mrf.mxu0
  %v799 = vadd.f32 %v747, %v798
  %v800 = vpop.f32.mrf.mxu0
  %v801 = vpop.f32.mrf.mxu0
  %v802 = vpop.f32.mrf.mxu0
  %803 = vdwg.mxu0
  %v804 = vtanh.pop %v799
  %v805 = vld [vmem:[%s41] sm:$0xf]
  %v806 = vld [vmem:[%s41 + $0x4] sm:$0xf]
  %v807 = vld [vmem:[%s41 + $0x8] sm:$0xf]
  %v808 = vld [vmem:[%s41 + $0xc] sm:$0xf]
  %v809 = vpack.c.bf16 %v804, %v804
  %v810 = vld [vmem:[%s43] sm:$0x1]
  %v812 = vlaneseq
  %v813 = vshrl.u32 %v812, 7
  %v814 = vsub.s32 0, %v813
  %v815 = vrot.slane %v810, %v814
  %v821 = vunpack.c.l.b16 %v805
  %v822 = vunpack.c.l.b16 %v806
  %v823 = vunpack.c.l.b16 %v807
  %v824 = vunpack.c.l.b16 %v808
  %v825 = vpack.c.b16 %v822, %v821
  %v826 = vpack.c.b16 %v824, %v823
  %v830 = vsel %vm158, %v809, 0
  %832 = vmatprep.subr.bf16.mxu0 0
  %833 = vmatpush1.bf16.msra.mxu0 0
  %834 = vmatprep.subr.bf16.mxu0 0
  %835 = vmatpush1.bf16.msra.mxu0 0
  %836 = vmatprep.subr.bf16.mxu0 0
  %837 = vmatpush1.bf16.msra.mxu0 0
  %838 = vmatprep.subr.bf16.mxu0 0
  %839 = vmatpush1.bf16.msra.mxu0 0
  %840 = vmatprep.subr.bf16.mxu0 0
  %841 = vmatpush1.bf16.msra.mxu0 0
  %842 = vmatprep.subr.bf16.mxu0 0
  %843 = vmatpush1.bf16.msra.mxu0 0
  %844 = vmatprep.subr.bf16.mxu0 0
  %845 = vmatpush1.bf16.msra.mxu0 %v826
  %846 = vmatprep.subr.bf16.mxu0 0
  %847 = vmatpush1.bf16.msra.mxu0 %v825
  %848 = vmatprep.subr.bf16.mxu0 0
  %849 = vmatpush2.bf16.msra.mxu0 0
  %850 = vmatprep.subr.bf16.mxu0 0
  %851 = vmatpush2.bf16.msra.mxu0 0
  %852 = vmatprep.subr.bf16.mxu0 0
  %853 = vmatpush2.bf16.msra.mxu0 0
  %854 = vmatprep.subr.bf16.mxu0 0
  %855 = vmatpush2.bf16.msra.mxu0 0
  %856 = vmatprep.subr.bf16.mxu0 0
  %857 = vmatpush2.bf16.msra.mxu0 0
  %858 = vmatprep.subr.bf16.mxu0 0
  %859 = vmatpush2.bf16.msra.mxu0 0
  %860 = vmatprep.subr.bf16.mxu0 0
  %861 = vmatpush2.bf16.msra.mxu0 0
  %862 = vmatprep.subr.bf16.mxu0 0
  %863 = vmatpush2.bf16.msra.mxu0 0
  %864 = vmatprep.mubr.bf16.mxu0 0
  %865 = vmatmul.mubr.bf16.gmra.mxu0 %v830
  %v866 = vpop.f32.mrf.mxu0
  %v867 = vadd.f32 %v815, %v866
  %v868 = vpop.f32.mrf.mxu0
  %v869 = vpop.f32.mrf.mxu0
  %v870 = vpop.f32.mrf.mxu0
  %871 = vdwg.mxu0
  %v872 = vpack.c.bf16 %v688, %v688
  %v874 = vsel %vm158, %v872, 0
  %876 = vmatprep.subr.bf16.mxu0 0
  %877 = vmatpush1.bf16.msra.mxu0 0
  %878 = vmatprep.subr.bf16.mxu0 0
  %879 = vmatpush1.bf16.msra.mxu0 0
  %880 = vmatprep.subr.bf16.mxu0 0
  %881 = vmatpush1.bf16.msra.mxu0 0
  %882 = vmatprep.subr.bf16.mxu0 0
  %883 = vmatpush1.bf16.msra.mxu0 0
  %884 = vmatprep.subr.bf16.mxu0 0
  %885 = vmatpush1.bf16.msra.mxu0 0
  %886 = vmatprep.subr.bf16.mxu0 0
  %887 = vmatpush1.bf16.msra.mxu0 0
  %888 = vmatprep.subr.bf16.mxu0 0
  %889 = vmatpush1.bf16.msra.mxu0 %v758
  %890 = vmatprep.subr.bf16.mxu0 0
  %891 = vmatpush1.bf16.msra.mxu0 %v757
  %892 = vmatprep.subr.bf16.mxu0 0
  %893 = vmatpush2.bf16.msra.mxu0 0
  %894 = vmatprep.subr.bf16.mxu0 0
  %895 = vmatpush2.bf16.msra.mxu0 0
  %896 = vmatprep.subr.bf16.mxu0 0
  %897 = vmatpush2.bf16.msra.mxu0 0
  %898 = vmatprep.subr.bf16.mxu0 0
  %899 = vmatpush2.bf16.msra.mxu0 0
  %900 = vmatprep.subr.bf16.mxu0 0
  %901 = vmatpush2.bf16.msra.mxu0 0
  %902 = vmatprep.subr.bf16.mxu0 0
  %903 = vmatpush2.bf16.msra.mxu0 0
  %904 = vmatprep.subr.bf16.mxu0 0
  %905 = vmatpush2.bf16.msra.mxu0 0
  %906 = vmatprep.subr.bf16.mxu0 0
  %907 = vmatpush2.bf16.msra.mxu0 0
  %908 = vmatprep.mubr.bf16.mxu0 0
  %909 = vmatmul.mubr.bf16.gmra.mxu0 %v874
  %v910 = vpop.f32.mrf.mxu0
  %v911 = vadd.f32 %v747, %v910
  %v912 = vpop.f32.mrf.mxu0
  %v913 = vpop.f32.mrf.mxu0
  %v914 = vpop.f32.mrf.mxu0
  %915 = vdwg.mxu0
  %v916 = vtanh.pop %v911
  %v917 = vpack.c.bf16 %v916, %v916
  %v919 = vsel %vm158, %v917, 0
  %921 = vmatprep.subr.bf16.mxu0 0
  %922 = vmatpush1.bf16.msra.mxu0 0
  %923 = vmatprep.subr.bf16.mxu0 0
  %924 = vmatpush1.bf16.msra.mxu0 0
  %925 = vmatprep.subr.bf16.mxu0 0
  %926 = vmatpush1.bf16.msra.mxu0 0
  %927 = vmatprep.subr.bf16.mxu0 0
  %928 = vmatpush1.bf16.msra.mxu0 0
  %929 = vmatprep.subr.bf16.mxu0 0
  %930 = vmatpush1.bf16.msra.mxu0 0
  %931 = vmatprep.subr.bf16.mxu0 0
  %932 = vmatpush1.bf16.msra.mxu0 0
  %933 = vmatprep.subr.bf16.mxu0 0
  %934 = vmatpush1.bf16.msra.mxu0 %v826
  %935 = vmatprep.subr.bf16.mxu0 0
  %936 = vmatpush1.bf16.msra.mxu0 %v825
  %937 = vmatprep.subr.bf16.mxu0 0
  %938 = vmatpush2.bf16.msra.mxu0 0
  %939 = vmatprep.subr.bf16.mxu0 0
  %940 = vmatpush2.bf16.msra.mxu0 0
  %941 = vmatprep.subr.bf16.mxu0 0
  %942 = vmatpush2.bf16.msra.mxu0 0
  %943 = vmatprep.subr.bf16.mxu0 0
  %944 = vmatpush2.bf16.msra.mxu0 0
  %945 = vmatprep.subr.bf16.mxu0 0
  %946 = vmatpush2.bf16.msra.mxu0 0
  %947 = vmatprep.subr.bf16.mxu0 0
  %948 = vmatpush2.bf16.msra.mxu0 0
  %949 = vmatprep.subr.bf16.mxu0 0
  %950 = vmatpush2.bf16.msra.mxu0 0
  %951 = vmatprep.subr.bf16.mxu0 0
  %952 = vmatpush2.bf16.msra.mxu0 0
  %953 = vmatprep.mubr.bf16.mxu0 0
  %954 = vmatmul.mubr.bf16.gmra.mxu0 %v919
  %v955 = vpop.f32.mrf.mxu0
  %v956 = vadd.f32 %v815, %v955
  %v957 = vpop.f32.mrf.mxu0
  %v958 = vpop.f32.mrf.mxu0
  %v959 = vpop.f32.mrf.mxu0
  %960 = vdwg.mxu0
  %v961 = vpack.c.bf16 %v732, %v732
  %v963 = vsel %vm158, %v961, 0
  %965 = vmatprep.subr.bf16.mxu0 0
  %966 = vmatpush1.bf16.msra.mxu0 0
  %967 = vmatprep.subr.bf16.mxu0 0
  %968 = vmatpush1.bf16.msra.mxu0 0
  %969 = vmatprep.subr.bf16.mxu0 0
  %970 = vmatpush1.bf16.msra.mxu0 0
  %971 = vmatprep.subr.bf16.mxu0 0
  %972 = vmatpush1.bf16.msra.mxu0 0
  %973 = vmatprep.subr.bf16.mxu0 0
  %974 = vmatpush1.bf16.msra.mxu0 0
  %975 = vmatprep.subr.bf16.mxu0 0
  %976 = vmatpush1.bf16.msra.mxu0 0
  %977 = vmatprep.subr.bf16.mxu0 0
  %978 = vmatpush1.bf16.msra.mxu0 %v758
  %979 = vmatprep.subr.bf16.mxu0 0
  %980 = vmatpush1.bf16.msra.mxu0 %v757
  %981 = vmatprep.subr.bf16.mxu0 0
  %982 = vmatpush2.bf16.msra.mxu0 0
  %983 = vmatprep.subr.bf16.mxu0 0
  %984 = vmatpush2.bf16.msra.mxu0 0
  %985 = vmatprep.subr.bf16.mxu0 0
  %986 = vmatpush2.bf16.msra.mxu0 0
  %987 = vmatprep.subr.bf16.mxu0 0
  %988 = vmatpush2.bf16.msra.mxu0 0
  %989 = vmatprep.subr.bf16.mxu0 0
  %990 = vmatpush2.bf16.msra.mxu0 0
  %991 = vmatprep.subr.bf16.mxu0 0
  %992 = vmatpush2.bf16.msra.mxu0 0
  %993 = vmatprep.subr.bf16.mxu0 0
  %994 = vmatpush2.bf16.msra.mxu0 0
  %995 = vmatprep.subr.bf16.mxu0 0
  %996 = vmatpush2.bf16.msra.mxu0 0
  %997 = vmatprep.mubr.bf16.mxu0 0
  %998 = vmatmul.mubr.bf16.gmra.mxu0 %v963
  %v999 = vpop.f32.mrf.mxu0
  %v1000 = vadd.f32 %v747, %v999
  %v1001 = vpop.f32.mrf.mxu0
  %v1002 = vpop.f32.mrf.mxu0
  %v1003 = vpop.f32.mrf.mxu0
  %1004 = vdwg.mxu0
  %v1005 = vtanh.pop %v1000
  %v1006 = vpack.c.bf16 %v1005, %v1005
  %v1008 = vsel %vm158, %v1006, 0
  %1010 = vmatprep.subr.bf16.mxu0 0
  %1011 = vmatpush1.bf16.msra.mxu0 0
  %1012 = vmatprep.subr.bf16.mxu0 0
  %1013 = vmatpush1.bf16.msra.mxu0 0
  %1014 = vmatprep.subr.bf16.mxu0 0
  %1015 = vmatpush1.bf16.msra.mxu0 0
  %1016 = vmatprep.subr.bf16.mxu0 0
  %1017 = vmatpush1.bf16.msra.mxu0 0
  %1018 = vmatprep.subr.bf16.mxu0 0
  %1019 = vmatpush1.bf16.msra.mxu0 0
  %1020 = vmatprep.subr.bf16.mxu0 0
  %1021 = vmatpush1.bf16.msra.mxu0 0
  %1022 = vmatprep.subr.bf16.mxu0 0
  %1023 = vmatpush1.bf16.msra.mxu0 %v826
  %1024 = vmatprep.subr.bf16.mxu0 0
  %1025 = vmatpush1.bf16.msra.mxu0 %v825
  %1026 = vmatprep.subr.bf16.mxu0 0
  %1027 = vmatpush2.bf16.msra.mxu0 0
  %1028 = vmatprep.subr.bf16.mxu0 0
  %1029 = vmatpush2.bf16.msra.mxu0 0
  %1030 = vmatprep.subr.bf16.mxu0 0
  %1031 = vmatpush2.bf16.msra.mxu0 0
  %1032 = vmatprep.subr.bf16.mxu0 0
  %1033 = vmatpush2.bf16.msra.mxu0 0
  %1034 = vmatprep.subr.bf16.mxu0 0
  %1035 = vmatpush2.bf16.msra.mxu0 0
  %1036 = vmatprep.subr.bf16.mxu0 0
  %1037 = vmatpush2.bf16.msra.mxu0 0
  %1038 = vmatprep.subr.bf16.mxu0 0
  %1039 = vmatpush2.bf16.msra.mxu0 0
  %1040 = vmatprep.subr.bf16.mxu0 0
  %1041 = vmatpush2.bf16.msra.mxu0 0
  %1042 = vmatprep.mubr.bf16.mxu0 0
  %1043 = vmatmul.mubr.bf16.gmra.mxu0 %v1008
  %v1044 = vpop.f32.mrf.mxu0
  %v1045 = vadd.f32 %v815, %v1044
  %v1046 = vpop.f32.mrf.mxu0
  %v1047 = vpop.f32.mrf.mxu0
  %v1048 = vpop.f32.mrf.mxu0
  %1049 = vdwg.mxu0
  %v1050 = vsub.f32 %v867, %v956
  %v1051 = vmul.f32 %v1050, %v1050
  %vm1052 = vcmask 254976
  %v1053 = vsel %vm1052, %v1051, 0.0
  %1054 = vadd.xlane.f32.xlu0 %v1053
  %v1055 = vpop.xlane.xlu0 %1054
  %v1056 = vrsqrt.pop %v1055
  %v1057 = vmul.f32 %v1055, %v1056
  %vm1058 = vcmp.eq.f32.partialorder %v1055, inf
  %v1059 = vsel %vm1058, %v1055, %v1057
  %vm1060 = vcmp.eq.f32.partialorder %v1055, 0.0
  %v1061 = vand.u32 %v1055, 2147483648
  %v1062 = vsel %vm1060, %v1061, %v1059
  %v1063 = vsub.f32 %v867, %v1045
  %v1064 = vmul.f32 %v1063, %v1063
  %v1065 = vsel %vm1052, %v1064, 0.0
  %1066 = vadd.xlane.f32.xlu0 %v1065
  %v1067 = vpop.xlane.xlu0 %1066
  %v1068 = vrsqrt.pop %v1067
  %v1069 = vmul.f32 %v1067, %v1068
  %vm1070 = vcmp.eq.f32.partialorder %v1067, inf
  %v1071 = vsel %vm1070, %v1067, %v1069
  %vm1072 = vcmp.eq.f32.partialorder %v1067, 0.0
  %v1073 = vand.u32 %v1067, 2147483648
  %v1074 = vsel %vm1072, %v1073, %v1071
  %v1075 = vsub.f32 %v956, %v1045
  %v1076 = vmul.f32 %v1075, %v1075
  %v1077 = vsel %vm1052, %v1076, 0.0
  %1078 = vadd.xlane.f32.xlu0 %v1077
  %v1079 = vpop.xlane.xlu0 %1078
  %v1080 = vrsqrt.pop %v1079
  %v1081 = vmul.f32 %v1079, %v1080
  %vm1082 = vcmp.eq.f32.partialorder %v1079, inf
  %v1083 = vsel %vm1082, %v1079, %v1081
  %vm1084 = vcmp.eq.f32.partialorder %v1079, 0.0
  %v1085 = vand.u32 %v1079, 2147483648
  %v1086 = vsel %vm1084, %v1085, %v1083
  %v1087 = vadd.f32 %v1062, %v1074
  %v1088 = vadd.f32 %v1087, 1e-06
  %v1089 = vrcp.pop %v1088
  %v1090 = vmul.f32 1.0, %v1089
  %v1091 = vadd.f32 %v1062, %v1086
  %v1092 = vadd.f32 %v1091, 1e-06
  %v1093 = vrcp.pop %v1092
  %v1094 = vmul.f32 1.0, %v1093
  %v1095 = vadd.f32 %v1074, %v1086
  %v1096 = vadd.f32 %v1095, 1e-06
  %v1097 = vrcp.pop %v1096
  %v1098 = vmul.f32 1.0, %v1097
  %v1099 = vadd.f32 %v1090, %v1094
  %v1100 = vadd.f32 %v1099, %v1098
  %v1101 = vmul.f32 %v1090, %v644
  %v1102 = vmul.f32 %v1094, %v688
  %v1103 = vadd.f32 %v1101, %v1102
  %v1104 = vmul.f32 %v1098, %v732
  %v1105 = vadd.f32 %v1103, %v1104
  %v1106 = vrcp.pop %v1100
  %v1107 = vmul.f32 %v1105, %v1106
  %v1108 = vld [vmem:[%s45] sm:$0xf]
  %v1109 = vld [vmem:[%s45 + $0x4] sm:$0xf]
  %v1110 = vld [vmem:[%s45 + $0x8] sm:$0xf]
  %v1111 = vld [vmem:[%s45 + $0xc] sm:$0xf]
  %v1112 = vpack.c.bf16 %v1107, %v1107
  %v1113 = vld [vmem:[%s47] sm:$0x1]
  %v1115 = vlaneseq
  %v1116 = vshrl.u32 %v1115, 7
  %v1117 = vsub.s32 0, %v1116
  %v1118 = vrot.slane %v1113, %v1117
  %v1124 = vunpack.c.l.b16 %v1108
  %v1125 = vunpack.c.l.b16 %v1109
  %v1126 = vunpack.c.l.b16 %v1110
  %v1127 = vunpack.c.l.b16 %v1111
  %v1128 = vpack.c.b16 %v1125, %v1124
  %v1129 = vpack.c.b16 %v1127, %v1126
  %v1133 = vsel %vm158, %v1112, 0
  %1135 = vmatprep.subr.bf16.mxu0 0
  %1136 = vmatpush1.bf16.msra.mxu0 0
  %1137 = vmatprep.subr.bf16.mxu0 0
  %1138 = vmatpush1.bf16.msra.mxu0 0
  %1139 = vmatprep.subr.bf16.mxu0 0
  %1140 = vmatpush1.bf16.msra.mxu0 0
  %1141 = vmatprep.subr.bf16.mxu0 0
  %1142 = vmatpush1.bf16.msra.mxu0 0
  %1143 = vmatprep.subr.bf16.mxu0 0
  %1144 = vmatpush1.bf16.msra.mxu0 0
  %1145 = vmatprep.subr.bf16.mxu0 0
  %1146 = vmatpush1.bf16.msra.mxu0 0
  %1147 = vmatprep.subr.bf16.mxu0 0
  %1148 = vmatpush1.bf16.msra.mxu0 %v1129
  %1149 = vmatprep.subr.bf16.mxu0 0
  %1150 = vmatpush1.bf16.msra.mxu0 %v1128
  %1151 = vmatprep.subr.bf16.mxu0 0
  %1152 = vmatpush2.bf16.msra.mxu0 0
  %1153 = vmatprep.subr.bf16.mxu0 0
  %1154 = vmatpush2.bf16.msra.mxu0 0
  %1155 = vmatprep.subr.bf16.mxu0 0
  %1156 = vmatpush2.bf16.msra.mxu0 0
  %1157 = vmatprep.subr.bf16.mxu0 0
  %1158 = vmatpush2.bf16.msra.mxu0 0
  %1159 = vmatprep.subr.bf16.mxu0 0
  %1160 = vmatpush2.bf16.msra.mxu0 0
  %1161 = vmatprep.subr.bf16.mxu0 0
  %1162 = vmatpush2.bf16.msra.mxu0 0
  %1163 = vmatprep.subr.bf16.mxu0 0
  %1164 = vmatpush2.bf16.msra.mxu0 0
  %1165 = vmatprep.subr.bf16.mxu0 0
  %1166 = vmatpush2.bf16.msra.mxu0 0
  %1167 = vmatprep.mubr.bf16.mxu0 0
  %1168 = vmatmul.mubr.bf16.gmra.mxu0 %v1133
  %v1169 = vpop.f32.mrf.mxu0
  %v1170 = vadd.f32 %v1118, %v1169
  %v1171 = vpop.f32.mrf.mxu0
  %v1172 = vpop.f32.mrf.mxu0
  %v1173 = vpop.f32.mrf.mxu0
  %1174 = vdwg.mxu0
  %v1175 = vtanh.pop %v1170
  %v1176 = vld [vmem:[%s49] sm:$0xf]
  %v1177 = vld [vmem:[%s49 + $0x4] sm:$0xf]
  %v1178 = vld [vmem:[%s49 + $0x8] sm:$0xf]
  %v1179 = vld [vmem:[%s49 + $0xc] sm:$0xf]
  %v1180 = vpack.c.bf16 %v1175, %v1175
  %v1181 = vld [vmem:[%s51] sm:$0x1]
  %v1183 = vlaneseq
  %v1184 = vshrl.u32 %v1183, 7
  %v1185 = vsub.s32 0, %v1184
  %v1186 = vrot.slane %v1181, %v1185
  %v1192 = vunpack.c.l.b16 %v1176
  %v1193 = vunpack.c.l.b16 %v1177
  %v1194 = vunpack.c.l.b16 %v1178
  %v1195 = vunpack.c.l.b16 %v1179
  %v1196 = vpack.c.b16 %v1193, %v1192
  %v1197 = vpack.c.b16 %v1195, %v1194
  %v1201 = vsel %vm158, %v1180, 0
  %1203 = vmatprep.subr.bf16.mxu0 0
  %1204 = vmatpush1.bf16.msra.mxu0 0
  %1205 = vmatprep.subr.bf16.mxu0 0
  %1206 = vmatpush1.bf16.msra.mxu0 0
  %1207 = vmatprep.subr.bf16.mxu0 0
  %1208 = vmatpush1.bf16.msra.mxu0 0
  %1209 = vmatprep.subr.bf16.mxu0 0
  %1210 = vmatpush1.bf16.msra.mxu0 0
  %1211 = vmatprep.subr.bf16.mxu0 0
  %1212 = vmatpush1.bf16.msra.mxu0 0
  %1213 = vmatprep.subr.bf16.mxu0 0
  %1214 = vmatpush1.bf16.msra.mxu0 0
  %1215 = vmatprep.subr.bf16.mxu0 0
  %1216 = vmatpush1.bf16.msra.mxu0 %v1197
  %1217 = vmatprep.subr.bf16.mxu0 0
  %1218 = vmatpush1.bf16.msra.mxu0 %v1196
  %1219 = vmatprep.subr.bf16.mxu0 0
  %1220 = vmatpush2.bf16.msra.mxu0 0
  %1221 = vmatprep.subr.bf16.mxu0 0
  %1222 = vmatpush2.bf16.msra.mxu0 0
  %1223 = vmatprep.subr.bf16.mxu0 0
  %1224 = vmatpush2.bf16.msra.mxu0 0
  %1225 = vmatprep.subr.bf16.mxu0 0
  %1226 = vmatpush2.bf16.msra.mxu0 0
  %1227 = vmatprep.subr.bf16.mxu0 0
  %1228 = vmatpush2.bf16.msra.mxu0 0
  %1229 = vmatprep.subr.bf16.mxu0 0
  %1230 = vmatpush2.bf16.msra.mxu0 0
  %1231 = vmatprep.subr.bf16.mxu0 0
  %1232 = vmatpush2.bf16.msra.mxu0 0
  %1233 = vmatprep.subr.bf16.mxu0 0
  %1234 = vmatpush2.bf16.msra.mxu0 0
  %1235 = vmatprep.mubr.bf16.mxu0 0
  %1236 = vmatmul.mubr.bf16.gmra.mxu0 %v1201
  %v1237 = vpop.f32.mrf.mxu0
  %v1238 = vadd.f32 %v1186, %v1237
  %v1239 = vpop.f32.mrf.mxu0
  %v1240 = vpop.f32.mrf.mxu0
  %v1241 = vpop.f32.mrf.mxu0
  %1242 = vdwg.mxu0
  %v1243 = vtanh.pop %v1238
  %v1244 = vld [vmem:[%s53] sm:$0xf]
  %v1245 = vld [vmem:[%s53 + $0x4] sm:$0xf]
  %v1246 = vld [vmem:[%s53 + $0x8] sm:$0xf]
  %v1247 = vld [vmem:[%s53 + $0xc] sm:$0xf]
  %v1248 = vpack.c.bf16 %v1243, %v1243
  %v1249 = vld [vmem:[#allocation3] sm:$0x1]
  %v1251 = vlaneseq
  %v1252 = vshrl.u32 %v1251, 7
  %v1253 = vsub.s32 0, %v1252
  %v1254 = vrot.slane %v1249, %v1253
  %v1260 = vunpack.c.l.b16 %v1244
  %v1261 = vunpack.c.l.b16 %v1245
  %v1262 = vunpack.c.l.b16 %v1246
  %v1263 = vunpack.c.l.b16 %v1247
  %v1264 = vpack.c.b16 %v1261, %v1260
  %v1265 = vpack.c.b16 %v1263, %v1262
  %v1269 = vsel %vm158, %v1248, 0
  %1271 = vmatprep.subr.bf16.mxu0 0
  %1272 = vmatpush1.bf16.msra.mxu0 0
  %1273 = vmatprep.subr.bf16.mxu0 0
  %1274 = vmatpush1.bf16.msra.mxu0 0
  %1275 = vmatprep.subr.bf16.mxu0 0
  %1276 = vmatpush1.bf16.msra.mxu0 0
  %1277 = vmatprep.subr.bf16.mxu0 0
  %1278 = vmatpush1.bf16.msra.mxu0 0
  %1279 = vmatprep.subr.bf16.mxu0 0
  %1280 = vmatpush1.bf16.msra.mxu0 0
  %1281 = vmatprep.subr.bf16.mxu0 0
  %1282 = vmatpush1.bf16.msra.mxu0 0
  %1283 = vmatprep.subr.bf16.mxu0 0
  %1284 = vmatpush1.bf16.msra.mxu0 %v1265
  %1285 = vmatprep.subr.bf16.mxu0 0
  %1286 = vmatpush1.bf16.msra.mxu0 %v1264
  %1287 = vmatprep.subr.bf16.mxu0 0
  %1288 = vmatpush2.bf16.msra.mxu0 0
  %1289 = vmatprep.subr.bf16.mxu0 0
  %1290 = vmatpush2.bf16.msra.mxu0 0
  %1291 = vmatprep.subr.bf16.mxu0 0
  %1292 = vmatpush2.bf16.msra.mxu0 0
  %1293 = vmatprep.subr.bf16.mxu0 0
  %1294 = vmatpush2.bf16.msra.mxu0 0
  %1295 = vmatprep.subr.bf16.mxu0 0
  %1296 = vmatpush2.bf16.msra.mxu0 0
  %1297 = vmatprep.subr.bf16.mxu0 0
  %1298 = vmatpush2.bf16.msra.mxu0 0
  %1299 = vmatprep.subr.bf16.mxu0 0
  %1300 = vmatpush2.bf16.msra.mxu0 0
  %1301 = vmatprep.subr.bf16.mxu0 0
  %1302 = vmatpush2.bf16.msra.mxu0 0
  %1303 = vmatprep.mubr.bf16.mxu0 0
  %1304 = vmatmul.mubr.bf16.gmra.mxu0 %v1269
  %v1305 = vpop.f32.mrf.mxu0
  %v1306 = vadd.f32 %v1254, %v1305
  %v1307 = vpop.f32.mrf.mxu0
  %v1308 = vpop.f32.mrf.mxu0
  %v1309 = vpop.f32.mrf.mxu0
  %1310 = vdwg.mxu0
  %1311 = vst.msk [vmem:[%s67] sm:$0x3] %vm1052, %v1243
  %1313 = vrot.lane.b32.xlu0 %v142, 32
  %v1314 = vpop.permute.xlu0 %1313
  %v1316 = vsel %vm158, %v604, %v1314
  %v1317 = vld [vmem:[%s57] sm:$0xf]
  %v1318 = vld [vmem:[%s57 + $0x4] sm:$0xf]
  %v1319 = vld [vmem:[%s57 + $0x8] sm:$0xf]
  %v1320 = vld [vmem:[%s57 + $0xc] sm:$0xf]
  %v1321 = vld [vmem:[%s57 + $0x10] sm:$0xf]
  %v1322 = vld [vmem:[%s57 + $0x14] sm:$0xf]
  %v1323 = vld [vmem:[%s57 + $0x18] sm:$0xf]
  %v1324 = vld [vmem:[%s57 + $0x1c] sm:$0xf]
  %v1325 = vpack.c.bf16 %v1316, %v1316
  %v1326 = vld [vmem:[%s59] sm:$0x1]
  %v1328 = vlaneseq
  %v1329 = vshrl.u32 %v1328, 7
  %v1330 = vsub.s32 0, %v1329
  %v1331 = vrot.slane %v1326, %v1330
  %v1341 = vunpack.c.l.b16 %v1317
  %v1342 = vunpack.c.l.b16 %v1318
  %v1343 = vunpack.c.l.b16 %v1319
  %v1344 = vunpack.c.l.b16 %v1320
  %v1345 = vunpack.c.l.b16 %v1321
  %v1346 = vunpack.c.l.b16 %v1322
  %v1347 = vunpack.c.l.b16 %v1323
  %v1348 = vunpack.c.l.b16 %v1324
  %v1349 = vpack.c.b16 %v1342, %v1341
  %v1350 = vpack.c.b16 %v1344, %v1343
  %v1351 = vpack.c.b16 %v1346, %v1345
  %v1352 = vpack.c.b16 %v1348, %v1347
  %v1358 = vsel %vm160, %v1325, 0
  %1360 = vmatprep.subr.bf16.mxu0 0
  %1361 = vmatpush1.bf16.msra.mxu0 0
  %1362 = vmatprep.subr.bf16.mxu0 0
  %1363 = vmatpush1.bf16.msra.mxu0 0
  %1364 = vmatprep.subr.bf16.mxu0 0
  %1365 = vmatpush1.bf16.msra.mxu0 0
  %1366 = vmatprep.subr.bf16.mxu0 0
  %1367 = vmatpush1.bf16.msra.mxu0 0
  %1368 = vmatprep.subr.bf16.mxu0 0
  %1369 = vmatpush1.bf16.msra.mxu0 %v1352
  %1370 = vmatprep.subr.bf16.mxu0 0
  %1371 = vmatpush1.bf16.msra.mxu0 %v1351
  %1372 = vmatprep.subr.bf16.mxu0 0
  %1373 = vmatpush1.bf16.msra.mxu0 %v1350
  %1374 = vmatprep.subr.bf16.mxu0 0
  %1375 = vmatpush1.bf16.msra.mxu0 %v1349
  %1376 = vmatprep.subr.bf16.mxu0 0
  %1377 = vmatpush2.bf16.msra.mxu0 0
  %1378 = vmatprep.subr.bf16.mxu0 0
  %1379 = vmatpush2.bf16.msra.mxu0 0
  %1380 = vmatprep.subr.bf16.mxu0 0
  %1381 = vmatpush2.bf16.msra.mxu0 0
  %1382 = vmatprep.subr.bf16.mxu0 0
  %1383 = vmatpush2.bf16.msra.mxu0 0
  %1384 = vmatprep.subr.bf16.mxu0 0
  %1385 = vmatpush2.bf16.msra.mxu0 0
  %1386 = vmatprep.subr.bf16.mxu0 0
  %1387 = vmatpush2.bf16.msra.mxu0 0
  %1388 = vmatprep.subr.bf16.mxu0 0
  %1389 = vmatpush2.bf16.msra.mxu0 0
  %1390 = vmatprep.subr.bf16.mxu0 0
  %1391 = vmatpush2.bf16.msra.mxu0 0
  %1392 = vmatprep.mubr.bf16.mxu0 0
  %1393 = vmatmul.mubr.bf16.gmra.mxu0 %v1358
  %v1394 = vpop.f32.mrf.mxu0
  %v1395 = vadd.f32 %v1331, %v1394
  %v1396 = vpop.f32.mrf.mxu0
  %v1397 = vpop.f32.mrf.mxu0
  %v1398 = vpop.f32.mrf.mxu0
  %1399 = vdwg.mxu0
  %v1400 = vtanh.pop %v1395
  %v1401 = vld [vmem:[%s61] sm:$0xf]
  %v1402 = vld [vmem:[%s61 + $0x4] sm:$0xf]
  %v1403 = vld [vmem:[%s61 + $0x8] sm:$0xf]
  %v1404 = vld [vmem:[%s61 + $0xc] sm:$0xf]
  %v1405 = vpack.c.bf16 %v1400, %v1400
  %v1406 = vld [vmem:[%s63] sm:$0x1]
  %v1408 = vlaneseq
  %v1409 = vshrl.u32 %v1408, 7
  %v1410 = vsub.s32 0, %v1409
  %v1411 = vrot.slane %v1406, %v1410
  %v1417 = vunpack.c.l.b16 %v1401
  %v1418 = vunpack.c.l.b16 %v1402
  %v1419 = vunpack.c.l.b16 %v1403
  %v1420 = vunpack.c.l.b16 %v1404
  %v1421 = vpack.c.b16 %v1418, %v1417
  %v1422 = vpack.c.b16 %v1420, %v1419
  %v1426 = vsel %vm158, %v1405, 0
  %1428 = vmatprep.subr.bf16.mxu0 0
  %1429 = vmatpush1.bf16.msra.mxu0 0
  %1430 = vmatprep.subr.bf16.mxu0 0
  %1431 = vmatpush1.bf16.msra.mxu0 0
  %1432 = vmatprep.subr.bf16.mxu0 0
  %1433 = vmatpush1.bf16.msra.mxu0 0
  %1434 = vmatprep.subr.bf16.mxu0 0
  %1435 = vmatpush1.bf16.msra.mxu0 0
  %1436 = vmatprep.subr.bf16.mxu0 0
  %1437 = vmatpush1.bf16.msra.mxu0 0
  %1438 = vmatprep.subr.bf16.mxu0 0
  %1439 = vmatpush1.bf16.msra.mxu0 0
  %1440 = vmatprep.subr.bf16.mxu0 0
  %1441 = vmatpush1.bf16.msra.mxu0 %v1422
  %1442 = vmatprep.subr.bf16.mxu0 0
  %1443 = vmatpush1.bf16.msra.mxu0 %v1421
  %1444 = vmatprep.subr.bf16.mxu0 0
  %1445 = vmatpush2.bf16.msra.mxu0 0
  %1446 = vmatprep.subr.bf16.mxu0 0
  %1447 = vmatpush2.bf16.msra.mxu0 0
  %1448 = vmatprep.subr.bf16.mxu0 0
  %1449 = vmatpush2.bf16.msra.mxu0 0
  %1450 = vmatprep.subr.bf16.mxu0 0
  %1451 = vmatpush2.bf16.msra.mxu0 0
  %1452 = vmatprep.subr.bf16.mxu0 0
  %1453 = vmatpush2.bf16.msra.mxu0 0
  %1454 = vmatprep.subr.bf16.mxu0 0
  %1455 = vmatpush2.bf16.msra.mxu0 0
  %1456 = vmatprep.subr.bf16.mxu0 0
  %1457 = vmatpush2.bf16.msra.mxu0 0
  %1458 = vmatprep.subr.bf16.mxu0 0
  %1459 = vmatpush2.bf16.msra.mxu0 0
  %1460 = vmatprep.mubr.bf16.mxu0 0
  %1461 = vmatmul.mubr.bf16.gmra.mxu0 %v1426
  %v1462 = vpop.f32.mrf.mxu0
  %v1463 = vadd.f32 %v1411, %v1462
  %v1464 = vpop.f32.mrf.mxu0
  %v1465 = vpop.f32.mrf.mxu0
  %v1466 = vpop.f32.mrf.mxu0
  %1467 = vdwg.mxu0
  %v1468 = vpack.c.bf16 %v1463, %v1463
  %v1470 = vsel %vm168, %v1468, 0
  %1472 = vmatprep.subr.bf16.mxu0 0
  %1473 = vmatpush1.bf16.msra.mxu0 0
  %1474 = vmatprep.subr.bf16.mxu0 0
  %1475 = vmatpush1.bf16.msra.mxu0 0
  %1476 = vmatprep.subr.bf16.mxu0 0
  %1477 = vmatpush1.bf16.msra.mxu0 0
  %1478 = vmatprep.subr.bf16.mxu0 0
  %1479 = vmatpush1.bf16.msra.mxu0 0
  %1480 = vmatprep.subr.bf16.mxu0 0
  %1481 = vmatpush1.bf16.msra.mxu0 0
  %1482 = vmatprep.subr.bf16.mxu0 0
  %1483 = vmatpush1.bf16.msra.mxu0 0
  %1484 = vmatprep.subr.bf16.mxu0 0
  %1485 = vmatpush1.bf16.msra.mxu0 0
  %1486 = vmatprep.subr.bf16.mxu0 0
  %1487 = vmatpush1.bf16.msra.mxu0 %v1470
  %1488 = vmatprep.subr.bf16.mxu0 0
  %1489 = vmatpush2.bf16.msra.mxu0 0
  %1490 = vmatprep.subr.bf16.mxu0 0
  %1491 = vmatpush2.bf16.msra.mxu0 0
  %1492 = vmatprep.subr.bf16.mxu0 0
  %1493 = vmatpush2.bf16.msra.mxu0 0
  %1494 = vmatprep.subr.bf16.mxu0 0
  %1495 = vmatpush2.bf16.msra.mxu0 0
  %1496 = vmatprep.subr.bf16.mxu0 0
  %1497 = vmatpush2.bf16.msra.mxu0 0
  %1498 = vmatprep.subr.bf16.mxu0 0
  %1499 = vmatpush2.bf16.msra.mxu0 0
  %1500 = vmatprep.subr.bf16.mxu0 0
  %1501 = vmatpush2.bf16.msra.mxu0 0
  %1502 = vmatprep.subr.bf16.mxu0 0
  %1503 = vmatpush2.bf16.msra.mxu0 0
  %1504 = vmatprep.mubr.bf16.mxu0 0
  %1505 = vmatmul.mubr.bf16.gmra.mxu0 %v166
  %v1506 = vpop.f32.mrf.mxu0
  %v1507 = vadd.f32 0.0, %v1506
  %v1508 = vpop.f32.mrf.mxu0
  %v1509 = vpop.f32.mrf.mxu0
  %v1510 = vpop.f32.mrf.mxu0
  %1511 = vdwg.mxu0
  %1512 = vst.msk [vmem:[%s67 + $0x2] sm:$0x3] %vm1052, %v1507
  %v1513 = vsel %vm158, %v148, %v152
  %s1514 = scalar_lea.vmem %s57, 32
  %v1515 = vld [vmem:[%s1514] sm:$0xf]
  %v1516 = vld [vmem:[%s1514 + $0x4] sm:$0xf]
  %v1517 = vld [vmem:[%s1514 + $0x8] sm:$0xf]
  %v1518 = vld [vmem:[%s1514 + $0xc] sm:$0xf]
  %v1519 = vld [vmem:[%s1514 + $0x10] sm:$0xf]
  %v1520 = vld [vmem:[%s1514 + $0x14] sm:$0xf]
  %v1521 = vld [vmem:[%s1514 + $0x18] sm:$0xf]
  %v1522 = vld [vmem:[%s1514 + $0x1c] sm:$0xf]
  %v1523 = vpack.c.bf16 %v1513, %v1513
  %s1524 = scalar_lea.vmem %s59, 1
  %v1525 = vld [vmem:[%s1524] sm:$0x1]
  %v1527 = vlaneseq
  %v1528 = vshrl.u32 %v1527, 7
  %v1529 = vsub.s32 0, %v1528
  %v1530 = vrot.slane %v1525, %v1529
  %v1540 = vunpack.c.l.b16 %v1515
  %v1541 = vunpack.c.l.b16 %v1516
  %v1542 = vunpack.c.l.b16 %v1517
  %v1543 = vunpack.c.l.b16 %v1518
  %v1544 = vunpack.c.l.b16 %v1519
  %v1545 = vunpack.c.l.b16 %v1520
  %v1546 = vunpack.c.l.b16 %v1521
  %v1547 = vunpack.c.l.b16 %v1522
  %v1548 = vpack.c.b16 %v1541, %v1540
  %v1549 = vpack.c.b16 %v1543, %v1542
  %v1550 = vpack.c.b16 %v1545, %v1544
  %v1551 = vpack.c.b16 %v1547, %v1546
  %v1557 = vsel %vm160, %v1523, 0
  %1559 = vmatprep.subr.bf16.mxu0 0
  %1560 = vmatpush1.bf16.msra.mxu0 0
  %1561 = vmatprep.subr.bf16.mxu0 0
  %1562 = vmatpush1.bf16.msra.mxu0 0
  %1563 = vmatprep.subr.bf16.mxu0 0
  %1564 = vmatpush1.bf16.msra.mxu0 0
  %1565 = vmatprep.subr.bf16.mxu0 0
  %1566 = vmatpush1.bf16.msra.mxu0 0
  %1567 = vmatprep.subr.bf16.mxu0 0
  %1568 = vmatpush1.bf16.msra.mxu0 %v1551
  %1569 = vmatprep.subr.bf16.mxu0 0
  %1570 = vmatpush1.bf16.msra.mxu0 %v1550
  %1571 = vmatprep.subr.bf16.mxu0 0
  %1572 = vmatpush1.bf16.msra.mxu0 %v1549
  %1573 = vmatprep.subr.bf16.mxu0 0
  %1574 = vmatpush1.bf16.msra.mxu0 %v1548
  %1575 = vmatprep.subr.bf16.mxu0 0
  %1576 = vmatpush2.bf16.msra.mxu0 0
  %1577 = vmatprep.subr.bf16.mxu0 0
  %1578 = vmatpush2.bf16.msra.mxu0 0
  %1579 = vmatprep.subr.bf16.mxu0 0
  %1580 = vmatpush2.bf16.msra.mxu0 0
  %1581 = vmatprep.subr.bf16.mxu0 0
  %1582 = vmatpush2.bf16.msra.mxu0 0
  %1583 = vmatprep.subr.bf16.mxu0 0
  %1584 = vmatpush2.bf16.msra.mxu0 0
  %1585 = vmatprep.subr.bf16.mxu0 0
  %1586 = vmatpush2.bf16.msra.mxu0 0
  %1587 = vmatprep.subr.bf16.mxu0 0
  %1588 = vmatpush2.bf16.msra.mxu0 0
  %1589 = vmatprep.subr.bf16.mxu0 0
  %1590 = vmatpush2.bf16.msra.mxu0 0
  %1591 = vmatprep.mubr.bf16.mxu0 0
  %1592 = vmatmul.mubr.bf16.gmra.mxu0 %v1557
  %v1593 = vpop.f32.mrf.mxu0
  %v1594 = vadd.f32 %v1530, %v1593
  %v1595 = vpop.f32.mrf.mxu0
  %v1596 = vpop.f32.mrf.mxu0
  %v1597 = vpop.f32.mrf.mxu0
  %1598 = vdwg.mxu0
  %v1599 = vtanh.pop %v1594
  %s1600 = scalar_lea.vmem %s61, 16
  %v1601 = vld [vmem:[%s1600] sm:$0xf]
  %v1602 = vld [vmem:[%s1600 + $0x4] sm:$0xf]
  %v1603 = vld [vmem:[%s1600 + $0x8] sm:$0xf]
  %v1604 = vld [vmem:[%s1600 + $0xc] sm:$0xf]
  %v1605 = vpack.c.bf16 %v1599, %v1599
  %s1606 = scalar_lea.vmem %s63, 1
  %v1607 = vld [vmem:[%s1606] sm:$0x1]
  %v1609 = vlaneseq
  %v1610 = vshrl.u32 %v1609, 7
  %v1611 = vsub.s32 0, %v1610
  %v1612 = vrot.slane %v1607, %v1611
  %v1618 = vunpack.c.l.b16 %v1601
  %v1619 = vunpack.c.l.b16 %v1602
  %v1620 = vunpack.c.l.b16 %v1603
  %v1621 = vunpack.c.l.b16 %v1604
  %v1622 = vpack.c.b16 %v1619, %v1618
  %v1623 = vpack.c.b16 %v1621, %v1620
  %v1627 = vsel %vm158, %v1605, 0
  %1629 = vmatprep.subr.bf16.mxu0 0
  %1630 = vmatpush1.bf16.msra.mxu0 0
  %1631 = vmatprep.subr.bf16.mxu0 0
  %1632 = vmatpush1.bf16.msra.mxu0 0
  %1633 = vmatprep.subr.bf16.mxu0 0
  %1634 = vmatpush1.bf16.msra.mxu0 0
  %1635 = vmatprep.subr.bf16.mxu0 0
  %1636 = vmatpush1.bf16.msra.mxu0 0
  %1637 = vmatprep.subr.bf16.mxu0 0
  %1638 = vmatpush1.bf16.msra.mxu0 0
  %1639 = vmatprep.subr.bf16.mxu0 0
  %1640 = vmatpush1.bf16.msra.mxu0 0
  %1641 = vmatprep.subr.bf16.mxu0 0
  %1642 = vmatpush1.bf16.msra.mxu0 %v1623
  %1643 = vmatprep.subr.bf16.mxu0 0
  %1644 = vmatpush1.bf16.msra.mxu0 %v1622
  %1645 = vmatprep.subr.bf16.mxu0 0
  %1646 = vmatpush2.bf16.msra.mxu0 0
  %1647 = vmatprep.subr.bf16.mxu0 0
  %1648 = vmatpush2.bf16.msra.mxu0 0
  %1649 = vmatprep.subr.bf16.mxu0 0
  %1650 = vmatpush2.bf16.msra.mxu0 0
  %1651 = vmatprep.subr.bf16.mxu0 0
  %1652 = vmatpush2.bf16.msra.mxu0 0
  %1653 = vmatprep.subr.bf16.mxu0 0
  %1654 = vmatpush2.bf16.msra.mxu0 0
  %1655 = vmatprep.subr.bf16.mxu0 0
  %1656 = vmatpush2.bf16.msra.mxu0 0
  %1657 = vmatprep.subr.bf16.mxu0 0
  %1658 = vmatpush2.bf16.msra.mxu0 0
  %1659 = vmatprep.subr.bf16.mxu0 0
  %1660 = vmatpush2.bf16.msra.mxu0 0
  %1661 = vmatprep.mubr.bf16.mxu0 0
  %1662 = vmatmul.mubr.bf16.gmra.mxu0 %v1627
  %v1663 = vpop.f32.mrf.mxu0
  %v1664 = vadd.f32 %v1612, %v1663
  %v1665 = vpop.f32.mrf.mxu0
  %v1666 = vpop.f32.mrf.mxu0
  %v1667 = vpop.f32.mrf.mxu0
  %1668 = vdwg.mxu0
  %v1669 = vpack.c.bf16 %v1664, %v1664
  %v1671 = vsel %vm168, %v1669, 0
  %1673 = vmatprep.subr.bf16.mxu0 0
  %1674 = vmatpush1.bf16.msra.mxu0 0
  %1675 = vmatprep.subr.bf16.mxu0 0
  %1676 = vmatpush1.bf16.msra.mxu0 0
  %1677 = vmatprep.subr.bf16.mxu0 0
  %1678 = vmatpush1.bf16.msra.mxu0 0
  %1679 = vmatprep.subr.bf16.mxu0 0
  %1680 = vmatpush1.bf16.msra.mxu0 0
  %1681 = vmatprep.subr.bf16.mxu0 0
  %1682 = vmatpush1.bf16.msra.mxu0 0
  %1683 = vmatprep.subr.bf16.mxu0 0
  %1684 = vmatpush1.bf16.msra.mxu0 0
  %1685 = vmatprep.subr.bf16.mxu0 0
  %1686 = vmatpush1.bf16.msra.mxu0 0
  %1687 = vmatprep.subr.bf16.mxu0 0
  %1688 = vmatpush1.bf16.msra.mxu0 %v1671
  %1689 = vmatprep.subr.bf16.mxu0 0
  %1690 = vmatpush2.bf16.msra.mxu0 0
  %1691 = vmatprep.subr.bf16.mxu0 0
  %1692 = vmatpush2.bf16.msra.mxu0 0
  %1693 = vmatprep.subr.bf16.mxu0 0
  %1694 = vmatpush2.bf16.msra.mxu0 0
  %1695 = vmatprep.subr.bf16.mxu0 0
  %1696 = vmatpush2.bf16.msra.mxu0 0
  %1697 = vmatprep.subr.bf16.mxu0 0
  %1698 = vmatpush2.bf16.msra.mxu0 0
  %1699 = vmatprep.subr.bf16.mxu0 0
  %1700 = vmatpush2.bf16.msra.mxu0 0
  %1701 = vmatprep.subr.bf16.mxu0 0
  %1702 = vmatpush2.bf16.msra.mxu0 0
  %1703 = vmatprep.subr.bf16.mxu0 0
  %1704 = vmatpush2.bf16.msra.mxu0 0
  %1705 = vmatprep.mubr.bf16.mxu0 0
  %1706 = vmatmul.mubr.bf16.gmra.mxu0 %v166
  %v1707 = vpop.f32.mrf.mxu0
  %v1708 = vadd.f32 0.0, %v1707
  %v1709 = vpop.f32.mrf.mxu0
  %v1710 = vpop.f32.mrf.mxu0
  %v1711 = vpop.f32.mrf.mxu0
  %1712 = vdwg.mxu0
  %1713 = vst.msk [vmem:[%s67 + $0x4] sm:$0x3] %vm1052, %v1708
  %1714 = vrot.lane.b32.xlu0 %v144, 32
  %v1715 = vpop.permute.xlu0 %1714
  %v1717 = vsel %vm158, %v146, %v1715
  %s1718 = scalar_lea.vmem %s57, 64
  %v1719 = vld [vmem:[%s1718] sm:$0xf]
  %v1720 = vld [vmem:[%s1718 + $0x4] sm:$0xf]
  %v1721 = vld [vmem:[%s1718 + $0x8] sm:$0xf]
  %v1722 = vld [vmem:[%s1718 + $0xc] sm:$0xf]
  %v1723 = vld [vmem:[%s1718 + $0x10] sm:$0xf]
  %v1724 = vld [vmem:[%s1718 + $0x14] sm:$0xf]
  %v1725 = vld [vmem:[%s1718 + $0x18] sm:$0xf]
  %v1726 = vld [vmem:[%s1718 + $0x1c] sm:$0xf]
  %v1727 = vpack.c.bf16 %v1717, %v1717
  %s1728 = scalar_lea.vmem %s59, 2
  %v1729 = vld [vmem:[%s1728] sm:$0x1]
  %v1731 = vlaneseq
  %v1732 = vshrl.u32 %v1731, 7
  %v1733 = vsub.s32 0, %v1732
  %v1734 = vrot.slane %v1729, %v1733
  %v1744 = vunpack.c.l.b16 %v1719
  %v1745 = vunpack.c.l.b16 %v1720
  %v1746 = vunpack.c.l.b16 %v1721
  %v1747 = vunpack.c.l.b16 %v1722
  %v1748 = vunpack.c.l.b16 %v1723
  %v1749 = vunpack.c.l.b16 %v1724
  %v1750 = vunpack.c.l.b16 %v1725
  %v1751 = vunpack.c.l.b16 %v1726
  %v1752 = vpack.c.b16 %v1745, %v1744
  %v1753 = vpack.c.b16 %v1747, %v1746
  %v1754 = vpack.c.b16 %v1749, %v1748
  %v1755 = vpack.c.b16 %v1751, %v1750
  %v1761 = vsel %vm160, %v1727, 0
  %1763 = vmatprep.subr.bf16.mxu0 0
  %1764 = vmatpush1.bf16.msra.mxu0 0
  %1765 = vmatprep.subr.bf16.mxu0 0
  %1766 = vmatpush1.bf16.msra.mxu0 0
  %1767 = vmatprep.subr.bf16.mxu0 0
  %1768 = vmatpush1.bf16.msra.mxu0 0
  %1769 = vmatprep.subr.bf16.mxu0 0
  %1770 = vmatpush1.bf16.msra.mxu0 0
  %1771 = vmatprep.subr.bf16.mxu0 0
  %1772 = vmatpush1.bf16.msra.mxu0 %v1755
  %1773 = vmatprep.subr.bf16.mxu0 0
  %1774 = vmatpush1.bf16.msra.mxu0 %v1754
  %1775 = vmatprep.subr.bf16.mxu0 0
  %1776 = vmatpush1.bf16.msra.mxu0 %v1753
  %1777 = vmatprep.subr.bf16.mxu0 0
  %1778 = vmatpush1.bf16.msra.mxu0 %v1752
  %1779 = vmatprep.subr.bf16.mxu0 0
  %1780 = vmatpush2.bf16.msra.mxu0 0
  %1781 = vmatprep.subr.bf16.mxu0 0
  %1782 = vmatpush2.bf16.msra.mxu0 0
  %1783 = vmatprep.subr.bf16.mxu0 0
  %1784 = vmatpush2.bf16.msra.mxu0 0
  %1785 = vmatprep.subr.bf16.mxu0 0
  %1786 = vmatpush2.bf16.msra.mxu0 0
  %1787 = vmatprep.subr.bf16.mxu0 0
  %1788 = vmatpush2.bf16.msra.mxu0 0
  %1789 = vmatprep.subr.bf16.mxu0 0
  %1790 = vmatpush2.bf16.msra.mxu0 0
  %1791 = vmatprep.subr.bf16.mxu0 0
  %1792 = vmatpush2.bf16.msra.mxu0 0
  %1793 = vmatprep.subr.bf16.mxu0 0
  %1794 = vmatpush2.bf16.msra.mxu0 0
  %1795 = vmatprep.mubr.bf16.mxu0 0
  %1796 = vmatmul.mubr.bf16.gmra.mxu0 %v1761
  %v1797 = vpop.f32.mrf.mxu0
  %v1798 = vadd.f32 %v1734, %v1797
  %v1799 = vpop.f32.mrf.mxu0
  %v1800 = vpop.f32.mrf.mxu0
  %v1801 = vpop.f32.mrf.mxu0
  %1802 = vdwg.mxu0
  %v1803 = vtanh.pop %v1798
  %s1804 = scalar_lea.vmem %s61, 32
  %v1805 = vld [vmem:[%s1804] sm:$0xf]
  %v1806 = vld [vmem:[%s1804 + $0x4] sm:$0xf]
  %v1807 = vld [vmem:[%s1804 + $0x8] sm:$0xf]
  %v1808 = vld [vmem:[%s1804 + $0xc] sm:$0xf]
  %v1809 = vpack.c.bf16 %v1803, %v1803
  %s1810 = scalar_lea.vmem %s63, 2
  %v1811 = vld [vmem:[%s1810] sm:$0x1]
  %v1813 = vlaneseq
  %v1814 = vshrl.u32 %v1813, 7
  %v1815 = vsub.s32 0, %v1814
  %v1816 = vrot.slane %v1811, %v1815
  %v1822 = vunpack.c.l.b16 %v1805
  %v1823 = vunpack.c.l.b16 %v1806
  %v1824 = vunpack.c.l.b16 %v1807
  %v1825 = vunpack.c.l.b16 %v1808
  %v1826 = vpack.c.b16 %v1823, %v1822
  %v1827 = vpack.c.b16 %v1825, %v1824
  %v1831 = vsel %vm158, %v1809, 0
  %1833 = vmatprep.subr.bf16.mxu0 0
  %1834 = vmatpush1.bf16.msra.mxu0 0
  %1835 = vmatprep.subr.bf16.mxu0 0
  %1836 = vmatpush1.bf16.msra.mxu0 0
  %1837 = vmatprep.subr.bf16.mxu0 0
  %1838 = vmatpush1.bf16.msra.mxu0 0
  %1839 = vmatprep.subr.bf16.mxu0 0
  %1840 = vmatpush1.bf16.msra.mxu0 0
  %1841 = vmatprep.subr.bf16.mxu0 0
  %1842 = vmatpush1.bf16.msra.mxu0 0
  %1843 = vmatprep.subr.bf16.mxu0 0
  %1844 = vmatpush1.bf16.msra.mxu0 0
  %1845 = vmatprep.subr.bf16.mxu0 0
  %1846 = vmatpush1.bf16.msra.mxu0 %v1827
  %1847 = vmatprep.subr.bf16.mxu0 0
  %1848 = vmatpush1.bf16.msra.mxu0 %v1826
  %1849 = vmatprep.subr.bf16.mxu0 0
  %1850 = vmatpush2.bf16.msra.mxu0 0
  %1851 = vmatprep.subr.bf16.mxu0 0
  %1852 = vmatpush2.bf16.msra.mxu0 0
  %1853 = vmatprep.subr.bf16.mxu0 0
  %1854 = vmatpush2.bf16.msra.mxu0 0
  %1855 = vmatprep.subr.bf16.mxu0 0
  %1856 = vmatpush2.bf16.msra.mxu0 0
  %1857 = vmatprep.subr.bf16.mxu0 0
  %1858 = vmatpush2.bf16.msra.mxu0 0
  %1859 = vmatprep.subr.bf16.mxu0 0
  %1860 = vmatpush2.bf16.msra.mxu0 0
  %1861 = vmatprep.subr.bf16.mxu0 0
  %1862 = vmatpush2.bf16.msra.mxu0 0
  %1863 = vmatprep.subr.bf16.mxu0 0
  %1864 = vmatpush2.bf16.msra.mxu0 0
  %1865 = vmatprep.mubr.bf16.mxu0 0
  %1866 = vmatmul.mubr.bf16.gmra.mxu0 %v1831
  %v1867 = vpop.f32.mrf.mxu0
  %v1868 = vadd.f32 %v1816, %v1867
  %v1869 = vpop.f32.mrf.mxu0
  %v1870 = vpop.f32.mrf.mxu0
  %v1871 = vpop.f32.mrf.mxu0
  %1872 = vdwg.mxu0
  %v1873 = vpack.c.bf16 %v1868, %v1868
  %v1875 = vsel %vm168, %v1873, 0
  %1877 = vmatprep.subr.bf16.mxu0 0
  %1878 = vmatpush1.bf16.msra.mxu0 0
  %1879 = vmatprep.subr.bf16.mxu0 0
  %1880 = vmatpush1.bf16.msra.mxu0 0
  %1881 = vmatprep.subr.bf16.mxu0 0
  %1882 = vmatpush1.bf16.msra.mxu0 0
  %1883 = vmatprep.subr.bf16.mxu0 0
  %1884 = vmatpush1.bf16.msra.mxu0 0
  %1885 = vmatprep.subr.bf16.mxu0 0
  %1886 = vmatpush1.bf16.msra.mxu0 0
  %1887 = vmatprep.subr.bf16.mxu0 0
  %1888 = vmatpush1.bf16.msra.mxu0 0
  %1889 = vmatprep.subr.bf16.mxu0 0
  %1890 = vmatpush1.bf16.msra.mxu0 0
  %1891 = vmatprep.subr.bf16.mxu0 0
  %1892 = vmatpush1.bf16.msra.mxu0 %v1875
  %1893 = vmatprep.subr.bf16.mxu0 0
  %1894 = vmatpush2.bf16.msra.mxu0 0
  %1895 = vmatprep.subr.bf16.mxu0 0
  %1896 = vmatpush2.bf16.msra.mxu0 0
  %1897 = vmatprep.subr.bf16.mxu0 0
  %1898 = vmatpush2.bf16.msra.mxu0 0
  %1899 = vmatprep.subr.bf16.mxu0 0
  %1900 = vmatpush2.bf16.msra.mxu0 0
  %1901 = vmatprep.subr.bf16.mxu0 0
  %1902 = vmatpush2.bf16.msra.mxu0 0
  %1903 = vmatprep.subr.bf16.mxu0 0
  %1904 = vmatpush2.bf16.msra.mxu0 0
  %1905 = vmatprep.subr.bf16.mxu0 0
  %1906 = vmatpush2.bf16.msra.mxu0 0
  %1907 = vmatprep.subr.bf16.mxu0 0
  %1908 = vmatpush2.bf16.msra.mxu0 0
  %1909 = vmatprep.mubr.bf16.mxu0 0
  %1910 = vmatmul.mubr.bf16.gmra.mxu0 %v166
  %v1911 = vpop.f32.mrf.mxu0
  %v1912 = vadd.f32 0.0, %v1911
  %v1913 = vpop.f32.mrf.mxu0
  %v1914 = vpop.f32.mrf.mxu0
  %v1915 = vpop.f32.mrf.mxu0
  %1916 = vdwg.mxu0
  %1917 = vst.msk [vmem:[%s67 + $0x6] sm:$0x3] %vm1052, %v1912
  %vm1918 = vcmask 1024
  %1919 = vst.msk [vmem:[%s65] sm:$0x3] %vm1918, %v443
  %1920 = vst.msk [vmem:[%s65 + $0x2] sm:$0x3] %vm1918, %v1306
  // Predicated region
  $region130: #{fwd.9} parent=0 // pred_check
    _
  $region131: #{fwd.9} parent=0 // pred_check_branch
    %1922 = sbr.rel (0) target = $region133
  $region132: #{fwd.9} parent=0 // pred_region
    _
  $region133: #{fwd.9} parent=0 // pred_fallthru
    _
  // Predicated region
  $region134: #{fwd.9} parent=0 // pred_check
    _
  $region135: #{fwd.9} parent=0 // pred_check_branch
    %1924 = sbr.rel (0) target = $region137
  $region136: #{fwd.9} parent=0 // pred_region
    _
  $region137: #{fwd.9} parent=0 // pred_fallthru
    _
  // Predicated region
  $region138: #{fwd.9} parent=0 // pred_check
    _
  $region139: #{fwd.9} parent=0 // pred_check_branch
    %1926 = sbr.rel (0) target = $region141
  $region140: #{fwd.9} parent=0 // pred_region
    _
  $region141: #{fwd.9} parent=0 // pred_fallthru
    _
  // Predicated region
  $region142: #{fwd.9} parent=0 // pred_check
    _
  $region143: #{fwd.9} parent=0 // pred_check_branch
    %1928 = sbr.rel (0) target = $region145
  $region144: #{fwd.9} parent=0 // pred_region
    _
  $region145: #{fwd.9} parent=0 // pred_fallthru
    _

</llo_original>
